<compile_context>
chip_gen: v7x
topology: tpu7x:2x2x1
jax: 0.10.0
libtpu: 0.0.40
codegen_flags: <defaults>
</compile_context>

<pallas_src>
import functools

import jax
import jax.numpy as jnp
from jax import lax
from jax.experimental import pallas as pl
from jax.experimental.pallas import tpu as pltpu

_BN_EPS = 1e-5
_LANE = 128
_PADL = 8          # sublane-aligned left margin in the halo scratch
_ACT_DTYPE = jnp.bfloat16   # inter-stage activation storage dtype


def _rup(v, m):
    return ((v + m - 1) // m) * m


def _pad_axis(x, size, axis):
    if x.shape[axis] == size:
        return x
    cfg = [(0, 0)] * x.ndim
    cfg[axis] = (0, size - x.shape[axis])
    return jnp.pad(x, cfg)


def _vmem_capacity():
    """Per-generation VMEM capacity (bytes), with a conservative fallback."""
    try:
        cap = int(pltpu.get_tpu_info().vmem_capacity_bytes)
        if cap > 0:
            return cap
    except Exception:
        pass
    return 64 * 1024 * 1024   # v7x per-TensorCore (smallest of v5e/v6e/v7x)


def _vmem_budget(need_bytes, what):
    cap = _vmem_capacity()
    usable = (cap * 13) // 16          # ~81%: headroom for Mosaic scratch/spills
    if need_bytes > usable:
        raise ValueError(
            f"{what}: needs ~{need_bytes} B of VMEM but only {usable} B usable "
            f"(capacity {cap} B). Retile (add an H-row grid axis) for this shape.")
    return int(usable)


# ---------------------------------------------------------------------------
# fused  (maxpool | prev-BN+ReLU)  ->  dilated 3x3 conv  ->  (pre-BN out, stats)
# ---------------------------------------------------------------------------
def _conv_kernel(x_ref, scale_ref, shift_ref, w_ref, b_ref,      # inputs
                 y_ref, stats_ref,                               # outputs
                 pad_ref,                                        # VMEM scratch
                 *, dil, out_h, out_w, cin_p, cout_p, pool_input, apply_bn):
    # ---- input read, fused with the previous stage -------------------------
    if pool_input:
        # x block: (1, H, 2, W, 2*Cin) -- the 2x2 pool window folded into a
        # row-parity slab dim and the lane dim (col parity * C).
        xall = x_ref[0].astype(jnp.float32)                       # (H,2,W,2C)
        xm = jnp.maximum(xall[:, 0], xall[:, 1])                  # (H,W,2C)
        x = jnp.maximum(xm[:, :, :cin_p], xm[:, :, cin_p:])       # (H,W,C)
    else:
        x = x_ref[0].astype(jnp.float32)                          # (H,W,C)
    if apply_bn:
        sc = scale_ref[...].reshape(1, 1, cin_p)
        sh = shift_ref[...].reshape(1, 1, cin_p)
        x = jnp.maximum(x * sc + sh, 0.0)        # previous conv's BN + ReLU

    # ---- zero-haloed activation scratch (halo width == dilation) -----------
    # Only the halo strips are (re)zeroed each step; the interior is fully
    # overwritten below, so no full-scratch clear is needed.
    wpad = out_w + 2 * _PADL
    zrow = jnp.zeros((dil, wpad, cin_p), jnp.float32)
    zcol = jnp.zeros((out_h, _PADL, cin_p), jnp.float32)
    pad_ref[0:dil, :, :] = zrow                                   # top rows
    pad_ref[dil + out_h:2 * dil + out_h, :, :] = zrow             # bottom rows
    pad_ref[dil:dil + out_h, 0:_PADL, :] = zcol                   # left band
    pad_ref[dil:dil + out_h, _PADL + out_w:_PADL + out_w + _PADL, :] = zcol
    # Interior at sublane offset _PADL (=8) -> vreg-aligned store.
    pad_ref[dil:dil + out_h, _PADL:_PADL + out_w, :] = x

    # ---- 9 per-tap MXU matmuls accumulating in f32 --------------------------
    rows = out_h * out_w
    acc = jnp.zeros((rows, cout_p), jnp.float32)
    for kh in range(3):
        for kw in range(3):
            t = kh * 3 + kw
            r0 = kh * dil
            c0 = _PADL - dil + kw * dil
            win = pad_ref[r0:r0 + out_h, c0:c0 + out_w, :]        # (H,W,C)
            acc = acc + jnp.dot(win.reshape(rows, cin_p), w_ref[t],
                                preferred_element_type=jnp.float32)
    acc = acc + b_ref[...]                                        # conv bias

    # ---- per-sample partial BN statistics (sum | sum of squares) -----------
    ssum = jnp.sum(acc, axis=0, keepdims=True)                    # (1, Cout)
    ssq = jnp.sum(acc * acc, axis=0, keepdims=True)               # (1, Cout)
    stats_ref[0] = jnp.concatenate([ssum, ssq], axis=1)           # (1, 2*Cout)

    # ---- pre-BN conv output (BN+ReLU is applied by the NEXT kernel) ---------
    y_ref[0] = acc.reshape(out_h, out_w, cout_p).astype(y_ref.dtype)


def _conv_stage(x, scale, shift, w9, bias, *, dilation, pool_input, apply_bn,
                out_dtype=_ACT_DTYPE):
    if pool_input:
        n, out_h, _, out_w, two_cin = x.shape
        cin_p = two_cin // 2
        x_spec = pl.BlockSpec((1, out_h, 2, out_w, two_cin),
                              lambda i: (i, 0, 0, 0, 0))
        x_block = out_h * 2 * out_w * two_cin * x.dtype.itemsize
    else:
        n, out_h, out_w, cin_p = x.shape
        x_spec = pl.BlockSpec((1, out_h, out_w, cin_p),
                              lambda i: (i, 0, 0, 0))
        x_block = out_h * out_w * cin_p * x.dtype.itemsize

    cout_p = w9.shape[-1]
    d = dilation
    rows = out_h * out_w

    kernel = functools.partial(
        _conv_kernel, dil=d, out_h=out_h, out_w=out_w,
        cin_p=cin_p, cout_p=cout_p, pool_input=pool_input, apply_bn=apply_bn)

    # ---- explicit VMEM budget (constants counted once, headroom kept) ------
    y_bytes = rows * cout_p * jnp.dtype(out_dtype).itemsize
    stats_bytes = 2 * cout_p * 4
    const_bytes = (2 * cin_p + 9 * cin_p * cout_p + cout_p) * 4
    pad_bytes = (out_h + 2 * d) * (out_w + 2 * _PADL) * cin_p * 4
    tmp_bytes = 8 * rows * max(cin_p, cout_p) * 4      # traced f32 temporaries
    need = (2 * (x_block + y_bytes + stats_bytes)      # double-buffered tiles
            + const_bytes + pad_bytes + tmp_bytes + (2 << 20))
    vmem_limit = _vmem_budget(need, f"conv stage (dil={d})")

    return pl.pallas_call(
        kernel,
        out_shape=(jax.ShapeDtypeStruct((n, out_h, out_w, cout_p), out_dtype),
                   jax.ShapeDtypeStruct((n, 1, 2 * cout_p), jnp.float32)),
        grid_spec=pltpu.PrefetchScalarGridSpec(
            num_scalar_prefetch=0,
            grid=(n,),
            in_specs=[x_spec,
                      pl.BlockSpec((1, cin_p), lambda i: (0, 0)),
                      pl.BlockSpec((1, cin_p), lambda i: (0, 0)),
                      pl.BlockSpec((9, cin_p, cout_p), lambda i: (0, 0, 0)),
                      pl.BlockSpec((1, cout_p), lambda i: (0, 0))],
            out_specs=(pl.BlockSpec((1, out_h, out_w, cout_p),
                                    lambda i: (i, 0, 0, 0)),
                       pl.BlockSpec((1, 1, 2 * cout_p), lambda i: (i, 0, 0))),
            scratch_shapes=[
                pltpu.VMEM((out_h + 2 * d, out_w + 2 * _PADL, cin_p),
                           jnp.float32)]),
        compiler_params=pltpu.CompilerParams(
            dimension_semantics=("parallel",),
            vmem_limit_bytes=vmem_limit),
    )(x, scale, shift, w9, bias)


def _bn_scale_shift(stats, gamma_p, beta_p, count, cp):
    # stats: (N, 1, 2*Cp) per-sample (sum | sumsq).  Tiny cross-sample reduce
    # (a few hundred floats), done in plain JAX / f32.
    s = jnp.sum(stats[:, 0, :cp], axis=0)
    sq = jnp.sum(stats[:, 0, cp:], axis=0)
    mean = s / count
    var = jnp.maximum(sq / count - mean * mean, 0.0)   # biased (train-mode) var
    scale = gamma_p * lax.rsqrt(var + _BN_EPS)
    shift = beta_p - mean * scale
    return scale.reshape(1, cp), shift.reshape(1, cp)


# ---------------------------------------------------------------------------
# final pass: conv3's BN + ReLU fused with the SE block (GAP -> FC -> sigmoid)
# ---------------------------------------------------------------------------
def _se_kernel(y_ref, scale_ref, shift_ref, w1_ref, w2_ref, o_ref,
               *, out_h, out_w, cp):
    sc = scale_ref[...].reshape(1, 1, cp)
    sh = shift_ref[...].reshape(1, 1, cp)
    x = jnp.maximum(y_ref[0].astype(jnp.float32) * sc + sh, 0.0)   # BN3 + ReLU
    xf = x.reshape(out_h * out_w, cp)
    gap = jnp.sum(xf, axis=0, keepdims=True) * (1.0 / (out_h * out_w))  # (1,C)
    h1 = jnp.maximum(jnp.dot(gap, w1_ref[...],
                             preferred_element_type=jnp.float32), 0.0)
    s = jax.nn.sigmoid(jnp.dot(h1, w2_ref[...],
                               preferred_element_type=jnp.float32))     # (1,C)
    o_ref[0] = (xf * s).reshape(out_h, out_w, cp).astype(o_ref.dtype)


def _se_stage(y, scale, shift, w1, w2):
    n, out_h, out_w, cp = y.shape
    hid_p = w1.shape[1]
    rows = out_h * out_w
    kernel = functools.partial(_se_kernel, out_h=out_h, out_w=out_w, cp=cp)

    in_bytes = rows * cp * y.dtype.itemsize
    out_bytes = rows * cp * 4
    const_bytes = (2 * cp + 2 * cp * hid_p) * 4
    tmp_bytes = 4 * rows * cp * 4
    need = 2 * (in_bytes + out_bytes) + const_bytes + tmp_bytes + (2 << 20)
    vmem_limit = _vmem_budget(need, "SE stage")

    return pl.pallas_call(
        kernel,
        out_shape=jax.ShapeDtypeStruct((n, out_h, out_w, cp), jnp.float32),
        grid_spec=pltpu.PrefetchScalarGridSpec(
            num_scalar_prefetch=0,
            grid=(n,),
            in_specs=[pl.BlockSpec((1, out_h, out_w, cp),
                                   lambda i: (i, 0, 0, 0)),
                      pl.BlockSpec((1, cp), lambda i: (0, 0)),
                      pl.BlockSpec((1, cp), lambda i: (0, 0)),
                      pl.BlockSpec((cp, hid_p), lambda i: (0, 0)),
                      pl.BlockSpec((hid_p, cp), lambda i: (0, 0))],
            out_specs=pl.BlockSpec((1, out_h, out_w, cp),
                                   lambda i: (i, 0, 0, 0))),
        compiler_params=pltpu.CompilerParams(
            dimension_semantics=("parallel",),
            vmem_limit_bytes=vmem_limit),
    )(y, scale, shift, w1, w2)


# ---------------------------------------------------------------------------
# full forward
# ---------------------------------------------------------------------------
def se_down_forward(x_nchw, params):
    n, cin, hin, win = x_nchw.shape
    mid = params["w1"].shape[-1]
    cout = params["w3"].shape[-1]
    hidden = params["se_w1"].shape[-1]
    out_h, out_w = hin // 2, win // 2

    cin_p = _rup(cin, _LANE)
    cp = _rup(max(mid, cout), _LANE)
    hid_p = _rup(hidden, _LANE)

    # boundary glue: NCHW -> NHWC, lane-dense channel pad, then a *free*
    # (contiguous) reshape exposing the 2x2 pool window for the fused conv1 load.
    x = jnp.transpose(x_nchw, (0, 2, 3, 1)).astype(jnp.float32)
    x = _pad_axis(x, cin_p, 3)
    x = x.reshape(n, out_h, 2, out_w, 2 * cin_p)

    # parameters padded to lane-dense shapes (tiny, once per call)
    def conv_w(w, ci_p, co_p):
        w = _pad_axis(_pad_axis(w, ci_p, 2), co_p, 3)      # (3,3,ci_p,co_p)
        return w.reshape(9, ci_p, co_p)                    # per-tap weight slices

    w1 = conv_w(params["w1"], cin_p, cp)
    w2 = conv_w(params["w2"], cp, cp)
    w3 = conv_w(params["w3"], cp, cp)
    b1 = _pad_axis(params["b1"], cp, 0).reshape(1, cp)
    b2 = _pad_axis(params["b2"], cp, 0).reshape(1, cp)
    b3 = _pad_axis(params["b3"], cp, 0).reshape(1, cp)
    # gamma/beta padded with ZEROS -> padded channels stay exactly zero.
    g1 = _pad_axis(params["g1"], cp, 0)
    g2 = _pad_axis(params["g2"], cp, 0)
    g3 = _pad_axis(params["g3"], cp, 0)
    be1 = _pad_axis(params["be1"], cp, 0)
    be2 = _pad_axis(params["be2"], cp, 0)
    be3 = _pad_axis(params["be3"], cp, 0)
    se_w1 = _pad_axis(_pad_axis(params["se_w1"], cp, 0), hid_p, 1)
    se_w2 = _pad_axis(_pad_axis(params["se_w2"], hid_p, 0), cp, 1)

    count = float(n * out_h * out_w)
    one = jnp.ones((1, cin_p), jnp.float32)
    zero = jnp.zeros((1, cin_p), jnp.float32)

    y1, st1 = _conv_stage(x, one, zero, w1, b1,
                          dilation=1, pool_input=True, apply_bn=False)
    sc1, sh1 = _bn_scale_shift(st1, g1, be1, count, cp)
    y2, st2 = _conv_stage(y1, sc1, sh1, w2, b2,
                          dilation=2, pool_input=False, apply_bn=True)
    sc2, sh2 = _bn_scale_shift(st2, g2, be2, count, cp)
    y3, st3 = _conv_stage(y2, sc2, sh2, w3, b3,
                          dilation=3, pool_input=False, apply_bn=True)
    sc3, sh3 = _bn_scale_shift(st3, g3, be3, count, cp)
    out = _se_stage(y3, sc3, sh3, se_w1, se_w2)            # (N, H, W, cp) f32

    out = out[..., :cout]                                  # drop channel pad
    return jnp.transpose(out, (0, 3, 1, 2))                # NHWC -> NCHW


# ---------------------------------------------------------------------------
# parameter init (matches PyTorch module structure / shapes)
# ---------------------------------------------------------------------------
def init_params(key, in_channels, out_channels):
    mid = out_channels
    ratio = int(0.25 * out_channels)
    hidden = out_channels // ratio
    ks = jax.random.split(key, 8)

    def w_init(k, shape, fan_in):
        return jax.random.normal(k, shape, jnp.float32) / jnp.sqrt(float(fan_in))

    return {
        # conv weights stored HWIO (kh, kw, Cin, Cout)
        "w1": w_init(ks[0], (3, 3, in_channels, mid), 9 * in_channels),
        "b1": w_init(ks[1], (mid,), 9 * in_channels),
        "g1": jnp.ones((mid,), jnp.float32),
        "be1": jnp.zeros((mid,), jnp.float32),
        "w2": w_init(ks[2], (3, 3, mid, mid), 9 * mid),
        "b2": w_init(ks[3], (mid,), 9 * mid),
        "g2": jnp.ones((mid,), jnp.float32),
        "be2": jnp.zeros((mid,), jnp.float32),
        "w3": w_init(ks[4], (3, 3, mid, out_channels), 9 * mid),
        "b3": w_init(ks[5], (out_channels,), 9 * mid),
        "g3": jnp.ones((out_channels,), jnp.float32),
        "be3": jnp.zeros((out_channels,), jnp.float32),
        # SE: Linear(C, C//ratio, bias=False), Linear(C//ratio, C, bias=False)
        "se_w1": w_init(ks[6], (out_channels, hidden), out_channels),
        "se_w2": w_init(ks[7], (hidden, out_channels), hidden),
    }


if __name__ == "__main__":
    key = jax.random.PRNGKey(0)
    kx, kp = jax.random.split(key)

    in_channels, out_channels = 4, 8
    x = jax.random.normal(kx, (2, in_channels, 16, 16), jnp.float32)
    params = init_params(kp, in_channels, out_channels)

    out = jax.jit(se_down_forward)(x, params)
    out = jax.block_until_ready(out)

    assert out.shape == (2, out_channels, 8, 8), out.shape
    assert bool(jnp.all(jnp.isfinite(out)))
    print("KERNEL_OK")
</pallas_src>

<mosaic_0001>
module attributes {stable_mosaic.version = 11 : i64} {
  func.func @_conv_kernel(%arg0: i32, %arg1: memref<1x8x2x8x256xf32, #tpu.memory_space<vmem>>, %arg2: memref<1x128xf32, #tpu.memory_space<vmem>>, %arg3: memref<1x128xf32, #tpu.memory_space<vmem>>, %arg4: memref<9x128x128xf32, #tpu.memory_space<vmem>>, %arg5: memref<1x128xf32, #tpu.memory_space<vmem>>, %arg6: memref<1x8x8x128xbf16, #tpu.memory_space<vmem>>, %arg7: memref<1x1x256xf32, #tpu.memory_space<vmem>>, %arg8: memref<10x24x128xf32, #tpu.memory_space<vmem>>) attributes {dimension_semantics = [#tpu.dimension_semantics<parallel>], iteration_bounds = array<i64: 2>, scalar_prefetch = 0 : i64, scratch_operands = 1 : i64, tpu.core_type = #tpu.core_type<tc>, window_params = [{transform_indices = @transform_0, window_bounds = array<i64: 1, 8, 2, 8, 256>}, {pipeline_mode = #tpu.pipeline_mode<synchronous>, transform_indices = @transform_1, window_bounds = array<i64: 1, 128>}, {pipeline_mode = #tpu.pipeline_mode<synchronous>, transform_indices = @transform_2, window_bounds = array<i64: 1, 128>}, {pipeline_mode = #tpu.pipeline_mode<synchronous>, transform_indices = @transform_3, window_bounds = array<i64: 9, 128, 128>}, {pipeline_mode = #tpu.pipeline_mode<synchronous>, transform_indices = @transform_4, window_bounds = array<i64: 1, 128>}, {transform_indices = @transform_5, window_bounds = array<i64: 1, 8, 8, 128>}, {transform_indices = @transform_6, window_bounds = array<i64: 1, 1, 256>}]} {
    %c0 = arith.constant 0 : index
    %c0_0 = arith.constant 0 : index
    %c0_1 = arith.constant 0 : index
    %c0_2 = arith.constant 0 : index
    %c0_3 = arith.constant 0 : index
    %0 = vector.load %arg1[%c0, %c0_0, %c0_1, %c0_2, %c0_3] : memref<1x8x2x8x256xf32, #tpu.memory_space<vmem>>, vector<1x8x2x8x256xf32>
    %1 = vector.shape_cast %0 : vector<1x8x2x8x256xf32> to vector<8x2x8x256xf32>
    %2 = vector.extract_strided_slice %1 {offsets = [0, 0, 0, 0], sizes = [8, 1, 8, 256], strides = [1, 1, 1, 1]} : vector<8x2x8x256xf32> to vector<8x1x8x256xf32>
    %3 = vector.shape_cast %2 : vector<8x1x8x256xf32> to vector<8x8x256xf32>
    %4 = vector.extract_strided_slice %1 {offsets = [0, 1, 0, 0], sizes = [8, 1, 8, 256], strides = [1, 1, 1, 1]} : vector<8x2x8x256xf32> to vector<8x1x8x256xf32>
    %5 = vector.shape_cast %4 : vector<8x1x8x256xf32> to vector<8x8x256xf32>
    %6 = arith.maximumf %3, %5 : vector<8x8x256xf32>
    %7 = vector.extract_strided_slice %6 {offsets = [0, 0, 0], sizes = [8, 8, 128], strides = [1, 1, 1]} : vector<8x8x256xf32> to vector<8x8x128xf32>
    %8 = vector.extract_strided_slice %6 {offsets = [0, 0, 128], sizes = [8, 8, 128], strides = [1, 1, 1]} : vector<8x8x256xf32> to vector<8x8x128xf32>
    %9 = arith.maximumf %7, %8 : vector<8x8x128xf32>
    %cst = arith.constant 0.000000e+00 : f32
    %10 = vector.broadcast %cst : f32 to vector<1x24x128xf32>
    %cst_4 = arith.constant 0.000000e+00 : f32
    %11 = vector.broadcast %cst_4 : f32 to vector<8x8x128xf32>
    %c0_5 = arith.constant 0 : index
    %c0_6 = arith.constant 0 : index
    %c0_7 = arith.constant 0 : index
    %12 = vector.load %arg8[%c0_5, %c0_6, %c0_7] : memref<10x24x128xf32, #tpu.memory_space<vmem>>, vector<1x24x128xf32>
    tpu.vector_store %arg8[%c0_5, %c0_6, %c0_7], %10 {strides = array<i32>} : memref<10x24x128xf32, #tpu.memory_space<vmem>>, vector<1x24x128xf32>,
    %c9 = arith.constant 9 : index
    %c0_8 = arith.constant 0 : index
    %c0_9 = arith.constant 0 : index
    %13 = vector.load %arg8[%c9, %c0_8, %c0_9] : memref<10x24x128xf32, #tpu.memory_space<vmem>>, vector<1x24x128xf32>
    tpu.vector_store %arg8[%c9, %c0_8, %c0_9], %10 {strides = array<i32>} : memref<10x24x128xf32, #tpu.memory_space<vmem>>, vector<1x24x128xf32>,
    %c1 = arith.constant 1 : index
    %c0_10 = arith.constant 0 : index
    %c0_11 = arith.constant 0 : index
    %14 = vector.load %arg8[%c1, %c0_10, %c0_11] : memref<10x24x128xf32, #tpu.memory_space<vmem>>, vector<8x8x128xf32>
    tpu.vector_store %arg8[%c1, %c0_10, %c0_11], %11 {strides = array<i32>} : memref<10x24x128xf32, #tpu.memory_space<vmem>>, vector<8x8x128xf32>,
    %c1_12 = arith.constant 1 : index
    %c16 = arith.constant 16 : index
    %c0_13 = arith.constant 0 : index
    %15 = vector.load %arg8[%c1_12, %c16, %c0_13] : memref<10x24x128xf32, #tpu.memory_space<vmem>>, vector<8x8x128xf32>
    tpu.vector_store %arg8[%c1_12, %c16, %c0_13], %11 {strides = array<i32>} : memref<10x24x128xf32, #tpu.memory_space<vmem>>, vector<8x8x128xf32>,
    %c1_14 = arith.constant 1 : index
    %c8 = arith.constant 8 : index
    %c0_15 = arith.constant 0 : index
    %16 = vector.load %arg8[%c1_14, %c8, %c0_15] : memref<10x24x128xf32, #tpu.memory_space<vmem>>, vector<8x8x128xf32>
    tpu.vector_store %arg8[%c1_14, %c8, %c0_15], %9 {strides = array<i32>} : memref<10x24x128xf32, #tpu.memory_space<vmem>>, vector<8x8x128xf32>,
    %cst_16 = arith.constant 0.000000e+00 : f32
    %17 = vector.broadcast %cst_16 : f32 to vector<64x128xf32>
    %c0_17 = arith.constant 0 : index
    %c7 = arith.constant 7 : index
    %c0_18 = arith.constant 0 : index
    %18 = vector.load %arg8[%c0_17, %c7, %c0_18] : memref<10x24x128xf32, #tpu.memory_space<vmem>>, vector<8x8x128xf32>
    %19 = vector.shape_cast %18 : vector<8x8x128xf32> to vector<64x128xf32>
    %c0_19 = arith.constant 0 : index
    %c0_20 = arith.constant 0 : index
    %c0_21 = arith.constant 0 : index
    %20 = vector.load %arg4[%c0_19, %c0_20, %c0_21] : memref<9x128x128xf32, #tpu.memory_space<vmem>>, vector<1x128x128xf32>
    %21 = vector.shape_cast %20 : vector<1x128x128xf32> to vector<128x128xf32>
    %cst_22 = arith.constant dense<0.000000e+00> : vector<64x128xf32>
    %22 = tpu.matmul %19, %21, %cst_22 {dimension_numbers = #tpu.dot_dimension_numbers<[1], [0], [0], [1], [0, 0, 1, 1], [], []>} : vector<64x128xf32>, vector<128x128xf32>, vector<64x128xf32> -> vector<64x128xf32>
    %23 = arith.addf %17, %22 : vector<64x128xf32>
    %c0_23 = arith.constant 0 : index
    %c8_24 = arith.constant 8 : index
    %c0_25 = arith.constant 0 : index
    %24 = vector.load %arg8[%c0_23, %c8_24, %c0_25] : memref<10x24x128xf32, #tpu.memory_space<vmem>>, vector<8x8x128xf32>
    %25 = vector.shape_cast %24 : vector<8x8x128xf32> to vector<64x128xf32>
    %c1_26 = arith.constant 1 : index
    %c0_27 = arith.constant 0 : index
    %c0_28 = arith.constant 0 : index
    %26 = vector.load %arg4[%c1_26, %c0_27, %c0_28] : memref<9x128x128xf32, #tpu.memory_space<vmem>>, vector<1x128x128xf32>
    %27 = vector.shape_cast %26 : vector<1x128x128xf32> to vector<128x128xf32>
    %cst_29 = arith.constant dense<0.000000e+00> : vector<64x128xf32>
    %28 = tpu.matmul %25, %27, %cst_29 {dimension_numbers = #tpu.dot_dimension_numbers<[1], [0], [0], [1], [0, 0, 1, 1], [], []>} : vector<64x128xf32>, vector<128x128xf32>, vector<64x128xf32> -> vector<64x128xf32>
    %29 = arith.addf %23, %28 : vector<64x128xf32>
    %c0_30 = arith.constant 0 : index
    %c9_31 = arith.constant 9 : index
    %c0_32 = arith.constant 0 : index
    %30 = vector.load %arg8[%c0_30, %c9_31, %c0_32] : memref<10x24x128xf32, #tpu.memory_space<vmem>>, vector<8x8x128xf32>
    %31 = vector.shape_cast %30 : vector<8x8x128xf32> to vector<64x128xf32>
    %c2 = arith.constant 2 : index
    %c0_33 = arith.constant 0 : index
    %c0_34 = arith.constant 0 : index
    %32 = vector.load %arg4[%c2, %c0_33, %c0_34] : memref<9x128x128xf32, #tpu.memory_space<vmem>>, vector<1x128x128xf32>
    %33 = vector.shape_cast %32 : vector<1x128x128xf32> to vector<128x128xf32>
    %cst_35 = arith.constant dense<0.000000e+00> : vector<64x128xf32>
    %34 = tpu.matmul %31, %33, %cst_35 {dimension_numbers = #tpu.dot_dimension_numbers<[1], [0], [0], [1], [0, 0, 1, 1], [], []>} : vector<64x128xf32>, vector<128x128xf32>, vector<64x128xf32> -> vector<64x128xf32>
    %35 = arith.addf %29, %34 : vector<64x128xf32>
    %c1_36 = arith.constant 1 : index
    %c7_37 = arith.constant 7 : index
    %c0_38 = arith.constant 0 : index
    %36 = vector.load %arg8[%c1_36, %c7_37, %c0_38] : memref<10x24x128xf32, #tpu.memory_space<vmem>>, vector<8x8x128xf32>
    %37 = vector.shape_cast %36 : vector<8x8x128xf32> to vector<64x128xf32>
    %c3 = arith.constant 3 : index
    %c0_39 = arith.constant 0 : index
    %c0_40 = arith.constant 0 : index
    %38 = vector.load %arg4[%c3, %c0_39, %c0_40] : memref<9x128x128xf32, #tpu.memory_space<vmem>>, vector<1x128x128xf32>
    %39 = vector.shape_cast %38 : vector<1x128x128xf32> to vector<128x128xf32>
    %cst_41 = arith.constant dense<0.000000e+00> : vector<64x128xf32>
    %40 = tpu.matmul %37, %39, %cst_41 {dimension_numbers = #tpu.dot_dimension_numbers<[1], [0], [0], [1], [0, 0, 1, 1], [], []>} : vector<64x128xf32>, vector<128x128xf32>, vector<64x128xf32> -> vector<64x128xf32>
    %41 = arith.addf %35, %40 : vector<64x128xf32>
    %c1_42 = arith.constant 1 : index
    %c8_43 = arith.constant 8 : index
    %c0_44 = arith.constant 0 : index
    %42 = vector.load %arg8[%c1_42, %c8_43, %c0_44] : memref<10x24x128xf32, #tpu.memory_space<vmem>>, vector<8x8x128xf32>
    %43 = vector.shape_cast %42 : vector<8x8x128xf32> to vector<64x128xf32>
    %c4 = arith.constant 4 : index
    %c0_45 = arith.constant 0 : index
    %c0_46 = arith.constant 0 : index
    %44 = vector.load %arg4[%c4, %c0_45, %c0_46] : memref<9x128x128xf32, #tpu.memory_space<vmem>>, vector<1x128x128xf32>
    %45 = vector.shape_cast %44 : vector<1x128x128xf32> to vector<128x128xf32>
    %cst_47 = arith.constant dense<0.000000e+00> : vector<64x128xf32>
    %46 = tpu.matmul %43, %45, %cst_47 {dimension_numbers = #tpu.dot_dimension_numbers<[1], [0], [0], [1], [0, 0, 1, 1], [], []>} : vector<64x128xf32>, vector<128x128xf32>, vector<64x128xf32> -> vector<64x128xf32>
    %47 = arith.addf %41, %46 : vector<64x128xf32>
    %c1_48 = arith.constant 1 : index
    %c9_49 = arith.constant 9 : index
    %c0_50 = arith.constant 0 : index
    %48 = vector.load %arg8[%c1_48, %c9_49, %c0_50] : memref<10x24x128xf32, #tpu.memory_space<vmem>>, vector<8x8x128xf32>
    %49 = vector.shape_cast %48 : vector<8x8x128xf32> to vector<64x128xf32>
    %c5 = arith.constant 5 : index
    %c0_51 = arith.constant 0 : index
    %c0_52 = arith.constant 0 : index
    %50 = vector.load %arg4[%c5, %c0_51, %c0_52] : memref<9x128x128xf32, #tpu.memory_space<vmem>>, vector<1x128x128xf32>
    %51 = vector.shape_cast %50 : vector<1x128x128xf32> to vector<128x128xf32>
    %cst_53 = arith.constant dense<0.000000e+00> : vector<64x128xf32>
    %52 = tpu.matmul %49, %51, %cst_53 {dimension_numbers = #tpu.dot_dimension_numbers<[1], [0], [0], [1], [0, 0, 1, 1], [], []>} : vector<64x128xf32>, vector<128x128xf32>, vector<64x128xf32> -> vector<64x128xf32>
    %53 = arith.addf %47, %52 : vector<64x128xf32>
    %c2_54 = arith.constant 2 : index
    %c7_55 = arith.constant 7 : index
    %c0_56 = arith.constant 0 : index
    %54 = vector.load %arg8[%c2_54, %c7_55, %c0_56] : memref<10x24x128xf32, #tpu.memory_space<vmem>>, vector<8x8x128xf32>
    %55 = vector.shape_cast %54 : vector<8x8x128xf32> to vector<64x128xf32>
    %c6 = arith.constant 6 : index
    %c0_57 = arith.constant 0 : index
    %c0_58 = arith.constant 0 : index
    %56 = vector.load %arg4[%c6, %c0_57, %c0_58] : memref<9x128x128xf32, #tpu.memory_space<vmem>>, vector<1x128x128xf32>
    %57 = vector.shape_cast %56 : vector<1x128x128xf32> to vector<128x128xf32>
    %cst_59 = arith.constant dense<0.000000e+00> : vector<64x128xf32>
    %58 = tpu.matmul %55, %57, %cst_59 {dimension_numbers = #tpu.dot_dimension_numbers<[1], [0], [0], [1], [0, 0, 1, 1], [], []>} : vector<64x128xf32>, vector<128x128xf32>, vector<64x128xf32> -> vector<64x128xf32>
    %59 = arith.addf %53, %58 : vector<64x128xf32>
    %c2_60 = arith.constant 2 : index
    %c8_61 = arith.constant 8 : index
    %c0_62 = arith.constant 0 : index
    %60 = vector.load %arg8[%c2_60, %c8_61, %c0_62] : memref<10x24x128xf32, #tpu.memory_space<vmem>>, vector<8x8x128xf32>
    %61 = vector.shape_cast %60 : vector<8x8x128xf32> to vector<64x128xf32>
    %c7_63 = arith.constant 7 : index
    %c0_64 = arith.constant 0 : index
    %c0_65 = arith.constant 0 : index
    %62 = vector.load %arg4[%c7_63, %c0_64, %c0_65] : memref<9x128x128xf32, #tpu.memory_space<vmem>>, vector<1x128x128xf32>
    %63 = vector.shape_cast %62 : vector<1x128x128xf32> to vector<128x128xf32>
    %cst_66 = arith.constant dense<0.000000e+00> : vector<64x128xf32>
    %64 = tpu.matmul %61, %63, %cst_66 {dimension_numbers = #tpu.dot_dimension_numbers<[1], [0], [0], [1], [0, 0, 1, 1], [], []>} : vector<64x128xf32>, vector<128x128xf32>, vector<64x128xf32> -> vector<64x128xf32>
    %65 = arith.addf %59, %64 : vector<64x128xf32>
    %c2_67 = arith.constant 2 : index
    %c9_68 = arith.constant 9 : index
    %c0_69 = arith.constant 0 : index
    %66 = vector.load %arg8[%c2_67, %c9_68, %c0_69] : memref<10x24x128xf32, #tpu.memory_space<vmem>>, vector<8x8x128xf32>
    %67 = vector.shape_cast %66 : vector<8x8x128xf32> to vector<64x128xf32>
    %c8_70 = arith.constant 8 : index
    %c0_71 = arith.constant 0 : index
    %c0_72 = arith.constant 0 : index
    %68 = vector.load %arg4[%c8_70, %c0_71, %c0_72] : memref<9x128x128xf32, #tpu.memory_space<vmem>>, vector<1x128x128xf32>
    %69 = vector.shape_cast %68 : vector<1x128x128xf32> to vector<128x128xf32>
    %cst_73 = arith.constant dense<0.000000e+00> : vector<64x128xf32>
    %70 = tpu.matmul %67, %69, %cst_73 {dimension_numbers = #tpu.dot_dimension_numbers<[1], [0], [0], [1], [0, 0, 1, 1], [], []>} : vector<64x128xf32>, vector<128x128xf32>, vector<64x128xf32> -> vector<64x128xf32>
    %71 = arith.addf %65, %70 : vector<64x128xf32>
    %c0_74 = arith.constant 0 : index
    %c0_75 = arith.constant 0 : index
    %72 = vector.load %arg5[%c0_74, %c0_75] : memref<1x128xf32, #tpu.memory_space<vmem>>, vector<1x128xf32>
    %73 = vector.broadcast %72 : vector<1x128xf32> to vector<64x128xf32>
    %74 = arith.addf %71, %73 : vector<64x128xf32>
    %cst_76 = arith.constant dense<0.000000e+00> : vector<128xf32>
    %75 = vector.multi_reduction <add>, %74, %cst_76 [0] : vector<64x128xf32> to vector<128xf32>
    %76 = vector.shape_cast %75 : vector<128xf32> to vector<1x128xf32>
    %77 = arith.mulf %74, %74 : vector<64x128xf32>
    %cst_77 = arith.constant dense<0.000000e+00> : vector<128xf32>
    %78 = vector.multi_reduction <add>, %77, %cst_77 [0] : vector<64x128xf32> to vector<128xf32>
    %79 = vector.shape_cast %78 : vector<128xf32> to vector<1x128xf32>
    %80 = tpu.concatenate %76, %79 in 1 : vector<1x128xf32>, vector<1x128xf32> -> vector<1x256xf32>
    %c0_78 = arith.constant 0 : index
    %c0_79 = arith.constant 0 : index
    %c0_80 = arith.constant 0 : index
    %81 = vector.load %arg7[%c0_78, %c0_79, %c0_80] : memref<1x1x256xf32, #tpu.memory_space<vmem>>, vector<1x1x256xf32>
    %82 = vector.shape_cast %81 : vector<1x1x256xf32> to vector<1x256xf32>
    %83 = vector.shape_cast %80 : vector<1x256xf32> to vector<1x1x256xf32>
    tpu.vector_store %arg7[%c0_78, %c0_79, %c0_80], %83 {strides = array<i32>} : memref<1x1x256xf32, #tpu.memory_space<vmem>>, vector<1x1x256xf32>,
    %84 = vector.shape_cast %74 : vector<64x128xf32> to vector<8x8x128xf32>
    %85 = arith.truncf %84 : vector<8x8x128xf32> to vector<8x8x128xbf16>
    %c0_81 = arith.constant 0 : index
    %c0_82 = arith.constant 0 : index
    %c0_83 = arith.constant 0 : index
    %c0_84 = arith.constant 0 : index
    %86 = vector.load %arg6[%c0_81, %c0_82, %c0_83, %c0_84] : memref<1x8x8x128xbf16, #tpu.memory_space<vmem>>, vector<1x8x8x128xbf16>
    %87 = vector.shape_cast %86 : vector<1x8x8x128xbf16> to vector<8x8x128xbf16>
    %88 = vector.shape_cast %85 : vector<8x8x128xbf16> to vector<1x8x8x128xbf16>
    tpu.vector_store %arg6[%c0_81, %c0_82, %c0_83, %c0_84], %88 {strides = array<i32>} : memref<1x8x8x128xbf16, #tpu.memory_space<vmem>>, vector<1x8x8x128xbf16>,
    return
  }
  func.func @transform_0(%arg0: i32) -> (i32, i32, i32, i32, i32) {
    %c0_i32 = arith.constant 0 : i32
    %c0_i32_0 = arith.constant 0 : i32
    %c0_i32_1 = arith.constant 0 : i32
    %c0_i32_2 = arith.constant 0 : i32
    %c0_i32_3 = arith.constant 0 : i32
    return %arg0, %c0_i32, %c0_i32_0, %c0_i32_1, %c0_i32_2 : i32, i32, i32, i32, i32
  }
  func.func @transform_1(%arg0: i32) -> (i32, i32) {
    %c0_i32 = arith.constant 0 : i32
    %c0_i32_0 = arith.constant 0 : i32
    %c0_i32_1 = arith.constant 0 : i32
    return %c0_i32, %c0_i32_0 : i32, i32
  }
  func.func @transform_2(%arg0: i32) -> (i32, i32) {
    %c0_i32 = arith.constant 0 : i32
    %c0_i32_0 = arith.constant 0 : i32
    %c0_i32_1 = arith.constant 0 : i32
    return %c0_i32, %c0_i32_0 : i32, i32
  }
  func.func @transform_3(%arg0: i32) -> (i32, i32, i32) {
    %c0_i32 = arith.constant 0 : i32
    %c0_i32_0 = arith.constant 0 : i32
    %c0_i32_1 = arith.constant 0 : i32
    %c0_i32_2 = arith.constant 0 : i32
    return %c0_i32, %c0_i32_0, %c0_i32_1 : i32, i32, i32
  }
  func.func @transform_4(%arg0: i32) -> (i32, i32) {
    %c0_i32 = arith.constant 0 : i32
    %c0_i32_0 = arith.constant 0 : i32
    %c0_i32_1 = arith.constant 0 : i32
    return %c0_i32, %c0_i32_0 : i32, i32
  }
  func.func @transform_5(%arg0: i32) -> (i32, i32, i32, i32) {
    %c0_i32 = arith.constant 0 : i32
    %c0_i32_0 = arith.constant 0 : i32
    %c0_i32_1 = arith.constant 0 : i32
    %c0_i32_2 = arith.constant 0 : i32
    return %arg0, %c0_i32, %c0_i32_0, %c0_i32_1 : i32, i32, i32, i32
  }
  func.func @transform_6(%arg0: i32) -> (i32, i32, i32) {
    %c0_i32 = arith.constant 0 : i32
    %c0_i32_0 = arith.constant 0 : i32
    %c0_i32_1 = arith.constant 0 : i32
    return %arg0, %c0_i32, %c0_i32_0 : i32, i32, i32
  }
}

module attributes {stable_mosaic.version = 11 : i64} {
  func.func @_conv_kernel(%arg0: i32, %arg1: memref<1x8x8x128xbf16, #tpu.memory_space<vmem>>, %arg2: memref<1x128xf32, #tpu.memory_space<vmem>>, %arg3: memref<1x128xf32, #tpu.memory_space<vmem>>, %arg4: memref<9x128x128xf32, #tpu.memory_space<vmem>>, %arg5: memref<1x128xf32, #tpu.memory_space<vmem>>, %arg6: memref<1x8x8x128xbf16, #tpu.memory_space<vmem>>, %arg7: memref<1x1x256xf32, #tpu.memory_space<vmem>>, %arg8: memref<12x24x128xf32, #tpu.memory_space<vmem>>) attributes {dimension_semantics = [#tpu.dimension_semantics<parallel>], iteration_bounds = array<i64: 2>, scalar_prefetch = 0 : i64, scratch_operands = 1 : i64, tpu.core_type = #tpu.core_type<tc>, window_params = [{transform_indices = @transform_0, window_bounds = array<i64: 1, 8, 8, 128>}, {pipeline_mode = #tpu.pipeline_mode<synchronous>, transform_indices = @transform_1, window_bounds = array<i64: 1, 128>}, {pipeline_mode = #tpu.pipeline_mode<synchronous>, transform_indices = @transform_2, window_bounds = array<i64: 1, 128>}, {pipeline_mode = #tpu.pipeline_mode<synchronous>, transform_indices = @transform_3, window_bounds = array<i64: 9, 128, 128>}, {pipeline_mode = #tpu.pipeline_mode<synchronous>, transform_indices = @transform_4, window_bounds = array<i64: 1, 128>}, {transform_indices = @transform_5, window_bounds = array<i64: 1, 8, 8, 128>}, {transform_indices = @transform_6, window_bounds = array<i64: 1, 1, 256>}]} {
    %c0 = arith.constant 0 : index
    %c0_0 = arith.constant 0 : index
    %c0_1 = arith.constant 0 : index
    %c0_2 = arith.constant 0 : index
    %0 = vector.load %arg1[%c0, %c0_0, %c0_1, %c0_2] : memref<1x8x8x128xbf16, #tpu.memory_space<vmem>>, vector<1x8x8x128xbf16>
    %1 = vector.shape_cast %0 : vector<1x8x8x128xbf16> to vector<8x8x128xbf16>
    %2 = arith.extf %1 : vector<8x8x128xbf16> to vector<8x8x128xf32>
    %c0_3 = arith.constant 0 : index
    %c0_4 = arith.constant 0 : index
    %3 = vector.load %arg2[%c0_3, %c0_4] : memref<1x128xf32, #tpu.memory_space<vmem>>, vector<1x128xf32>
    %4 = vector.shape_cast %3 : vector<1x128xf32> to vector<1x1x128xf32>
    %c0_5 = arith.constant 0 : index
    %c0_6 = arith.constant 0 : index
    %5 = vector.load %arg3[%c0_5, %c0_6] : memref<1x128xf32, #tpu.memory_space<vmem>>, vector<1x128xf32>
    %6 = vector.shape_cast %5 : vector<1x128xf32> to vector<1x1x128xf32>
    %7 = vector.broadcast %4 : vector<1x1x128xf32> to vector<8x8x128xf32>
    %8 = arith.mulf %2, %7 : vector<8x8x128xf32>
    %9 = vector.broadcast %6 : vector<1x1x128xf32> to vector<8x8x128xf32>
    %10 = arith.addf %8, %9 : vector<8x8x128xf32>
    %cst = arith.constant 0.000000e+00 : f32
    %11 = vector.broadcast %cst : f32 to vector<8x8x128xf32>
    %12 = arith.maximumf %10, %11 : vector<8x8x128xf32>
    %cst_7 = arith.constant 0.000000e+00 : f32
    %13 = vector.broadcast %cst_7 : f32 to vector<2x24x128xf32>
    %cst_8 = arith.constant 0.000000e+00 : f32
    %14 = vector.broadcast %cst_8 : f32 to vector<8x8x128xf32>
    %c0_9 = arith.constant 0 : index
    %c0_10 = arith.constant 0 : index
    %c0_11 = arith.constant 0 : index
    %15 = vector.load %arg8[%c0_9, %c0_10, %c0_11] : memref<12x24x128xf32, #tpu.memory_space<vmem>>, vector<2x24x128xf32>
    tpu.vector_store %arg8[%c0_9, %c0_10, %c0_11], %13 {strides = array<i32>} : memref<12x24x128xf32, #tpu.memory_space<vmem>>, vector<2x24x128xf32>,
    %c10 = arith.constant 10 : index
    %c0_12 = arith.constant 0 : index
    %c0_13 = arith.constant 0 : index
    %16 = vector.load %arg8[%c10, %c0_12, %c0_13] : memref<12x24x128xf32, #tpu.memory_space<vmem>>, vector<2x24x128xf32>
    tpu.vector_store %arg8[%c10, %c0_12, %c0_13], %13 {strides = array<i32>} : memref<12x24x128xf32, #tpu.memory_space<vmem>>, vector<2x24x128xf32>,
    %c2 = arith.constant 2 : index
    %c0_14 = arith.constant 0 : index
    %c0_15 = arith.constant 0 : index
    %17 = vector.load %arg8[%c2, %c0_14, %c0_15] : memref<12x24x128xf32, #tpu.memory_space<vmem>>, vector<8x8x128xf32>
    tpu.vector_store %arg8[%c2, %c0_14, %c0_15], %14 {strides = array<i32>} : memref<12x24x128xf32, #tpu.memory_space<vmem>>, vector<8x8x128xf32>,
    %c2_16 = arith.constant 2 : index
    %c16 = arith.constant 16 : index
    %c0_17 = arith.constant 0 : index
    %18 = vector.load %arg8[%c2_16, %c16, %c0_17] : memref<12x24x128xf32, #tpu.memory_space<vmem>>, vector<8x8x128xf32>
    tpu.vector_store %arg8[%c2_16, %c16, %c0_17], %14 {strides = array<i32>} : memref<12x24x128xf32, #tpu.memory_space<vmem>>, vector<8x8x128xf32>,
    %c2_18 = arith.constant 2 : index
    %c8 = arith.constant 8 : index
    %c0_19 = arith.constant 0 : index
    %19 = vector.load %arg8[%c2_18, %c8, %c0_19] : memref<12x24x128xf32, #tpu.memory_space<vmem>>, vector<8x8x128xf32>
    tpu.vector_store %arg8[%c2_18, %c8, %c0_19], %12 {strides = array<i32>} : memref<12x24x128xf32, #tpu.memory_space<vmem>>, vector<8x8x128xf32>,
    %cst_20 = arith.constant 0.000000e+00 : f32
    %20 = vector.broadcast %cst_20 : f32 to vector<64x128xf32>
    %c0_21 = arith.constant 0 : index
    %c6 = arith.constant 6 : index
    %c0_22 = arith.constant 0 : index
    %21 = vector.load %arg8[%c0_21, %c6, %c0_22] : memref<12x24x128xf32, #tpu.memory_space<vmem>>, vector<8x8x128xf32>
    %22 = vector.shape_cast %21 : vector<8x8x128xf32> to vector<64x128xf32>
    %c0_23 = arith.constant 0 : index
    %c0_24 = arith.constant 0 : index
    %c0_25 = arith.constant 0 : index
    %23 = vector.load %arg4[%c0_23, %c0_24, %c0_25] : memref<9x128x128xf32, #tpu.memory_space<vmem>>, vector<1x128x128xf32>
    %24 = vector.shape_cast %23 : vector<1x128x128xf32> to vector<128x128xf32>
    %cst_26 = arith.constant dense<0.000000e+00> : vector<64x128xf32>
    %25 = tpu.matmul %22, %24, %cst_26 {dimension_numbers = #tpu.dot_dimension_numbers<[1], [0], [0], [1], [0, 0, 1, 1], [], []>} : vector<64x128xf32>, vector<128x128xf32>, vector<64x128xf32> -> vector<64x128xf32>
    %26 = arith.addf %20, %25 : vector<64x128xf32>
    %c0_27 = arith.constant 0 : index
    %c8_28 = arith.constant 8 : index
    %c0_29 = arith.constant 0 : index
    %27 = vector.load %arg8[%c0_27, %c8_28, %c0_29] : memref<12x24x128xf32, #tpu.memory_space<vmem>>, vector<8x8x128xf32>
    %28 = vector.shape_cast %27 : vector<8x8x128xf32> to vector<64x128xf32>
    %c1 = arith.constant 1 : index
    %c0_30 = arith.constant 0 : index
    %c0_31 = arith.constant 0 : index
    %29 = vector.load %arg4[%c1, %c0_30, %c0_31] : memref<9x128x128xf32, #tpu.memory_space<vmem>>, vector<1x128x128xf32>
    %30 = vector.shape_cast %29 : vector<1x128x128xf32> to vector<128x128xf32>
    %cst_32 = arith.constant dense<0.000000e+00> : vector<64x128xf32>
    %31 = tpu.matmul %28, %30, %cst_32 {dimension_numbers = #tpu.dot_dimension_numbers<[1], [0], [0], [1], [0, 0, 1, 1], [], []>} : vector<64x128xf32>, vector<128x128xf32>, vector<64x128xf32> -> vector<64x128xf32>
    %32 = arith.addf %26, %31 : vector<64x128xf32>
    %c0_33 = arith.constant 0 : index
    %c10_34 = arith.constant 10 : index
    %c0_35 = arith.constant 0 : index
    %33 = vector.load %arg8[%c0_33, %c10_34, %c0_35] : memref<12x24x128xf32, #tpu.memory_space<vmem>>, vector<8x8x128xf32>
    %34 = vector.shape_cast %33 : vector<8x8x128xf32> to vector<64x128xf32>
    %c2_36 = arith.constant 2 : index
    %c0_37 = arith.constant 0 : index
    %c0_38 = arith.constant 0 : index
    %35 = vector.load %arg4[%c2_36, %c0_37, %c0_38] : memref<9x128x128xf32, #tpu.memory_space<vmem>>, vector<1x128x128xf32>
    %36 = vector.shape_cast %35 : vector<1x128x128xf32> to vector<128x128xf32>
    %cst_39 = arith.constant dense<0.000000e+00> : vector<64x128xf32>
    %37 = tpu.matmul %34, %36, %cst_39 {dimension_numbers = #tpu.dot_dimension_numbers<[1], [0], [0], [1], [0, 0, 1, 1], [], []>} : vector<64x128xf32>, vector<128x128xf32>, vector<64x128xf32> -> vector<64x128xf32>
    %38 = arith.addf %32, %37 : vector<64x128xf32>
    %c2_40 = arith.constant 2 : index
    %c6_41 = arith.constant 6 : index
    %c0_42 = arith.constant 0 : index
    %39 = vector.load %arg8[%c2_40, %c6_41, %c0_42] : memref<12x24x128xf32, #tpu.memory_space<vmem>>, vector<8x8x128xf32>
    %40 = vector.shape_cast %39 : vector<8x8x128xf32> to vector<64x128xf32>
    %c3 = arith.constant 3 : index
    %c0_43 = arith.constant 0 : index
    %c0_44 = arith.constant 0 : index
    %41 = vector.load %arg4[%c3, %c0_43, %c0_44] : memref<9x128x128xf32, #tpu.memory_space<vmem>>, vector<1x128x128xf32>
    %42 = vector.shape_cast %41 : vector<1x128x128xf32> to vector<128x128xf32>
    %cst_45 = arith.constant dense<0.000000e+00> : vector<64x128xf32>
    %43 = tpu.matmul %40, %42, %cst_45 {dimension_numbers = #tpu.dot_dimension_numbers<[1], [0], [0], [1], [0, 0, 1, 1], [], []>} : vector<64x128xf32>, vector<128x128xf32>, vector<64x128xf32> -> vector<64x128xf32>
    %44 = arith.addf %38, %43 : vector<64x128xf32>
    %c2_46 = arith.constant 2 : index
    %c8_47 = arith.constant 8 : index
    %c0_48 = arith.constant 0 : index
    %45 = vector.load %arg8[%c2_46, %c8_47, %c0_48] : memref<12x24x128xf32, #tpu.memory_space<vmem>>, vector<8x8x128xf32>
    %46 = vector.shape_cast %45 : vector<8x8x128xf32> to vector<64x128xf32>
    %c4 = arith.constant 4 : index
    %c0_49 = arith.constant 0 : index
    %c0_50 = arith.constant 0 : index
    %47 = vector.load %arg4[%c4, %c0_49, %c0_50] : memref<9x128x128xf32, #tpu.memory_space<vmem>>, vector<1x128x128xf32>
    %48 = vector.shape_cast %47 : vector<1x128x128xf32> to vector<128x128xf32>
    %cst_51 = arith.constant dense<0.000000e+00> : vector<64x128xf32>
    %49 = tpu.matmul %46, %48, %cst_51 {dimension_numbers = #tpu.dot_dimension_numbers<[1], [0], [0], [1], [0, 0, 1, 1], [], []>} : vector<64x128xf32>, vector<128x128xf32>, vector<64x128xf32> -> vector<64x128xf32>
    %50 = arith.addf %44, %49 : vector<64x128xf32>
    %c2_52 = arith.constant 2 : index
    %c10_53 = arith.constant 10 : index
    %c0_54 = arith.constant 0 : index
    %51 = vector.load %arg8[%c2_52, %c10_53, %c0_54] : memref<12x24x128xf32, #tpu.memory_space<vmem>>, vector<8x8x128xf32>
    %52 = vector.shape_cast %51 : vector<8x8x128xf32> to vector<64x128xf32>
    %c5 = arith.constant 5 : index
    %c0_55 = arith.constant 0 : index
    %c0_56 = arith.constant 0 : index
    %53 = vector.load %arg4[%c5, %c0_55, %c0_56] : memref<9x128x128xf32, #tpu.memory_space<vmem>>, vector<1x128x128xf32>
    %54 = vector.shape_cast %53 : vector<1x128x128xf32> to vector<128x128xf32>
    %cst_57 = arith.constant dense<0.000000e+00> : vector<64x128xf32>
    %55 = tpu.matmul %52, %54, %cst_57 {dimension_numbers = #tpu.dot_dimension_numbers<[1], [0], [0], [1], [0, 0, 1, 1], [], []>} : vector<64x128xf32>, vector<128x128xf32>, vector<64x128xf32> -> vector<64x128xf32>
    %56 = arith.addf %50, %55 : vector<64x128xf32>
    %c4_58 = arith.constant 4 : index
    %c6_59 = arith.constant 6 : index
    %c0_60 = arith.constant 0 : index
    %57 = vector.load %arg8[%c4_58, %c6_59, %c0_60] : memref<12x24x128xf32, #tpu.memory_space<vmem>>, vector<8x8x128xf32>
    %58 = vector.shape_cast %57 : vector<8x8x128xf32> to vector<64x128xf32>
    %c6_61 = arith.constant 6 : index
    %c0_62 = arith.constant 0 : index
    %c0_63 = arith.constant 0 : index
    %59 = vector.load %arg4[%c6_61, %c0_62, %c0_63] : memref<9x128x128xf32, #tpu.memory_space<vmem>>, vector<1x128x128xf32>
    %60 = vector.shape_cast %59 : vector<1x128x128xf32> to vector<128x128xf32>
    %cst_64 = arith.constant dense<0.000000e+00> : vector<64x128xf32>
    %61 = tpu.matmul %58, %60, %cst_64 {dimension_numbers = #tpu.dot_dimension_numbers<[1], [0], [0], [1], [0, 0, 1, 1], [], []>} : vector<64x128xf32>, vector<128x128xf32>, vector<64x128xf32> -> vector<64x128xf32>
    %62 = arith.addf %56, %61 : vector<64x128xf32>
    %c4_65 = arith.constant 4 : index
    %c8_66 = arith.constant 8 : index
    %c0_67 = arith.constant 0 : index
    %63 = vector.load %arg8[%c4_65, %c8_66, %c0_67] : memref<12x24x128xf32, #tpu.memory_space<vmem>>, vector<8x8x128xf32>
    %64 = vector.shape_cast %63 : vector<8x8x128xf32> to vector<64x128xf32>
    %c7 = arith.constant 7 : index
    %c0_68 = arith.constant 0 : index
    %c0_69 = arith.constant 0 : index
    %65 = vector.load %arg4[%c7, %c0_68, %c0_69] : memref<9x128x128xf32, #tpu.memory_space<vmem>>, vector<1x128x128xf32>
    %66 = vector.shape_cast %65 : vector<1x128x128xf32> to vector<128x128xf32>
    %cst_70 = arith.constant dense<0.000000e+00> : vector<64x128xf32>
    %67 = tpu.matmul %64, %66, %cst_70 {dimension_numbers = #tpu.dot_dimension_numbers<[1], [0], [0], [1], [0, 0, 1, 1], [], []>} : vector<64x128xf32>, vector<128x128xf32>, vector<64x128xf32> -> vector<64x128xf32>
    %68 = arith.addf %62, %67 : vector<64x128xf32>
    %c4_71 = arith.constant 4 : index
    %c10_72 = arith.constant 10 : index
    %c0_73 = arith.constant 0 : index
    %69 = vector.load %arg8[%c4_71, %c10_72, %c0_73] : memref<12x24x128xf32, #tpu.memory_space<vmem>>, vector<8x8x128xf32>
    %70 = vector.shape_cast %69 : vector<8x8x128xf32> to vector<64x128xf32>
    %c8_74 = arith.constant 8 : index
    %c0_75 = arith.constant 0 : index
    %c0_76 = arith.constant 0 : index
    %71 = vector.load %arg4[%c8_74, %c0_75, %c0_76] : memref<9x128x128xf32, #tpu.memory_space<vmem>>, vector<1x128x128xf32>
    %72 = vector.shape_cast %71 : vector<1x128x128xf32> to vector<128x128xf32>
    %cst_77 = arith.constant dense<0.000000e+00> : vector<64x128xf32>
    %73 = tpu.matmul %70, %72, %cst_77 {dimension_numbers = #tpu.dot_dimension_numbers<[1], [0], [0], [1], [0, 0, 1, 1], [], []>} : vector<64x128xf32>, vector<128x128xf32>, vector<64x128xf32> -> vector<64x128xf32>
    %74 = arith.addf %68, %73 : vector<64x128xf32>
    %c0_78 = arith.constant 0 : index
    %c0_79 = arith.constant 0 : index
    %75 = vector.load %arg5[%c0_78, %c0_79] : memref<1x128xf32, #tpu.memory_space<vmem>>, vector<1x128xf32>
    %76 = vector.broadcast %75 : vector<1x128xf32> to vector<64x128xf32>
    %77 = arith.addf %74, %76 : vector<64x128xf32>
    %cst_80 = arith.constant dense<0.000000e+00> : vector<128xf32>
    %78 = vector.multi_reduction <add>, %77, %cst_80 [0] : vector<64x128xf32> to vector<128xf32>
    %79 = vector.shape_cast %78 : vector<128xf32> to vector<1x128xf32>
    %80 = arith.mulf %77, %77 : vector<64x128xf32>
    %cst_81 = arith.constant dense<0.000000e+00> : vector<128xf32>
    %81 = vector.multi_reduction <add>, %80, %cst_81 [0] : vector<64x128xf32> to vector<128xf32>
    %82 = vector.shape_cast %81 : vector<128xf32> to vector<1x128xf32>
    %83 = tpu.concatenate %79, %82 in 1 : vector<1x128xf32>, vector<1x128xf32> -> vector<1x256xf32>
    %c0_82 = arith.constant 0 : index
    %c0_83 = arith.constant 0 : index
    %c0_84 = arith.constant 0 : index
    %84 = vector.load %arg7[%c0_82, %c0_83, %c0_84] : memref<1x1x256xf32, #tpu.memory_space<vmem>>, vector<1x1x256xf32>
    %85 = vector.shape_cast %84 : vector<1x1x256xf32> to vector<1x256xf32>
    %86 = vector.shape_cast %83 : vector<1x256xf32> to vector<1x1x256xf32>
    tpu.vector_store %arg7[%c0_82, %c0_83, %c0_84], %86 {strides = array<i32>} : memref<1x1x256xf32, #tpu.memory_space<vmem>>, vector<1x1x256xf32>,
    %87 = vector.shape_cast %77 : vector<64x128xf32> to vector<8x8x128xf32>
    %88 = arith.truncf %87 : vector<8x8x128xf32> to vector<8x8x128xbf16>
    %c0_85 = arith.constant 0 : index
    %c0_86 = arith.constant 0 : index
    %c0_87 = arith.constant 0 : index
    %c0_88 = arith.constant 0 : index
    %89 = vector.load %arg6[%c0_85, %c0_86, %c0_87, %c0_88] : memref<1x8x8x128xbf16, #tpu.memory_space<vmem>>, vector<1x8x8x128xbf16>
    %90 = vector.shape_cast %89 : vector<1x8x8x128xbf16> to vector<8x8x128xbf16>
    %91 = vector.shape_cast %88 : vector<8x8x128xbf16> to vector<1x8x8x128xbf16>
    tpu.vector_store %arg6[%c0_85, %c0_86, %c0_87, %c0_88], %91 {strides = array<i32>} : memref<1x8x8x128xbf16, #tpu.memory_space<vmem>>, vector<1x8x8x128xbf16>,
    return
  }
  func.func @transform_0(%arg0: i32) -> (i32, i32, i32, i32) {
    %c0_i32 = arith.constant 0 : i32
    %c0_i32_0 = arith.constant 0 : i32
    %c0_i32_1 = arith.constant 0 : i32
    %c0_i32_2 = arith.constant 0 : i32
    return %arg0, %c0_i32, %c0_i32_0, %c0_i32_1 : i32, i32, i32, i32
  }
  func.func @transform_1(%arg0: i32) -> (i32, i32) {
    %c0_i32 = arith.constant 0 : i32
    %c0_i32_0 = arith.constant 0 : i32
    %c0_i32_1 = arith.constant 0 : i32
    return %c0_i32, %c0_i32_0 : i32, i32
  }
  func.func @transform_2(%arg0: i32) -> (i32, i32) {
    %c0_i32 = arith.constant 0 : i32
    %c0_i32_0 = arith.constant 0 : i32
    %c0_i32_1 = arith.constant 0 : i32
    return %c0_i32, %c0_i32_0 : i32, i32
  }
  func.func @transform_3(%arg0: i32) -> (i32, i32, i32) {
    %c0_i32 = arith.constant 0 : i32
    %c0_i32_0 = arith.constant 0 : i32
    %c0_i32_1 = arith.constant 0 : i32
    %c0_i32_2 = arith.constant 0 : i32
    return %c0_i32, %c0_i32_0, %c0_i32_1 : i32, i32, i32
  }
  func.func @transform_4(%arg0: i32) -> (i32, i32) {
    %c0_i32 = arith.constant 0 : i32
    %c0_i32_0 = arith.constant 0 : i32
    %c0_i32_1 = arith.constant 0 : i32
    return %c0_i32, %c0_i32_0 : i32, i32
  }
  func.func @transform_5(%arg0: i32) -> (i32, i32, i32, i32) {
    %c0_i32 = arith.constant 0 : i32
    %c0_i32_0 = arith.constant 0 : i32
    %c0_i32_1 = arith.constant 0 : i32
    %c0_i32_2 = arith.constant 0 : i32
    return %arg0, %c0_i32, %c0_i32_0, %c0_i32_1 : i32, i32, i32, i32
  }
  func.func @transform_6(%arg0: i32) -> (i32, i32, i32) {
    %c0_i32 = arith.constant 0 : i32
    %c0_i32_0 = arith.constant 0 : i32
    %c0_i32_1 = arith.constant 0 : i32
    return %arg0, %c0_i32, %c0_i32_0 : i32, i32, i32
  }
}

module attributes {stable_mosaic.version = 11 : i64} {
  func.func @_conv_kernel(%arg0: i32, %arg1: memref<1x8x8x128xbf16, #tpu.memory_space<vmem>>, %arg2: memref<1x128xf32, #tpu.memory_space<vmem>>, %arg3: memref<1x128xf32, #tpu.memory_space<vmem>>, %arg4: memref<9x128x128xf32, #tpu.memory_space<vmem>>, %arg5: memref<1x128xf32, #tpu.memory_space<vmem>>, %arg6: memref<1x8x8x128xbf16, #tpu.memory_space<vmem>>, %arg7: memref<1x1x256xf32, #tpu.memory_space<vmem>>, %arg8: memref<14x24x128xf32, #tpu.memory_space<vmem>>) attributes {dimension_semantics = [#tpu.dimension_semantics<parallel>], iteration_bounds = array<i64: 2>, scalar_prefetch = 0 : i64, scratch_operands = 1 : i64, tpu.core_type = #tpu.core_type<tc>, window_params = [{transform_indices = @transform_0, window_bounds = array<i64: 1, 8, 8, 128>}, {pipeline_mode = #tpu.pipeline_mode<synchronous>, transform_indices = @transform_1, window_bounds = array<i64: 1, 128>}, {pipeline_mode = #tpu.pipeline_mode<synchronous>, transform_indices = @transform_2, window_bounds = array<i64: 1, 128>}, {pipeline_mode = #tpu.pipeline_mode<synchronous>, transform_indices = @transform_3, window_bounds = array<i64: 9, 128, 128>}, {pipeline_mode = #tpu.pipeline_mode<synchronous>, transform_indices = @transform_4, window_bounds = array<i64: 1, 128>}, {transform_indices = @transform_5, window_bounds = array<i64: 1, 8, 8, 128>}, {transform_indices = @transform_6, window_bounds = array<i64: 1, 1, 256>}]} {
    %c0 = arith.constant 0 : index
    %c0_0 = arith.constant 0 : index
    %c0_1 = arith.constant 0 : index
    %c0_2 = arith.constant 0 : index
    %0 = vector.load %arg1[%c0, %c0_0, %c0_1, %c0_2] : memref<1x8x8x128xbf16, #tpu.memory_space<vmem>>, vector<1x8x8x128xbf16>
    %1 = vector.shape_cast %0 : vector<1x8x8x128xbf16> to vector<8x8x128xbf16>
    %2 = arith.extf %1 : vector<8x8x128xbf16> to vector<8x8x128xf32>
    %c0_3 = arith.constant 0 : index
    %c0_4 = arith.constant 0 : index
    %3 = vector.load %arg2[%c0_3, %c0_4] : memref<1x128xf32, #tpu.memory_space<vmem>>, vector<1x128xf32>
    %4 = vector.shape_cast %3 : vector<1x128xf32> to vector<1x1x128xf32>
    %c0_5 = arith.constant 0 : index
    %c0_6 = arith.constant 0 : index
    %5 = vector.load %arg3[%c0_5, %c0_6] : memref<1x128xf32, #tpu.memory_space<vmem>>, vector<1x128xf32>
    %6 = vector.shape_cast %5 : vector<1x128xf32> to vector<1x1x128xf32>
    %7 = vector.broadcast %4 : vector<1x1x128xf32> to vector<8x8x128xf32>
    %8 = arith.mulf %2, %7 : vector<8x8x128xf32>
    %9 = vector.broadcast %6 : vector<1x1x128xf32> to vector<8x8x128xf32>
    %10 = arith.addf %8, %9 : vector<8x8x128xf32>
    %cst = arith.constant 0.000000e+00 : f32
    %11 = vector.broadcast %cst : f32 to vector<8x8x128xf32>
    %12 = arith.maximumf %10, %11 : vector<8x8x128xf32>
    %cst_7 = arith.constant 0.000000e+00 : f32
    %13 = vector.broadcast %cst_7 : f32 to vector<3x24x128xf32>
    %cst_8 = arith.constant 0.000000e+00 : f32
    %14 = vector.broadcast %cst_8 : f32 to vector<8x8x128xf32>
    %c0_9 = arith.constant 0 : index
    %c0_10 = arith.constant 0 : index
    %c0_11 = arith.constant 0 : index
    %15 = vector.load %arg8[%c0_9, %c0_10, %c0_11] : memref<14x24x128xf32, #tpu.memory_space<vmem>>, vector<3x24x128xf32>
    tpu.vector_store %arg8[%c0_9, %c0_10, %c0_11], %13 {strides = array<i32>} : memref<14x24x128xf32, #tpu.memory_space<vmem>>, vector<3x24x128xf32>,
    %c11 = arith.constant 11 : index
    %c0_12 = arith.constant 0 : index
    %c0_13 = arith.constant 0 : index
    %16 = vector.load %arg8[%c11, %c0_12, %c0_13] : memref<14x24x128xf32, #tpu.memory_space<vmem>>, vector<3x24x128xf32>
    tpu.vector_store %arg8[%c11, %c0_12, %c0_13], %13 {strides = array<i32>} : memref<14x24x128xf32, #tpu.memory_space<vmem>>, vector<3x24x128xf32>,
    %c3 = arith.constant 3 : index
    %c0_14 = arith.constant 0 : index
    %c0_15 = arith.constant 0 : index
    %17 = vector.load %arg8[%c3, %c0_14, %c0_15] : memref<14x24x128xf32, #tpu.memory_space<vmem>>, vector<8x8x128xf32>
    tpu.vector_store %arg8[%c3, %c0_14, %c0_15], %14 {strides = array<i32>} : memref<14x24x128xf32, #tpu.memory_space<vmem>>, vector<8x8x128xf32>,
    %c3_16 = arith.constant 3 : index
    %c16 = arith.constant 16 : index
    %c0_17 = arith.constant 0 : index
    %18 = vector.load %arg8[%c3_16, %c16, %c0_17] : memref<14x24x128xf32, #tpu.memory_space<vmem>>, vector<8x8x128xf32>
    tpu.vector_store %arg8[%c3_16, %c16, %c0_17], %14 {strides = array<i32>} : memref<14x24x128xf32, #tpu.memory_space<vmem>>, vector<8x8x128xf32>,
    %c3_18 = arith.constant 3 : index
    %c8 = arith.constant 8 : index
    %c0_19 = arith.constant 0 : index
    %19 = vector.load %arg8[%c3_18, %c8, %c0_19] : memref<14x24x128xf32, #tpu.memory_space<vmem>>, vector<8x8x128xf32>
    tpu.vector_store %arg8[%c3_18, %c8, %c0_19], %12 {strides = array<i32>} : memref<14x24x128xf32, #tpu.memory_space<vmem>>, vector<8x8x128xf32>,
    %cst_20 = arith.constant 0.000000e+00 : f32
    %20 = vector.broadcast %cst_20 : f32 to vector<64x128xf32>
    %c0_21 = arith.constant 0 : index
    %c5 = arith.constant 5 : index
    %c0_22 = arith.constant 0 : index
    %21 = vector.load %arg8[%c0_21, %c5, %c0_22] : memref<14x24x128xf32, #tpu.memory_space<vmem>>, vector<8x8x128xf32>
    %22 = vector.shape_cast %21 : vector<8x8x128xf32> to vector<64x128xf32>
    %c0_23 = arith.constant 0 : index
    %c0_24 = arith.constant 0 : index
    %c0_25 = arith.constant 0 : index
    %23 = vector.load %arg4[%c0_23, %c0_24, %c0_25] : memref<9x128x128xf32, #tpu.memory_space<vmem>>, vector<1x128x128xf32>
    %24 = vector.shape_cast %23 : vector<1x128x128xf32> to vector<128x128xf32>
    %cst_26 = arith.constant dense<0.000000e+00> : vector<64x128xf32>
    %25 = tpu.matmul %22, %24, %cst_26 {dimension_numbers = #tpu.dot_dimension_numbers<[1], [0], [0], [1], [0, 0, 1, 1], [], []>} : vector<64x128xf32>, vector<128x128xf32>, vector<64x128xf32> -> vector<64x128xf32>
    %26 = arith.addf %20, %25 : vector<64x128xf32>
    %c0_27 = arith.constant 0 : index
    %c8_28 = arith.constant 8 : index
    %c0_29 = arith.constant 0 : index
    %27 = vector.load %arg8[%c0_27, %c8_28, %c0_29] : memref<14x24x128xf32, #tpu.memory_space<vmem>>, vector<8x8x128xf32>
    %28 = vector.shape_cast %27 : vector<8x8x128xf32> to vector<64x128xf32>
    %c1 = arith.constant 1 : index
    %c0_30 = arith.constant 0 : index
    %c0_31 = arith.constant 0 : index
    %29 = vector.load %arg4[%c1, %c0_30, %c0_31] : memref<9x128x128xf32, #tpu.memory_space<vmem>>, vector<1x128x128xf32>
    %30 = vector.shape_cast %29 : vector<1x128x128xf32> to vector<128x128xf32>
    %cst_32 = arith.constant dense<0.000000e+00> : vector<64x128xf32>
    %31 = tpu.matmul %28, %30, %cst_32 {dimension_numbers = #tpu.dot_dimension_numbers<[1], [0], [0], [1], [0, 0, 1, 1], [], []>} : vector<64x128xf32>, vector<128x128xf32>, vector<64x128xf32> -> vector<64x128xf32>
    %32 = arith.addf %26, %31 : vector<64x128xf32>
    %c0_33 = arith.constant 0 : index
    %c11_34 = arith.constant 11 : index
    %c0_35 = arith.constant 0 : index
    %33 = vector.load %arg8[%c0_33, %c11_34, %c0_35] : memref<14x24x128xf32, #tpu.memory_space<vmem>>, vector<8x8x128xf32>
    %34 = vector.shape_cast %33 : vector<8x8x128xf32> to vector<64x128xf32>
    %c2 = arith.constant 2 : index
    %c0_36 = arith.constant 0 : index
    %c0_37 = arith.constant 0 : index
    %35 = vector.load %arg4[%c2, %c0_36, %c0_37] : memref<9x128x128xf32, #tpu.memory_space<vmem>>, vector<1x128x128xf32>
    %36 = vector.shape_cast %35 : vector<1x128x128xf32> to vector<128x128xf32>
    %cst_38 = arith.constant dense<0.000000e+00> : vector<64x128xf32>
    %37 = tpu.matmul %34, %36, %cst_38 {dimension_numbers = #tpu.dot_dimension_numbers<[1], [0], [0], [1], [0, 0, 1, 1], [], []>} : vector<64x128xf32>, vector<128x128xf32>, vector<64x128xf32> -> vector<64x128xf32>
    %38 = arith.addf %32, %37 : vector<64x128xf32>
    %c3_39 = arith.constant 3 : index
    %c5_40 = arith.constant 5 : index
    %c0_41 = arith.constant 0 : index
    %39 = vector.load %arg8[%c3_39, %c5_40, %c0_41] : memref<14x24x128xf32, #tpu.memory_space<vmem>>, vector<8x8x128xf32>
    %40 = vector.shape_cast %39 : vector<8x8x128xf32> to vector<64x128xf32>
    %c3_42 = arith.constant 3 : index
    %c0_43 = arith.constant 0 : index
    %c0_44 = arith.constant 0 : index
    %41 = vector.load %arg4[%c3_42, %c0_43, %c0_44] : memref<9x128x128xf32, #tpu.memory_space<vmem>>, vector<1x128x128xf32>
    %42 = vector.shape_cast %41 : vector<1x128x128xf32> to vector<128x128xf32>
    %cst_45 = arith.constant dense<0.000000e+00> : vector<64x128xf32>
    %43 = tpu.matmul %40, %42, %cst_45 {dimension_numbers = #tpu.dot_dimension_numbers<[1], [0], [0], [1], [0, 0, 1, 1], [], []>} : vector<64x128xf32>, vector<128x128xf32>, vector<64x128xf32> -> vector<64x128xf32>
    %44 = arith.addf %38, %43 : vector<64x128xf32>
    %c3_46 = arith.constant 3 : index
    %c8_47 = arith.constant 8 : index
    %c0_48 = arith.constant 0 : index
    %45 = vector.load %arg8[%c3_46, %c8_47, %c0_48] : memref<14x24x128xf32, #tpu.memory_space<vmem>>, vector<8x8x128xf32>
    %46 = vector.shape_cast %45 : vector<8x8x128xf32> to vector<64x128xf32>
    %c4 = arith.constant 4 : index
    %c0_49 = arith.constant 0 : index
    %c0_50 = arith.constant 0 : index
    %47 = vector.load %arg4[%c4, %c0_49, %c0_50] : memref<9x128x128xf32, #tpu.memory_space<vmem>>, vector<1x128x128xf32>
    %48 = vector.shape_cast %47 : vector<1x128x128xf32> to vector<128x128xf32>
    %cst_51 = arith.constant dense<0.000000e+00> : vector<64x128xf32>
    %49 = tpu.matmul %46, %48, %cst_51 {dimension_numbers = #tpu.dot_dimension_numbers<[1], [0], [0], [1], [0, 0, 1, 1], [], []>} : vector<64x128xf32>, vector<128x128xf32>, vector<64x128xf32> -> vector<64x128xf32>
    %50 = arith.addf %44, %49 : vector<64x128xf32>
    %c3_52 = arith.constant 3 : index
    %c11_53 = arith.constant 11 : index
    %c0_54 = arith.constant 0 : index
    %51 = vector.load %arg8[%c3_52, %c11_53, %c0_54] : memref<14x24x128xf32, #tpu.memory_space<vmem>>, vector<8x8x128xf32>
    %52 = vector.shape_cast %51 : vector<8x8x128xf32> to vector<64x128xf32>
    %c5_55 = arith.constant 5 : index
    %c0_56 = arith.constant 0 : index
    %c0_57 = arith.constant 0 : index
    %53 = vector.load %arg4[%c5_55, %c0_56, %c0_57] : memref<9x128x128xf32, #tpu.memory_space<vmem>>, vector<1x128x128xf32>
    %54 = vector.shape_cast %53 : vector<1x128x128xf32> to vector<128x128xf32>
    %cst_58 = arith.constant dense<0.000000e+00> : vector<64x128xf32>
    %55 = tpu.matmul %52, %54, %cst_58 {dimension_numbers = #tpu.dot_dimension_numbers<[1], [0], [0], [1], [0, 0, 1, 1], [], []>} : vector<64x128xf32>, vector<128x128xf32>, vector<64x128xf32> -> vector<64x128xf32>
    %56 = arith.addf %50, %55 : vector<64x128xf32>
    %c6 = arith.constant 6 : index
    %c5_59 = arith.constant 5 : index
    %c0_60 = arith.constant 0 : index
    %57 = vector.load %arg8[%c6, %c5_59, %c0_60] : memref<14x24x128xf32, #tpu.memory_space<vmem>>, vector<8x8x128xf32>
    %58 = vector.shape_cast %57 : vector<8x8x128xf32> to vector<64x128xf32>
    %c6_61 = arith.constant 6 : index
    %c0_62 = arith.constant 0 : index
    %c0_63 = arith.constant 0 : index
    %59 = vector.load %arg4[%c6_61, %c0_62, %c0_63] : memref<9x128x128xf32, #tpu.memory_space<vmem>>, vector<1x128x128xf32>
    %60 = vector.shape_cast %59 : vector<1x128x128xf32> to vector<128x128xf32>
    %cst_64 = arith.constant dense<0.000000e+00> : vector<64x128xf32>
    %61 = tpu.matmul %58, %60, %cst_64 {dimension_numbers = #tpu.dot_dimension_numbers<[1], [0], [0], [1], [0, 0, 1, 1], [], []>} : vector<64x128xf32>, vector<128x128xf32>, vector<64x128xf32> -> vector<64x128xf32>
    %62 = arith.addf %56, %61 : vector<64x128xf32>
    %c6_65 = arith.constant 6 : index
    %c8_66 = arith.constant 8 : index
    %c0_67 = arith.constant 0 : index
    %63 = vector.load %arg8[%c6_65, %c8_66, %c0_67] : memref<14x24x128xf32, #tpu.memory_space<vmem>>, vector<8x8x128xf32>
    %64 = vector.shape_cast %63 : vector<8x8x128xf32> to vector<64x128xf32>
    %c7 = arith.constant 7 : index
    %c0_68 = arith.constant 0 : index
    %c0_69 = arith.constant 0 : index
    %65 = vector.load %arg4[%c7, %c0_68, %c0_69] : memref<9x128x128xf32, #tpu.memory_space<vmem>>, vector<1x128x128xf32>
    %66 = vector.shape_cast %65 : vector<1x128x128xf32> to vector<128x128xf32>
    %cst_70 = arith.constant dense<0.000000e+00> : vector<64x128xf32>
    %67 = tpu.matmul %64, %66, %cst_70 {dimension_numbers = #tpu.dot_dimension_numbers<[1], [0], [0], [1], [0, 0, 1, 1], [], []>} : vector<64x128xf32>, vector<128x128xf32>, vector<64x128xf32> -> vector<64x128xf32>
    %68 = arith.addf %62, %67 : vector<64x128xf32>
    %c6_71 = arith.constant 6 : index
    %c11_72 = arith.constant 11 : index
    %c0_73 = arith.constant 0 : index
    %69 = vector.load %arg8[%c6_71, %c11_72, %c0_73] : memref<14x24x128xf32, #tpu.memory_space<vmem>>, vector<8x8x128xf32>
    %70 = vector.shape_cast %69 : vector<8x8x128xf32> to vector<64x128xf32>
    %c8_74 = arith.constant 8 : index
    %c0_75 = arith.constant 0 : index
    %c0_76 = arith.constant 0 : index
    %71 = vector.load %arg4[%c8_74, %c0_75, %c0_76] : memref<9x128x128xf32, #tpu.memory_space<vmem>>, vector<1x128x128xf32>
    %72 = vector.shape_cast %71 : vector<1x128x128xf32> to vector<128x128xf32>
    %cst_77 = arith.constant dense<0.000000e+00> : vector<64x128xf32>
    %73 = tpu.matmul %70, %72, %cst_77 {dimension_numbers = #tpu.dot_dimension_numbers<[1], [0], [0], [1], [0, 0, 1, 1], [], []>} : vector<64x128xf32>, vector<128x128xf32>, vector<64x128xf32> -> vector<64x128xf32>
    %74 = arith.addf %68, %73 : vector<64x128xf32>
    %c0_78 = arith.constant 0 : index
    %c0_79 = arith.constant 0 : index
    %75 = vector.load %arg5[%c0_78, %c0_79] : memref<1x128xf32, #tpu.memory_space<vmem>>, vector<1x128xf32>
    %76 = vector.broadcast %75 : vector<1x128xf32> to vector<64x128xf32>
    %77 = arith.addf %74, %76 : vector<64x128xf32>
    %cst_80 = arith.constant dense<0.000000e+00> : vector<128xf32>
    %78 = vector.multi_reduction <add>, %77, %cst_80 [0] : vector<64x128xf32> to vector<128xf32>
    %79 = vector.shape_cast %78 : vector<128xf32> to vector<1x128xf32>
    %80 = arith.mulf %77, %77 : vector<64x128xf32>
    %cst_81 = arith.constant dense<0.000000e+00> : vector<128xf32>
    %81 = vector.multi_reduction <add>, %80, %cst_81 [0] : vector<64x128xf32> to vector<128xf32>
    %82 = vector.shape_cast %81 : vector<128xf32> to vector<1x128xf32>
    %83 = tpu.concatenate %79, %82 in 1 : vector<1x128xf32>, vector<1x128xf32> -> vector<1x256xf32>
    %c0_82 = arith.constant 0 : index
    %c0_83 = arith.constant 0 : index
    %c0_84 = arith.constant 0 : index
    %84 = vector.load %arg7[%c0_82, %c0_83, %c0_84] : memref<1x1x256xf32, #tpu.memory_space<vmem>>, vector<1x1x256xf32>
    %85 = vector.shape_cast %84 : vector<1x1x256xf32> to vector<1x256xf32>
    %86 = vector.shape_cast %83 : vector<1x256xf32> to vector<1x1x256xf32>
    tpu.vector_store %arg7[%c0_82, %c0_83, %c0_84], %86 {strides = array<i32>} : memref<1x1x256xf32, #tpu.memory_space<vmem>>, vector<1x1x256xf32>,
    %87 = vector.shape_cast %77 : vector<64x128xf32> to vector<8x8x128xf32>
    %88 = arith.truncf %87 : vector<8x8x128xf32> to vector<8x8x128xbf16>
    %c0_85 = arith.constant 0 : index
    %c0_86 = arith.constant 0 : index
    %c0_87 = arith.constant 0 : index
    %c0_88 = arith.constant 0 : index
    %89 = vector.load %arg6[%c0_85, %c0_86, %c0_87, %c0_88] : memref<1x8x8x128xbf16, #tpu.memory_space<vmem>>, vector<1x8x8x128xbf16>
    %90 = vector.shape_cast %89 : vector<1x8x8x128xbf16> to vector<8x8x128xbf16>
    %91 = vector.shape_cast %88 : vector<8x8x128xbf16> to vector<1x8x8x128xbf16>
    tpu.vector_store %arg6[%c0_85, %c0_86, %c0_87, %c0_88], %91 {strides = array<i32>} : memref<1x8x8x128xbf16, #tpu.memory_space<vmem>>, vector<1x8x8x128xbf16>,
    return
  }
  func.func @transform_0(%arg0: i32) -> (i32, i32, i32, i32) {
    %c0_i32 = arith.constant 0 : i32
    %c0_i32_0 = arith.constant 0 : i32
    %c0_i32_1 = arith.constant 0 : i32
    %c0_i32_2 = arith.constant 0 : i32
    return %arg0, %c0_i32, %c0_i32_0, %c0_i32_1 : i32, i32, i32, i32
  }
  func.func @transform_1(%arg0: i32) -> (i32, i32) {
    %c0_i32 = arith.constant 0 : i32
    %c0_i32_0 = arith.constant 0 : i32
    %c0_i32_1 = arith.constant 0 : i32
    return %c0_i32, %c0_i32_0 : i32, i32
  }
  func.func @transform_2(%arg0: i32) -> (i32, i32) {
    %c0_i32 = arith.constant 0 : i32
    %c0_i32_0 = arith.constant 0 : i32
    %c0_i32_1 = arith.constant 0 : i32
    return %c0_i32, %c0_i32_0 : i32, i32
  }
  func.func @transform_3(%arg0: i32) -> (i32, i32, i32) {
    %c0_i32 = arith.constant 0 : i32
    %c0_i32_0 = arith.constant 0 : i32
    %c0_i32_1 = arith.constant 0 : i32
    %c0_i32_2 = arith.constant 0 : i32
    return %c0_i32, %c0_i32_0, %c0_i32_1 : i32, i32, i32
  }
  func.func @transform_4(%arg0: i32) -> (i32, i32) {
    %c0_i32 = arith.constant 0 : i32
    %c0_i32_0 = arith.constant 0 : i32
    %c0_i32_1 = arith.constant 0 : i32
    return %c0_i32, %c0_i32_0 : i32, i32
  }
  func.func @transform_5(%arg0: i32) -> (i32, i32, i32, i32) {
    %c0_i32 = arith.constant 0 : i32
    %c0_i32_0 = arith.constant 0 : i32
    %c0_i32_1 = arith.constant 0 : i32
    %c0_i32_2 = arith.constant 0 : i32
    return %arg0, %c0_i32, %c0_i32_0, %c0_i32_1 : i32, i32, i32, i32
  }
  func.func @transform_6(%arg0: i32) -> (i32, i32, i32) {
    %c0_i32 = arith.constant 0 : i32
    %c0_i32_0 = arith.constant 0 : i32
    %c0_i32_1 = arith.constant 0 : i32
    return %arg0, %c0_i32, %c0_i32_0 : i32, i32, i32
  }
}

module attributes {stable_mosaic.version = 11 : i64} {
  func.func @_se_kernel(%arg0: i32, %arg1: memref<1x8x8x128xbf16, #tpu.memory_space<vmem>>, %arg2: memref<1x128xf32, #tpu.memory_space<vmem>>, %arg3: memref<1x128xf32, #tpu.memory_space<vmem>>, %arg4: memref<128x128xf32, #tpu.memory_space<vmem>>, %arg5: memref<128x128xf32, #tpu.memory_space<vmem>>, %arg6: memref<1x8x8x128xf32, #tpu.memory_space<vmem>>) attributes {dimension_semantics = [#tpu.dimension_semantics<parallel>], iteration_bounds = array<i64: 2>, scalar_prefetch = 0 : i64, scratch_operands = 0 : i64, tpu.core_type = #tpu.core_type<tc>, window_params = [{transform_indices = @transform_0, window_bounds = array<i64: 1, 8, 8, 128>}, {pipeline_mode = #tpu.pipeline_mode<synchronous>, transform_indices = @transform_1, window_bounds = array<i64: 1, 128>}, {pipeline_mode = #tpu.pipeline_mode<synchronous>, transform_indices = @transform_2, window_bounds = array<i64: 1, 128>}, {pipeline_mode = #tpu.pipeline_mode<synchronous>, transform_indices = @transform_3, window_bounds = array<i64: 128, 128>}, {pipeline_mode = #tpu.pipeline_mode<synchronous>, transform_indices = @transform_4, window_bounds = array<i64: 128, 128>}, {transform_indices = @transform_5, window_bounds = array<i64: 1, 8, 8, 128>}]} {
    %c0 = arith.constant 0 : index
    %c0_0 = arith.constant 0 : index
    %0 = vector.load %arg2[%c0, %c0_0] : memref<1x128xf32, #tpu.memory_space<vmem>>, vector<1x128xf32>
    %1 = vector.shape_cast %0 : vector<1x128xf32> to vector<1x1x128xf32>
    %c0_1 = arith.constant 0 : index
    %c0_2 = arith.constant 0 : index
    %2 = vector.load %arg3[%c0_1, %c0_2] : memref<1x128xf32, #tpu.memory_space<vmem>>, vector<1x128xf32>
    %3 = vector.shape_cast %2 : vector<1x128xf32> to vector<1x1x128xf32>
    %c0_3 = arith.constant 0 : index
    %c0_4 = arith.constant 0 : index
    %c0_5 = arith.constant 0 : index
    %c0_6 = arith.constant 0 : index
    %4 = vector.load %arg1[%c0_3, %c0_4, %c0_5, %c0_6] : memref<1x8x8x128xbf16, #tpu.memory_space<vmem>>, vector<1x8x8x128xbf16>
    %5 = vector.shape_cast %4 : vector<1x8x8x128xbf16> to vector<8x8x128xbf16>
    %6 = arith.extf %5 : vector<8x8x128xbf16> to vector<8x8x128xf32>
    %7 = vector.broadcast %1 : vector<1x1x128xf32> to vector<8x8x128xf32>
    %8 = arith.mulf %6, %7 : vector<8x8x128xf32>
    %9 = vector.broadcast %3 : vector<1x1x128xf32> to vector<8x8x128xf32>
    %10 = arith.addf %8, %9 : vector<8x8x128xf32>
    %cst = arith.constant 0.000000e+00 : f32
    %11 = vector.broadcast %cst : f32 to vector<8x8x128xf32>
    %12 = arith.maximumf %10, %11 : vector<8x8x128xf32>
    %13 = vector.shape_cast %12 : vector<8x8x128xf32> to vector<64x128xf32>
    %cst_7 = arith.constant dense<0.000000e+00> : vector<128xf32>
    %14 = vector.multi_reduction <add>, %13, %cst_7 [0] : vector<64x128xf32> to vector<128xf32>
    %15 = vector.shape_cast %14 : vector<128xf32> to vector<1x128xf32>
    %cst_8 = arith.constant 1.562500e-02 : f32
    %16 = vector.broadcast %cst_8 : f32 to vector<1x128xf32>
    %17 = arith.mulf %15, %16 : vector<1x128xf32>
    %c0_9 = arith.constant 0 : index
    %c0_10 = arith.constant 0 : index
    %18 = vector.load %arg4[%c0_9, %c0_10] : memref<128x128xf32, #tpu.memory_space<vmem>>, vector<128x128xf32>
    %cst_11 = arith.constant dense<0.000000e+00> : vector<1x128xf32>
    %19 = tpu.matmul %17, %18, %cst_11 {dimension_numbers = #tpu.dot_dimension_numbers<[1], [0], [0], [1], [0, 0, 1, 1], [], []>} : vector<1x128xf32>, vector<128x128xf32>, vector<1x128xf32> -> vector<1x128xf32>
    %cst_12 = arith.constant 0.000000e+00 : f32
    %20 = vector.broadcast %cst_12 : f32 to vector<1x128xf32>
    %21 = arith.maximumf %19, %20 : vector<1x128xf32>
    %c0_13 = arith.constant 0 : index
    %c0_14 = arith.constant 0 : index
    %22 = vector.load %arg5[%c0_13, %c0_14] : memref<128x128xf32, #tpu.memory_space<vmem>>, vector<128x128xf32>
    %cst_15 = arith.constant dense<0.000000e+00> : vector<1x128xf32>
    %23 = tpu.matmul %21, %22, %cst_15 {dimension_numbers = #tpu.dot_dimension_numbers<[1], [0], [0], [1], [0, 0, 1, 1], [], []>} : vector<1x128xf32>, vector<128x128xf32>, vector<1x128xf32> -> vector<1x128xf32>
    %24 = arith.negf %23 : vector<1x128xf32>
    %25 = math.exp %24 : vector<1x128xf32>
    %cst_16 = arith.constant 1.000000e+00 : f32
    %26 = vector.broadcast %cst_16 : f32 to vector<1x128xf32>
    %27 = arith.addf %26, %25 : vector<1x128xf32>
    %28 = arith.divf %26, %27 : vector<1x128xf32>
    %29 = vector.broadcast %28 : vector<1x128xf32> to vector<64x128xf32>
    %30 = arith.mulf %13, %29 : vector<64x128xf32>
    %31 = vector.shape_cast %30 : vector<64x128xf32> to vector<8x8x128xf32>
    %c0_17 = arith.constant 0 : index
    %c0_18 = arith.constant 0 : index
    %c0_19 = arith.constant 0 : index
    %c0_20 = arith.constant 0 : index
    %32 = vector.load %arg6[%c0_17, %c0_18, %c0_19, %c0_20] : memref<1x8x8x128xf32, #tpu.memory_space<vmem>>, vector<1x8x8x128xf32>
    %33 = vector.shape_cast %32 : vector<1x8x8x128xf32> to vector<8x8x128xf32>
    %34 = vector.shape_cast %31 : vector<8x8x128xf32> to vector<1x8x8x128xf32>
    tpu.vector_store %arg6[%c0_17, %c0_18, %c0_19, %c0_20], %34 {strides = array<i32>} : memref<1x8x8x128xf32, #tpu.memory_space<vmem>>, vector<1x8x8x128xf32>,
    return
  }
  func.func @transform_0(%arg0: i32) -> (i32, i32, i32, i32) {
    %c0_i32 = arith.constant 0 : i32
    %c0_i32_0 = arith.constant 0 : i32
    %c0_i32_1 = arith.constant 0 : i32
    %c0_i32_2 = arith.constant 0 : i32
    return %arg0, %c0_i32, %c0_i32_0, %c0_i32_1 : i32, i32, i32, i32
  }
  func.func @transform_1(%arg0: i32) -> (i32, i32) {
    %c0_i32 = arith.constant 0 : i32
    %c0_i32_0 = arith.constant 0 : i32
    %c0_i32_1 = arith.constant 0 : i32
    return %c0_i32, %c0_i32_0 : i32, i32
  }
  func.func @transform_2(%arg0: i32) -> (i32, i32) {
    %c0_i32 = arith.constant 0 : i32
    %c0_i32_0 = arith.constant 0 : i32
    %c0_i32_1 = arith.constant 0 : i32
    return %c0_i32, %c0_i32_0 : i32, i32
  }
  func.func @transform_3(%arg0: i32) -> (i32, i32) {
    %c0_i32 = arith.constant 0 : i32
    %c0_i32_0 = arith.constant 0 : i32
    %c0_i32_1 = arith.constant 0 : i32
    return %c0_i32, %c0_i32_0 : i32, i32
  }
  func.func @transform_4(%arg0: i32) -> (i32, i32) {
    %c0_i32 = arith.constant 0 : i32
    %c0_i32_0 = arith.constant 0 : i32
    %c0_i32_1 = arith.constant 0 : i32
    return %c0_i32, %c0_i32_0 : i32, i32
  }
  func.func @transform_5(%arg0: i32) -> (i32, i32, i32, i32) {
    %c0_i32 = arith.constant 0 : i32
    %c0_i32_0 = arith.constant 0 : i32
    %c0_i32_1 = arith.constant 0 : i32
    %c0_i32_2 = arith.constant 0 : i32
    return %arg0, %c0_i32, %c0_i32_0, %c0_i32_1 : i32, i32, i32, i32
  }
}

</mosaic_0001>

<llo_original>
// kernel: se_down_forward.7
$region0: #{se_down_forward.7}
  #allocation0 [shape = 'u32[]', space=smem, size = 0x4, offset = 0x4, fixed_abs, tag = 'smem constant byte address 0x4 - core index']
  #allocation1 [shape = 'u32[144,128]{1,0:T(1,128)}', space=vmem, size = 0x12000, scoped, tag = 'internal scratch']
  %s0 = inlined_call_operand.vmem [shape: bf16[2,8,8,128], index: 0, kind: input, shape index: {}]
  %s1 = inlined_call_operand.vmem [shape: f32[1,128], index: 1, kind: input, shape index: {}]
  %s2 = inlined_call_operand.vmem [shape: f32[1,128], index: 2, kind: input, shape index: {}]
  %s3 = inlined_call_operand.vmem [shape: f32[128,128], index: 3, kind: input, shape index: {}]
  %s4 = inlined_call_operand.vmem [shape: f32[128,128], index: 4, kind: input, shape index: {}]
  %s5 = inlined_call_operand.vmem [shape: f32[2,8,8,128], index: 5, kind: output, shape index: {}]
  %s6 = sld [smem:[#allocation0]]
  $region53: #{se_down_forward.7} parent=0
    _
  %s8 = ssub.s32 1, %s6
  %s9 = scalar_select 0, %s8, %s6
  loop: start=0, step=1, limit=4
  $region2: #{se_down_forward.7} parent=0 // loop_pre_header
    _
  $region3: #{se_down_forward.7} parent=0 // loop_header
    %s11 = sphi 0, %s15
    %p12 = scmp.ge.s32.totalorder %s11, 4
    %s21 = sphi 0, %s23
    %s24 = sphi 0, %s21
    %s25 = sphi 0, %s24
    %s41 = sphi 0, %s25
    %s45 = sphi 0, %s45
    %s47 = sphi 0, %s45
    %s48 = sphi 0, %s47
    %s62 = sphi 0, %s48
    %s66 = sphi 0, %s66
    %s68 = sphi 0, %s66
    %s69 = sphi 0, %s68
    %s83 = sphi 0, %s69
    %s87 = sphi 0, %s87
    %s89 = sphi 0, %s87
    %s90 = sphi 0, %s89
    %s104 = sphi 0, %s90
    %s108 = sphi 0, %s108
    %s110 = sphi 0, %s108
    %s111 = sphi 0, %s110
    %s125 = sphi 0, %s111
    %s131 = sphi 0, %s133
    %s134 = sphi 0, %s131
    %s135 = sphi 0, %s134
    %s151 = sphi 0, %s135
  $region4: #{se_down_forward.7} parent=0 // loop_header_branch
    %14 = sbr.rel (%p12) target = $region8
  $region5: #{se_down_forward.7} parent=0 // loop_body
    %s16 = ssub.s32 %s11, 1
    %s17 = ssub.s32 %s11, 2
    %s18 = sadd.s32 %s11, 1
    %s19 = ssub.s32 %s11, %s18
    %p20 = scmp.eq.s32.totalorder %s19, 0
    %s22 = sadd.s32 %s21, 1
    %s23 = scalar_select %p20, %s21, %s22
    %p26 = pneg %p20
    %p27 = scmp.eq.s32.totalorder %s11, 1
    %p28 = por %p26, %p27
    %p29 = scmp.ne.s32.totalorder %s21, %s24
    %p30 = scmp.eq.s32.totalorder %s11, 0
    %p31 = por %p29, %p30
    %p32 = scmp.ne.s32.totalorder %s21, %s24
    %p33 = scmp.eq.s32.totalorder %s16, 1
    %p34 = por %p32, %p33
    %p35 = scmp.ne.s32.totalorder %s24, %s25
    %p36 = scmp.eq.s32.totalorder %s16, 0
    %p37 = por %p35, %p36
    %p38 = scmp.ne.s32.totalorder %s24, %s25
    %p39 = scmp.eq.s32.totalorder %s17, 1
    %p40 = por %p38, %p39
    %p42 = scmp.ne.s32.totalorder %s25, %s41
    %p43 = scmp.eq.s32.totalorder %s17, 0
    %p44 = por %p42, %p43
    %s46 = sadd.s32 %s45, 1
    %p49 = scmp.eq.s32.totalorder %s11, 1
    %p50 = scmp.ne.s32.totalorder %s45, %s47
    %p51 = scmp.eq.s32.totalorder %s11, 0
    %p52 = por %p50, %p51
    %p53 = scmp.ne.s32.totalorder %s45, %s47
    %p54 = scmp.eq.s32.totalorder %s16, 1
    %p55 = por %p53, %p54
    %p56 = scmp.ne.s32.totalorder %s47, %s48
    %p57 = scmp.eq.s32.totalorder %s16, 0
    %p58 = por %p56, %p57
    %p59 = scmp.ne.s32.totalorder %s47, %s48
    %p60 = scmp.eq.s32.totalorder %s17, 1
    %p61 = por %p59, %p60
    %p63 = scmp.ne.s32.totalorder %s48, %s62
    %p64 = scmp.eq.s32.totalorder %s17, 0
    %p65 = por %p63, %p64
    %s67 = sadd.s32 %s66, 1
    %p70 = scmp.eq.s32.totalorder %s11, 1
    %p71 = scmp.ne.s32.totalorder %s66, %s68
    %p72 = scmp.eq.s32.totalorder %s11, 0
    %p73 = por %p71, %p72
    %p74 = scmp.ne.s32.totalorder %s66, %s68
    %p75 = scmp.eq.s32.totalorder %s16, 1
    %p76 = por %p74, %p75
    %p77 = scmp.ne.s32.totalorder %s68, %s69
    %p78 = scmp.eq.s32.totalorder %s16, 0
    %p79 = por %p77, %p78
    %p80 = scmp.ne.s32.totalorder %s68, %s69
    %p81 = scmp.eq.s32.totalorder %s17, 1
    %p82 = por %p80, %p81
    %p84 = scmp.ne.s32.totalorder %s69, %s83
    %p85 = scmp.eq.s32.totalorder %s17, 0
    %p86 = por %p84, %p85
    %s88 = sadd.s32 %s87, 1
    %p91 = scmp.eq.s32.totalorder %s11, 1
    %p92 = scmp.ne.s32.totalorder %s87, %s89
    %p93 = scmp.eq.s32.totalorder %s11, 0
    %p94 = por %p92, %p93
    %p95 = scmp.ne.s32.totalorder %s87, %s89
    %p96 = scmp.eq.s32.totalorder %s16, 1
    %p97 = por %p95, %p96
    %p98 = scmp.ne.s32.totalorder %s89, %s90
    %p99 = scmp.eq.s32.totalorder %s16, 0
    %p100 = por %p98, %p99
    %p101 = scmp.ne.s32.totalorder %s89, %s90
    %p102 = scmp.eq.s32.totalorder %s17, 1
    %p103 = por %p101, %p102
    %p105 = scmp.ne.s32.totalorder %s90, %s104
    %p106 = scmp.eq.s32.totalorder %s17, 0
    %p107 = por %p105, %p106
    %s109 = sadd.s32 %s108, 1
    %p112 = scmp.eq.s32.totalorder %s11, 1
    %p113 = scmp.ne.s32.totalorder %s108, %s110
    %p114 = scmp.eq.s32.totalorder %s11, 0
    %p115 = por %p113, %p114
    %p116 = scmp.ne.s32.totalorder %s108, %s110
    %p117 = scmp.eq.s32.totalorder %s16, 1
    %p118 = por %p116, %p117
    %p119 = scmp.ne.s32.totalorder %s110, %s111
    %p120 = scmp.eq.s32.totalorder %s16, 0
    %p121 = por %p119, %p120
    %p122 = scmp.ne.s32.totalorder %s110, %s111
    %p123 = scmp.eq.s32.totalorder %s17, 1
    %p124 = por %p122, %p123
    %p126 = scmp.ne.s32.totalorder %s111, %s125
    %p127 = scmp.eq.s32.totalorder %s17, 0
    %p128 = por %p126, %p127
    %s129 = ssub.s32 %s11, %s18
    %p130 = scmp.eq.s32.totalorder %s129, 0
    %s132 = sadd.s32 %s131, 1
    %s133 = scalar_select %p130, %s131, %s132
    %p136 = pneg %p130
    %p137 = scmp.eq.s32.totalorder %s11, 1
    %p138 = por %p136, %p137
    %p139 = scmp.ne.s32.totalorder %s131, %s134
    %p140 = scmp.eq.s32.totalorder %s11, 0
    %p141 = por %p139, %p140
    %p142 = scmp.ne.s32.totalorder %s131, %s134
    %p143 = scmp.eq.s32.totalorder %s16, 1
    %p144 = por %p142, %p143
    %p145 = scmp.ne.s32.totalorder %s134, %s135
    %p146 = scmp.eq.s32.totalorder %s16, 0
    %p147 = por %p145, %p146
    %p148 = scmp.ne.s32.totalorder %s134, %s135
    %p149 = scmp.eq.s32.totalorder %s17, 1
    %p150 = por %p148, %p149
    %p152 = scmp.ne.s32.totalorder %s135, %s151
    %p153 = scmp.eq.s32.totalorder %s17, 0
    %p154 = por %p152, %p153
    %p155 = scmp.le.s32.totalorder 1, %s11
    %p156 = scmp.lt.s32.totalorder %s11, 3
    %p157 = pnand %p155, %p156
    %p158 = pneg %p157
    // Predicated region
    $region9: #{se_down_forward.7} parent=5 // pred_check
      _
    $region10: #{se_down_forward.7} parent=5 // pred_check_branch
      %160 = sbr.rel (%p157) target = $region12
    $region11: #{se_down_forward.7} parent=5 // pred_region
      %s161 = ssub.s32 %s11, 1
      // Predicated region
      $region13: #{se_down_forward.7} parent=11 // pred_check
        %p162 = pneg %p58
      $region14: #{se_down_forward.7} parent=11 // pred_check_branch
        %164 = sbr.rel (%p162) target = $region16
      $region15: #{se_down_forward.7} parent=11 // pred_region
        _
      $region16: #{se_down_forward.7} parent=11 // pred_fallthru
        _
      // Predicated region
      $region17: #{se_down_forward.7} parent=11 // pred_check
        %p165 = pneg %p79
      $region18: #{se_down_forward.7} parent=11 // pred_check_branch
        %167 = sbr.rel (%p165) target = $region20
      $region19: #{se_down_forward.7} parent=11 // pred_region
        _
      $region20: #{se_down_forward.7} parent=11 // pred_fallthru
        _
      // Predicated region
      $region21: #{se_down_forward.7} parent=11 // pred_check
        %p168 = pneg %p100
      $region22: #{se_down_forward.7} parent=11 // pred_check_branch
        %170 = sbr.rel (%p168) target = $region24
      $region23: #{se_down_forward.7} parent=11 // pred_region
        _
      $region24: #{se_down_forward.7} parent=11 // pred_fallthru
        _
      // Predicated region
      $region25: #{se_down_forward.7} parent=11 // pred_check
        %p171 = pneg %p121
      $region26: #{se_down_forward.7} parent=11 // pred_check_branch
        %173 = sbr.rel (%p171) target = $region28
      $region27: #{se_down_forward.7} parent=11 // pred_region
        _
      $region28: #{se_down_forward.7} parent=11 // pred_fallthru
        _
    $region12: #{se_down_forward.7} parent=5 // pred_fallthru
      _
    %p174 = scmp.lt.s32.totalorder %s11, 2
    // Predicated region
    $region29: #{se_down_forward.7} parent=5 // pred_check
      %p175 = pneg %p174
    $region30: #{se_down_forward.7} parent=5 // pred_check_branch
      %177 = sbr.rel (%p175) target = $region32
    $region31: #{se_down_forward.7} parent=5 // pred_region
      // Predicated region
      $region33: #{se_down_forward.7} parent=31 // pred_check
        %p178 = pneg %p31
      $region34: #{se_down_forward.7} parent=31 // pred_check_branch
        %180 = sbr.rel (%p178) target = $region36
      $region35: #{se_down_forward.7} parent=31 // pred_region
        %p181 = scmp.lt.s32.totalorder %s11, 1
        %s182 = scalar_select %p181, %s11, 1
        %s183 = smul.addr %s182, 8
        %s184 = smul.addr %s183, 4
        %s185 = scalar_lea.vmem %s0, %s184
      $region36: #{se_down_forward.7} parent=31 // pred_fallthru
        _
    $region32: #{se_down_forward.7} parent=5 // pred_fallthru
      _
    %p186 = scmp.le.s32.totalorder 1, %s11
    %p187 = scmp.lt.s32.totalorder %s11, 3
    %p188 = pnand %p186, %p187
    %p189 = pneg %p188
    // Predicated region
    $region37: #{se_down_forward.7} parent=5 // pred_check
      _
    $region38: #{se_down_forward.7} parent=5 // pred_check_branch
      %191 = sbr.rel (%p188) target = $region40
    $region39: #{se_down_forward.7} parent=5 // pred_region
      %s192 = ssub.s32 %s11, 1
      %p193 = scmp.lt.s32.totalorder %s16, 1
      %s194 = scalar_select %p193, %s16, 1
      %s195 = smul.addr %s194, 8
      %s196 = smul.addr %s195, 4
      %s197 = scalar_lea.vmem %s0, %s196
      %p198 = pneg %p37
      %p199 = pneg %p34
      %p200 = pneg %p58
      %p201 = pneg %p55
      %p202 = pneg %p79
      %p203 = pneg %p76
      %p204 = pneg %p100
      %p205 = pneg %p97
      %p206 = pneg %p121
      %p207 = pneg %p118
      %p208 = pneg %p147
      %p209 = pneg %p144
      %p210 = scmp.lt.s32.totalorder %s16, 1
      %s211 = scalar_select %p210, %s16, 1
      %s212 = smul.addr %s211, 8
      %s213 = smul.addr %s212, 8
      %s214 = scalar_lea.vmem %s5, %s213
      %p215 = scmp.lt.s32.totalorder %s16, 1
      %s216 = scalar_select %p215, %s16, 1
      %s217 = smul.addr %s216, 8
      %s218 = smul.addr %s217, 4
      %s219 = scalar_lea.vmem %s0, %s218
      %p220 = scmp.lt.s32.totalorder %s16, 1
      %s221 = scalar_select %p220, %s16, 1
      %s222 = smul.addr %s221, 8
      %s223 = smul.addr %s222, 8
      %s224 = scalar_lea.vmem %s5, %s223
      %v225 = vld [vmem:[%s1] sm:$0x1]
      %v226 = vld [vmem:[%s2] sm:$0x1]
      %v227 = vld [vmem:[%s219] sm:$0xf]
      %v228 = vld [vmem:[%s219 + $0x4] sm:$0xf]
      %v229 = vld [vmem:[%s219 + $0x8] sm:$0xf]
      %v230 = vld [vmem:[%s219 + $0xc] sm:$0xf]
      %v231 = vld [vmem:[%s219 + $0x10] sm:$0xf]
      %v232 = vld [vmem:[%s219 + $0x14] sm:$0xf]
      %v233 = vld [vmem:[%s219 + $0x18] sm:$0xf]
      %v234 = vld [vmem:[%s219 + $0x1c] sm:$0xf]
      %v235 = vunpack.c.l.bf16 %v227
      %v236 = vunpack.c.l.bf16 %v228
      %v237 = vunpack.c.l.bf16 %v229
      %v238 = vunpack.c.l.bf16 %v230
      %v239 = vunpack.c.l.bf16 %v231
      %v240 = vunpack.c.l.bf16 %v232
      %v241 = vunpack.c.l.bf16 %v233
      %v242 = vunpack.c.l.bf16 %v234
      %v244 = vlaneseq
      %v245 = vshrl.u32 %v244, 7
      %v246 = vsub.s32 0, %v245
      %v247 = vrot.slane %v225, %v246
      %v249 = vmul.f32 %v235, %v247
      %v250 = vmul.f32 %v236, %v247
      %v251 = vmul.f32 %v237, %v247
      %v252 = vmul.f32 %v238, %v247
      %v253 = vmul.f32 %v239, %v247
      %v254 = vmul.f32 %v240, %v247
      %v255 = vmul.f32 %v241, %v247
      %v256 = vmul.f32 %v242, %v247
      %v258 = vlaneseq
      %v259 = vshrl.u32 %v258, 7
      %v260 = vsub.s32 0, %v259
      %v261 = vrot.slane %v226, %v260
      %v263 = vadd.f32 %v249, %v261
      %v264 = vadd.f32 %v250, %v261
      %v265 = vadd.f32 %v251, %v261
      %v266 = vadd.f32 %v252, %v261
      %v267 = vadd.f32 %v253, %v261
      %v268 = vadd.f32 %v254, %v261
      %v269 = vadd.f32 %v255, %v261
      %v270 = vadd.f32 %v256, %v261
      %v271 = vmax.f32 %v263, 0.0
      %v272 = vmax.f32 %v264, 0.0
      %v273 = vmax.f32 %v265, 0.0
      %v274 = vmax.f32 %v266, 0.0
      %v275 = vmax.f32 %v267, 0.0
      %v276 = vmax.f32 %v268, 0.0
      %v277 = vmax.f32 %v269, 0.0
      %v278 = vmax.f32 %v270, 0.0
      %v279 = vadd.f32 %v271, %v272
      %v280 = vadd.f32 %v279, %v273
      %v281 = vadd.f32 %v280, %v274
      %v282 = vadd.f32 %v281, %v275
      %v283 = vadd.f32 %v282, %v276
      %v284 = vadd.f32 %v283, %v277
      %v285 = vadd.f32 %v284, %v278
      %v286 = vrot.slane %v285, 4
      %v287 = vadd.f32 %v285, %v286
      %v288 = vrot.slane %v287, 2
      %v289 = vadd.f32 %v287, %v288
      %v290 = vrot.slane %v289, 1
      %v291 = vadd.f32 %v289, %v290
      %v292 = vmul.f32 %v291, 0.015625
      %v293 = vld [vmem:[%s3] sm:$0xff]
      %v294 = vld [vmem:[%s3 + $0x8] sm:$0xff]
      %v295 = vld [vmem:[%s3 + $0x10] sm:$0xff]
      %v296 = vld [vmem:[%s3 + $0x18] sm:$0xff]
      %v297 = vld [vmem:[%s3 + $0x20] sm:$0xff]
      %v298 = vld [vmem:[%s3 + $0x28] sm:$0xff]
      %v299 = vld [vmem:[%s3 + $0x30] sm:$0xff]
      %v300 = vld [vmem:[%s3 + $0x38] sm:$0xff]
      %v301 = vld [vmem:[%s3 + $0x40] sm:$0xff]
      %v302 = vld [vmem:[%s3 + $0x48] sm:$0xff]
      %v303 = vld [vmem:[%s3 + $0x50] sm:$0xff]
      %v304 = vld [vmem:[%s3 + $0x58] sm:$0xff]
      %v305 = vld [vmem:[%s3 + $0x60] sm:$0xff]
      %v306 = vld [vmem:[%s3 + $0x68] sm:$0xff]
      %v307 = vld [vmem:[%s3 + $0x70] sm:$0xff]
      %v308 = vld [vmem:[%s3 + $0x78] sm:$0xff]
      %309 = vmatprep.subr.mxu0 0.0
      %310 = vmatpush1.msra.mxu0 %v293
      %311 = vmatprep.subr.mxu0 0.0
      %312 = vmatpush1.msra.mxu0 %v294
      %313 = vmatprep.subr.mxu0 0.0
      %314 = vmatpush1.msra.mxu0 %v295
      %315 = vmatprep.subr.mxu0 0.0
      %316 = vmatpush1.msra.mxu0 %v296
      %317 = vmatprep.subr.mxu0 0.0
      %318 = vmatpush1.msra.mxu0 %v297
      %319 = vmatprep.subr.mxu0 0.0
      %320 = vmatpush1.msra.mxu0 %v298
      %321 = vmatprep.subr.mxu0 0.0
      %322 = vmatpush1.msra.mxu0 %v299
      %323 = vmatprep.subr.mxu0 0.0
      %324 = vmatpush1.msra.mxu0 %v300
      %325 = vmatprep.subr.mxu0 0.0
      %326 = vmatpush1.msra.mxu0 %v301
      %327 = vmatprep.subr.mxu0 0.0
      %328 = vmatpush1.msra.mxu0 %v302
      %329 = vmatprep.subr.mxu0 0.0
      %330 = vmatpush1.msra.mxu0 %v303
      %331 = vmatprep.subr.mxu0 0.0
      %332 = vmatpush1.msra.mxu0 %v304
      %333 = vmatprep.subr.mxu0 0.0
      %334 = vmatpush1.msra.mxu0 %v305
      %335 = vmatprep.subr.mxu0 0.0
      %336 = vmatpush1.msra.mxu0 %v306
      %337 = vmatprep.subr.mxu0 0.0
      %338 = vmatpush1.msra.mxu0 %v307
      %339 = vmatprep.subr.mxu0 0.0
      %340 = vmatpush1.msra.mxu0 %v308
      %341 = vmatprep.subr.mxu0 0.0
      %342 = vmatpush1.msra.mxu0 0.0
      %343 = vmatprep.subr.mxu0 0.0
      %344 = vmatpush1.msra.mxu0 0.0
      %345 = vmatprep.subr.mxu0 0.0
      %346 = vmatpush1.msra.mxu0 0.0
      %347 = vmatprep.subr.mxu0 0.0
      %348 = vmatpush1.msra.mxu0 0.0
      %349 = vmatprep.subr.mxu0 0.0
      %350 = vmatpush1.msra.mxu0 0.0
      %351 = vmatprep.subr.mxu0 0.0
      %352 = vmatpush1.msra.mxu0 0.0
      %353 = vmatprep.subr.mxu0 0.0
      %354 = vmatpush1.msra.mxu0 0.0
      %355 = vmatprep.subr.mxu0 0.0
      %356 = vmatpush1.msra.mxu0 0.0
      %357 = vmatprep.subr.mxu0 0.0
      %358 = vmatpush1.msra.mxu0 0.0
      %359 = vmatprep.subr.mxu0 0.0
      %360 = vmatpush1.msra.mxu0 0.0
      %361 = vmatprep.subr.mxu0 0.0
      %362 = vmatpush1.msra.mxu0 0.0
      %363 = vmatprep.subr.mxu0 0.0
      %364 = vmatpush1.msra.mxu0 0.0
      %365 = vmatprep.subr.mxu0 0.0
      %366 = vmatpush1.msra.mxu0 0.0
      %367 = vmatprep.subr.mxu0 0.0
      %368 = vmatpush1.msra.mxu0 0.0
      %369 = vmatprep.subr.mxu0 0.0
      %370 = vmatpush1.msra.mxu0 0.0
      %371 = vmatprep.subr.mxu0 0.0
      %372 = vmatpush1.msra.mxu0 0.0
      %373 = vmatprep.mubr.f32.mxu0 0.0
      %374 = vmatmul.mubr.f32.gmra.mrb[0].mxu0 %v292
      %v375 = vpop.f32.mrb[0].mxu0
      %v376 = vadd.f32 0.0, %v375
      %v377 = vpop.f32.mrb[0].mxu0
      %378 = vdwg.mxu0
      %v379 = vmax.f32 %v376, 0.0
      %v380 = vld [vmem:[%s4] sm:$0xff]
      %v381 = vld [vmem:[%s4 + $0x8] sm:$0xff]
      %v382 = vld [vmem:[%s4 + $0x10] sm:$0xff]
      %v383 = vld [vmem:[%s4 + $0x18] sm:$0xff]
      %v384 = vld [vmem:[%s4 + $0x20] sm:$0xff]
      %v385 = vld [vmem:[%s4 + $0x28] sm:$0xff]
      %v386 = vld [vmem:[%s4 + $0x30] sm:$0xff]
      %v387 = vld [vmem:[%s4 + $0x38] sm:$0xff]
      %v388 = vld [vmem:[%s4 + $0x40] sm:$0xff]
      %v389 = vld [vmem:[%s4 + $0x48] sm:$0xff]
      %v390 = vld [vmem:[%s4 + $0x50] sm:$0xff]
      %v391 = vld [vmem:[%s4 + $0x58] sm:$0xff]
      %v392 = vld [vmem:[%s4 + $0x60] sm:$0xff]
      %v393 = vld [vmem:[%s4 + $0x68] sm:$0xff]
      %v394 = vld [vmem:[%s4 + $0x70] sm:$0xff]
      %v395 = vld [vmem:[%s4 + $0x78] sm:$0xff]
      %396 = vmatprep.subr.mxu0 0.0
      %397 = vmatpush1.msra.mxu0 %v380
      %398 = vmatprep.subr.mxu0 0.0
      %399 = vmatpush1.msra.mxu0 %v381
      %400 = vmatprep.subr.mxu0 0.0
      %401 = vmatpush1.msra.mxu0 %v382
      %402 = vmatprep.subr.mxu0 0.0
      %403 = vmatpush1.msra.mxu0 %v383
      %404 = vmatprep.subr.mxu0 0.0
      %405 = vmatpush1.msra.mxu0 %v384
      %406 = vmatprep.subr.mxu0 0.0
      %407 = vmatpush1.msra.mxu0 %v385
      %408 = vmatprep.subr.mxu0 0.0
      %409 = vmatpush1.msra.mxu0 %v386
      %410 = vmatprep.subr.mxu0 0.0
      %411 = vmatpush1.msra.mxu0 %v387
      %412 = vmatprep.subr.mxu0 0.0
      %413 = vmatpush1.msra.mxu0 %v388
      %414 = vmatprep.subr.mxu0 0.0
      %415 = vmatpush1.msra.mxu0 %v389
      %416 = vmatprep.subr.mxu0 0.0
      %417 = vmatpush1.msra.mxu0 %v390
      %418 = vmatprep.subr.mxu0 0.0
      %419 = vmatpush1.msra.mxu0 %v391
      %420 = vmatprep.subr.mxu0 0.0
      %421 = vmatpush1.msra.mxu0 %v392
      %422 = vmatprep.subr.mxu0 0.0
      %423 = vmatpush1.msra.mxu0 %v393
      %424 = vmatprep.subr.mxu0 0.0
      %425 = vmatpush1.msra.mxu0 %v394
      %426 = vmatprep.subr.mxu0 0.0
      %427 = vmatpush1.msra.mxu0 %v395
      %428 = vmatprep.subr.mxu0 0.0
      %429 = vmatpush1.msra.mxu0 0.0
      %430 = vmatprep.subr.mxu0 0.0
      %431 = vmatpush1.msra.mxu0 0.0
      %432 = vmatprep.subr.mxu0 0.0
      %433 = vmatpush1.msra.mxu0 0.0
      %434 = vmatprep.subr.mxu0 0.0
      %435 = vmatpush1.msra.mxu0 0.0
      %436 = vmatprep.subr.mxu0 0.0
      %437 = vmatpush1.msra.mxu0 0.0
      %438 = vmatprep.subr.mxu0 0.0
      %439 = vmatpush1.msra.mxu0 0.0
      %440 = vmatprep.subr.mxu0 0.0
      %441 = vmatpush1.msra.mxu0 0.0
      %442 = vmatprep.subr.mxu0 0.0
      %443 = vmatpush1.msra.mxu0 0.0
      %444 = vmatprep.subr.mxu0 0.0
      %445 = vmatpush1.msra.mxu0 0.0
      %446 = vmatprep.subr.mxu0 0.0
      %447 = vmatpush1.msra.mxu0 0.0
      %448 = vmatprep.subr.mxu0 0.0
      %449 = vmatpush1.msra.mxu0 0.0
      %450 = vmatprep.subr.mxu0 0.0
      %451 = vmatpush1.msra.mxu0 0.0
      %452 = vmatprep.subr.mxu0 0.0
      %453 = vmatpush1.msra.mxu0 0.0
      %454 = vmatprep.subr.mxu0 0.0
      %455 = vmatpush1.msra.mxu0 0.0
      %456 = vmatprep.subr.mxu0 0.0
      %457 = vmatpush1.msra.mxu0 0.0
      %458 = vmatprep.subr.mxu0 0.0
      %459 = vmatpush1.msra.mxu0 0.0
      %460 = vmatprep.mubr.f32.mxu0 0.0
      %461 = vmatmul.mubr.f32.gmra.mrb[0].mxu0 %v379
      %v462 = vpop.f32.mrb[0].mxu0
      %v463 = vadd.f32 0.0, %v462
      %v464 = vpop.f32.mrb[0].mxu0
      %465 = vdwg.mxu0
      %v466 = vxor.u32 %v463, 2147483648
      %v467 = vmul.f32 %v466, 1.442695
      %v468 = vpow.pop %v467
      %v469 = vadd.f32 %v468, 1.0
      %v470 = vrcp.pop %v469
      %v471 = vmul.f32 1.0, %v470
      %v472 = vlaneseq
      %v473 = vshrl.u32 %v472, 7
      %v474 = vsub.s32 0, %v473
      %v475 = vrot.slane %v471, %v474
      %v476 = vmul.f32 %v271, %v475
      %v477 = vmul.f32 %v272, %v475
      %v478 = vmul.f32 %v273, %v475
      %v479 = vmul.f32 %v274, %v475
      %v480 = vmul.f32 %v275, %v475
      %v481 = vmul.f32 %v276, %v475
      %v482 = vmul.f32 %v277, %v475
      %v483 = vmul.f32 %v278, %v475
      %484 = vst [vmem:[%s224] sm:$0xff] %v476
      %485 = vst [vmem:[%s224 + $0x8] sm:$0xff] %v477
      %486 = vst [vmem:[%s224 + $0x10] sm:$0xff] %v478
      %487 = vst [vmem:[%s224 + $0x18] sm:$0xff] %v479
      %488 = vst [vmem:[%s224 + $0x20] sm:$0xff] %v480
      %489 = vst [vmem:[%s224 + $0x28] sm:$0xff] %v481
      %490 = vst [vmem:[%s224 + $0x30] sm:$0xff] %v482
      %491 = vst [vmem:[%s224 + $0x38] sm:$0xff] %v483
      %p492 = scmp.lt.s32.totalorder %s16, 1
      %s493 = scalar_select %p492, %s16, 1
      %s494 = smul.addr %s493, 8
      %s495 = smul.addr %s494, 8
      %s496 = scalar_lea.vmem %s5, %s495
      // Predicated region
      $region41: #{se_down_forward.7} parent=39 // pred_check
        %p497 = pneg %p144
      $region42: #{se_down_forward.7} parent=39 // pred_check_branch
        %499 = sbr.rel (%p497) target = $region44
      $region43: #{se_down_forward.7} parent=39 // pred_region
        _
      $region44: #{se_down_forward.7} parent=39 // pred_fallthru
        _
    $region40: #{se_down_forward.7} parent=5 // pred_fallthru
      _
    %p500 = scmp.le.s32.totalorder 2, %s11
    // Predicated region
    $region45: #{se_down_forward.7} parent=5 // pred_check
      %p501 = pneg %p500
    $region46: #{se_down_forward.7} parent=5 // pred_check_branch
      %503 = sbr.rel (%p501) target = $region48
    $region47: #{se_down_forward.7} parent=5 // pred_region
      %s504 = ssub.s32 %s11, 2
      // Predicated region
      $region49: #{se_down_forward.7} parent=47 // pred_check
        %p505 = pneg %p150
      $region50: #{se_down_forward.7} parent=47 // pred_check_branch
        %507 = sbr.rel (%p505) target = $region52
      $region51: #{se_down_forward.7} parent=47 // pred_region
        %p508 = scmp.lt.s32.totalorder %s17, 1
        %s509 = scalar_select %p508, %s17, 1
        %s510 = smul.addr %s509, 8
        %s511 = smul.addr %s510, 8
        %s512 = scalar_lea.vmem %s5, %s511
      $region52: #{se_down_forward.7} parent=47 // pred_fallthru
        _
    $region48: #{se_down_forward.7} parent=5 // pred_fallthru
      _
  $region6: #{se_down_forward.7} parent=0 // loop_footer
    %s15 = sadd.s32 1, %s11
  $region7: #{se_down_forward.7} parent=0 // loop_footer_branch
    %10 = sbr.rel target = $region3
  $region8: #{se_down_forward.7} parent=0 // loop_exit
    _

// kernel: se_down_forward.4
$region0: #{se_down_forward.4}
  #allocation0 [shape = 'u32[]', space=smem, size = 0x4, offset = 0x4, fixed_abs, tag = 'smem constant byte address 0x4 - core index']
  #allocation1 [shape = 'u32[144,128]{1,0:T(1,128)}', space=vmem, size = 0x12000, scoped, tag = 'internal scratch']
  #allocation2 [shape = 'f32[10,24,128]{2,1,0:T(8,128)}', space=vmem, size = 0x1e000, scoped, tag = 'scratch operand']
  %s0 = inlined_call_operand.vmem [shape: f32[2,8,2,8,256], index: 0, kind: input, shape index: {}]
  %s1 = inlined_call_operand.vmem [shape: f32[1,128], index: 1, kind: input, shape index: {}]
  %s2 = inlined_call_operand.vmem [shape: f32[1,128], index: 2, kind: input, shape index: {}]
  %s3 = inlined_call_operand.vmem [shape: f32[9,128,128], index: 3, kind: input, shape index: {}]
  %s4 = inlined_call_operand.vmem [shape: f32[1,128], index: 4, kind: input, shape index: {}]
  %s5 = inlined_call_operand.vmem [shape: bf16[2,8,8,128], index: 5, kind: output, shape index: {0}]
  %s6 = inlined_call_operand.vmem [shape: f32[2,1,256], index: 6, kind: output, shape index: {1}]
  %7 = xla_tuple %s5, %s6
  %s8 = sld [smem:[#allocation0]]
  $region61: #{se_down_forward.4} parent=0
    _
  %s10 = ssub.s32 1, %s8
  %s11 = scalar_select 0, %s10, %s8
  loop: start=0, step=1, limit=4
  $region2: #{se_down_forward.4} parent=0 // loop_pre_header
    _
  $region3: #{se_down_forward.4} parent=0 // loop_header
    %s13 = sphi 0, %s17
    %p14 = scmp.ge.s32.totalorder %s13, 4
    %s23 = sphi 0, %s25
    %s26 = sphi 0, %s23
    %s27 = sphi 0, %s26
    %s43 = sphi 0, %s27
    %s47 = sphi 0, %s47
    %s49 = sphi 0, %s47
    %s50 = sphi 0, %s49
    %s64 = sphi 0, %s50
    %s68 = sphi 0, %s68
    %s70 = sphi 0, %s68
    %s71 = sphi 0, %s70
    %s85 = sphi 0, %s71
    %s89 = sphi 0, %s89
    %s91 = sphi 0, %s89
    %s92 = sphi 0, %s91
    %s106 = sphi 0, %s92
    %s110 = sphi 0, %s110
    %s112 = sphi 0, %s110
    %s113 = sphi 0, %s112
    %s127 = sphi 0, %s113
    %s133 = sphi 0, %s135
    %s136 = sphi 0, %s133
    %s137 = sphi 0, %s136
    %s153 = sphi 0, %s137
    %s159 = sphi 0, %s161
    %s162 = sphi 0, %s159
    %s163 = sphi 0, %s162
    %s179 = sphi 0, %s163
  $region4: #{se_down_forward.4} parent=0 // loop_header_branch
    %16 = sbr.rel (%p14) target = $region8
  $region5: #{se_down_forward.4} parent=0 // loop_body
    %s18 = ssub.s32 %s13, 1
    %s19 = ssub.s32 %s13, 2
    %s20 = sadd.s32 %s13, 1
    %s21 = ssub.s32 %s13, %s20
    %p22 = scmp.eq.s32.totalorder %s21, 0
    %s24 = sadd.s32 %s23, 1
    %s25 = scalar_select %p22, %s23, %s24
    %p28 = pneg %p22
    %p29 = scmp.eq.s32.totalorder %s13, 1
    %p30 = por %p28, %p29
    %p31 = scmp.ne.s32.totalorder %s23, %s26
    %p32 = scmp.eq.s32.totalorder %s13, 0
    %p33 = por %p31, %p32
    %p34 = scmp.ne.s32.totalorder %s23, %s26
    %p35 = scmp.eq.s32.totalorder %s18, 1
    %p36 = por %p34, %p35
    %p37 = scmp.ne.s32.totalorder %s26, %s27
    %p38 = scmp.eq.s32.totalorder %s18, 0
    %p39 = por %p37, %p38
    %p40 = scmp.ne.s32.totalorder %s26, %s27
    %p41 = scmp.eq.s32.totalorder %s19, 1
    %p42 = por %p40, %p41
    %p44 = scmp.ne.s32.totalorder %s27, %s43
    %p45 = scmp.eq.s32.totalorder %s19, 0
    %p46 = por %p44, %p45
    %s48 = sadd.s32 %s47, 1
    %p51 = scmp.eq.s32.totalorder %s13, 1
    %p52 = scmp.ne.s32.totalorder %s47, %s49
    %p53 = scmp.eq.s32.totalorder %s13, 0
    %p54 = por %p52, %p53
    %p55 = scmp.ne.s32.totalorder %s47, %s49
    %p56 = scmp.eq.s32.totalorder %s18, 1
    %p57 = por %p55, %p56
    %p58 = scmp.ne.s32.totalorder %s49, %s50
    %p59 = scmp.eq.s32.totalorder %s18, 0
    %p60 = por %p58, %p59
    %p61 = scmp.ne.s32.totalorder %s49, %s50
    %p62 = scmp.eq.s32.totalorder %s19, 1
    %p63 = por %p61, %p62
    %p65 = scmp.ne.s32.totalorder %s50, %s64
    %p66 = scmp.eq.s32.totalorder %s19, 0
    %p67 = por %p65, %p66
    %s69 = sadd.s32 %s68, 1
    %p72 = scmp.eq.s32.totalorder %s13, 1
    %p73 = scmp.ne.s32.totalorder %s68, %s70
    %p74 = scmp.eq.s32.totalorder %s13, 0
    %p75 = por %p73, %p74
    %p76 = scmp.ne.s32.totalorder %s68, %s70
    %p77 = scmp.eq.s32.totalorder %s18, 1
    %p78 = por %p76, %p77
    %p79 = scmp.ne.s32.totalorder %s70, %s71
    %p80 = scmp.eq.s32.totalorder %s18, 0
    %p81 = por %p79, %p80
    %p82 = scmp.ne.s32.totalorder %s70, %s71
    %p83 = scmp.eq.s32.totalorder %s19, 1
    %p84 = por %p82, %p83
    %p86 = scmp.ne.s32.totalorder %s71, %s85
    %p87 = scmp.eq.s32.totalorder %s19, 0
    %p88 = por %p86, %p87
    %s90 = sadd.s32 %s89, 1
    %p93 = scmp.eq.s32.totalorder %s13, 1
    %p94 = scmp.ne.s32.totalorder %s89, %s91
    %p95 = scmp.eq.s32.totalorder %s13, 0
    %p96 = por %p94, %p95
    %p97 = scmp.ne.s32.totalorder %s89, %s91
    %p98 = scmp.eq.s32.totalorder %s18, 1
    %p99 = por %p97, %p98
    %p100 = scmp.ne.s32.totalorder %s91, %s92
    %p101 = scmp.eq.s32.totalorder %s18, 0
    %p102 = por %p100, %p101
    %p103 = scmp.ne.s32.totalorder %s91, %s92
    %p104 = scmp.eq.s32.totalorder %s19, 1
    %p105 = por %p103, %p104
    %p107 = scmp.ne.s32.totalorder %s92, %s106
    %p108 = scmp.eq.s32.totalorder %s19, 0
    %p109 = por %p107, %p108
    %s111 = sadd.s32 %s110, 1
    %p114 = scmp.eq.s32.totalorder %s13, 1
    %p115 = scmp.ne.s32.totalorder %s110, %s112
    %p116 = scmp.eq.s32.totalorder %s13, 0
    %p117 = por %p115, %p116
    %p118 = scmp.ne.s32.totalorder %s110, %s112
    %p119 = scmp.eq.s32.totalorder %s18, 1
    %p120 = por %p118, %p119
    %p121 = scmp.ne.s32.totalorder %s112, %s113
    %p122 = scmp.eq.s32.totalorder %s18, 0
    %p123 = por %p121, %p122
    %p124 = scmp.ne.s32.totalorder %s112, %s113
    %p125 = scmp.eq.s32.totalorder %s19, 1
    %p126 = por %p124, %p125
    %p128 = scmp.ne.s32.totalorder %s113, %s127
    %p129 = scmp.eq.s32.totalorder %s19, 0
    %p130 = por %p128, %p129
    %s131 = ssub.s32 %s13, %s20
    %p132 = scmp.eq.s32.totalorder %s131, 0
    %s134 = sadd.s32 %s133, 1
    %s135 = scalar_select %p132, %s133, %s134
    %p138 = pneg %p132
    %p139 = scmp.eq.s32.totalorder %s13, 1
    %p140 = por %p138, %p139
    %p141 = scmp.ne.s32.totalorder %s133, %s136
    %p142 = scmp.eq.s32.totalorder %s13, 0
    %p143 = por %p141, %p142
    %p144 = scmp.ne.s32.totalorder %s133, %s136
    %p145 = scmp.eq.s32.totalorder %s18, 1
    %p146 = por %p144, %p145
    %p147 = scmp.ne.s32.totalorder %s136, %s137
    %p148 = scmp.eq.s32.totalorder %s18, 0
    %p149 = por %p147, %p148
    %p150 = scmp.ne.s32.totalorder %s136, %s137
    %p151 = scmp.eq.s32.totalorder %s19, 1
    %p152 = por %p150, %p151
    %p154 = scmp.ne.s32.totalorder %s137, %s153
    %p155 = scmp.eq.s32.totalorder %s19, 0
    %p156 = por %p154, %p155
    %s157 = ssub.s32 %s13, %s20
    %p158 = scmp.eq.s32.totalorder %s157, 0
    %s160 = sadd.s32 %s159, 1
    %s161 = scalar_select %p158, %s159, %s160
    %p164 = pneg %p158
    %p165 = scmp.eq.s32.totalorder %s13, 1
    %p166 = por %p164, %p165
    %p167 = scmp.ne.s32.totalorder %s159, %s162
    %p168 = scmp.eq.s32.totalorder %s13, 0
    %p169 = por %p167, %p168
    %p170 = scmp.ne.s32.totalorder %s159, %s162
    %p171 = scmp.eq.s32.totalorder %s18, 1
    %p172 = por %p170, %p171
    %p173 = scmp.ne.s32.totalorder %s162, %s163
    %p174 = scmp.eq.s32.totalorder %s18, 0
    %p175 = por %p173, %p174
    %p176 = scmp.ne.s32.totalorder %s162, %s163
    %p177 = scmp.eq.s32.totalorder %s19, 1
    %p178 = por %p176, %p177
    %p180 = scmp.ne.s32.totalorder %s163, %s179
    %p181 = scmp.eq.s32.totalorder %s19, 0
    %p182 = por %p180, %p181
    %p183 = scmp.le.s32.totalorder 1, %s13
    %p184 = scmp.lt.s32.totalorder %s13, 3
    %p185 = pnand %p183, %p184
    %p186 = pneg %p185
    // Predicated region
    $region9: #{se_down_forward.4} parent=5 // pred_check
      _
    $region10: #{se_down_forward.4} parent=5 // pred_check_branch
      %188 = sbr.rel (%p185) target = $region12
    $region11: #{se_down_forward.4} parent=5 // pred_region
      %s189 = ssub.s32 %s13, 1
      // Predicated region
      $region13: #{se_down_forward.4} parent=11 // pred_check
        %p190 = pneg %p60
      $region14: #{se_down_forward.4} parent=11 // pred_check_branch
        %192 = sbr.rel (%p190) target = $region16
      $region15: #{se_down_forward.4} parent=11 // pred_region
        _
      $region16: #{se_down_forward.4} parent=11 // pred_fallthru
        _
      // Predicated region
      $region17: #{se_down_forward.4} parent=11 // pred_check
        %p193 = pneg %p81
      $region18: #{se_down_forward.4} parent=11 // pred_check_branch
        %195 = sbr.rel (%p193) target = $region20
      $region19: #{se_down_forward.4} parent=11 // pred_region
        _
      $region20: #{se_down_forward.4} parent=11 // pred_fallthru
        _
      // Predicated region
      $region21: #{se_down_forward.4} parent=11 // pred_check
        %p196 = pneg %p102
      $region22: #{se_down_forward.4} parent=11 // pred_check_branch
        %198 = sbr.rel (%p196) target = $region24
      $region23: #{se_down_forward.4} parent=11 // pred_region
        _
      $region24: #{se_down_forward.4} parent=11 // pred_fallthru
        _
      // Predicated region
      $region25: #{se_down_forward.4} parent=11 // pred_check
        %p199 = pneg %p123
      $region26: #{se_down_forward.4} parent=11 // pred_check_branch
        %201 = sbr.rel (%p199) target = $region28
      $region27: #{se_down_forward.4} parent=11 // pred_region
        _
      $region28: #{se_down_forward.4} parent=11 // pred_fallthru
        _
    $region12: #{se_down_forward.4} parent=5 // pred_fallthru
      _
    %p202 = scmp.lt.s32.totalorder %s13, 2
    // Predicated region
    $region29: #{se_down_forward.4} parent=5 // pred_check
      %p203 = pneg %p202
    $region30: #{se_down_forward.4} parent=5 // pred_check_branch
      %205 = sbr.rel (%p203) target = $region32
    $region31: #{se_down_forward.4} parent=5 // pred_region
      // Predicated region
      $region33: #{se_down_forward.4} parent=31 // pred_check
        %p206 = pneg %p33
      $region34: #{se_down_forward.4} parent=31 // pred_check_branch
        %208 = sbr.rel (%p206) target = $region36
      $region35: #{se_down_forward.4} parent=31 // pred_region
        %p209 = scmp.lt.s32.totalorder %s13, 1
        %s210 = scalar_select %p209, %s13, 1
        %s211 = smul.addr %s210, 32
        %s212 = smul.addr %s211, 8
        %s213 = scalar_lea.vmem %s0, %s212
      $region36: #{se_down_forward.4} parent=31 // pred_fallthru
        _
    $region32: #{se_down_forward.4} parent=5 // pred_fallthru
      _
    %p214 = scmp.le.s32.totalorder 1, %s13
    %p215 = scmp.lt.s32.totalorder %s13, 3
    %p216 = pnand %p214, %p215
    %p217 = pneg %p216
    // Predicated region
    $region37: #{se_down_forward.4} parent=5 // pred_check
      _
    $region38: #{se_down_forward.4} parent=5 // pred_check_branch
      %219 = sbr.rel (%p216) target = $region40
    $region39: #{se_down_forward.4} parent=5 // pred_region
      %s220 = ssub.s32 %s13, 1
      %p221 = scmp.lt.s32.totalorder %s18, 1
      %s222 = scalar_select %p221, %s18, 1
      %s223 = smul.addr %s222, 32
      %s224 = smul.addr %s223, 8
      %s225 = scalar_lea.vmem %s0, %s224
      %p226 = pneg %p39
      %p227 = pneg %p36
      %p228 = pneg %p60
      %p229 = pneg %p57
      %p230 = pneg %p81
      %p231 = pneg %p78
      %p232 = pneg %p102
      %p233 = pneg %p99
      %p234 = pneg %p123
      %p235 = pneg %p120
      %p236 = pneg %p149
      %p237 = pneg %p146
      %p238 = scmp.lt.s32.totalorder %s18, 1
      %s239 = scalar_select %p238, %s18, 1
      %s240 = smul.addr %s239, 8
      %s241 = smul.addr %s240, 4
      %s242 = scalar_lea.vmem %s5, %s241
      %p243 = pneg %p175
      %p244 = pneg %p172
      %p245 = scmp.lt.s32.totalorder %s18, 1
      %s246 = scalar_select %p245, %s18, 1
      %s247 = smul.addr %s246, 2
      %s248 = scalar_lea.vmem %s6, %s247
      %p249 = scmp.lt.s32.totalorder %s18, 1
      %s250 = scalar_select %p249, %s18, 1
      %s251 = smul.addr %s250, 32
      %s252 = smul.addr %s251, 8
      %s253 = scalar_lea.vmem %s0, %s252
      %p254 = scmp.lt.s32.totalorder %s18, 1
      %s255 = scalar_select %p254, %s18, 1
      %s256 = smul.addr %s255, 8
      %s257 = smul.addr %s256, 4
      %s258 = scalar_lea.vmem %s5, %s257
      %p259 = scmp.lt.s32.totalorder %s18, 1
      %s260 = scalar_select %p259, %s18, 1
      %s261 = smul.addr %s260, 2
      %s262 = scalar_lea.vmem %s6, %s261
      %v263 = vld [vmem:[%s253] sm:$0xff]
      %v264 = vld [vmem:[%s253 + $0x8] sm:$0xff]
      %v265 = vld [vmem:[%s253 + $0x10] sm:$0xff]
      %v266 = vld [vmem:[%s253 + $0x18] sm:$0xff]
      %v267 = vld [vmem:[%s253 + $0x20] sm:$0xff]
      %v268 = vld [vmem:[%s253 + $0x28] sm:$0xff]
      %v269 = vld [vmem:[%s253 + $0x30] sm:$0xff]
      %v270 = vld [vmem:[%s253 + $0x38] sm:$0xff]
      %v271 = vld [vmem:[%s253 + $0x40] sm:$0xff]
      %v272 = vld [vmem:[%s253 + $0x48] sm:$0xff]
      %v273 = vld [vmem:[%s253 + $0x50] sm:$0xff]
      %v274 = vld [vmem:[%s253 + $0x58] sm:$0xff]
      %v275 = vld [vmem:[%s253 + $0x60] sm:$0xff]
      %v276 = vld [vmem:[%s253 + $0x68] sm:$0xff]
      %v277 = vld [vmem:[%s253 + $0x70] sm:$0xff]
      %v278 = vld [vmem:[%s253 + $0x78] sm:$0xff]
      %v279 = vld [vmem:[%s253 + $0x80] sm:$0xff]
      %v280 = vld [vmem:[%s253 + $0x88] sm:$0xff]
      %v281 = vld [vmem:[%s253 + $0x90] sm:$0xff]
      %v282 = vld [vmem:[%s253 + $0x98] sm:$0xff]
      %v283 = vld [vmem:[%s253 + $0xa0] sm:$0xff]
      %v284 = vld [vmem:[%s253 + $0xa8] sm:$0xff]
      %v285 = vld [vmem:[%s253 + $0xb0] sm:$0xff]
      %v286 = vld [vmem:[%s253 + $0xb8] sm:$0xff]
      %v287 = vld [vmem:[%s253 + $0xc0] sm:$0xff]
      %v288 = vld [vmem:[%s253 + $0xc8] sm:$0xff]
      %v289 = vld [vmem:[%s253 + $0xd0] sm:$0xff]
      %v290 = vld [vmem:[%s253 + $0xd8] sm:$0xff]
      %v291 = vld [vmem:[%s253 + $0xe0] sm:$0xff]
      %v292 = vld [vmem:[%s253 + $0xe8] sm:$0xff]
      %v293 = vld [vmem:[%s253 + $0xf0] sm:$0xff]
      %v294 = vld [vmem:[%s253 + $0xf8] sm:$0xff]
      %v295 = vmax.f32 %v263, %v265
      %v296 = vmax.f32 %v264, %v266
      %v297 = vmax.f32 %v267, %v269
      %v298 = vmax.f32 %v268, %v270
      %v299 = vmax.f32 %v271, %v273
      %v300 = vmax.f32 %v272, %v274
      %v301 = vmax.f32 %v275, %v277
      %v302 = vmax.f32 %v276, %v278
      %v303 = vmax.f32 %v279, %v281
      %v304 = vmax.f32 %v280, %v282
      %v305 = vmax.f32 %v283, %v285
      %v306 = vmax.f32 %v284, %v286
      %v307 = vmax.f32 %v287, %v289
      %v308 = vmax.f32 %v288, %v290
      %v309 = vmax.f32 %v291, %v293
      %v310 = vmax.f32 %v292, %v294
      %v311 = vmax.f32 %v295, %v296
      %v312 = vmax.f32 %v297, %v298
      %v313 = vmax.f32 %v299, %v300
      %v314 = vmax.f32 %v301, %v302
      %v315 = vmax.f32 %v303, %v304
      %v316 = vmax.f32 %v305, %v306
      %v317 = vmax.f32 %v307, %v308
      %v318 = vmax.f32 %v309, %v310
      %319 = vst [vmem:[#allocation2] sm:$0xff] 0.0
      %320 = vst [vmem:[#allocation2 + $0x8] sm:$0xff] 0.0
      %321 = vst [vmem:[#allocation2 + $0x10] sm:$0xff] 0.0
      %s322 = scalar_lea.vmem [#allocation2], 216
      %323 = vst [vmem:[%s322] sm:$0xff] 0.0
      %324 = vst [vmem:[%s322 + $0x8] sm:$0xff] 0.0
      %325 = vst [vmem:[%s322 + $0x10] sm:$0xff] 0.0
      %s326 = scalar_lea.vmem [#allocation2], 24
      %327 = vst [vmem:[%s326] sm:$0xff] 0.0
      %328 = vst [vmem:[%s326 + $0x18] sm:$0xff] 0.0
      %329 = vst [vmem:[%s326 + $0x30] sm:$0xff] 0.0
      %330 = vst [vmem:[%s326 + $0x48] sm:$0xff] 0.0
      %331 = vst [vmem:[%s326 + $0x60] sm:$0xff] 0.0
      %332 = vst [vmem:[%s326 + $0x78] sm:$0xff] 0.0
      %333 = vst [vmem:[%s326 + $0x90] sm:$0xff] 0.0
      %334 = vst [vmem:[%s326 + $0xa8] sm:$0xff] 0.0
      %335 = vst [vmem:[%s326 + $0x10] sm:$0xff] 0.0
      %336 = vst [vmem:[%s326 + $0x28] sm:$0xff] 0.0
      %337 = vst [vmem:[%s326 + $0x40] sm:$0xff] 0.0
      %338 = vst [vmem:[%s326 + $0x58] sm:$0xff] 0.0
      %339 = vst [vmem:[%s326 + $0x70] sm:$0xff] 0.0
      %340 = vst [vmem:[%s326 + $0x88] sm:$0xff] 0.0
      %341 = vst [vmem:[%s326 + $0xa0] sm:$0xff] 0.0
      %342 = vst [vmem:[%s326 + $0xb8] sm:$0xff] 0.0
      %343 = vst [vmem:[%s326 + $0x8] sm:$0xff] %v311
      %344 = vst [vmem:[%s326 + $0x20] sm:$0xff] %v312
      %345 = vst [vmem:[%s326 + $0x38] sm:$0xff] %v313
      %346 = vst [vmem:[%s326 + $0x50] sm:$0xff] %v314
      %347 = vst [vmem:[%s326 + $0x68] sm:$0xff] %v315
      %348 = vst [vmem:[%s326 + $0x80] sm:$0xff] %v316
      %349 = vst [vmem:[%s326 + $0x98] sm:$0xff] %v317
      %350 = vst [vmem:[%s326 + $0xb0] sm:$0xff] %v318
      %v351 = vld [vmem:[#allocation2 + $0x7] sm:$0xff]
      %v352 = vld [vmem:[#allocation2 + $0x1f] sm:$0xff]
      %v353 = vld [vmem:[#allocation2 + $0x37] sm:$0xff]
      %v354 = vld [vmem:[#allocation2 + $0x4f] sm:$0xff]
      %v355 = vld [vmem:[#allocation2 + $0x67] sm:$0xff]
      %v356 = vld [vmem:[#allocation2 + $0x7f] sm:$0xff]
      %v357 = vld [vmem:[#allocation2 + $0x97] sm:$0xff]
      %v358 = vld [vmem:[#allocation2 + $0xaf] sm:$0xff]
      %v359 = vld [vmem:[%s3] sm:$0xff]
      %v360 = vld [vmem:[%s3 + $0x8] sm:$0xff]
      %v361 = vld [vmem:[%s3 + $0x10] sm:$0xff]
      %v362 = vld [vmem:[%s3 + $0x18] sm:$0xff]
      %v363 = vld [vmem:[%s3 + $0x20] sm:$0xff]
      %v364 = vld [vmem:[%s3 + $0x28] sm:$0xff]
      %v365 = vld [vmem:[%s3 + $0x30] sm:$0xff]
      %v366 = vld [vmem:[%s3 + $0x38] sm:$0xff]
      %v367 = vld [vmem:[%s3 + $0x40] sm:$0xff]
      %v368 = vld [vmem:[%s3 + $0x48] sm:$0xff]
      %v369 = vld [vmem:[%s3 + $0x50] sm:$0xff]
      %v370 = vld [vmem:[%s3 + $0x58] sm:$0xff]
      %v371 = vld [vmem:[%s3 + $0x60] sm:$0xff]
      %v372 = vld [vmem:[%s3 + $0x68] sm:$0xff]
      %v373 = vld [vmem:[%s3 + $0x70] sm:$0xff]
      %v374 = vld [vmem:[%s3 + $0x78] sm:$0xff]
      %v375 = vld [vmem:[#allocation2 + $0x8] sm:$0xff]
      %v376 = vld [vmem:[#allocation2 + $0x20] sm:$0xff]
      %v377 = vld [vmem:[#allocation2 + $0x38] sm:$0xff]
      %v378 = vld [vmem:[#allocation2 + $0x50] sm:$0xff]
      %v379 = vld [vmem:[#allocation2 + $0x68] sm:$0xff]
      %v380 = vld [vmem:[#allocation2 + $0x80] sm:$0xff]
      %v381 = vld [vmem:[#allocation2 + $0x98] sm:$0xff]
      %v382 = vld [vmem:[#allocation2 + $0xb0] sm:$0xff]
      %s383 = scalar_lea.vmem %s3, 128
      %v384 = vld [vmem:[%s383] sm:$0xff]
      %v385 = vld [vmem:[%s383 + $0x8] sm:$0xff]
      %v386 = vld [vmem:[%s383 + $0x10] sm:$0xff]
      %v387 = vld [vmem:[%s383 + $0x18] sm:$0xff]
      %v388 = vld [vmem:[%s383 + $0x20] sm:$0xff]
      %v389 = vld [vmem:[%s383 + $0x28] sm:$0xff]
      %v390 = vld [vmem:[%s383 + $0x30] sm:$0xff]
      %v391 = vld [vmem:[%s383 + $0x38] sm:$0xff]
      %v392 = vld [vmem:[%s383 + $0x40] sm:$0xff]
      %v393 = vld [vmem:[%s383 + $0x48] sm:$0xff]
      %v394 = vld [vmem:[%s383 + $0x50] sm:$0xff]
      %v395 = vld [vmem:[%s383 + $0x58] sm:$0xff]
      %v396 = vld [vmem:[%s383 + $0x60] sm:$0xff]
      %v397 = vld [vmem:[%s383 + $0x68] sm:$0xff]
      %v398 = vld [vmem:[%s383 + $0x70] sm:$0xff]
      %v399 = vld [vmem:[%s383 + $0x78] sm:$0xff]
      %400 = vmatprep.subr.mxu0 0.0
      %401 = vmatpush1.msra.mxu0 %v384
      %402 = vmatprep.subr.mxu0 0.0
      %403 = vmatpush1.msra.mxu0 %v385
      %404 = vmatprep.subr.mxu0 0.0
      %405 = vmatpush1.msra.mxu0 %v386
      %406 = vmatprep.subr.mxu0 0.0
      %407 = vmatpush1.msra.mxu0 %v387
      %408 = vmatprep.subr.mxu0 0.0
      %409 = vmatpush1.msra.mxu0 %v388
      %410 = vmatprep.subr.mxu0 0.0
      %411 = vmatpush1.msra.mxu0 %v389
      %412 = vmatprep.subr.mxu0 0.0
      %413 = vmatpush1.msra.mxu0 %v390
      %414 = vmatprep.subr.mxu0 0.0
      %415 = vmatpush1.msra.mxu0 %v391
      %416 = vmatprep.subr.mxu0 0.0
      %417 = vmatpush1.msra.mxu0 %v392
      %418 = vmatprep.subr.mxu0 0.0
      %419 = vmatpush1.msra.mxu0 %v393
      %420 = vmatprep.subr.mxu0 0.0
      %421 = vmatpush1.msra.mxu0 %v394
      %422 = vmatprep.subr.mxu0 0.0
      %423 = vmatpush1.msra.mxu0 %v395
      %424 = vmatprep.subr.mxu0 0.0
      %425 = vmatpush1.msra.mxu0 %v396
      %426 = vmatprep.subr.mxu0 0.0
      %427 = vmatpush1.msra.mxu0 %v397
      %428 = vmatprep.subr.mxu0 0.0
      %429 = vmatpush1.msra.mxu0 %v398
      %430 = vmatprep.subr.mxu0 0.0
      %431 = vmatpush1.msra.mxu0 %v399
      %432 = vmatprep.subr.mxu0 0.0
      %433 = vmatpush1.msra.mxu0 0.0
      %434 = vmatprep.subr.mxu0 0.0
      %435 = vmatpush1.msra.mxu0 0.0
      %436 = vmatprep.subr.mxu0 0.0
      %437 = vmatpush1.msra.mxu0 0.0
      %438 = vmatprep.subr.mxu0 0.0
      %439 = vmatpush1.msra.mxu0 0.0
      %440 = vmatprep.subr.mxu0 0.0
      %441 = vmatpush1.msra.mxu0 0.0
      %442 = vmatprep.subr.mxu0 0.0
      %443 = vmatpush1.msra.mxu0 0.0
      %444 = vmatprep.subr.mxu0 0.0
      %445 = vmatpush1.msra.mxu0 0.0
      %446 = vmatprep.subr.mxu0 0.0
      %447 = vmatpush1.msra.mxu0 0.0
      %448 = vmatprep.subr.mxu0 0.0
      %449 = vmatpush1.msra.mxu0 0.0
      %450 = vmatprep.subr.mxu0 0.0
      %451 = vmatpush1.msra.mxu0 0.0
      %452 = vmatprep.subr.mxu0 0.0
      %453 = vmatpush1.msra.mxu0 0.0
      %454 = vmatprep.subr.mxu0 0.0
      %455 = vmatpush1.msra.mxu0 0.0
      %456 = vmatprep.subr.mxu0 0.0
      %457 = vmatpush1.msra.mxu0 0.0
      %458 = vmatprep.subr.mxu0 0.0
      %459 = vmatpush1.msra.mxu0 0.0
      %460 = vmatprep.subr.mxu0 0.0
      %461 = vmatpush1.msra.mxu0 0.0
      %462 = vmatprep.subr.mxu0 0.0
      %463 = vmatpush1.msra.mxu0 0.0
      %464 = vmatprep.mubr.f32.mxu0 0.0
      %465 = vmatmul.mubr.f32.gmra.mrb[0].mxu0 %v375
      %v466 = vpop.f32.mrb[0].mxu0
      %v467 = vadd.f32 0.0, %v466
      %v468 = vpop.f32.mrb[0].mxu0
      %469 = vmatprep.mubr.f32.mxu0 0.0
      %470 = vmatmul.mubr.f32.gmra.mrb[0].mxu0 %v376
      %v471 = vpop.f32.mrb[0].mxu0
      %v472 = vadd.f32 0.0, %v471
      %v473 = vpop.f32.mrb[0].mxu0
      %474 = vmatprep.mubr.f32.mxu0 0.0
      %475 = vmatmul.mubr.f32.gmra.mrb[0].mxu0 %v377
      %v476 = vpop.f32.mrb[0].mxu0
      %v477 = vadd.f32 0.0, %v476
      %v478 = vpop.f32.mrb[0].mxu0
      %479 = vmatprep.mubr.f32.mxu0 0.0
      %480 = vmatmul.mubr.f32.gmra.mrb[0].mxu0 %v378
      %v481 = vpop.f32.mrb[0].mxu0
      %v482 = vadd.f32 0.0, %v481
      %v483 = vpop.f32.mrb[0].mxu0
      %484 = vmatprep.mubr.f32.mxu0 0.0
      %485 = vmatmul.mubr.f32.gmra.mrb[0].mxu0 %v379
      %v486 = vpop.f32.mrb[0].mxu0
      %v487 = vadd.f32 0.0, %v486
      %v488 = vpop.f32.mrb[0].mxu0
      %489 = vmatprep.mubr.f32.mxu0 0.0
      %490 = vmatmul.mubr.f32.gmra.mrb[0].mxu0 %v380
      %v491 = vpop.f32.mrb[0].mxu0
      %v492 = vadd.f32 0.0, %v491
      %v493 = vpop.f32.mrb[0].mxu0
      %494 = vmatprep.mubr.f32.mxu0 0.0
      %495 = vmatmul.mubr.f32.gmra.mrb[0].mxu0 %v381
      %v496 = vpop.f32.mrb[0].mxu0
      %v497 = vadd.f32 0.0, %v496
      %v498 = vpop.f32.mrb[0].mxu0
      %499 = vmatprep.mubr.f32.mxu0 0.0
      %500 = vmatmul.mubr.f32.gmra.mrb[0].mxu0 %v382
      %v501 = vpop.f32.mrb[0].mxu0
      %v502 = vadd.f32 0.0, %v501
      %v503 = vpop.f32.mrb[0].mxu0
      %504 = vdwg.mxu0
      %505 = vmatprep.subr.mxu0 0.0
      %506 = vmatpush1.msra.mxu0 %v359
      %507 = vmatprep.subr.mxu0 0.0
      %508 = vmatpush1.msra.mxu0 %v360
      %509 = vmatprep.subr.mxu0 0.0
      %510 = vmatpush1.msra.mxu0 %v361
      %511 = vmatprep.subr.mxu0 0.0
      %512 = vmatpush1.msra.mxu0 %v362
      %513 = vmatprep.subr.mxu0 0.0
      %514 = vmatpush1.msra.mxu0 %v363
      %515 = vmatprep.subr.mxu0 0.0
      %516 = vmatpush1.msra.mxu0 %v364
      %517 = vmatprep.subr.mxu0 0.0
      %518 = vmatpush1.msra.mxu0 %v365
      %519 = vmatprep.subr.mxu0 0.0
      %520 = vmatpush1.msra.mxu0 %v366
      %521 = vmatprep.subr.mxu0 0.0
      %522 = vmatpush1.msra.mxu0 %v367
      %523 = vmatprep.subr.mxu0 0.0
      %524 = vmatpush1.msra.mxu0 %v368
      %525 = vmatprep.subr.mxu0 0.0
      %526 = vmatpush1.msra.mxu0 %v369
      %527 = vmatprep.subr.mxu0 0.0
      %528 = vmatpush1.msra.mxu0 %v370
      %529 = vmatprep.subr.mxu0 0.0
      %530 = vmatpush1.msra.mxu0 %v371
      %531 = vmatprep.subr.mxu0 0.0
      %532 = vmatpush1.msra.mxu0 %v372
      %533 = vmatprep.subr.mxu0 0.0
      %534 = vmatpush1.msra.mxu0 %v373
      %535 = vmatprep.subr.mxu0 0.0
      %536 = vmatpush1.msra.mxu0 %v374
      %537 = vmatprep.subr.mxu0 0.0
      %538 = vmatpush1.msra.mxu0 0.0
      %539 = vmatprep.subr.mxu0 0.0
      %540 = vmatpush1.msra.mxu0 0.0
      %541 = vmatprep.subr.mxu0 0.0
      %542 = vmatpush1.msra.mxu0 0.0
      %543 = vmatprep.subr.mxu0 0.0
      %544 = vmatpush1.msra.mxu0 0.0
      %545 = vmatprep.subr.mxu0 0.0
      %546 = vmatpush1.msra.mxu0 0.0
      %547 = vmatprep.subr.mxu0 0.0
      %548 = vmatpush1.msra.mxu0 0.0
      %549 = vmatprep.subr.mxu0 0.0
      %550 = vmatpush1.msra.mxu0 0.0
      %551 = vmatprep.subr.mxu0 0.0
      %552 = vmatpush1.msra.mxu0 0.0
      %553 = vmatprep.subr.mxu0 0.0
      %554 = vmatpush1.msra.mxu0 0.0
      %555 = vmatprep.subr.mxu0 0.0
      %556 = vmatpush1.msra.mxu0 0.0
      %557 = vmatprep.subr.mxu0 0.0
      %558 = vmatpush1.msra.mxu0 0.0
      %559 = vmatprep.subr.mxu0 0.0
      %560 = vmatpush1.msra.mxu0 0.0
      %561 = vmatprep.subr.mxu0 0.0
      %562 = vmatpush1.msra.mxu0 0.0
      %563 = vmatprep.subr.mxu0 0.0
      %564 = vmatpush1.msra.mxu0 0.0
      %565 = vmatprep.subr.mxu0 0.0
      %566 = vmatpush1.msra.mxu0 0.0
      %567 = vmatprep.subr.mxu0 0.0
      %568 = vmatpush1.msra.mxu0 0.0
      %569 = vmatprep.mubr.f32.mxu0 0.0
      %570 = vmatmul.mubr.f32.gmra.mrb[0].mxu0 %v351
      %v571 = vpop.f32.mrb[0].mxu0
      %v572 = vadd.f32 %v467, %v571
      %v573 = vpop.f32.mrb[0].mxu0
      %574 = vmatprep.mubr.f32.mxu0 0.0
      %575 = vmatmul.mubr.f32.gmra.mrb[0].mxu0 %v352
      %v576 = vpop.f32.mrb[0].mxu0
      %v577 = vadd.f32 %v472, %v576
      %v578 = vpop.f32.mrb[0].mxu0
      %579 = vmatprep.mubr.f32.mxu0 0.0
      %580 = vmatmul.mubr.f32.gmra.mrb[0].mxu0 %v353
      %v581 = vpop.f32.mrb[0].mxu0
      %v582 = vadd.f32 %v477, %v581
      %v583 = vpop.f32.mrb[0].mxu0
      %584 = vmatprep.mubr.f32.mxu0 0.0
      %585 = vmatmul.mubr.f32.gmra.mrb[0].mxu0 %v354
      %v586 = vpop.f32.mrb[0].mxu0
      %v587 = vadd.f32 %v482, %v586
      %v588 = vpop.f32.mrb[0].mxu0
      %589 = vmatprep.mubr.f32.mxu0 0.0
      %590 = vmatmul.mubr.f32.gmra.mrb[0].mxu0 %v355
      %v591 = vpop.f32.mrb[0].mxu0
      %v592 = vadd.f32 %v487, %v591
      %v593 = vpop.f32.mrb[0].mxu0
      %594 = vmatprep.mubr.f32.mxu0 0.0
      %595 = vmatmul.mubr.f32.gmra.mrb[0].mxu0 %v356
      %v596 = vpop.f32.mrb[0].mxu0
      %v597 = vadd.f32 %v492, %v596
      %v598 = vpop.f32.mrb[0].mxu0
      %599 = vmatprep.mubr.f32.mxu0 0.0
      %600 = vmatmul.mubr.f32.gmra.mrb[0].mxu0 %v357
      %v601 = vpop.f32.mrb[0].mxu0
      %v602 = vadd.f32 %v497, %v601
      %v603 = vpop.f32.mrb[0].mxu0
      %604 = vmatprep.mubr.f32.mxu0 0.0
      %605 = vmatmul.mubr.f32.gmra.mrb[0].mxu0 %v358
      %v606 = vpop.f32.mrb[0].mxu0
      %v607 = vadd.f32 %v502, %v606
      %v608 = vpop.f32.mrb[0].mxu0
      %609 = vdwg.mxu0
      %v610 = vld [vmem:[#allocation2 + $0x9] sm:$0xff]
      %v611 = vld [vmem:[#allocation2 + $0x21] sm:$0xff]
      %v612 = vld [vmem:[#allocation2 + $0x39] sm:$0xff]
      %v613 = vld [vmem:[#allocation2 + $0x51] sm:$0xff]
      %v614 = vld [vmem:[#allocation2 + $0x69] sm:$0xff]
      %v615 = vld [vmem:[#allocation2 + $0x81] sm:$0xff]
      %v616 = vld [vmem:[#allocation2 + $0x99] sm:$0xff]
      %v617 = vld [vmem:[#allocation2 + $0xb1] sm:$0xff]
      %s618 = scalar_lea.vmem %s3, 256
      %v619 = vld [vmem:[%s618] sm:$0xff]
      %v620 = vld [vmem:[%s618 + $0x8] sm:$0xff]
      %v621 = vld [vmem:[%s618 + $0x10] sm:$0xff]
      %v622 = vld [vmem:[%s618 + $0x18] sm:$0xff]
      %v623 = vld [vmem:[%s618 + $0x20] sm:$0xff]
      %v624 = vld [vmem:[%s618 + $0x28] sm:$0xff]
      %v625 = vld [vmem:[%s618 + $0x30] sm:$0xff]
      %v626 = vld [vmem:[%s618 + $0x38] sm:$0xff]
      %v627 = vld [vmem:[%s618 + $0x40] sm:$0xff]
      %v628 = vld [vmem:[%s618 + $0x48] sm:$0xff]
      %v629 = vld [vmem:[%s618 + $0x50] sm:$0xff]
      %v630 = vld [vmem:[%s618 + $0x58] sm:$0xff]
      %v631 = vld [vmem:[%s618 + $0x60] sm:$0xff]
      %v632 = vld [vmem:[%s618 + $0x68] sm:$0xff]
      %v633 = vld [vmem:[%s618 + $0x70] sm:$0xff]
      %v634 = vld [vmem:[%s618 + $0x78] sm:$0xff]
      %635 = vmatprep.subr.mxu0 0.0
      %636 = vmatpush1.msra.mxu0 %v619
      %637 = vmatprep.subr.mxu0 0.0
      %638 = vmatpush1.msra.mxu0 %v620
      %639 = vmatprep.subr.mxu0 0.0
      %640 = vmatpush1.msra.mxu0 %v621
      %641 = vmatprep.subr.mxu0 0.0
      %642 = vmatpush1.msra.mxu0 %v622
      %643 = vmatprep.subr.mxu0 0.0
      %644 = vmatpush1.msra.mxu0 %v623
      %645 = vmatprep.subr.mxu0 0.0
      %646 = vmatpush1.msra.mxu0 %v624
      %647 = vmatprep.subr.mxu0 0.0
      %648 = vmatpush1.msra.mxu0 %v625
      %649 = vmatprep.subr.mxu0 0.0
      %650 = vmatpush1.msra.mxu0 %v626
      %651 = vmatprep.subr.mxu0 0.0
      %652 = vmatpush1.msra.mxu0 %v627
      %653 = vmatprep.subr.mxu0 0.0
      %654 = vmatpush1.msra.mxu0 %v628
      %655 = vmatprep.subr.mxu0 0.0
      %656 = vmatpush1.msra.mxu0 %v629
      %657 = vmatprep.subr.mxu0 0.0
      %658 = vmatpush1.msra.mxu0 %v630
      %659 = vmatprep.subr.mxu0 0.0
      %660 = vmatpush1.msra.mxu0 %v631
      %661 = vmatprep.subr.mxu0 0.0
      %662 = vmatpush1.msra.mxu0 %v632
      %663 = vmatprep.subr.mxu0 0.0
      %664 = vmatpush1.msra.mxu0 %v633
      %665 = vmatprep.subr.mxu0 0.0
      %666 = vmatpush1.msra.mxu0 %v634
      %667 = vmatprep.subr.mxu0 0.0
      %668 = vmatpush1.msra.mxu0 0.0
      %669 = vmatprep.subr.mxu0 0.0
      %670 = vmatpush1.msra.mxu0 0.0
      %671 = vmatprep.subr.mxu0 0.0
      %672 = vmatpush1.msra.mxu0 0.0
      %673 = vmatprep.subr.mxu0 0.0
      %674 = vmatpush1.msra.mxu0 0.0
      %675 = vmatprep.subr.mxu0 0.0
      %676 = vmatpush1.msra.mxu0 0.0
      %677 = vmatprep.subr.mxu0 0.0
      %678 = vmatpush1.msra.mxu0 0.0
      %679 = vmatprep.subr.mxu0 0.0
      %680 = vmatpush1.msra.mxu0 0.0
      %681 = vmatprep.subr.mxu0 0.0
      %682 = vmatpush1.msra.mxu0 0.0
      %683 = vmatprep.subr.mxu0 0.0
      %684 = vmatpush1.msra.mxu0 0.0
      %685 = vmatprep.subr.mxu0 0.0
      %686 = vmatpush1.msra.mxu0 0.0
      %687 = vmatprep.subr.mxu0 0.0
      %688 = vmatpush1.msra.mxu0 0.0
      %689 = vmatprep.subr.mxu0 0.0
      %690 = vmatpush1.msra.mxu0 0.0
      %691 = vmatprep.subr.mxu0 0.0
      %692 = vmatpush1.msra.mxu0 0.0
      %693 = vmatprep.subr.mxu0 0.0
      %694 = vmatpush1.msra.mxu0 0.0
      %695 = vmatprep.subr.mxu0 0.0
      %696 = vmatpush1.msra.mxu0 0.0
      %697 = vmatprep.subr.mxu0 0.0
      %698 = vmatpush1.msra.mxu0 0.0
      %699 = vmatprep.mubr.f32.mxu0 0.0
      %700 = vmatmul.mubr.f32.gmra.mrb[0].mxu0 %v610
      %v701 = vpop.f32.mrb[0].mxu0
      %v702 = vadd.f32 0.0, %v701
      %v703 = vpop.f32.mrb[0].mxu0
      %704 = vmatprep.mubr.f32.mxu0 0.0
      %705 = vmatmul.mubr.f32.gmra.mrb[0].mxu0 %v611
      %v706 = vpop.f32.mrb[0].mxu0
      %v707 = vadd.f32 0.0, %v706
      %v708 = vpop.f32.mrb[0].mxu0
      %709 = vmatprep.mubr.f32.mxu0 0.0
      %710 = vmatmul.mubr.f32.gmra.mrb[0].mxu0 %v612
      %v711 = vpop.f32.mrb[0].mxu0
      %v712 = vadd.f32 0.0, %v711
      %v713 = vpop.f32.mrb[0].mxu0
      %714 = vmatprep.mubr.f32.mxu0 0.0
      %715 = vmatmul.mubr.f32.gmra.mrb[0].mxu0 %v613
      %v716 = vpop.f32.mrb[0].mxu0
      %v717 = vadd.f32 0.0, %v716
      %v718 = vpop.f32.mrb[0].mxu0
      %719 = vmatprep.mubr.f32.mxu0 0.0
      %720 = vmatmul.mubr.f32.gmra.mrb[0].mxu0 %v614
      %v721 = vpop.f32.mrb[0].mxu0
      %v722 = vadd.f32 0.0, %v721
      %v723 = vpop.f32.mrb[0].mxu0
      %724 = vmatprep.mubr.f32.mxu0 0.0
      %725 = vmatmul.mubr.f32.gmra.mrb[0].mxu0 %v615
      %v726 = vpop.f32.mrb[0].mxu0
      %v727 = vadd.f32 0.0, %v726
      %v728 = vpop.f32.mrb[0].mxu0
      %729 = vmatprep.mubr.f32.mxu0 0.0
      %730 = vmatmul.mubr.f32.gmra.mrb[0].mxu0 %v616
      %v731 = vpop.f32.mrb[0].mxu0
      %v732 = vadd.f32 0.0, %v731
      %v733 = vpop.f32.mrb[0].mxu0
      %734 = vmatprep.mubr.f32.mxu0 0.0
      %735 = vmatmul.mubr.f32.gmra.mrb[0].mxu0 %v617
      %v736 = vpop.f32.mrb[0].mxu0
      %v737 = vadd.f32 0.0, %v736
      %v738 = vpop.f32.mrb[0].mxu0
      %739 = vdwg.mxu0
      %v740 = vadd.f32 %v572, %v702
      %v741 = vadd.f32 %v577, %v707
      %v742 = vadd.f32 %v582, %v712
      %v743 = vadd.f32 %v587, %v717
      %v744 = vadd.f32 %v592, %v722
      %v745 = vadd.f32 %v597, %v727
      %v746 = vadd.f32 %v602, %v732
      %v747 = vadd.f32 %v607, %v737
      %v748 = vld [vmem:[%s326 + $0x7] sm:$0xff]
      %v749 = vld [vmem:[%s326 + $0x1f] sm:$0xff]
      %v750 = vld [vmem:[%s326 + $0x37] sm:$0xff]
      %v751 = vld [vmem:[%s326 + $0x4f] sm:$0xff]
      %v752 = vld [vmem:[%s326 + $0x67] sm:$0xff]
      %v753 = vld [vmem:[%s326 + $0x7f] sm:$0xff]
      %v754 = vld [vmem:[%s326 + $0x97] sm:$0xff]
      %v755 = vld [vmem:[%s326 + $0xaf] sm:$0xff]
      %s756 = scalar_lea.vmem %s3, 384
      %v757 = vld [vmem:[%s756] sm:$0xff]
      %v758 = vld [vmem:[%s756 + $0x8] sm:$0xff]
      %v759 = vld [vmem:[%s756 + $0x10] sm:$0xff]
      %v760 = vld [vmem:[%s756 + $0x18] sm:$0xff]
      %v761 = vld [vmem:[%s756 + $0x20] sm:$0xff]
      %v762 = vld [vmem:[%s756 + $0x28] sm:$0xff]
      %v763 = vld [vmem:[%s756 + $0x30] sm:$0xff]
      %v764 = vld [vmem:[%s756 + $0x38] sm:$0xff]
      %v765 = vld [vmem:[%s756 + $0x40] sm:$0xff]
      %v766 = vld [vmem:[%s756 + $0x48] sm:$0xff]
      %v767 = vld [vmem:[%s756 + $0x50] sm:$0xff]
      %v768 = vld [vmem:[%s756 + $0x58] sm:$0xff]
      %v769 = vld [vmem:[%s756 + $0x60] sm:$0xff]
      %v770 = vld [vmem:[%s756 + $0x68] sm:$0xff]
      %v771 = vld [vmem:[%s756 + $0x70] sm:$0xff]
      %v772 = vld [vmem:[%s756 + $0x78] sm:$0xff]
      %773 = vmatprep.subr.mxu0 0.0
      %774 = vmatpush1.msra.mxu0 %v757
      %775 = vmatprep.subr.mxu0 0.0
      %776 = vmatpush1.msra.mxu0 %v758
      %777 = vmatprep.subr.mxu0 0.0
      %778 = vmatpush1.msra.mxu0 %v759
      %779 = vmatprep.subr.mxu0 0.0
      %780 = vmatpush1.msra.mxu0 %v760
      %781 = vmatprep.subr.mxu0 0.0
      %782 = vmatpush1.msra.mxu0 %v761
      %783 = vmatprep.subr.mxu0 0.0
      %784 = vmatpush1.msra.mxu0 %v762
      %785 = vmatprep.subr.mxu0 0.0
      %786 = vmatpush1.msra.mxu0 %v763
      %787 = vmatprep.subr.mxu0 0.0
      %788 = vmatpush1.msra.mxu0 %v764
      %789 = vmatprep.subr.mxu0 0.0
      %790 = vmatpush1.msra.mxu0 %v765
      %791 = vmatprep.subr.mxu0 0.0
      %792 = vmatpush1.msra.mxu0 %v766
      %793 = vmatprep.subr.mxu0 0.0
      %794 = vmatpush1.msra.mxu0 %v767
      %795 = vmatprep.subr.mxu0 0.0
      %796 = vmatpush1.msra.mxu0 %v768
      %797 = vmatprep.subr.mxu0 0.0
      %798 = vmatpush1.msra.mxu0 %v769
      %799 = vmatprep.subr.mxu0 0.0
      %800 = vmatpush1.msra.mxu0 %v770
      %801 = vmatprep.subr.mxu0 0.0
      %802 = vmatpush1.msra.mxu0 %v771
      %803 = vmatprep.subr.mxu0 0.0
      %804 = vmatpush1.msra.mxu0 %v772
      %805 = vmatprep.subr.mxu0 0.0
      %806 = vmatpush1.msra.mxu0 0.0
      %807 = vmatprep.subr.mxu0 0.0
      %808 = vmatpush1.msra.mxu0 0.0
      %809 = vmatprep.subr.mxu0 0.0
      %810 = vmatpush1.msra.mxu0 0.0
      %811 = vmatprep.subr.mxu0 0.0
      %812 = vmatpush1.msra.mxu0 0.0
      %813 = vmatprep.subr.mxu0 0.0
      %814 = vmatpush1.msra.mxu0 0.0
      %815 = vmatprep.subr.mxu0 0.0
      %816 = vmatpush1.msra.mxu0 0.0
      %817 = vmatprep.subr.mxu0 0.0
      %818 = vmatpush1.msra.mxu0 0.0
      %819 = vmatprep.subr.mxu0 0.0
      %820 = vmatpush1.msra.mxu0 0.0
      %821 = vmatprep.subr.mxu0 0.0
      %822 = vmatpush1.msra.mxu0 0.0
      %823 = vmatprep.subr.mxu0 0.0
      %824 = vmatpush1.msra.mxu0 0.0
      %825 = vmatprep.subr.mxu0 0.0
      %826 = vmatpush1.msra.mxu0 0.0
      %827 = vmatprep.subr.mxu0 0.0
      %828 = vmatpush1.msra.mxu0 0.0
      %829 = vmatprep.subr.mxu0 0.0
      %830 = vmatpush1.msra.mxu0 0.0
      %831 = vmatprep.subr.mxu0 0.0
      %832 = vmatpush1.msra.mxu0 0.0
      %833 = vmatprep.subr.mxu0 0.0
      %834 = vmatpush1.msra.mxu0 0.0
      %835 = vmatprep.subr.mxu0 0.0
      %836 = vmatpush1.msra.mxu0 0.0
      %837 = vmatprep.mubr.f32.mxu0 0.0
      %838 = vmatmul.mubr.f32.gmra.mrb[0].mxu0 %v748
      %v839 = vpop.f32.mrb[0].mxu0
      %v840 = vadd.f32 0.0, %v839
      %v841 = vpop.f32.mrb[0].mxu0
      %842 = vmatprep.mubr.f32.mxu0 0.0
      %843 = vmatmul.mubr.f32.gmra.mrb[0].mxu0 %v749
      %v844 = vpop.f32.mrb[0].mxu0
      %v845 = vadd.f32 0.0, %v844
      %v846 = vpop.f32.mrb[0].mxu0
      %847 = vmatprep.mubr.f32.mxu0 0.0
      %848 = vmatmul.mubr.f32.gmra.mrb[0].mxu0 %v750
      %v849 = vpop.f32.mrb[0].mxu0
      %v850 = vadd.f32 0.0, %v849
      %v851 = vpop.f32.mrb[0].mxu0
      %852 = vmatprep.mubr.f32.mxu0 0.0
      %853 = vmatmul.mubr.f32.gmra.mrb[0].mxu0 %v751
      %v854 = vpop.f32.mrb[0].mxu0
      %v855 = vadd.f32 0.0, %v854
      %v856 = vpop.f32.mrb[0].mxu0
      %857 = vmatprep.mubr.f32.mxu0 0.0
      %858 = vmatmul.mubr.f32.gmra.mrb[0].mxu0 %v752
      %v859 = vpop.f32.mrb[0].mxu0
      %v860 = vadd.f32 0.0, %v859
      %v861 = vpop.f32.mrb[0].mxu0
      %862 = vmatprep.mubr.f32.mxu0 0.0
      %863 = vmatmul.mubr.f32.gmra.mrb[0].mxu0 %v753
      %v864 = vpop.f32.mrb[0].mxu0
      %v865 = vadd.f32 0.0, %v864
      %v866 = vpop.f32.mrb[0].mxu0
      %867 = vmatprep.mubr.f32.mxu0 0.0
      %868 = vmatmul.mubr.f32.gmra.mrb[0].mxu0 %v754
      %v869 = vpop.f32.mrb[0].mxu0
      %v870 = vadd.f32 0.0, %v869
      %v871 = vpop.f32.mrb[0].mxu0
      %872 = vmatprep.mubr.f32.mxu0 0.0
      %873 = vmatmul.mubr.f32.gmra.mrb[0].mxu0 %v755
      %v874 = vpop.f32.mrb[0].mxu0
      %v875 = vadd.f32 0.0, %v874
      %v876 = vpop.f32.mrb[0].mxu0
      %877 = vdwg.mxu0
      %v878 = vadd.f32 %v740, %v840
      %v879 = vadd.f32 %v741, %v845
      %v880 = vadd.f32 %v742, %v850
      %v881 = vadd.f32 %v743, %v855
      %v882 = vadd.f32 %v744, %v860
      %v883 = vadd.f32 %v745, %v865
      %v884 = vadd.f32 %v746, %v870
      %v885 = vadd.f32 %v747, %v875
      %v886 = vld [vmem:[%s326 + $0x8] sm:$0xff]
      %v887 = vld [vmem:[%s326 + $0x20] sm:$0xff]
      %v888 = vld [vmem:[%s326 + $0x38] sm:$0xff]
      %v889 = vld [vmem:[%s326 + $0x50] sm:$0xff]
      %v890 = vld [vmem:[%s326 + $0x68] sm:$0xff]
      %v891 = vld [vmem:[%s326 + $0x80] sm:$0xff]
      %v892 = vld [vmem:[%s326 + $0x98] sm:$0xff]
      %v893 = vld [vmem:[%s326 + $0xb0] sm:$0xff]
      %s894 = scalar_lea.vmem %s3, 512
      %v895 = vld [vmem:[%s894] sm:$0xff]
      %v896 = vld [vmem:[%s894 + $0x8] sm:$0xff]
      %v897 = vld [vmem:[%s894 + $0x10] sm:$0xff]
      %v898 = vld [vmem:[%s894 + $0x18] sm:$0xff]
      %v899 = vld [vmem:[%s894 + $0x20] sm:$0xff]
      %v900 = vld [vmem:[%s894 + $0x28] sm:$0xff]
      %v901 = vld [vmem:[%s894 + $0x30] sm:$0xff]
      %v902 = vld [vmem:[%s894 + $0x38] sm:$0xff]
      %v903 = vld [vmem:[%s894 + $0x40] sm:$0xff]
      %v904 = vld [vmem:[%s894 + $0x48] sm:$0xff]
      %v905 = vld [vmem:[%s894 + $0x50] sm:$0xff]
      %v906 = vld [vmem:[%s894 + $0x58] sm:$0xff]
      %v907 = vld [vmem:[%s894 + $0x60] sm:$0xff]
      %v908 = vld [vmem:[%s894 + $0x68] sm:$0xff]
      %v909 = vld [vmem:[%s894 + $0x70] sm:$0xff]
      %v910 = vld [vmem:[%s894 + $0x78] sm:$0xff]
      %911 = vmatprep.subr.mxu0 0.0
      %912 = vmatpush1.msra.mxu0 %v895
      %913 = vmatprep.subr.mxu0 0.0
      %914 = vmatpush1.msra.mxu0 %v896
      %915 = vmatprep.subr.mxu0 0.0
      %916 = vmatpush1.msra.mxu0 %v897
      %917 = vmatprep.subr.mxu0 0.0
      %918 = vmatpush1.msra.mxu0 %v898
      %919 = vmatprep.subr.mxu0 0.0
      %920 = vmatpush1.msra.mxu0 %v899
      %921 = vmatprep.subr.mxu0 0.0
      %922 = vmatpush1.msra.mxu0 %v900
      %923 = vmatprep.subr.mxu0 0.0
      %924 = vmatpush1.msra.mxu0 %v901
      %925 = vmatprep.subr.mxu0 0.0
      %926 = vmatpush1.msra.mxu0 %v902
      %927 = vmatprep.subr.mxu0 0.0
      %928 = vmatpush1.msra.mxu0 %v903
      %929 = vmatprep.subr.mxu0 0.0
      %930 = vmatpush1.msra.mxu0 %v904
      %931 = vmatprep.subr.mxu0 0.0
      %932 = vmatpush1.msra.mxu0 %v905
      %933 = vmatprep.subr.mxu0 0.0
      %934 = vmatpush1.msra.mxu0 %v906
      %935 = vmatprep.subr.mxu0 0.0
      %936 = vmatpush1.msra.mxu0 %v907
      %937 = vmatprep.subr.mxu0 0.0
      %938 = vmatpush1.msra.mxu0 %v908
      %939 = vmatprep.subr.mxu0 0.0
      %940 = vmatpush1.msra.mxu0 %v909
      %941 = vmatprep.subr.mxu0 0.0
      %942 = vmatpush1.msra.mxu0 %v910
      %943 = vmatprep.subr.mxu0 0.0
      %944 = vmatpush1.msra.mxu0 0.0
      %945 = vmatprep.subr.mxu0 0.0
      %946 = vmatpush1.msra.mxu0 0.0
      %947 = vmatprep.subr.mxu0 0.0
      %948 = vmatpush1.msra.mxu0 0.0
      %949 = vmatprep.subr.mxu0 0.0
      %950 = vmatpush1.msra.mxu0 0.0
      %951 = vmatprep.subr.mxu0 0.0
      %952 = vmatpush1.msra.mxu0 0.0
      %953 = vmatprep.subr.mxu0 0.0
      %954 = vmatpush1.msra.mxu0 0.0
      %955 = vmatprep.subr.mxu0 0.0
      %956 = vmatpush1.msra.mxu0 0.0
      %957 = vmatprep.subr.mxu0 0.0
      %958 = vmatpush1.msra.mxu0 0.0
      %959 = vmatprep.subr.mxu0 0.0
      %960 = vmatpush1.msra.mxu0 0.0
      %961 = vmatprep.subr.mxu0 0.0
      %962 = vmatpush1.msra.mxu0 0.0
      %963 = vmatprep.subr.mxu0 0.0
      %964 = vmatpush1.msra.mxu0 0.0
      %965 = vmatprep.subr.mxu0 0.0
      %966 = vmatpush1.msra.mxu0 0.0
      %967 = vmatprep.subr.mxu0 0.0
      %968 = vmatpush1.msra.mxu0 0.0
      %969 = vmatprep.subr.mxu0 0.0
      %970 = vmatpush1.msra.mxu0 0.0
      %971 = vmatprep.subr.mxu0 0.0
      %972 = vmatpush1.msra.mxu0 0.0
      %973 = vmatprep.subr.mxu0 0.0
      %974 = vmatpush1.msra.mxu0 0.0
      %975 = vmatprep.mubr.f32.mxu0 0.0
      %976 = vmatmul.mubr.f32.gmra.mrb[0].mxu0 %v886
      %v977 = vpop.f32.mrb[0].mxu0
      %v978 = vadd.f32 0.0, %v977
      %v979 = vpop.f32.mrb[0].mxu0
      %980 = vmatprep.mubr.f32.mxu0 0.0
      %981 = vmatmul.mubr.f32.gmra.mrb[0].mxu0 %v887
      %v982 = vpop.f32.mrb[0].mxu0
      %v983 = vadd.f32 0.0, %v982
      %v984 = vpop.f32.mrb[0].mxu0
      %985 = vmatprep.mubr.f32.mxu0 0.0
      %986 = vmatmul.mubr.f32.gmra.mrb[0].mxu0 %v888
      %v987 = vpop.f32.mrb[0].mxu0
      %v988 = vadd.f32 0.0, %v987
      %v989 = vpop.f32.mrb[0].mxu0
      %990 = vmatprep.mubr.f32.mxu0 0.0
      %991 = vmatmul.mubr.f32.gmra.mrb[0].mxu0 %v889
      %v992 = vpop.f32.mrb[0].mxu0
      %v993 = vadd.f32 0.0, %v992
      %v994 = vpop.f32.mrb[0].mxu0
      %995 = vmatprep.mubr.f32.mxu0 0.0
      %996 = vmatmul.mubr.f32.gmra.mrb[0].mxu0 %v890
      %v997 = vpop.f32.mrb[0].mxu0
      %v998 = vadd.f32 0.0, %v997
      %v999 = vpop.f32.mrb[0].mxu0
      %1000 = vmatprep.mubr.f32.mxu0 0.0
      %1001 = vmatmul.mubr.f32.gmra.mrb[0].mxu0 %v891
      %v1002 = vpop.f32.mrb[0].mxu0
      %v1003 = vadd.f32 0.0, %v1002
      %v1004 = vpop.f32.mrb[0].mxu0
      %1005 = vmatprep.mubr.f32.mxu0 0.0
      %1006 = vmatmul.mubr.f32.gmra.mrb[0].mxu0 %v892
      %v1007 = vpop.f32.mrb[0].mxu0
      %v1008 = vadd.f32 0.0, %v1007
      %v1009 = vpop.f32.mrb[0].mxu0
      %1010 = vmatprep.mubr.f32.mxu0 0.0
      %1011 = vmatmul.mubr.f32.gmra.mrb[0].mxu0 %v893
      %v1012 = vpop.f32.mrb[0].mxu0
      %v1013 = vadd.f32 0.0, %v1012
      %v1014 = vpop.f32.mrb[0].mxu0
      %1015 = vdwg.mxu0
      %v1016 = vadd.f32 %v878, %v978
      %v1017 = vadd.f32 %v879, %v983
      %v1018 = vadd.f32 %v880, %v988
      %v1019 = vadd.f32 %v881, %v993
      %v1020 = vadd.f32 %v882, %v998
      %v1021 = vadd.f32 %v883, %v1003
      %v1022 = vadd.f32 %v884, %v1008
      %v1023 = vadd.f32 %v885, %v1013
      %v1024 = vld [vmem:[%s326 + $0x9] sm:$0xff]
      %v1025 = vld [vmem:[%s326 + $0x21] sm:$0xff]
      %v1026 = vld [vmem:[%s326 + $0x39] sm:$0xff]
      %v1027 = vld [vmem:[%s326 + $0x51] sm:$0xff]
      %v1028 = vld [vmem:[%s326 + $0x69] sm:$0xff]
      %v1029 = vld [vmem:[%s326 + $0x81] sm:$0xff]
      %v1030 = vld [vmem:[%s326 + $0x99] sm:$0xff]
      %v1031 = vld [vmem:[%s326 + $0xb1] sm:$0xff]
      %s1032 = scalar_lea.vmem %s3, 640
      %v1033 = vld [vmem:[%s1032] sm:$0xff]
      %v1034 = vld [vmem:[%s1032 + $0x8] sm:$0xff]
      %v1035 = vld [vmem:[%s1032 + $0x10] sm:$0xff]
      %v1036 = vld [vmem:[%s1032 + $0x18] sm:$0xff]
      %v1037 = vld [vmem:[%s1032 + $0x20] sm:$0xff]
      %v1038 = vld [vmem:[%s1032 + $0x28] sm:$0xff]
      %v1039 = vld [vmem:[%s1032 + $0x30] sm:$0xff]
      %v1040 = vld [vmem:[%s1032 + $0x38] sm:$0xff]
      %v1041 = vld [vmem:[%s1032 + $0x40] sm:$0xff]
      %v1042 = vld [vmem:[%s1032 + $0x48] sm:$0xff]
      %v1043 = vld [vmem:[%s1032 + $0x50] sm:$0xff]
      %v1044 = vld [vmem:[%s1032 + $0x58] sm:$0xff]
      %v1045 = vld [vmem:[%s1032 + $0x60] sm:$0xff]
      %v1046 = vld [vmem:[%s1032 + $0x68] sm:$0xff]
      %v1047 = vld [vmem:[%s1032 + $0x70] sm:$0xff]
      %v1048 = vld [vmem:[%s1032 + $0x78] sm:$0xff]
      %1049 = vmatprep.subr.mxu0 0.0
      %1050 = vmatpush1.msra.mxu0 %v1033
      %1051 = vmatprep.subr.mxu0 0.0
      %1052 = vmatpush1.msra.mxu0 %v1034
      %1053 = vmatprep.subr.mxu0 0.0
      %1054 = vmatpush1.msra.mxu0 %v1035
      %1055 = vmatprep.subr.mxu0 0.0
      %1056 = vmatpush1.msra.mxu0 %v1036
      %1057 = vmatprep.subr.mxu0 0.0
      %1058 = vmatpush1.msra.mxu0 %v1037
      %1059 = vmatprep.subr.mxu0 0.0
      %1060 = vmatpush1.msra.mxu0 %v1038
      %1061 = vmatprep.subr.mxu0 0.0
      %1062 = vmatpush1.msra.mxu0 %v1039
      %1063 = vmatprep.subr.mxu0 0.0
      %1064 = vmatpush1.msra.mxu0 %v1040
      %1065 = vmatprep.subr.mxu0 0.0
      %1066 = vmatpush1.msra.mxu0 %v1041
      %1067 = vmatprep.subr.mxu0 0.0
      %1068 = vmatpush1.msra.mxu0 %v1042
      %1069 = vmatprep.subr.mxu0 0.0
      %1070 = vmatpush1.msra.mxu0 %v1043
      %1071 = vmatprep.subr.mxu0 0.0
      %1072 = vmatpush1.msra.mxu0 %v1044
      %1073 = vmatprep.subr.mxu0 0.0
      %1074 = vmatpush1.msra.mxu0 %v1045
      %1075 = vmatprep.subr.mxu0 0.0
      %1076 = vmatpush1.msra.mxu0 %v1046
      %1077 = vmatprep.subr.mxu0 0.0
      %1078 = vmatpush1.msra.mxu0 %v1047
      %1079 = vmatprep.subr.mxu0 0.0
      %1080 = vmatpush1.msra.mxu0 %v1048
      %1081 = vmatprep.subr.mxu0 0.0
      %1082 = vmatpush1.msra.mxu0 0.0
      %1083 = vmatprep.subr.mxu0 0.0
      %1084 = vmatpush1.msra.mxu0 0.0
      %1085 = vmatprep.subr.mxu0 0.0
      %1086 = vmatpush1.msra.mxu0 0.0
      %1087 = vmatprep.subr.mxu0 0.0
      %1088 = vmatpush1.msra.mxu0 0.0
      %1089 = vmatprep.subr.mxu0 0.0
      %1090 = vmatpush1.msra.mxu0 0.0
      %1091 = vmatprep.subr.mxu0 0.0
      %1092 = vmatpush1.msra.mxu0 0.0
      %1093 = vmatprep.subr.mxu0 0.0
      %1094 = vmatpush1.msra.mxu0 0.0
      %1095 = vmatprep.subr.mxu0 0.0
      %1096 = vmatpush1.msra.mxu0 0.0
      %1097 = vmatprep.subr.mxu0 0.0
      %1098 = vmatpush1.msra.mxu0 0.0
      %1099 = vmatprep.subr.mxu0 0.0
      %1100 = vmatpush1.msra.mxu0 0.0
      %1101 = vmatprep.subr.mxu0 0.0
      %1102 = vmatpush1.msra.mxu0 0.0
      %1103 = vmatprep.subr.mxu0 0.0
      %1104 = vmatpush1.msra.mxu0 0.0
      %1105 = vmatprep.subr.mxu0 0.0
      %1106 = vmatpush1.msra.mxu0 0.0
      %1107 = vmatprep.subr.mxu0 0.0
      %1108 = vmatpush1.msra.mxu0 0.0
      %1109 = vmatprep.subr.mxu0 0.0
      %1110 = vmatpush1.msra.mxu0 0.0
      %1111 = vmatprep.subr.mxu0 0.0
      %1112 = vmatpush1.msra.mxu0 0.0
      %1113 = vmatprep.mubr.f32.mxu0 0.0
      %1114 = vmatmul.mubr.f32.gmra.mrb[0].mxu0 %v1024
      %v1115 = vpop.f32.mrb[0].mxu0
      %v1116 = vadd.f32 0.0, %v1115
      %v1117 = vpop.f32.mrb[0].mxu0
      %1118 = vmatprep.mubr.f32.mxu0 0.0
      %1119 = vmatmul.mubr.f32.gmra.mrb[0].mxu0 %v1025
      %v1120 = vpop.f32.mrb[0].mxu0
      %v1121 = vadd.f32 0.0, %v1120
      %v1122 = vpop.f32.mrb[0].mxu0
      %1123 = vmatprep.mubr.f32.mxu0 0.0
      %1124 = vmatmul.mubr.f32.gmra.mrb[0].mxu0 %v1026
      %v1125 = vpop.f32.mrb[0].mxu0
      %v1126 = vadd.f32 0.0, %v1125
      %v1127 = vpop.f32.mrb[0].mxu0
      %1128 = vmatprep.mubr.f32.mxu0 0.0
      %1129 = vmatmul.mubr.f32.gmra.mrb[0].mxu0 %v1027
      %v1130 = vpop.f32.mrb[0].mxu0
      %v1131 = vadd.f32 0.0, %v1130
      %v1132 = vpop.f32.mrb[0].mxu0
      %1133 = vmatprep.mubr.f32.mxu0 0.0
      %1134 = vmatmul.mubr.f32.gmra.mrb[0].mxu0 %v1028
      %v1135 = vpop.f32.mrb[0].mxu0
      %v1136 = vadd.f32 0.0, %v1135
      %v1137 = vpop.f32.mrb[0].mxu0
      %1138 = vmatprep.mubr.f32.mxu0 0.0
      %1139 = vmatmul.mubr.f32.gmra.mrb[0].mxu0 %v1029
      %v1140 = vpop.f32.mrb[0].mxu0
      %v1141 = vadd.f32 0.0, %v1140
      %v1142 = vpop.f32.mrb[0].mxu0
      %1143 = vmatprep.mubr.f32.mxu0 0.0
      %1144 = vmatmul.mubr.f32.gmra.mrb[0].mxu0 %v1030
      %v1145 = vpop.f32.mrb[0].mxu0
      %v1146 = vadd.f32 0.0, %v1145
      %v1147 = vpop.f32.mrb[0].mxu0
      %1148 = vmatprep.mubr.f32.mxu0 0.0
      %1149 = vmatmul.mubr.f32.gmra.mrb[0].mxu0 %v1031
      %v1150 = vpop.f32.mrb[0].mxu0
      %v1151 = vadd.f32 0.0, %v1150
      %v1152 = vpop.f32.mrb[0].mxu0
      %1153 = vdwg.mxu0
      %v1154 = vadd.f32 %v1016, %v1116
      %v1155 = vadd.f32 %v1017, %v1121
      %v1156 = vadd.f32 %v1018, %v1126
      %v1157 = vadd.f32 %v1019, %v1131
      %v1158 = vadd.f32 %v1020, %v1136
      %v1159 = vadd.f32 %v1021, %v1141
      %v1160 = vadd.f32 %v1022, %v1146
      %v1161 = vadd.f32 %v1023, %v1151
      %s1162 = scalar_lea.vmem [#allocation2], 48
      %v1163 = vld [vmem:[%s1162 + $0x7] sm:$0xff]
      %v1164 = vld [vmem:[%s1162 + $0x1f] sm:$0xff]
      %v1165 = vld [vmem:[%s1162 + $0x37] sm:$0xff]
      %v1166 = vld [vmem:[%s1162 + $0x4f] sm:$0xff]
      %v1167 = vld [vmem:[%s1162 + $0x67] sm:$0xff]
      %v1168 = vld [vmem:[%s1162 + $0x7f] sm:$0xff]
      %v1169 = vld [vmem:[%s1162 + $0x97] sm:$0xff]
      %v1170 = vld [vmem:[%s1162 + $0xaf] sm:$0xff]
      %s1171 = scalar_lea.vmem %s3, 768
      %v1172 = vld [vmem:[%s1171] sm:$0xff]
      %v1173 = vld [vmem:[%s1171 + $0x8] sm:$0xff]
      %v1174 = vld [vmem:[%s1171 + $0x10] sm:$0xff]
      %v1175 = vld [vmem:[%s1171 + $0x18] sm:$0xff]
      %v1176 = vld [vmem:[%s1171 + $0x20] sm:$0xff]
      %v1177 = vld [vmem:[%s1171 + $0x28] sm:$0xff]
      %v1178 = vld [vmem:[%s1171 + $0x30] sm:$0xff]
      %v1179 = vld [vmem:[%s1171 + $0x38] sm:$0xff]
      %v1180 = vld [vmem:[%s1171 + $0x40] sm:$0xff]
      %v1181 = vld [vmem:[%s1171 + $0x48] sm:$0xff]
      %v1182 = vld [vmem:[%s1171 + $0x50] sm:$0xff]
      %v1183 = vld [vmem:[%s1171 + $0x58] sm:$0xff]
      %v1184 = vld [vmem:[%s1171 + $0x60] sm:$0xff]
      %v1185 = vld [vmem:[%s1171 + $0x68] sm:$0xff]
      %v1186 = vld [vmem:[%s1171 + $0x70] sm:$0xff]
      %v1187 = vld [vmem:[%s1171 + $0x78] sm:$0xff]
      %1188 = vmatprep.subr.mxu0 0.0
      %1189 = vmatpush1.msra.mxu0 %v1172
      %1190 = vmatprep.subr.mxu0 0.0
      %1191 = vmatpush1.msra.mxu0 %v1173
      %1192 = vmatprep.subr.mxu0 0.0
      %1193 = vmatpush1.msra.mxu0 %v1174
      %1194 = vmatprep.subr.mxu0 0.0
      %1195 = vmatpush1.msra.mxu0 %v1175
      %1196 = vmatprep.subr.mxu0 0.0
      %1197 = vmatpush1.msra.mxu0 %v1176
      %1198 = vmatprep.subr.mxu0 0.0
      %1199 = vmatpush1.msra.mxu0 %v1177
      %1200 = vmatprep.subr.mxu0 0.0
      %1201 = vmatpush1.msra.mxu0 %v1178
      %1202 = vmatprep.subr.mxu0 0.0
      %1203 = vmatpush1.msra.mxu0 %v1179
      %1204 = vmatprep.subr.mxu0 0.0
      %1205 = vmatpush1.msra.mxu0 %v1180
      %1206 = vmatprep.subr.mxu0 0.0
      %1207 = vmatpush1.msra.mxu0 %v1181
      %1208 = vmatprep.subr.mxu0 0.0
      %1209 = vmatpush1.msra.mxu0 %v1182
      %1210 = vmatprep.subr.mxu0 0.0
      %1211 = vmatpush1.msra.mxu0 %v1183
      %1212 = vmatprep.subr.mxu0 0.0
      %1213 = vmatpush1.msra.mxu0 %v1184
      %1214 = vmatprep.subr.mxu0 0.0
      %1215 = vmatpush1.msra.mxu0 %v1185
      %1216 = vmatprep.subr.mxu0 0.0
      %1217 = vmatpush1.msra.mxu0 %v1186
      %1218 = vmatprep.subr.mxu0 0.0
      %1219 = vmatpush1.msra.mxu0 %v1187
      %1220 = vmatprep.subr.mxu0 0.0
      %1221 = vmatpush1.msra.mxu0 0.0
      %1222 = vmatprep.subr.mxu0 0.0
      %1223 = vmatpush1.msra.mxu0 0.0
      %1224 = vmatprep.subr.mxu0 0.0
      %1225 = vmatpush1.msra.mxu0 0.0
      %1226 = vmatprep.subr.mxu0 0.0
      %1227 = vmatpush1.msra.mxu0 0.0
      %1228 = vmatprep.subr.mxu0 0.0
      %1229 = vmatpush1.msra.mxu0 0.0
      %1230 = vmatprep.subr.mxu0 0.0
      %1231 = vmatpush1.msra.mxu0 0.0
      %1232 = vmatprep.subr.mxu0 0.0
      %1233 = vmatpush1.msra.mxu0 0.0
      %1234 = vmatprep.subr.mxu0 0.0
      %1235 = vmatpush1.msra.mxu0 0.0
      %1236 = vmatprep.subr.mxu0 0.0
      %1237 = vmatpush1.msra.mxu0 0.0
      %1238 = vmatprep.subr.mxu0 0.0
      %1239 = vmatpush1.msra.mxu0 0.0
      %1240 = vmatprep.subr.mxu0 0.0
      %1241 = vmatpush1.msra.mxu0 0.0
      %1242 = vmatprep.subr.mxu0 0.0
      %1243 = vmatpush1.msra.mxu0 0.0
      %1244 = vmatprep.subr.mxu0 0.0
      %1245 = vmatpush1.msra.mxu0 0.0
      %1246 = vmatprep.subr.mxu0 0.0
      %1247 = vmatpush1.msra.mxu0 0.0
      %1248 = vmatprep.subr.mxu0 0.0
      %1249 = vmatpush1.msra.mxu0 0.0
      %1250 = vmatprep.subr.mxu0 0.0
      %1251 = vmatpush1.msra.mxu0 0.0
      %1252 = vmatprep.mubr.f32.mxu0 0.0
      %1253 = vmatmul.mubr.f32.gmra.mrb[0].mxu0 %v1163
      %v1254 = vpop.f32.mrb[0].mxu0
      %v1255 = vadd.f32 0.0, %v1254
      %v1256 = vpop.f32.mrb[0].mxu0
      %1257 = vmatprep.mubr.f32.mxu0 0.0
      %1258 = vmatmul.mubr.f32.gmra.mrb[0].mxu0 %v1164
      %v1259 = vpop.f32.mrb[0].mxu0
      %v1260 = vadd.f32 0.0, %v1259
      %v1261 = vpop.f32.mrb[0].mxu0
      %1262 = vmatprep.mubr.f32.mxu0 0.0
      %1263 = vmatmul.mubr.f32.gmra.mrb[0].mxu0 %v1165
      %v1264 = vpop.f32.mrb[0].mxu0
      %v1265 = vadd.f32 0.0, %v1264
      %v1266 = vpop.f32.mrb[0].mxu0
      %1267 = vmatprep.mubr.f32.mxu0 0.0
      %1268 = vmatmul.mubr.f32.gmra.mrb[0].mxu0 %v1166
      %v1269 = vpop.f32.mrb[0].mxu0
      %v1270 = vadd.f32 0.0, %v1269
      %v1271 = vpop.f32.mrb[0].mxu0
      %1272 = vmatprep.mubr.f32.mxu0 0.0
      %1273 = vmatmul.mubr.f32.gmra.mrb[0].mxu0 %v1167
      %v1274 = vpop.f32.mrb[0].mxu0
      %v1275 = vadd.f32 0.0, %v1274
      %v1276 = vpop.f32.mrb[0].mxu0
      %1277 = vmatprep.mubr.f32.mxu0 0.0
      %1278 = vmatmul.mubr.f32.gmra.mrb[0].mxu0 %v1168
      %v1279 = vpop.f32.mrb[0].mxu0
      %v1280 = vadd.f32 0.0, %v1279
      %v1281 = vpop.f32.mrb[0].mxu0
      %1282 = vmatprep.mubr.f32.mxu0 0.0
      %1283 = vmatmul.mubr.f32.gmra.mrb[0].mxu0 %v1169
      %v1284 = vpop.f32.mrb[0].mxu0
      %v1285 = vadd.f32 0.0, %v1284
      %v1286 = vpop.f32.mrb[0].mxu0
      %1287 = vmatprep.mubr.f32.mxu0 0.0
      %1288 = vmatmul.mubr.f32.gmra.mrb[0].mxu0 %v1170
      %v1289 = vpop.f32.mrb[0].mxu0
      %v1290 = vadd.f32 0.0, %v1289
      %v1291 = vpop.f32.mrb[0].mxu0
      %1292 = vdwg.mxu0
      %v1293 = vadd.f32 %v1154, %v1255
      %v1294 = vadd.f32 %v1155, %v1260
      %v1295 = vadd.f32 %v1156, %v1265
      %v1296 = vadd.f32 %v1157, %v1270
      %v1297 = vadd.f32 %v1158, %v1275
      %v1298 = vadd.f32 %v1159, %v1280
      %v1299 = vadd.f32 %v1160, %v1285
      %v1300 = vadd.f32 %v1161, %v1290
      %v1301 = vld [vmem:[%s1162 + $0x8] sm:$0xff]
      %v1302 = vld [vmem:[%s1162 + $0x20] sm:$0xff]
      %v1303 = vld [vmem:[%s1162 + $0x38] sm:$0xff]
      %v1304 = vld [vmem:[%s1162 + $0x50] sm:$0xff]
      %v1305 = vld [vmem:[%s1162 + $0x68] sm:$0xff]
      %v1306 = vld [vmem:[%s1162 + $0x80] sm:$0xff]
      %v1307 = vld [vmem:[%s1162 + $0x98] sm:$0xff]
      %v1308 = vld [vmem:[%s1162 + $0xb0] sm:$0xff]
      %s1309 = scalar_lea.vmem %s3, 896
      %v1310 = vld [vmem:[%s1309] sm:$0xff]
      %v1311 = vld [vmem:[%s1309 + $0x8] sm:$0xff]
      %v1312 = vld [vmem:[%s1309 + $0x10] sm:$0xff]
      %v1313 = vld [vmem:[%s1309 + $0x18] sm:$0xff]
      %v1314 = vld [vmem:[%s1309 + $0x20] sm:$0xff]
      %v1315 = vld [vmem:[%s1309 + $0x28] sm:$0xff]
      %v1316 = vld [vmem:[%s1309 + $0x30] sm:$0xff]
      %v1317 = vld [vmem:[%s1309 + $0x38] sm:$0xff]
      %v1318 = vld [vmem:[%s1309 + $0x40] sm:$0xff]
      %v1319 = vld [vmem:[%s1309 + $0x48] sm:$0xff]
      %v1320 = vld [vmem:[%s1309 + $0x50] sm:$0xff]
      %v1321 = vld [vmem:[%s1309 + $0x58] sm:$0xff]
      %v1322 = vld [vmem:[%s1309 + $0x60] sm:$0xff]
      %v1323 = vld [vmem:[%s1309 + $0x68] sm:$0xff]
      %v1324 = vld [vmem:[%s1309 + $0x70] sm:$0xff]
      %v1325 = vld [vmem:[%s1309 + $0x78] sm:$0xff]
      %1326 = vmatprep.subr.mxu0 0.0
      %1327 = vmatpush1.msra.mxu0 %v1310
      %1328 = vmatprep.subr.mxu0 0.0
      %1329 = vmatpush1.msra.mxu0 %v1311
      %1330 = vmatprep.subr.mxu0 0.0
      %1331 = vmatpush1.msra.mxu0 %v1312
      %1332 = vmatprep.subr.mxu0 0.0
      %1333 = vmatpush1.msra.mxu0 %v1313
      %1334 = vmatprep.subr.mxu0 0.0
      %1335 = vmatpush1.msra.mxu0 %v1314
      %1336 = vmatprep.subr.mxu0 0.0
      %1337 = vmatpush1.msra.mxu0 %v1315
      %1338 = vmatprep.subr.mxu0 0.0
      %1339 = vmatpush1.msra.mxu0 %v1316
      %1340 = vmatprep.subr.mxu0 0.0
      %1341 = vmatpush1.msra.mxu0 %v1317
      %1342 = vmatprep.subr.mxu0 0.0
      %1343 = vmatpush1.msra.mxu0 %v1318
      %1344 = vmatprep.subr.mxu0 0.0
      %1345 = vmatpush1.msra.mxu0 %v1319
      %1346 = vmatprep.subr.mxu0 0.0
      %1347 = vmatpush1.msra.mxu0 %v1320
      %1348 = vmatprep.subr.mxu0 0.0
      %1349 = vmatpush1.msra.mxu0 %v1321
      %1350 = vmatprep.subr.mxu0 0.0
      %1351 = vmatpush1.msra.mxu0 %v1322
      %1352 = vmatprep.subr.mxu0 0.0
      %1353 = vmatpush1.msra.mxu0 %v1323
      %1354 = vmatprep.subr.mxu0 0.0
      %1355 = vmatpush1.msra.mxu0 %v1324
      %1356 = vmatprep.subr.mxu0 0.0
      %1357 = vmatpush1.msra.mxu0 %v1325
      %1358 = vmatprep.subr.mxu0 0.0
      %1359 = vmatpush1.msra.mxu0 0.0
      %1360 = vmatprep.subr.mxu0 0.0
      %1361 = vmatpush1.msra.mxu0 0.0
      %1362 = vmatprep.subr.mxu0 0.0
      %1363 = vmatpush1.msra.mxu0 0.0
      %1364 = vmatprep.subr.mxu0 0.0
      %1365 = vmatpush1.msra.mxu0 0.0
      %1366 = vmatprep.subr.mxu0 0.0
      %1367 = vmatpush1.msra.mxu0 0.0
      %1368 = vmatprep.subr.mxu0 0.0
      %1369 = vmatpush1.msra.mxu0 0.0
      %1370 = vmatprep.subr.mxu0 0.0
      %1371 = vmatpush1.msra.mxu0 0.0
      %1372 = vmatprep.subr.mxu0 0.0
      %1373 = vmatpush1.msra.mxu0 0.0
      %1374 = vmatprep.subr.mxu0 0.0
      %1375 = vmatpush1.msra.mxu0 0.0
      %1376 = vmatprep.subr.mxu0 0.0
      %1377 = vmatpush1.msra.mxu0 0.0
      %1378 = vmatprep.subr.mxu0 0.0
      %1379 = vmatpush1.msra.mxu0 0.0
      %1380 = vmatprep.subr.mxu0 0.0
      %1381 = vmatpush1.msra.mxu0 0.0
      %1382 = vmatprep.subr.mxu0 0.0
      %1383 = vmatpush1.msra.mxu0 0.0
      %1384 = vmatprep.subr.mxu0 0.0
      %1385 = vmatpush1.msra.mxu0 0.0
      %1386 = vmatprep.subr.mxu0 0.0
      %1387 = vmatpush1.msra.mxu0 0.0
      %1388 = vmatprep.subr.mxu0 0.0
      %1389 = vmatpush1.msra.mxu0 0.0
      %1390 = vmatprep.mubr.f32.mxu0 0.0
      %1391 = vmatmul.mubr.f32.gmra.mrb[0].mxu0 %v1301
      %v1392 = vpop.f32.mrb[0].mxu0
      %v1393 = vadd.f32 0.0, %v1392
      %v1394 = vpop.f32.mrb[0].mxu0
      %1395 = vmatprep.mubr.f32.mxu0 0.0
      %1396 = vmatmul.mubr.f32.gmra.mrb[0].mxu0 %v1302
      %v1397 = vpop.f32.mrb[0].mxu0
      %v1398 = vadd.f32 0.0, %v1397
      %v1399 = vpop.f32.mrb[0].mxu0
      %1400 = vmatprep.mubr.f32.mxu0 0.0
      %1401 = vmatmul.mubr.f32.gmra.mrb[0].mxu0 %v1303
      %v1402 = vpop.f32.mrb[0].mxu0
      %v1403 = vadd.f32 0.0, %v1402
      %v1404 = vpop.f32.mrb[0].mxu0
      %1405 = vmatprep.mubr.f32.mxu0 0.0
      %1406 = vmatmul.mubr.f32.gmra.mrb[0].mxu0 %v1304
      %v1407 = vpop.f32.mrb[0].mxu0
      %v1408 = vadd.f32 0.0, %v1407
      %v1409 = vpop.f32.mrb[0].mxu0
      %1410 = vmatprep.mubr.f32.mxu0 0.0
      %1411 = vmatmul.mubr.f32.gmra.mrb[0].mxu0 %v1305
      %v1412 = vpop.f32.mrb[0].mxu0
      %v1413 = vadd.f32 0.0, %v1412
      %v1414 = vpop.f32.mrb[0].mxu0
      %1415 = vmatprep.mubr.f32.mxu0 0.0
      %1416 = vmatmul.mubr.f32.gmra.mrb[0].mxu0 %v1306
      %v1417 = vpop.f32.mrb[0].mxu0
      %v1418 = vadd.f32 0.0, %v1417
      %v1419 = vpop.f32.mrb[0].mxu0
      %1420 = vmatprep.mubr.f32.mxu0 0.0
      %1421 = vmatmul.mubr.f32.gmra.mrb[0].mxu0 %v1307
      %v1422 = vpop.f32.mrb[0].mxu0
      %v1423 = vadd.f32 0.0, %v1422
      %v1424 = vpop.f32.mrb[0].mxu0
      %1425 = vmatprep.mubr.f32.mxu0 0.0
      %1426 = vmatmul.mubr.f32.gmra.mrb[0].mxu0 %v1308
      %v1427 = vpop.f32.mrb[0].mxu0
      %v1428 = vadd.f32 0.0, %v1427
      %v1429 = vpop.f32.mrb[0].mxu0
      %1430 = vdwg.mxu0
      %v1431 = vadd.f32 %v1293, %v1393
      %v1432 = vadd.f32 %v1294, %v1398
      %v1433 = vadd.f32 %v1295, %v1403
      %v1434 = vadd.f32 %v1296, %v1408
      %v1435 = vadd.f32 %v1297, %v1413
      %v1436 = vadd.f32 %v1298, %v1418
      %v1437 = vadd.f32 %v1299, %v1423
      %v1438 = vadd.f32 %v1300, %v1428
      %v1439 = vld [vmem:[%s1162 + $0x9] sm:$0xff]
      %v1440 = vld [vmem:[%s1162 + $0x21] sm:$0xff]
      %v1441 = vld [vmem:[%s1162 + $0x39] sm:$0xff]
      %v1442 = vld [vmem:[%s1162 + $0x51] sm:$0xff]
      %v1443 = vld [vmem:[%s1162 + $0x69] sm:$0xff]
      %v1444 = vld [vmem:[%s1162 + $0x81] sm:$0xff]
      %v1445 = vld [vmem:[%s1162 + $0x99] sm:$0xff]
      %v1446 = vld [vmem:[%s1162 + $0xb1] sm:$0xff]
      %s1447 = scalar_lea.vmem %s3, 1024
      %v1448 = vld [vmem:[%s1447] sm:$0xff]
      %v1449 = vld [vmem:[%s1447 + $0x8] sm:$0xff]
      %v1450 = vld [vmem:[%s1447 + $0x10] sm:$0xff]
      %v1451 = vld [vmem:[%s1447 + $0x18] sm:$0xff]
      %v1452 = vld [vmem:[%s1447 + $0x20] sm:$0xff]
      %v1453 = vld [vmem:[%s1447 + $0x28] sm:$0xff]
      %v1454 = vld [vmem:[%s1447 + $0x30] sm:$0xff]
      %v1455 = vld [vmem:[%s1447 + $0x38] sm:$0xff]
      %v1456 = vld [vmem:[%s1447 + $0x40] sm:$0xff]
      %v1457 = vld [vmem:[%s1447 + $0x48] sm:$0xff]
      %v1458 = vld [vmem:[%s1447 + $0x50] sm:$0xff]
      %v1459 = vld [vmem:[%s1447 + $0x58] sm:$0xff]
      %v1460 = vld [vmem:[%s1447 + $0x60] sm:$0xff]
      %v1461 = vld [vmem:[%s1447 + $0x68] sm:$0xff]
      %v1462 = vld [vmem:[%s1447 + $0x70] sm:$0xff]
      %v1463 = vld [vmem:[%s1447 + $0x78] sm:$0xff]
      %1464 = vmatprep.subr.mxu0 0.0
      %1465 = vmatpush1.msra.mxu0 %v1448
      %1466 = vmatprep.subr.mxu0 0.0
      %1467 = vmatpush1.msra.mxu0 %v1449
      %1468 = vmatprep.subr.mxu0 0.0
      %1469 = vmatpush1.msra.mxu0 %v1450
      %1470 = vmatprep.subr.mxu0 0.0
      %1471 = vmatpush1.msra.mxu0 %v1451
      %1472 = vmatprep.subr.mxu0 0.0
      %1473 = vmatpush1.msra.mxu0 %v1452
      %1474 = vmatprep.subr.mxu0 0.0
      %1475 = vmatpush1.msra.mxu0 %v1453
      %1476 = vmatprep.subr.mxu0 0.0
      %1477 = vmatpush1.msra.mxu0 %v1454
      %1478 = vmatprep.subr.mxu0 0.0
      %1479 = vmatpush1.msra.mxu0 %v1455
      %1480 = vmatprep.subr.mxu0 0.0
      %1481 = vmatpush1.msra.mxu0 %v1456
      %1482 = vmatprep.subr.mxu0 0.0
      %1483 = vmatpush1.msra.mxu0 %v1457
      %1484 = vmatprep.subr.mxu0 0.0
      %1485 = vmatpush1.msra.mxu0 %v1458
      %1486 = vmatprep.subr.mxu0 0.0
      %1487 = vmatpush1.msra.mxu0 %v1459
      %1488 = vmatprep.subr.mxu0 0.0
      %1489 = vmatpush1.msra.mxu0 %v1460
      %1490 = vmatprep.subr.mxu0 0.0
      %1491 = vmatpush1.msra.mxu0 %v1461
      %1492 = vmatprep.subr.mxu0 0.0
      %1493 = vmatpush1.msra.mxu0 %v1462
      %1494 = vmatprep.subr.mxu0 0.0
      %1495 = vmatpush1.msra.mxu0 %v1463
      %1496 = vmatprep.subr.mxu0 0.0
      %1497 = vmatpush1.msra.mxu0 0.0
      %1498 = vmatprep.subr.mxu0 0.0
      %1499 = vmatpush1.msra.mxu0 0.0
      %1500 = vmatprep.subr.mxu0 0.0
      %1501 = vmatpush1.msra.mxu0 0.0
      %1502 = vmatprep.subr.mxu0 0.0
      %1503 = vmatpush1.msra.mxu0 0.0
      %1504 = vmatprep.subr.mxu0 0.0
      %1505 = vmatpush1.msra.mxu0 0.0
      %1506 = vmatprep.subr.mxu0 0.0
      %1507 = vmatpush1.msra.mxu0 0.0
      %1508 = vmatprep.subr.mxu0 0.0
      %1509 = vmatpush1.msra.mxu0 0.0
      %1510 = vmatprep.subr.mxu0 0.0
      %1511 = vmatpush1.msra.mxu0 0.0
      %1512 = vmatprep.subr.mxu0 0.0
      %1513 = vmatpush1.msra.mxu0 0.0
      %1514 = vmatprep.subr.mxu0 0.0
      %1515 = vmatpush1.msra.mxu0 0.0
      %1516 = vmatprep.subr.mxu0 0.0
      %1517 = vmatpush1.msra.mxu0 0.0
      %1518 = vmatprep.subr.mxu0 0.0
      %1519 = vmatpush1.msra.mxu0 0.0
      %1520 = vmatprep.subr.mxu0 0.0
      %1521 = vmatpush1.msra.mxu0 0.0
      %1522 = vmatprep.subr.mxu0 0.0
      %1523 = vmatpush1.msra.mxu0 0.0
      %1524 = vmatprep.subr.mxu0 0.0
      %1525 = vmatpush1.msra.mxu0 0.0
      %1526 = vmatprep.subr.mxu0 0.0
      %1527 = vmatpush1.msra.mxu0 0.0
      %1528 = vmatprep.mubr.f32.mxu0 0.0
      %1529 = vmatmul.mubr.f32.gmra.mrb[0].mxu0 %v1439
      %v1530 = vpop.f32.mrb[0].mxu0
      %v1531 = vadd.f32 0.0, %v1530
      %v1532 = vpop.f32.mrb[0].mxu0
      %1533 = vmatprep.mubr.f32.mxu0 0.0
      %1534 = vmatmul.mubr.f32.gmra.mrb[0].mxu0 %v1440
      %v1535 = vpop.f32.mrb[0].mxu0
      %v1536 = vadd.f32 0.0, %v1535
      %v1537 = vpop.f32.mrb[0].mxu0
      %1538 = vmatprep.mubr.f32.mxu0 0.0
      %1539 = vmatmul.mubr.f32.gmra.mrb[0].mxu0 %v1441
      %v1540 = vpop.f32.mrb[0].mxu0
      %v1541 = vadd.f32 0.0, %v1540
      %v1542 = vpop.f32.mrb[0].mxu0
      %1543 = vmatprep.mubr.f32.mxu0 0.0
      %1544 = vmatmul.mubr.f32.gmra.mrb[0].mxu0 %v1442
      %v1545 = vpop.f32.mrb[0].mxu0
      %v1546 = vadd.f32 0.0, %v1545
      %v1547 = vpop.f32.mrb[0].mxu0
      %1548 = vmatprep.mubr.f32.mxu0 0.0
      %1549 = vmatmul.mubr.f32.gmra.mrb[0].mxu0 %v1443
      %v1550 = vpop.f32.mrb[0].mxu0
      %v1551 = vadd.f32 0.0, %v1550
      %v1552 = vpop.f32.mrb[0].mxu0
      %1553 = vmatprep.mubr.f32.mxu0 0.0
      %1554 = vmatmul.mubr.f32.gmra.mrb[0].mxu0 %v1444
      %v1555 = vpop.f32.mrb[0].mxu0
      %v1556 = vadd.f32 0.0, %v1555
      %v1557 = vpop.f32.mrb[0].mxu0
      %1558 = vmatprep.mubr.f32.mxu0 0.0
      %1559 = vmatmul.mubr.f32.gmra.mrb[0].mxu0 %v1445
      %v1560 = vpop.f32.mrb[0].mxu0
      %v1561 = vadd.f32 0.0, %v1560
      %v1562 = vpop.f32.mrb[0].mxu0
      %1563 = vmatprep.mubr.f32.mxu0 0.0
      %1564 = vmatmul.mubr.f32.gmra.mrb[0].mxu0 %v1446
      %v1565 = vpop.f32.mrb[0].mxu0
      %v1566 = vadd.f32 0.0, %v1565
      %v1567 = vpop.f32.mrb[0].mxu0
      %1568 = vdwg.mxu0
      %v1569 = vadd.f32 %v1431, %v1531
      %v1570 = vadd.f32 %v1432, %v1536
      %v1571 = vadd.f32 %v1433, %v1541
      %v1572 = vadd.f32 %v1434, %v1546
      %v1573 = vadd.f32 %v1435, %v1551
      %v1574 = vadd.f32 %v1436, %v1556
      %v1575 = vadd.f32 %v1437, %v1561
      %v1576 = vadd.f32 %v1438, %v1566
      %v1577 = vld [vmem:[%s4] sm:$0x1]
      %v1579 = vlaneseq
      %v1580 = vshrl.u32 %v1579, 7
      %v1581 = vsub.s32 0, %v1580
      %v1582 = vrot.slane %v1577, %v1581
      %v1584 = vadd.f32 %v1569, %v1582
      %v1585 = vadd.f32 %v1570, %v1582
      %v1586 = vadd.f32 %v1571, %v1582
      %v1587 = vadd.f32 %v1572, %v1582
      %v1588 = vadd.f32 %v1573, %v1582
      %v1589 = vadd.f32 %v1574, %v1582
      %v1590 = vadd.f32 %v1575, %v1582
      %v1591 = vadd.f32 %v1576, %v1582
      %v1592 = vadd.f32 %v1584, %v1585
      %v1593 = vadd.f32 %v1592, %v1586
      %v1594 = vadd.f32 %v1593, %v1587
      %v1595 = vadd.f32 %v1594, %v1588
      %v1596 = vadd.f32 %v1595, %v1589
      %v1597 = vadd.f32 %v1596, %v1590
      %v1598 = vadd.f32 %v1597, %v1591
      %v1599 = vrot.slane %v1598, 4
      %v1600 = vadd.f32 %v1598, %v1599
      %v1601 = vrot.slane %v1600, 2
      %v1602 = vadd.f32 %v1600, %v1601
      %v1603 = vrot.slane %v1602, 1
      %v1604 = vadd.f32 %v1602, %v1603
      %v1605 = vmul.f32 %v1584, %v1584
      %v1606 = vmul.f32 %v1585, %v1585
      %v1607 = vmul.f32 %v1586, %v1586
      %v1608 = vmul.f32 %v1587, %v1587
      %v1609 = vmul.f32 %v1588, %v1588
      %v1610 = vmul.f32 %v1589, %v1589
      %v1611 = vmul.f32 %v1590, %v1590
      %v1612 = vmul.f32 %v1591, %v1591
      %v1613 = vadd.f32 %v1605, %v1606
      %v1614 = vadd.f32 %v1613, %v1607
      %v1615 = vadd.f32 %v1614, %v1608
      %v1616 = vadd.f32 %v1615, %v1609
      %v1617 = vadd.f32 %v1616, %v1610
      %v1618 = vadd.f32 %v1617, %v1611
      %v1619 = vadd.f32 %v1618, %v1612
      %v1620 = vrot.slane %v1619, 4
      %v1621 = vadd.f32 %v1619, %v1620
      %v1622 = vrot.slane %v1621, 2
      %v1623 = vadd.f32 %v1621, %v1622
      %v1624 = vrot.slane %v1623, 1
      %v1625 = vadd.f32 %v1623, %v1624
      %v1628 = vcombine.low %v1604, %v1625
      %v1630 = vunpack.c.l.s4 1966171168
      %v1631 = vunpack.c.0.s8 %v1630
      %v1632 = vlaneseq
      %v1633 = vshrl.u32 %v1632, 7
      %v1634 = vsub.s32 %v1631, %v1633
      %v1635 = vrot.slane %v1628, %v1634
      %v1637 = vunpack.c.l.s4 1966171168
      %v1638 = vunpack.c.0.s8 %v1637
      %v1639 = vlaneseq
      %v1640 = vshrl.u32 %v1639, 7
      %v1641 = vsub.s32 %v1638, %v1640
      %v1642 = vrot.slane %v1635, %v1641
      %v1644 = vlaneseq
      %vm1645 = vcmp.ge.s32.totalorder %v1644, 0
      %vm1646 = vcmp.lt.s32.totalorder %v1644, 256
      %vm1647 = vmand %vm1645, %vm1646
      %1648 = vst.msk [vmem:[%s262] sm:$0x3] %vm1647, %v1642
      %v1649 = vpack.c.bf16 %v1584, %v1584
      %v1650 = vpack.c.bf16 %v1585, %v1585
      %v1651 = vpack.c.bf16 %v1586, %v1586
      %v1652 = vpack.c.bf16 %v1587, %v1587
      %v1653 = vpack.c.bf16 %v1588, %v1588
      %v1654 = vpack.c.bf16 %v1589, %v1589
      %v1655 = vpack.c.bf16 %v1590, %v1590
      %v1656 = vpack.c.bf16 %v1591, %v1591
      %1657 = vst [vmem:[%s258] sm:$0xf] %v1649
      %1658 = vst [vmem:[%s258 + $0x4] sm:$0xf] %v1650
      %1659 = vst [vmem:[%s258 + $0x8] sm:$0xf] %v1651
      %1660 = vst [vmem:[%s258 + $0xc] sm:$0xf] %v1652
      %1661 = vst [vmem:[%s258 + $0x10] sm:$0xf] %v1653
      %1662 = vst [vmem:[%s258 + $0x14] sm:$0xf] %v1654
      %1663 = vst [vmem:[%s258 + $0x18] sm:$0xf] %v1655
      %1664 = vst [vmem:[%s258 + $0x1c] sm:$0xf] %v1656
      %p1665 = scmp.lt.s32.totalorder %s18, 1
      %s1666 = scalar_select %p1665, %s18, 1
      %s1667 = smul.addr %s1666, 8
      %s1668 = smul.addr %s1667, 4
      %s1669 = scalar_lea.vmem %s5, %s1668
      %p1670 = scmp.lt.s32.totalorder %s18, 1
      %s1671 = scalar_select %p1670, %s18, 1
      %s1672 = smul.addr %s1671, 2
      %s1673 = scalar_lea.vmem %s6, %s1672
      // Predicated region
      $region41: #{se_down_forward.4} parent=39 // pred_check
        %p1674 = pneg %p146
      $region42: #{se_down_forward.4} parent=39 // pred_check_branch
        %1676 = sbr.rel (%p1674) target = $region44
      $region43: #{se_down_forward.4} parent=39 // pred_region
        _
      $region44: #{se_down_forward.4} parent=39 // pred_fallthru
        _
      // Predicated region
      $region45: #{se_down_forward.4} parent=39 // pred_check
        %p1677 = pneg %p172
      $region46: #{se_down_forward.4} parent=39 // pred_check_branch
        %1679 = sbr.rel (%p1677) target = $region48
      $region47: #{se_down_forward.4} parent=39 // pred_region
        _
      $region48: #{se_down_forward.4} parent=39 // pred_fallthru
        _
    $region40: #{se_down_forward.4} parent=5 // pred_fallthru
      _
    %p1680 = scmp.le.s32.totalorder 2, %s13
    // Predicated region
    $region49: #{se_down_forward.4} parent=5 // pred_check
      %p1681 = pneg %p1680
    $region50: #{se_down_forward.4} parent=5 // pred_check_branch
      %1683 = sbr.rel (%p1681) target = $region52
    $region51: #{se_down_forward.4} parent=5 // pred_region
      %s1684 = ssub.s32 %s13, 2
      // Predicated region
      $region53: #{se_down_forward.4} parent=51 // pred_check
        %p1685 = pneg %p152
      $region54: #{se_down_forward.4} parent=51 // pred_check_branch
        %1687 = sbr.rel (%p1685) target = $region56
      $region55: #{se_down_forward.4} parent=51 // pred_region
        %p1688 = scmp.lt.s32.totalorder %s19, 1
        %s1689 = scalar_select %p1688, %s19, 1
        %s1690 = smul.addr %s1689, 8
        %s1691 = smul.addr %s1690, 4
        %s1692 = scalar_lea.vmem %s5, %s1691
      $region56: #{se_down_forward.4} parent=51 // pred_fallthru
        _
      // Predicated region
      $region57: #{se_down_forward.4} parent=51 // pred_check
        %p1693 = pneg %p178
      $region58: #{se_down_forward.4} parent=51 // pred_check_branch
        %1695 = sbr.rel (%p1693) target = $region60
      $region59: #{se_down_forward.4} parent=51 // pred_region
        %p1696 = scmp.lt.s32.totalorder %s19, 1
        %s1697 = scalar_select %p1696, %s19, 1
        %s1698 = smul.addr %s1697, 2
        %s1699 = scalar_lea.vmem %s6, %s1698
      $region60: #{se_down_forward.4} parent=51 // pred_fallthru
        _
    $region52: #{se_down_forward.4} parent=5 // pred_fallthru
      _
  $region6: #{se_down_forward.4} parent=0 // loop_footer
    %s17 = sadd.s32 1, %s13
  $region7: #{se_down_forward.4} parent=0 // loop_footer_branch
    %12 = sbr.rel target = $region3
  $region8: #{se_down_forward.4} parent=0 // loop_exit
    _

// kernel: se_down_forward.5
$region0: #{se_down_forward.5}
  #allocation0 [shape = 'u32[]', space=smem, size = 0x4, offset = 0x4, fixed_abs, tag = 'smem constant byte address 0x4 - core index']
  #allocation1 [shape = 'u32[144,128]{1,0:T(1,128)}', space=vmem, size = 0x12000, scoped, tag = 'internal scratch']
  #allocation2 [shape = 'f32[12,24,128]{2,1,0:T(8,128)}', space=vmem, size = 0x24000, scoped, tag = 'scratch operand']
  %s0 = inlined_call_operand.vmem [shape: bf16[2,8,8,128], index: 0, kind: input, shape index: {}]
  %s1 = inlined_call_operand.vmem [shape: f32[1,128], index: 1, kind: input, shape index: {}]
  %s2 = inlined_call_operand.vmem [shape: f32[1,128], index: 2, kind: input, shape index: {}]
  %s3 = inlined_call_operand.vmem [shape: f32[9,128,128], index: 3, kind: input, shape index: {}]
  %s4 = inlined_call_operand.vmem [shape: f32[1,128], index: 4, kind: input, shape index: {}]
  %s5 = inlined_call_operand.vmem [shape: bf16[2,8,8,128], index: 5, kind: output, shape index: {0}]
  %s6 = inlined_call_operand.vmem [shape: f32[2,1,256], index: 6, kind: output, shape index: {1}]
  %7 = xla_tuple %s5, %s6
  %s8 = sld [smem:[#allocation0]]
  $region61: #{se_down_forward.5} parent=0
    _
  %s10 = ssub.s32 1, %s8
  %s11 = scalar_select 0, %s10, %s8
  loop: start=0, step=1, limit=4
  $region2: #{se_down_forward.5} parent=0 // loop_pre_header
    _
  $region3: #{se_down_forward.5} parent=0 // loop_header
    %s13 = sphi 0, %s17
    %p14 = scmp.ge.s32.totalorder %s13, 4
    %s23 = sphi 0, %s25
    %s26 = sphi 0, %s23
    %s27 = sphi 0, %s26
    %s43 = sphi 0, %s27
    %s47 = sphi 0, %s47
    %s49 = sphi 0, %s47
    %s50 = sphi 0, %s49
    %s64 = sphi 0, %s50
    %s68 = sphi 0, %s68
    %s70 = sphi 0, %s68
    %s71 = sphi 0, %s70
    %s85 = sphi 0, %s71
    %s89 = sphi 0, %s89
    %s91 = sphi 0, %s89
    %s92 = sphi 0, %s91
    %s106 = sphi 0, %s92
    %s110 = sphi 0, %s110
    %s112 = sphi 0, %s110
    %s113 = sphi 0, %s112
    %s127 = sphi 0, %s113
    %s133 = sphi 0, %s135
    %s136 = sphi 0, %s133
    %s137 = sphi 0, %s136
    %s153 = sphi 0, %s137
    %s159 = sphi 0, %s161
    %s162 = sphi 0, %s159
    %s163 = sphi 0, %s162
    %s179 = sphi 0, %s163
  $region4: #{se_down_forward.5} parent=0 // loop_header_branch
    %16 = sbr.rel (%p14) target = $region8
  $region5: #{se_down_forward.5} parent=0 // loop_body
    %s18 = ssub.s32 %s13, 1
    %s19 = ssub.s32 %s13, 2
    %s20 = sadd.s32 %s13, 1
    %s21 = ssub.s32 %s13, %s20
    %p22 = scmp.eq.s32.totalorder %s21, 0
    %s24 = sadd.s32 %s23, 1
    %s25 = scalar_select %p22, %s23, %s24
    %p28 = pneg %p22
    %p29 = scmp.eq.s32.totalorder %s13, 1
    %p30 = por %p28, %p29
    %p31 = scmp.ne.s32.totalorder %s23, %s26
    %p32 = scmp.eq.s32.totalorder %s13, 0
    %p33 = por %p31, %p32
    %p34 = scmp.ne.s32.totalorder %s23, %s26
    %p35 = scmp.eq.s32.totalorder %s18, 1
    %p36 = por %p34, %p35
    %p37 = scmp.ne.s32.totalorder %s26, %s27
    %p38 = scmp.eq.s32.totalorder %s18, 0
    %p39 = por %p37, %p38
    %p40 = scmp.ne.s32.totalorder %s26, %s27
    %p41 = scmp.eq.s32.totalorder %s19, 1
    %p42 = por %p40, %p41
    %p44 = scmp.ne.s32.totalorder %s27, %s43
    %p45 = scmp.eq.s32.totalorder %s19, 0
    %p46 = por %p44, %p45
    %s48 = sadd.s32 %s47, 1
    %p51 = scmp.eq.s32.totalorder %s13, 1
    %p52 = scmp.ne.s32.totalorder %s47, %s49
    %p53 = scmp.eq.s32.totalorder %s13, 0
    %p54 = por %p52, %p53
    %p55 = scmp.ne.s32.totalorder %s47, %s49
    %p56 = scmp.eq.s32.totalorder %s18, 1
    %p57 = por %p55, %p56
    %p58 = scmp.ne.s32.totalorder %s49, %s50
    %p59 = scmp.eq.s32.totalorder %s18, 0
    %p60 = por %p58, %p59
    %p61 = scmp.ne.s32.totalorder %s49, %s50
    %p62 = scmp.eq.s32.totalorder %s19, 1
    %p63 = por %p61, %p62
    %p65 = scmp.ne.s32.totalorder %s50, %s64
    %p66 = scmp.eq.s32.totalorder %s19, 0
    %p67 = por %p65, %p66
    %s69 = sadd.s32 %s68, 1
    %p72 = scmp.eq.s32.totalorder %s13, 1
    %p73 = scmp.ne.s32.totalorder %s68, %s70
    %p74 = scmp.eq.s32.totalorder %s13, 0
    %p75 = por %p73, %p74
    %p76 = scmp.ne.s32.totalorder %s68, %s70
    %p77 = scmp.eq.s32.totalorder %s18, 1
    %p78 = por %p76, %p77
    %p79 = scmp.ne.s32.totalorder %s70, %s71
    %p80 = scmp.eq.s32.totalorder %s18, 0
    %p81 = por %p79, %p80
    %p82 = scmp.ne.s32.totalorder %s70, %s71
    %p83 = scmp.eq.s32.totalorder %s19, 1
    %p84 = por %p82, %p83
    %p86 = scmp.ne.s32.totalorder %s71, %s85
    %p87 = scmp.eq.s32.totalorder %s19, 0
    %p88 = por %p86, %p87
    %s90 = sadd.s32 %s89, 1
    %p93 = scmp.eq.s32.totalorder %s13, 1
    %p94 = scmp.ne.s32.totalorder %s89, %s91
    %p95 = scmp.eq.s32.totalorder %s13, 0
    %p96 = por %p94, %p95
    %p97 = scmp.ne.s32.totalorder %s89, %s91
    %p98 = scmp.eq.s32.totalorder %s18, 1
    %p99 = por %p97, %p98
    %p100 = scmp.ne.s32.totalorder %s91, %s92
    %p101 = scmp.eq.s32.totalorder %s18, 0
    %p102 = por %p100, %p101
    %p103 = scmp.ne.s32.totalorder %s91, %s92
    %p104 = scmp.eq.s32.totalorder %s19, 1
    %p105 = por %p103, %p104
    %p107 = scmp.ne.s32.totalorder %s92, %s106
    %p108 = scmp.eq.s32.totalorder %s19, 0
    %p109 = por %p107, %p108
    %s111 = sadd.s32 %s110, 1
    %p114 = scmp.eq.s32.totalorder %s13, 1
    %p115 = scmp.ne.s32.totalorder %s110, %s112
    %p116 = scmp.eq.s32.totalorder %s13, 0
    %p117 = por %p115, %p116
    %p118 = scmp.ne.s32.totalorder %s110, %s112
    %p119 = scmp.eq.s32.totalorder %s18, 1
    %p120 = por %p118, %p119
    %p121 = scmp.ne.s32.totalorder %s112, %s113
    %p122 = scmp.eq.s32.totalorder %s18, 0
    %p123 = por %p121, %p122
    %p124 = scmp.ne.s32.totalorder %s112, %s113
    %p125 = scmp.eq.s32.totalorder %s19, 1
    %p126 = por %p124, %p125
    %p128 = scmp.ne.s32.totalorder %s113, %s127
    %p129 = scmp.eq.s32.totalorder %s19, 0
    %p130 = por %p128, %p129
    %s131 = ssub.s32 %s13, %s20
    %p132 = scmp.eq.s32.totalorder %s131, 0
    %s134 = sadd.s32 %s133, 1
    %s135 = scalar_select %p132, %s133, %s134
    %p138 = pneg %p132
    %p139 = scmp.eq.s32.totalorder %s13, 1
    %p140 = por %p138, %p139
    %p141 = scmp.ne.s32.totalorder %s133, %s136
    %p142 = scmp.eq.s32.totalorder %s13, 0
    %p143 = por %p141, %p142
    %p144 = scmp.ne.s32.totalorder %s133, %s136
    %p145 = scmp.eq.s32.totalorder %s18, 1
    %p146 = por %p144, %p145
    %p147 = scmp.ne.s32.totalorder %s136, %s137
    %p148 = scmp.eq.s32.totalorder %s18, 0
    %p149 = por %p147, %p148
    %p150 = scmp.ne.s32.totalorder %s136, %s137
    %p151 = scmp.eq.s32.totalorder %s19, 1
    %p152 = por %p150, %p151
    %p154 = scmp.ne.s32.totalorder %s137, %s153
    %p155 = scmp.eq.s32.totalorder %s19, 0
    %p156 = por %p154, %p155
    %s157 = ssub.s32 %s13, %s20
    %p158 = scmp.eq.s32.totalorder %s157, 0
    %s160 = sadd.s32 %s159, 1
    %s161 = scalar_select %p158, %s159, %s160
    %p164 = pneg %p158
    %p165 = scmp.eq.s32.totalorder %s13, 1
    %p166 = por %p164, %p165
    %p167 = scmp.ne.s32.totalorder %s159, %s162
    %p168 = scmp.eq.s32.totalorder %s13, 0
    %p169 = por %p167, %p168
    %p170 = scmp.ne.s32.totalorder %s159, %s162
    %p171 = scmp.eq.s32.totalorder %s18, 1
    %p172 = por %p170, %p171
    %p173 = scmp.ne.s32.totalorder %s162, %s163
    %p174 = scmp.eq.s32.totalorder %s18, 0
    %p175 = por %p173, %p174
    %p176 = scmp.ne.s32.totalorder %s162, %s163
    %p177 = scmp.eq.s32.totalorder %s19, 1
    %p178 = por %p176, %p177
    %p180 = scmp.ne.s32.totalorder %s163, %s179
    %p181 = scmp.eq.s32.totalorder %s19, 0
    %p182 = por %p180, %p181
    %p183 = scmp.le.s32.totalorder 1, %s13
    %p184 = scmp.lt.s32.totalorder %s13, 3
    %p185 = pnand %p183, %p184
    %p186 = pneg %p185
    // Predicated region
    $region9: #{se_down_forward.5} parent=5 // pred_check
      _
    $region10: #{se_down_forward.5} parent=5 // pred_check_branch
      %188 = sbr.rel (%p185) target = $region12
    $region11: #{se_down_forward.5} parent=5 // pred_region
      %s189 = ssub.s32 %s13, 1
      // Predicated region
      $region13: #{se_down_forward.5} parent=11 // pred_check
        %p190 = pneg %p60
      $region14: #{se_down_forward.5} parent=11 // pred_check_branch
        %192 = sbr.rel (%p190) target = $region16
      $region15: #{se_down_forward.5} parent=11 // pred_region
        _
      $region16: #{se_down_forward.5} parent=11 // pred_fallthru
        _
      // Predicated region
      $region17: #{se_down_forward.5} parent=11 // pred_check
        %p193 = pneg %p81
      $region18: #{se_down_forward.5} parent=11 // pred_check_branch
        %195 = sbr.rel (%p193) target = $region20
      $region19: #{se_down_forward.5} parent=11 // pred_region
        _
      $region20: #{se_down_forward.5} parent=11 // pred_fallthru
        _
      // Predicated region
      $region21: #{se_down_forward.5} parent=11 // pred_check
        %p196 = pneg %p102
      $region22: #{se_down_forward.5} parent=11 // pred_check_branch
        %198 = sbr.rel (%p196) target = $region24
      $region23: #{se_down_forward.5} parent=11 // pred_region
        _
      $region24: #{se_down_forward.5} parent=11 // pred_fallthru
        _
      // Predicated region
      $region25: #{se_down_forward.5} parent=11 // pred_check
        %p199 = pneg %p123
      $region26: #{se_down_forward.5} parent=11 // pred_check_branch
        %201 = sbr.rel (%p199) target = $region28
      $region27: #{se_down_forward.5} parent=11 // pred_region
        _
      $region28: #{se_down_forward.5} parent=11 // pred_fallthru
        _
    $region12: #{se_down_forward.5} parent=5 // pred_fallthru
      _
    %p202 = scmp.lt.s32.totalorder %s13, 2
    // Predicated region
    $region29: #{se_down_forward.5} parent=5 // pred_check
      %p203 = pneg %p202
    $region30: #{se_down_forward.5} parent=5 // pred_check_branch
      %205 = sbr.rel (%p203) target = $region32
    $region31: #{se_down_forward.5} parent=5 // pred_region
      // Predicated region
      $region33: #{se_down_forward.5} parent=31 // pred_check
        %p206 = pneg %p33
      $region34: #{se_down_forward.5} parent=31 // pred_check_branch
        %208 = sbr.rel (%p206) target = $region36
      $region35: #{se_down_forward.5} parent=31 // pred_region
        %p209 = scmp.lt.s32.totalorder %s13, 1
        %s210 = scalar_select %p209, %s13, 1
        %s211 = smul.addr %s210, 8
        %s212 = smul.addr %s211, 4
        %s213 = scalar_lea.vmem %s0, %s212
      $region36: #{se_down_forward.5} parent=31 // pred_fallthru
        _
    $region32: #{se_down_forward.5} parent=5 // pred_fallthru
      _
    %p214 = scmp.le.s32.totalorder 1, %s13
    %p215 = scmp.lt.s32.totalorder %s13, 3
    %p216 = pnand %p214, %p215
    %p217 = pneg %p216
    // Predicated region
    $region37: #{se_down_forward.5} parent=5 // pred_check
      _
    $region38: #{se_down_forward.5} parent=5 // pred_check_branch
      %219 = sbr.rel (%p216) target = $region40
    $region39: #{se_down_forward.5} parent=5 // pred_region
      %s220 = ssub.s32 %s13, 1
      %p221 = scmp.lt.s32.totalorder %s18, 1
      %s222 = scalar_select %p221, %s18, 1
      %s223 = smul.addr %s222, 8
      %s224 = smul.addr %s223, 4
      %s225 = scalar_lea.vmem %s0, %s224
      %p226 = pneg %p39
      %p227 = pneg %p36
      %p228 = pneg %p60
      %p229 = pneg %p57
      %p230 = pneg %p81
      %p231 = pneg %p78
      %p232 = pneg %p102
      %p233 = pneg %p99
      %p234 = pneg %p123
      %p235 = pneg %p120
      %p236 = pneg %p149
      %p237 = pneg %p146
      %p238 = scmp.lt.s32.totalorder %s18, 1
      %s239 = scalar_select %p238, %s18, 1
      %s240 = smul.addr %s239, 8
      %s241 = smul.addr %s240, 4
      %s242 = scalar_lea.vmem %s5, %s241
      %p243 = pneg %p175
      %p244 = pneg %p172
      %p245 = scmp.lt.s32.totalorder %s18, 1
      %s246 = scalar_select %p245, %s18, 1
      %s247 = smul.addr %s246, 2
      %s248 = scalar_lea.vmem %s6, %s247
      %p249 = scmp.lt.s32.totalorder %s18, 1
      %s250 = scalar_select %p249, %s18, 1
      %s251 = smul.addr %s250, 8
      %s252 = smul.addr %s251, 4
      %s253 = scalar_lea.vmem %s0, %s252
      %p254 = scmp.lt.s32.totalorder %s18, 1
      %s255 = scalar_select %p254, %s18, 1
      %s256 = smul.addr %s255, 8
      %s257 = smul.addr %s256, 4
      %s258 = scalar_lea.vmem %s5, %s257
      %p259 = scmp.lt.s32.totalorder %s18, 1
      %s260 = scalar_select %p259, %s18, 1
      %s261 = smul.addr %s260, 2
      %s262 = scalar_lea.vmem %s6, %s261
      %v263 = vld [vmem:[%s253] sm:$0xf]
      %v264 = vld [vmem:[%s253 + $0x4] sm:$0xf]
      %v265 = vld [vmem:[%s253 + $0x8] sm:$0xf]
      %v266 = vld [vmem:[%s253 + $0xc] sm:$0xf]
      %v267 = vld [vmem:[%s253 + $0x10] sm:$0xf]
      %v268 = vld [vmem:[%s253 + $0x14] sm:$0xf]
      %v269 = vld [vmem:[%s253 + $0x18] sm:$0xf]
      %v270 = vld [vmem:[%s253 + $0x1c] sm:$0xf]
      %v271 = vunpack.c.l.bf16 %v263
      %v272 = vunpack.c.l.bf16 %v264
      %v273 = vunpack.c.l.bf16 %v265
      %v274 = vunpack.c.l.bf16 %v266
      %v275 = vunpack.c.l.bf16 %v267
      %v276 = vunpack.c.l.bf16 %v268
      %v277 = vunpack.c.l.bf16 %v269
      %v278 = vunpack.c.l.bf16 %v270
      %v279 = vld [vmem:[%s1] sm:$0x1]
      %v280 = vld [vmem:[%s2] sm:$0x1]
      %v282 = vlaneseq
      %v283 = vshrl.u32 %v282, 7
      %v284 = vsub.s32 0, %v283
      %v285 = vrot.slane %v279, %v284
      %v287 = vmul.f32 %v271, %v285
      %v288 = vmul.f32 %v272, %v285
      %v289 = vmul.f32 %v273, %v285
      %v290 = vmul.f32 %v274, %v285
      %v291 = vmul.f32 %v275, %v285
      %v292 = vmul.f32 %v276, %v285
      %v293 = vmul.f32 %v277, %v285
      %v294 = vmul.f32 %v278, %v285
      %v296 = vlaneseq
      %v297 = vshrl.u32 %v296, 7
      %v298 = vsub.s32 0, %v297
      %v299 = vrot.slane %v280, %v298
      %v301 = vadd.f32 %v287, %v299
      %v302 = vadd.f32 %v288, %v299
      %v303 = vadd.f32 %v289, %v299
      %v304 = vadd.f32 %v290, %v299
      %v305 = vadd.f32 %v291, %v299
      %v306 = vadd.f32 %v292, %v299
      %v307 = vadd.f32 %v293, %v299
      %v308 = vadd.f32 %v294, %v299
      %v309 = vmax.f32 %v301, 0.0
      %v310 = vmax.f32 %v302, 0.0
      %v311 = vmax.f32 %v303, 0.0
      %v312 = vmax.f32 %v304, 0.0
      %v313 = vmax.f32 %v305, 0.0
      %v314 = vmax.f32 %v306, 0.0
      %v315 = vmax.f32 %v307, 0.0
      %v316 = vmax.f32 %v308, 0.0
      %317 = vst [vmem:[#allocation2] sm:$0xff] 0.0
      %318 = vst [vmem:[#allocation2 + $0x8] sm:$0xff] 0.0
      %319 = vst [vmem:[#allocation2 + $0x10] sm:$0xff] 0.0
      %320 = vst [vmem:[#allocation2 + $0x18] sm:$0xff] 0.0
      %321 = vst [vmem:[#allocation2 + $0x20] sm:$0xff] 0.0
      %322 = vst [vmem:[#allocation2 + $0x28] sm:$0xff] 0.0
      %s323 = scalar_lea.vmem [#allocation2], 240
      %324 = vst [vmem:[%s323] sm:$0xff] 0.0
      %325 = vst [vmem:[%s323 + $0x8] sm:$0xff] 0.0
      %326 = vst [vmem:[%s323 + $0x10] sm:$0xff] 0.0
      %327 = vst [vmem:[%s323 + $0x18] sm:$0xff] 0.0
      %328 = vst [vmem:[%s323 + $0x20] sm:$0xff] 0.0
      %329 = vst [vmem:[%s323 + $0x28] sm:$0xff] 0.0
      %s330 = scalar_lea.vmem [#allocation2], 48
      %331 = vst [vmem:[%s330] sm:$0xff] 0.0
      %332 = vst [vmem:[%s330 + $0x18] sm:$0xff] 0.0
      %333 = vst [vmem:[%s330 + $0x30] sm:$0xff] 0.0
      %334 = vst [vmem:[%s330 + $0x48] sm:$0xff] 0.0
      %335 = vst [vmem:[%s330 + $0x60] sm:$0xff] 0.0
      %336 = vst [vmem:[%s330 + $0x78] sm:$0xff] 0.0
      %337 = vst [vmem:[%s330 + $0x90] sm:$0xff] 0.0
      %338 = vst [vmem:[%s330 + $0xa8] sm:$0xff] 0.0
      %339 = vst [vmem:[%s330 + $0x10] sm:$0xff] 0.0
      %340 = vst [vmem:[%s330 + $0x28] sm:$0xff] 0.0
      %341 = vst [vmem:[%s330 + $0x40] sm:$0xff] 0.0
      %342 = vst [vmem:[%s330 + $0x58] sm:$0xff] 0.0
      %343 = vst [vmem:[%s330 + $0x70] sm:$0xff] 0.0
      %344 = vst [vmem:[%s330 + $0x88] sm:$0xff] 0.0
      %345 = vst [vmem:[%s330 + $0xa0] sm:$0xff] 0.0
      %346 = vst [vmem:[%s330 + $0xb8] sm:$0xff] 0.0
      %347 = vst [vmem:[%s330 + $0x8] sm:$0xff] %v309
      %348 = vst [vmem:[%s330 + $0x20] sm:$0xff] %v310
      %349 = vst [vmem:[%s330 + $0x38] sm:$0xff] %v311
      %350 = vst [vmem:[%s330 + $0x50] sm:$0xff] %v312
      %351 = vst [vmem:[%s330 + $0x68] sm:$0xff] %v313
      %352 = vst [vmem:[%s330 + $0x80] sm:$0xff] %v314
      %353 = vst [vmem:[%s330 + $0x98] sm:$0xff] %v315
      %354 = vst [vmem:[%s330 + $0xb0] sm:$0xff] %v316
      %v355 = vld [vmem:[#allocation2 + $0x6] sm:$0xff]
      %v356 = vld [vmem:[#allocation2 + $0x1e] sm:$0xff]
      %v357 = vld [vmem:[#allocation2 + $0x36] sm:$0xff]
      %v358 = vld [vmem:[#allocation2 + $0x4e] sm:$0xff]
      %v359 = vld [vmem:[#allocation2 + $0x66] sm:$0xff]
      %v360 = vld [vmem:[#allocation2 + $0x7e] sm:$0xff]
      %v361 = vld [vmem:[#allocation2 + $0x96] sm:$0xff]
      %v362 = vld [vmem:[#allocation2 + $0xae] sm:$0xff]
      %v363 = vld [vmem:[%s3] sm:$0xff]
      %v364 = vld [vmem:[%s3 + $0x8] sm:$0xff]
      %v365 = vld [vmem:[%s3 + $0x10] sm:$0xff]
      %v366 = vld [vmem:[%s3 + $0x18] sm:$0xff]
      %v367 = vld [vmem:[%s3 + $0x20] sm:$0xff]
      %v368 = vld [vmem:[%s3 + $0x28] sm:$0xff]
      %v369 = vld [vmem:[%s3 + $0x30] sm:$0xff]
      %v370 = vld [vmem:[%s3 + $0x38] sm:$0xff]
      %v371 = vld [vmem:[%s3 + $0x40] sm:$0xff]
      %v372 = vld [vmem:[%s3 + $0x48] sm:$0xff]
      %v373 = vld [vmem:[%s3 + $0x50] sm:$0xff]
      %v374 = vld [vmem:[%s3 + $0x58] sm:$0xff]
      %v375 = vld [vmem:[%s3 + $0x60] sm:$0xff]
      %v376 = vld [vmem:[%s3 + $0x68] sm:$0xff]
      %v377 = vld [vmem:[%s3 + $0x70] sm:$0xff]
      %v378 = vld [vmem:[%s3 + $0x78] sm:$0xff]
      %v379 = vld [vmem:[#allocation2 + $0x8] sm:$0xff]
      %v380 = vld [vmem:[#allocation2 + $0x20] sm:$0xff]
      %v381 = vld [vmem:[#allocation2 + $0x38] sm:$0xff]
      %v382 = vld [vmem:[#allocation2 + $0x50] sm:$0xff]
      %v383 = vld [vmem:[#allocation2 + $0x68] sm:$0xff]
      %v384 = vld [vmem:[#allocation2 + $0x80] sm:$0xff]
      %v385 = vld [vmem:[#allocation2 + $0x98] sm:$0xff]
      %v386 = vld [vmem:[#allocation2 + $0xb0] sm:$0xff]
      %s387 = scalar_lea.vmem %s3, 128
      %v388 = vld [vmem:[%s387] sm:$0xff]
      %v389 = vld [vmem:[%s387 + $0x8] sm:$0xff]
      %v390 = vld [vmem:[%s387 + $0x10] sm:$0xff]
      %v391 = vld [vmem:[%s387 + $0x18] sm:$0xff]
      %v392 = vld [vmem:[%s387 + $0x20] sm:$0xff]
      %v393 = vld [vmem:[%s387 + $0x28] sm:$0xff]
      %v394 = vld [vmem:[%s387 + $0x30] sm:$0xff]
      %v395 = vld [vmem:[%s387 + $0x38] sm:$0xff]
      %v396 = vld [vmem:[%s387 + $0x40] sm:$0xff]
      %v397 = vld [vmem:[%s387 + $0x48] sm:$0xff]
      %v398 = vld [vmem:[%s387 + $0x50] sm:$0xff]
      %v399 = vld [vmem:[%s387 + $0x58] sm:$0xff]
      %v400 = vld [vmem:[%s387 + $0x60] sm:$0xff]
      %v401 = vld [vmem:[%s387 + $0x68] sm:$0xff]
      %v402 = vld [vmem:[%s387 + $0x70] sm:$0xff]
      %v403 = vld [vmem:[%s387 + $0x78] sm:$0xff]
      %404 = vmatprep.subr.mxu0 0.0
      %405 = vmatpush1.msra.mxu0 %v388
      %406 = vmatprep.subr.mxu0 0.0
      %407 = vmatpush1.msra.mxu0 %v389
      %408 = vmatprep.subr.mxu0 0.0
      %409 = vmatpush1.msra.mxu0 %v390
      %410 = vmatprep.subr.mxu0 0.0
      %411 = vmatpush1.msra.mxu0 %v391
      %412 = vmatprep.subr.mxu0 0.0
      %413 = vmatpush1.msra.mxu0 %v392
      %414 = vmatprep.subr.mxu0 0.0
      %415 = vmatpush1.msra.mxu0 %v393
      %416 = vmatprep.subr.mxu0 0.0
      %417 = vmatpush1.msra.mxu0 %v394
      %418 = vmatprep.subr.mxu0 0.0
      %419 = vmatpush1.msra.mxu0 %v395
      %420 = vmatprep.subr.mxu0 0.0
      %421 = vmatpush1.msra.mxu0 %v396
      %422 = vmatprep.subr.mxu0 0.0
      %423 = vmatpush1.msra.mxu0 %v397
      %424 = vmatprep.subr.mxu0 0.0
      %425 = vmatpush1.msra.mxu0 %v398
      %426 = vmatprep.subr.mxu0 0.0
      %427 = vmatpush1.msra.mxu0 %v399
      %428 = vmatprep.subr.mxu0 0.0
      %429 = vmatpush1.msra.mxu0 %v400
      %430 = vmatprep.subr.mxu0 0.0
      %431 = vmatpush1.msra.mxu0 %v401
      %432 = vmatprep.subr.mxu0 0.0
      %433 = vmatpush1.msra.mxu0 %v402
      %434 = vmatprep.subr.mxu0 0.0
      %435 = vmatpush1.msra.mxu0 %v403
      %436 = vmatprep.subr.mxu0 0.0
      %437 = vmatpush1.msra.mxu0 0.0
      %438 = vmatprep.subr.mxu0 0.0
      %439 = vmatpush1.msra.mxu0 0.0
      %440 = vmatprep.subr.mxu0 0.0
      %441 = vmatpush1.msra.mxu0 0.0
      %442 = vmatprep.subr.mxu0 0.0
      %443 = vmatpush1.msra.mxu0 0.0
      %444 = vmatprep.subr.mxu0 0.0
      %445 = vmatpush1.msra.mxu0 0.0
      %446 = vmatprep.subr.mxu0 0.0
      %447 = vmatpush1.msra.mxu0 0.0
      %448 = vmatprep.subr.mxu0 0.0
      %449 = vmatpush1.msra.mxu0 0.0
      %450 = vmatprep.subr.mxu0 0.0
      %451 = vmatpush1.msra.mxu0 0.0
      %452 = vmatprep.subr.mxu0 0.0
      %453 = vmatpush1.msra.mxu0 0.0
      %454 = vmatprep.subr.mxu0 0.0
      %455 = vmatpush1.msra.mxu0 0.0
      %456 = vmatprep.subr.mxu0 0.0
      %457 = vmatpush1.msra.mxu0 0.0
      %458 = vmatprep.subr.mxu0 0.0
      %459 = vmatpush1.msra.mxu0 0.0
      %460 = vmatprep.subr.mxu0 0.0
      %461 = vmatpush1.msra.mxu0 0.0
      %462 = vmatprep.subr.mxu0 0.0
      %463 = vmatpush1.msra.mxu0 0.0
      %464 = vmatprep.subr.mxu0 0.0
      %465 = vmatpush1.msra.mxu0 0.0
      %466 = vmatprep.subr.mxu0 0.0
      %467 = vmatpush1.msra.mxu0 0.0
      %468 = vmatprep.mubr.f32.mxu0 0.0
      %469 = vmatmul.mubr.f32.gmra.mrb[0].mxu0 %v379
      %v470 = vpop.f32.mrb[0].mxu0
      %v471 = vadd.f32 0.0, %v470
      %v472 = vpop.f32.mrb[0].mxu0
      %473 = vmatprep.mubr.f32.mxu0 0.0
      %474 = vmatmul.mubr.f32.gmra.mrb[0].mxu0 %v380
      %v475 = vpop.f32.mrb[0].mxu0
      %v476 = vadd.f32 0.0, %v475
      %v477 = vpop.f32.mrb[0].mxu0
      %478 = vmatprep.mubr.f32.mxu0 0.0
      %479 = vmatmul.mubr.f32.gmra.mrb[0].mxu0 %v381
      %v480 = vpop.f32.mrb[0].mxu0
      %v481 = vadd.f32 0.0, %v480
      %v482 = vpop.f32.mrb[0].mxu0
      %483 = vmatprep.mubr.f32.mxu0 0.0
      %484 = vmatmul.mubr.f32.gmra.mrb[0].mxu0 %v382
      %v485 = vpop.f32.mrb[0].mxu0
      %v486 = vadd.f32 0.0, %v485
      %v487 = vpop.f32.mrb[0].mxu0
      %488 = vmatprep.mubr.f32.mxu0 0.0
      %489 = vmatmul.mubr.f32.gmra.mrb[0].mxu0 %v383
      %v490 = vpop.f32.mrb[0].mxu0
      %v491 = vadd.f32 0.0, %v490
      %v492 = vpop.f32.mrb[0].mxu0
      %493 = vmatprep.mubr.f32.mxu0 0.0
      %494 = vmatmul.mubr.f32.gmra.mrb[0].mxu0 %v384
      %v495 = vpop.f32.mrb[0].mxu0
      %v496 = vadd.f32 0.0, %v495
      %v497 = vpop.f32.mrb[0].mxu0
      %498 = vmatprep.mubr.f32.mxu0 0.0
      %499 = vmatmul.mubr.f32.gmra.mrb[0].mxu0 %v385
      %v500 = vpop.f32.mrb[0].mxu0
      %v501 = vadd.f32 0.0, %v500
      %v502 = vpop.f32.mrb[0].mxu0
      %503 = vmatprep.mubr.f32.mxu0 0.0
      %504 = vmatmul.mubr.f32.gmra.mrb[0].mxu0 %v386
      %v505 = vpop.f32.mrb[0].mxu0
      %v506 = vadd.f32 0.0, %v505
      %v507 = vpop.f32.mrb[0].mxu0
      %508 = vdwg.mxu0
      %509 = vmatprep.subr.mxu0 0.0
      %510 = vmatpush1.msra.mxu0 %v363
      %511 = vmatprep.subr.mxu0 0.0
      %512 = vmatpush1.msra.mxu0 %v364
      %513 = vmatprep.subr.mxu0 0.0
      %514 = vmatpush1.msra.mxu0 %v365
      %515 = vmatprep.subr.mxu0 0.0
      %516 = vmatpush1.msra.mxu0 %v366
      %517 = vmatprep.subr.mxu0 0.0
      %518 = vmatpush1.msra.mxu0 %v367
      %519 = vmatprep.subr.mxu0 0.0
      %520 = vmatpush1.msra.mxu0 %v368
      %521 = vmatprep.subr.mxu0 0.0
      %522 = vmatpush1.msra.mxu0 %v369
      %523 = vmatprep.subr.mxu0 0.0
      %524 = vmatpush1.msra.mxu0 %v370
      %525 = vmatprep.subr.mxu0 0.0
      %526 = vmatpush1.msra.mxu0 %v371
      %527 = vmatprep.subr.mxu0 0.0
      %528 = vmatpush1.msra.mxu0 %v372
      %529 = vmatprep.subr.mxu0 0.0
      %530 = vmatpush1.msra.mxu0 %v373
      %531 = vmatprep.subr.mxu0 0.0
      %532 = vmatpush1.msra.mxu0 %v374
      %533 = vmatprep.subr.mxu0 0.0
      %534 = vmatpush1.msra.mxu0 %v375
      %535 = vmatprep.subr.mxu0 0.0
      %536 = vmatpush1.msra.mxu0 %v376
      %537 = vmatprep.subr.mxu0 0.0
      %538 = vmatpush1.msra.mxu0 %v377
      %539 = vmatprep.subr.mxu0 0.0
      %540 = vmatpush1.msra.mxu0 %v378
      %541 = vmatprep.subr.mxu0 0.0
      %542 = vmatpush1.msra.mxu0 0.0
      %543 = vmatprep.subr.mxu0 0.0
      %544 = vmatpush1.msra.mxu0 0.0
      %545 = vmatprep.subr.mxu0 0.0
      %546 = vmatpush1.msra.mxu0 0.0
      %547 = vmatprep.subr.mxu0 0.0
      %548 = vmatpush1.msra.mxu0 0.0
      %549 = vmatprep.subr.mxu0 0.0
      %550 = vmatpush1.msra.mxu0 0.0
      %551 = vmatprep.subr.mxu0 0.0
      %552 = vmatpush1.msra.mxu0 0.0
      %553 = vmatprep.subr.mxu0 0.0
      %554 = vmatpush1.msra.mxu0 0.0
      %555 = vmatprep.subr.mxu0 0.0
      %556 = vmatpush1.msra.mxu0 0.0
      %557 = vmatprep.subr.mxu0 0.0
      %558 = vmatpush1.msra.mxu0 0.0
      %559 = vmatprep.subr.mxu0 0.0
      %560 = vmatpush1.msra.mxu0 0.0
      %561 = vmatprep.subr.mxu0 0.0
      %562 = vmatpush1.msra.mxu0 0.0
      %563 = vmatprep.subr.mxu0 0.0
      %564 = vmatpush1.msra.mxu0 0.0
      %565 = vmatprep.subr.mxu0 0.0
      %566 = vmatpush1.msra.mxu0 0.0
      %567 = vmatprep.subr.mxu0 0.0
      %568 = vmatpush1.msra.mxu0 0.0
      %569 = vmatprep.subr.mxu0 0.0
      %570 = vmatpush1.msra.mxu0 0.0
      %571 = vmatprep.subr.mxu0 0.0
      %572 = vmatpush1.msra.mxu0 0.0
      %573 = vmatprep.mubr.f32.mxu0 0.0
      %574 = vmatmul.mubr.f32.gmra.mrb[0].mxu0 %v355
      %v575 = vpop.f32.mrb[0].mxu0
      %v576 = vadd.f32 %v471, %v575
      %v577 = vpop.f32.mrb[0].mxu0
      %578 = vmatprep.mubr.f32.mxu0 0.0
      %579 = vmatmul.mubr.f32.gmra.mrb[0].mxu0 %v356
      %v580 = vpop.f32.mrb[0].mxu0
      %v581 = vadd.f32 %v476, %v580
      %v582 = vpop.f32.mrb[0].mxu0
      %583 = vmatprep.mubr.f32.mxu0 0.0
      %584 = vmatmul.mubr.f32.gmra.mrb[0].mxu0 %v357
      %v585 = vpop.f32.mrb[0].mxu0
      %v586 = vadd.f32 %v481, %v585
      %v587 = vpop.f32.mrb[0].mxu0
      %588 = vmatprep.mubr.f32.mxu0 0.0
      %589 = vmatmul.mubr.f32.gmra.mrb[0].mxu0 %v358
      %v590 = vpop.f32.mrb[0].mxu0
      %v591 = vadd.f32 %v486, %v590
      %v592 = vpop.f32.mrb[0].mxu0
      %593 = vmatprep.mubr.f32.mxu0 0.0
      %594 = vmatmul.mubr.f32.gmra.mrb[0].mxu0 %v359
      %v595 = vpop.f32.mrb[0].mxu0
      %v596 = vadd.f32 %v491, %v595
      %v597 = vpop.f32.mrb[0].mxu0
      %598 = vmatprep.mubr.f32.mxu0 0.0
      %599 = vmatmul.mubr.f32.gmra.mrb[0].mxu0 %v360
      %v600 = vpop.f32.mrb[0].mxu0
      %v601 = vadd.f32 %v496, %v600
      %v602 = vpop.f32.mrb[0].mxu0
      %603 = vmatprep.mubr.f32.mxu0 0.0
      %604 = vmatmul.mubr.f32.gmra.mrb[0].mxu0 %v361
      %v605 = vpop.f32.mrb[0].mxu0
      %v606 = vadd.f32 %v501, %v605
      %v607 = vpop.f32.mrb[0].mxu0
      %608 = vmatprep.mubr.f32.mxu0 0.0
      %609 = vmatmul.mubr.f32.gmra.mrb[0].mxu0 %v362
      %v610 = vpop.f32.mrb[0].mxu0
      %v611 = vadd.f32 %v506, %v610
      %v612 = vpop.f32.mrb[0].mxu0
      %613 = vdwg.mxu0
      %v614 = vld [vmem:[#allocation2 + $0xa] sm:$0xff]
      %v615 = vld [vmem:[#allocation2 + $0x22] sm:$0xff]
      %v616 = vld [vmem:[#allocation2 + $0x3a] sm:$0xff]
      %v617 = vld [vmem:[#allocation2 + $0x52] sm:$0xff]
      %v618 = vld [vmem:[#allocation2 + $0x6a] sm:$0xff]
      %v619 = vld [vmem:[#allocation2 + $0x82] sm:$0xff]
      %v620 = vld [vmem:[#allocation2 + $0x9a] sm:$0xff]
      %v621 = vld [vmem:[#allocation2 + $0xb2] sm:$0xff]
      %s622 = scalar_lea.vmem %s3, 256
      %v623 = vld [vmem:[%s622] sm:$0xff]
      %v624 = vld [vmem:[%s622 + $0x8] sm:$0xff]
      %v625 = vld [vmem:[%s622 + $0x10] sm:$0xff]
      %v626 = vld [vmem:[%s622 + $0x18] sm:$0xff]
      %v627 = vld [vmem:[%s622 + $0x20] sm:$0xff]
      %v628 = vld [vmem:[%s622 + $0x28] sm:$0xff]
      %v629 = vld [vmem:[%s622 + $0x30] sm:$0xff]
      %v630 = vld [vmem:[%s622 + $0x38] sm:$0xff]
      %v631 = vld [vmem:[%s622 + $0x40] sm:$0xff]
      %v632 = vld [vmem:[%s622 + $0x48] sm:$0xff]
      %v633 = vld [vmem:[%s622 + $0x50] sm:$0xff]
      %v634 = vld [vmem:[%s622 + $0x58] sm:$0xff]
      %v635 = vld [vmem:[%s622 + $0x60] sm:$0xff]
      %v636 = vld [vmem:[%s622 + $0x68] sm:$0xff]
      %v637 = vld [vmem:[%s622 + $0x70] sm:$0xff]
      %v638 = vld [vmem:[%s622 + $0x78] sm:$0xff]
      %639 = vmatprep.subr.mxu0 0.0
      %640 = vmatpush1.msra.mxu0 %v623
      %641 = vmatprep.subr.mxu0 0.0
      %642 = vmatpush1.msra.mxu0 %v624
      %643 = vmatprep.subr.mxu0 0.0
      %644 = vmatpush1.msra.mxu0 %v625
      %645 = vmatprep.subr.mxu0 0.0
      %646 = vmatpush1.msra.mxu0 %v626
      %647 = vmatprep.subr.mxu0 0.0
      %648 = vmatpush1.msra.mxu0 %v627
      %649 = vmatprep.subr.mxu0 0.0
      %650 = vmatpush1.msra.mxu0 %v628
      %651 = vmatprep.subr.mxu0 0.0
      %652 = vmatpush1.msra.mxu0 %v629
      %653 = vmatprep.subr.mxu0 0.0
      %654 = vmatpush1.msra.mxu0 %v630
      %655 = vmatprep.subr.mxu0 0.0
      %656 = vmatpush1.msra.mxu0 %v631
      %657 = vmatprep.subr.mxu0 0.0
      %658 = vmatpush1.msra.mxu0 %v632
      %659 = vmatprep.subr.mxu0 0.0
      %660 = vmatpush1.msra.mxu0 %v633
      %661 = vmatprep.subr.mxu0 0.0
      %662 = vmatpush1.msra.mxu0 %v634
      %663 = vmatprep.subr.mxu0 0.0
      %664 = vmatpush1.msra.mxu0 %v635
      %665 = vmatprep.subr.mxu0 0.0
      %666 = vmatpush1.msra.mxu0 %v636
      %667 = vmatprep.subr.mxu0 0.0
      %668 = vmatpush1.msra.mxu0 %v637
      %669 = vmatprep.subr.mxu0 0.0
      %670 = vmatpush1.msra.mxu0 %v638
      %671 = vmatprep.subr.mxu0 0.0
      %672 = vmatpush1.msra.mxu0 0.0
      %673 = vmatprep.subr.mxu0 0.0
      %674 = vmatpush1.msra.mxu0 0.0
      %675 = vmatprep.subr.mxu0 0.0
      %676 = vmatpush1.msra.mxu0 0.0
      %677 = vmatprep.subr.mxu0 0.0
      %678 = vmatpush1.msra.mxu0 0.0
      %679 = vmatprep.subr.mxu0 0.0
      %680 = vmatpush1.msra.mxu0 0.0
      %681 = vmatprep.subr.mxu0 0.0
      %682 = vmatpush1.msra.mxu0 0.0
      %683 = vmatprep.subr.mxu0 0.0
      %684 = vmatpush1.msra.mxu0 0.0
      %685 = vmatprep.subr.mxu0 0.0
      %686 = vmatpush1.msra.mxu0 0.0
      %687 = vmatprep.subr.mxu0 0.0
      %688 = vmatpush1.msra.mxu0 0.0
      %689 = vmatprep.subr.mxu0 0.0
      %690 = vmatpush1.msra.mxu0 0.0
      %691 = vmatprep.subr.mxu0 0.0
      %692 = vmatpush1.msra.mxu0 0.0
      %693 = vmatprep.subr.mxu0 0.0
      %694 = vmatpush1.msra.mxu0 0.0
      %695 = vmatprep.subr.mxu0 0.0
      %696 = vmatpush1.msra.mxu0 0.0
      %697 = vmatprep.subr.mxu0 0.0
      %698 = vmatpush1.msra.mxu0 0.0
      %699 = vmatprep.subr.mxu0 0.0
      %700 = vmatpush1.msra.mxu0 0.0
      %701 = vmatprep.subr.mxu0 0.0
      %702 = vmatpush1.msra.mxu0 0.0
      %703 = vmatprep.mubr.f32.mxu0 0.0
      %704 = vmatmul.mubr.f32.gmra.mrb[0].mxu0 %v614
      %v705 = vpop.f32.mrb[0].mxu0
      %v706 = vadd.f32 0.0, %v705
      %v707 = vpop.f32.mrb[0].mxu0
      %708 = vmatprep.mubr.f32.mxu0 0.0
      %709 = vmatmul.mubr.f32.gmra.mrb[0].mxu0 %v615
      %v710 = vpop.f32.mrb[0].mxu0
      %v711 = vadd.f32 0.0, %v710
      %v712 = vpop.f32.mrb[0].mxu0
      %713 = vmatprep.mubr.f32.mxu0 0.0
      %714 = vmatmul.mubr.f32.gmra.mrb[0].mxu0 %v616
      %v715 = vpop.f32.mrb[0].mxu0
      %v716 = vadd.f32 0.0, %v715
      %v717 = vpop.f32.mrb[0].mxu0
      %718 = vmatprep.mubr.f32.mxu0 0.0
      %719 = vmatmul.mubr.f32.gmra.mrb[0].mxu0 %v617
      %v720 = vpop.f32.mrb[0].mxu0
      %v721 = vadd.f32 0.0, %v720
      %v722 = vpop.f32.mrb[0].mxu0
      %723 = vmatprep.mubr.f32.mxu0 0.0
      %724 = vmatmul.mubr.f32.gmra.mrb[0].mxu0 %v618
      %v725 = vpop.f32.mrb[0].mxu0
      %v726 = vadd.f32 0.0, %v725
      %v727 = vpop.f32.mrb[0].mxu0
      %728 = vmatprep.mubr.f32.mxu0 0.0
      %729 = vmatmul.mubr.f32.gmra.mrb[0].mxu0 %v619
      %v730 = vpop.f32.mrb[0].mxu0
      %v731 = vadd.f32 0.0, %v730
      %v732 = vpop.f32.mrb[0].mxu0
      %733 = vmatprep.mubr.f32.mxu0 0.0
      %734 = vmatmul.mubr.f32.gmra.mrb[0].mxu0 %v620
      %v735 = vpop.f32.mrb[0].mxu0
      %v736 = vadd.f32 0.0, %v735
      %v737 = vpop.f32.mrb[0].mxu0
      %738 = vmatprep.mubr.f32.mxu0 0.0
      %739 = vmatmul.mubr.f32.gmra.mrb[0].mxu0 %v621
      %v740 = vpop.f32.mrb[0].mxu0
      %v741 = vadd.f32 0.0, %v740
      %v742 = vpop.f32.mrb[0].mxu0
      %743 = vdwg.mxu0
      %v744 = vadd.f32 %v576, %v706
      %v745 = vadd.f32 %v581, %v711
      %v746 = vadd.f32 %v586, %v716
      %v747 = vadd.f32 %v591, %v721
      %v748 = vadd.f32 %v596, %v726
      %v749 = vadd.f32 %v601, %v731
      %v750 = vadd.f32 %v606, %v736
      %v751 = vadd.f32 %v611, %v741
      %v752 = vld [vmem:[%s330 + $0x6] sm:$0xff]
      %v753 = vld [vmem:[%s330 + $0x1e] sm:$0xff]
      %v754 = vld [vmem:[%s330 + $0x36] sm:$0xff]
      %v755 = vld [vmem:[%s330 + $0x4e] sm:$0xff]
      %v756 = vld [vmem:[%s330 + $0x66] sm:$0xff]
      %v757 = vld [vmem:[%s330 + $0x7e] sm:$0xff]
      %v758 = vld [vmem:[%s330 + $0x96] sm:$0xff]
      %v759 = vld [vmem:[%s330 + $0xae] sm:$0xff]
      %s760 = scalar_lea.vmem %s3, 384
      %v761 = vld [vmem:[%s760] sm:$0xff]
      %v762 = vld [vmem:[%s760 + $0x8] sm:$0xff]
      %v763 = vld [vmem:[%s760 + $0x10] sm:$0xff]
      %v764 = vld [vmem:[%s760 + $0x18] sm:$0xff]
      %v765 = vld [vmem:[%s760 + $0x20] sm:$0xff]
      %v766 = vld [vmem:[%s760 + $0x28] sm:$0xff]
      %v767 = vld [vmem:[%s760 + $0x30] sm:$0xff]
      %v768 = vld [vmem:[%s760 + $0x38] sm:$0xff]
      %v769 = vld [vmem:[%s760 + $0x40] sm:$0xff]
      %v770 = vld [vmem:[%s760 + $0x48] sm:$0xff]
      %v771 = vld [vmem:[%s760 + $0x50] sm:$0xff]
      %v772 = vld [vmem:[%s760 + $0x58] sm:$0xff]
      %v773 = vld [vmem:[%s760 + $0x60] sm:$0xff]
      %v774 = vld [vmem:[%s760 + $0x68] sm:$0xff]
      %v775 = vld [vmem:[%s760 + $0x70] sm:$0xff]
      %v776 = vld [vmem:[%s760 + $0x78] sm:$0xff]
      %777 = vmatprep.subr.mxu0 0.0
      %778 = vmatpush1.msra.mxu0 %v761
      %779 = vmatprep.subr.mxu0 0.0
      %780 = vmatpush1.msra.mxu0 %v762
      %781 = vmatprep.subr.mxu0 0.0
      %782 = vmatpush1.msra.mxu0 %v763
      %783 = vmatprep.subr.mxu0 0.0
      %784 = vmatpush1.msra.mxu0 %v764
      %785 = vmatprep.subr.mxu0 0.0
      %786 = vmatpush1.msra.mxu0 %v765
      %787 = vmatprep.subr.mxu0 0.0
      %788 = vmatpush1.msra.mxu0 %v766
      %789 = vmatprep.subr.mxu0 0.0
      %790 = vmatpush1.msra.mxu0 %v767
      %791 = vmatprep.subr.mxu0 0.0
      %792 = vmatpush1.msra.mxu0 %v768
      %793 = vmatprep.subr.mxu0 0.0
      %794 = vmatpush1.msra.mxu0 %v769
      %795 = vmatprep.subr.mxu0 0.0
      %796 = vmatpush1.msra.mxu0 %v770
      %797 = vmatprep.subr.mxu0 0.0
      %798 = vmatpush1.msra.mxu0 %v771
      %799 = vmatprep.subr.mxu0 0.0
      %800 = vmatpush1.msra.mxu0 %v772
      %801 = vmatprep.subr.mxu0 0.0
      %802 = vmatpush1.msra.mxu0 %v773
      %803 = vmatprep.subr.mxu0 0.0
      %804 = vmatpush1.msra.mxu0 %v774
      %805 = vmatprep.subr.mxu0 0.0
      %806 = vmatpush1.msra.mxu0 %v775
      %807 = vmatprep.subr.mxu0 0.0
      %808 = vmatpush1.msra.mxu0 %v776
      %809 = vmatprep.subr.mxu0 0.0
      %810 = vmatpush1.msra.mxu0 0.0
      %811 = vmatprep.subr.mxu0 0.0
      %812 = vmatpush1.msra.mxu0 0.0
      %813 = vmatprep.subr.mxu0 0.0
      %814 = vmatpush1.msra.mxu0 0.0
      %815 = vmatprep.subr.mxu0 0.0
      %816 = vmatpush1.msra.mxu0 0.0
      %817 = vmatprep.subr.mxu0 0.0
      %818 = vmatpush1.msra.mxu0 0.0
      %819 = vmatprep.subr.mxu0 0.0
      %820 = vmatpush1.msra.mxu0 0.0
      %821 = vmatprep.subr.mxu0 0.0
      %822 = vmatpush1.msra.mxu0 0.0
      %823 = vmatprep.subr.mxu0 0.0
      %824 = vmatpush1.msra.mxu0 0.0
      %825 = vmatprep.subr.mxu0 0.0
      %826 = vmatpush1.msra.mxu0 0.0
      %827 = vmatprep.subr.mxu0 0.0
      %828 = vmatpush1.msra.mxu0 0.0
      %829 = vmatprep.subr.mxu0 0.0
      %830 = vmatpush1.msra.mxu0 0.0
      %831 = vmatprep.subr.mxu0 0.0
      %832 = vmatpush1.msra.mxu0 0.0
      %833 = vmatprep.subr.mxu0 0.0
      %834 = vmatpush1.msra.mxu0 0.0
      %835 = vmatprep.subr.mxu0 0.0
      %836 = vmatpush1.msra.mxu0 0.0
      %837 = vmatprep.subr.mxu0 0.0
      %838 = vmatpush1.msra.mxu0 0.0
      %839 = vmatprep.subr.mxu0 0.0
      %840 = vmatpush1.msra.mxu0 0.0
      %841 = vmatprep.mubr.f32.mxu0 0.0
      %842 = vmatmul.mubr.f32.gmra.mrb[0].mxu0 %v752
      %v843 = vpop.f32.mrb[0].mxu0
      %v844 = vadd.f32 0.0, %v843
      %v845 = vpop.f32.mrb[0].mxu0
      %846 = vmatprep.mubr.f32.mxu0 0.0
      %847 = vmatmul.mubr.f32.gmra.mrb[0].mxu0 %v753
      %v848 = vpop.f32.mrb[0].mxu0
      %v849 = vadd.f32 0.0, %v848
      %v850 = vpop.f32.mrb[0].mxu0
      %851 = vmatprep.mubr.f32.mxu0 0.0
      %852 = vmatmul.mubr.f32.gmra.mrb[0].mxu0 %v754
      %v853 = vpop.f32.mrb[0].mxu0
      %v854 = vadd.f32 0.0, %v853
      %v855 = vpop.f32.mrb[0].mxu0
      %856 = vmatprep.mubr.f32.mxu0 0.0
      %857 = vmatmul.mubr.f32.gmra.mrb[0].mxu0 %v755
      %v858 = vpop.f32.mrb[0].mxu0
      %v859 = vadd.f32 0.0, %v858
      %v860 = vpop.f32.mrb[0].mxu0
      %861 = vmatprep.mubr.f32.mxu0 0.0
      %862 = vmatmul.mubr.f32.gmra.mrb[0].mxu0 %v756
      %v863 = vpop.f32.mrb[0].mxu0
      %v864 = vadd.f32 0.0, %v863
      %v865 = vpop.f32.mrb[0].mxu0
      %866 = vmatprep.mubr.f32.mxu0 0.0
      %867 = vmatmul.mubr.f32.gmra.mrb[0].mxu0 %v757
      %v868 = vpop.f32.mrb[0].mxu0
      %v869 = vadd.f32 0.0, %v868
      %v870 = vpop.f32.mrb[0].mxu0
      %871 = vmatprep.mubr.f32.mxu0 0.0
      %872 = vmatmul.mubr.f32.gmra.mrb[0].mxu0 %v758
      %v873 = vpop.f32.mrb[0].mxu0
      %v874 = vadd.f32 0.0, %v873
      %v875 = vpop.f32.mrb[0].mxu0
      %876 = vmatprep.mubr.f32.mxu0 0.0
      %877 = vmatmul.mubr.f32.gmra.mrb[0].mxu0 %v759
      %v878 = vpop.f32.mrb[0].mxu0
      %v879 = vadd.f32 0.0, %v878
      %v880 = vpop.f32.mrb[0].mxu0
      %881 = vdwg.mxu0
      %v882 = vadd.f32 %v744, %v844
      %v883 = vadd.f32 %v745, %v849
      %v884 = vadd.f32 %v746, %v854
      %v885 = vadd.f32 %v747, %v859
      %v886 = vadd.f32 %v748, %v864
      %v887 = vadd.f32 %v749, %v869
      %v888 = vadd.f32 %v750, %v874
      %v889 = vadd.f32 %v751, %v879
      %v890 = vld [vmem:[%s330 + $0x8] sm:$0xff]
      %v891 = vld [vmem:[%s330 + $0x20] sm:$0xff]
      %v892 = vld [vmem:[%s330 + $0x38] sm:$0xff]
      %v893 = vld [vmem:[%s330 + $0x50] sm:$0xff]
      %v894 = vld [vmem:[%s330 + $0x68] sm:$0xff]
      %v895 = vld [vmem:[%s330 + $0x80] sm:$0xff]
      %v896 = vld [vmem:[%s330 + $0x98] sm:$0xff]
      %v897 = vld [vmem:[%s330 + $0xb0] sm:$0xff]
      %s898 = scalar_lea.vmem %s3, 512
      %v899 = vld [vmem:[%s898] sm:$0xff]
      %v900 = vld [vmem:[%s898 + $0x8] sm:$0xff]
      %v901 = vld [vmem:[%s898 + $0x10] sm:$0xff]
      %v902 = vld [vmem:[%s898 + $0x18] sm:$0xff]
      %v903 = vld [vmem:[%s898 + $0x20] sm:$0xff]
      %v904 = vld [vmem:[%s898 + $0x28] sm:$0xff]
      %v905 = vld [vmem:[%s898 + $0x30] sm:$0xff]
      %v906 = vld [vmem:[%s898 + $0x38] sm:$0xff]
      %v907 = vld [vmem:[%s898 + $0x40] sm:$0xff]
      %v908 = vld [vmem:[%s898 + $0x48] sm:$0xff]
      %v909 = vld [vmem:[%s898 + $0x50] sm:$0xff]
      %v910 = vld [vmem:[%s898 + $0x58] sm:$0xff]
      %v911 = vld [vmem:[%s898 + $0x60] sm:$0xff]
      %v912 = vld [vmem:[%s898 + $0x68] sm:$0xff]
      %v913 = vld [vmem:[%s898 + $0x70] sm:$0xff]
      %v914 = vld [vmem:[%s898 + $0x78] sm:$0xff]
      %915 = vmatprep.subr.mxu0 0.0
      %916 = vmatpush1.msra.mxu0 %v899
      %917 = vmatprep.subr.mxu0 0.0
      %918 = vmatpush1.msra.mxu0 %v900
      %919 = vmatprep.subr.mxu0 0.0
      %920 = vmatpush1.msra.mxu0 %v901
      %921 = vmatprep.subr.mxu0 0.0
      %922 = vmatpush1.msra.mxu0 %v902
      %923 = vmatprep.subr.mxu0 0.0
      %924 = vmatpush1.msra.mxu0 %v903
      %925 = vmatprep.subr.mxu0 0.0
      %926 = vmatpush1.msra.mxu0 %v904
      %927 = vmatprep.subr.mxu0 0.0
      %928 = vmatpush1.msra.mxu0 %v905
      %929 = vmatprep.subr.mxu0 0.0
      %930 = vmatpush1.msra.mxu0 %v906
      %931 = vmatprep.subr.mxu0 0.0
      %932 = vmatpush1.msra.mxu0 %v907
      %933 = vmatprep.subr.mxu0 0.0
      %934 = vmatpush1.msra.mxu0 %v908
      %935 = vmatprep.subr.mxu0 0.0
      %936 = vmatpush1.msra.mxu0 %v909
      %937 = vmatprep.subr.mxu0 0.0
      %938 = vmatpush1.msra.mxu0 %v910
      %939 = vmatprep.subr.mxu0 0.0
      %940 = vmatpush1.msra.mxu0 %v911
      %941 = vmatprep.subr.mxu0 0.0
      %942 = vmatpush1.msra.mxu0 %v912
      %943 = vmatprep.subr.mxu0 0.0
      %944 = vmatpush1.msra.mxu0 %v913
      %945 = vmatprep.subr.mxu0 0.0
      %946 = vmatpush1.msra.mxu0 %v914
      %947 = vmatprep.subr.mxu0 0.0
      %948 = vmatpush1.msra.mxu0 0.0
      %949 = vmatprep.subr.mxu0 0.0
      %950 = vmatpush1.msra.mxu0 0.0
      %951 = vmatprep.subr.mxu0 0.0
      %952 = vmatpush1.msra.mxu0 0.0
      %953 = vmatprep.subr.mxu0 0.0
      %954 = vmatpush1.msra.mxu0 0.0
      %955 = vmatprep.subr.mxu0 0.0
      %956 = vmatpush1.msra.mxu0 0.0
      %957 = vmatprep.subr.mxu0 0.0
      %958 = vmatpush1.msra.mxu0 0.0
      %959 = vmatprep.subr.mxu0 0.0
      %960 = vmatpush1.msra.mxu0 0.0
      %961 = vmatprep.subr.mxu0 0.0
      %962 = vmatpush1.msra.mxu0 0.0
      %963 = vmatprep.subr.mxu0 0.0
      %964 = vmatpush1.msra.mxu0 0.0
      %965 = vmatprep.subr.mxu0 0.0
      %966 = vmatpush1.msra.mxu0 0.0
      %967 = vmatprep.subr.mxu0 0.0
      %968 = vmatpush1.msra.mxu0 0.0
      %969 = vmatprep.subr.mxu0 0.0
      %970 = vmatpush1.msra.mxu0 0.0
      %971 = vmatprep.subr.mxu0 0.0
      %972 = vmatpush1.msra.mxu0 0.0
      %973 = vmatprep.subr.mxu0 0.0
      %974 = vmatpush1.msra.mxu0 0.0
      %975 = vmatprep.subr.mxu0 0.0
      %976 = vmatpush1.msra.mxu0 0.0
      %977 = vmatprep.subr.mxu0 0.0
      %978 = vmatpush1.msra.mxu0 0.0
      %979 = vmatprep.mubr.f32.mxu0 0.0
      %980 = vmatmul.mubr.f32.gmra.mrb[0].mxu0 %v890
      %v981 = vpop.f32.mrb[0].mxu0
      %v982 = vadd.f32 0.0, %v981
      %v983 = vpop.f32.mrb[0].mxu0
      %984 = vmatprep.mubr.f32.mxu0 0.0
      %985 = vmatmul.mubr.f32.gmra.mrb[0].mxu0 %v891
      %v986 = vpop.f32.mrb[0].mxu0
      %v987 = vadd.f32 0.0, %v986
      %v988 = vpop.f32.mrb[0].mxu0
      %989 = vmatprep.mubr.f32.mxu0 0.0
      %990 = vmatmul.mubr.f32.gmra.mrb[0].mxu0 %v892
      %v991 = vpop.f32.mrb[0].mxu0
      %v992 = vadd.f32 0.0, %v991
      %v993 = vpop.f32.mrb[0].mxu0
      %994 = vmatprep.mubr.f32.mxu0 0.0
      %995 = vmatmul.mubr.f32.gmra.mrb[0].mxu0 %v893
      %v996 = vpop.f32.mrb[0].mxu0
      %v997 = vadd.f32 0.0, %v996
      %v998 = vpop.f32.mrb[0].mxu0
      %999 = vmatprep.mubr.f32.mxu0 0.0
      %1000 = vmatmul.mubr.f32.gmra.mrb[0].mxu0 %v894
      %v1001 = vpop.f32.mrb[0].mxu0
      %v1002 = vadd.f32 0.0, %v1001
      %v1003 = vpop.f32.mrb[0].mxu0
      %1004 = vmatprep.mubr.f32.mxu0 0.0
      %1005 = vmatmul.mubr.f32.gmra.mrb[0].mxu0 %v895
      %v1006 = vpop.f32.mrb[0].mxu0
      %v1007 = vadd.f32 0.0, %v1006
      %v1008 = vpop.f32.mrb[0].mxu0
      %1009 = vmatprep.mubr.f32.mxu0 0.0
      %1010 = vmatmul.mubr.f32.gmra.mrb[0].mxu0 %v896
      %v1011 = vpop.f32.mrb[0].mxu0
      %v1012 = vadd.f32 0.0, %v1011
      %v1013 = vpop.f32.mrb[0].mxu0
      %1014 = vmatprep.mubr.f32.mxu0 0.0
      %1015 = vmatmul.mubr.f32.gmra.mrb[0].mxu0 %v897
      %v1016 = vpop.f32.mrb[0].mxu0
      %v1017 = vadd.f32 0.0, %v1016
      %v1018 = vpop.f32.mrb[0].mxu0
      %1019 = vdwg.mxu0
      %v1020 = vadd.f32 %v882, %v982
      %v1021 = vadd.f32 %v883, %v987
      %v1022 = vadd.f32 %v884, %v992
      %v1023 = vadd.f32 %v885, %v997
      %v1024 = vadd.f32 %v886, %v1002
      %v1025 = vadd.f32 %v887, %v1007
      %v1026 = vadd.f32 %v888, %v1012
      %v1027 = vadd.f32 %v889, %v1017
      %v1028 = vld [vmem:[%s330 + $0xa] sm:$0xff]
      %v1029 = vld [vmem:[%s330 + $0x22] sm:$0xff]
      %v1030 = vld [vmem:[%s330 + $0x3a] sm:$0xff]
      %v1031 = vld [vmem:[%s330 + $0x52] sm:$0xff]
      %v1032 = vld [vmem:[%s330 + $0x6a] sm:$0xff]
      %v1033 = vld [vmem:[%s330 + $0x82] sm:$0xff]
      %v1034 = vld [vmem:[%s330 + $0x9a] sm:$0xff]
      %v1035 = vld [vmem:[%s330 + $0xb2] sm:$0xff]
      %s1036 = scalar_lea.vmem %s3, 640
      %v1037 = vld [vmem:[%s1036] sm:$0xff]
      %v1038 = vld [vmem:[%s1036 + $0x8] sm:$0xff]
      %v1039 = vld [vmem:[%s1036 + $0x10] sm:$0xff]
      %v1040 = vld [vmem:[%s1036 + $0x18] sm:$0xff]
      %v1041 = vld [vmem:[%s1036 + $0x20] sm:$0xff]
      %v1042 = vld [vmem:[%s1036 + $0x28] sm:$0xff]
      %v1043 = vld [vmem:[%s1036 + $0x30] sm:$0xff]
      %v1044 = vld [vmem:[%s1036 + $0x38] sm:$0xff]
      %v1045 = vld [vmem:[%s1036 + $0x40] sm:$0xff]
      %v1046 = vld [vmem:[%s1036 + $0x48] sm:$0xff]
      %v1047 = vld [vmem:[%s1036 + $0x50] sm:$0xff]
      %v1048 = vld [vmem:[%s1036 + $0x58] sm:$0xff]
      %v1049 = vld [vmem:[%s1036 + $0x60] sm:$0xff]
      %v1050 = vld [vmem:[%s1036 + $0x68] sm:$0xff]
      %v1051 = vld [vmem:[%s1036 + $0x70] sm:$0xff]
      %v1052 = vld [vmem:[%s1036 + $0x78] sm:$0xff]
      %1053 = vmatprep.subr.mxu0 0.0
      %1054 = vmatpush1.msra.mxu0 %v1037
      %1055 = vmatprep.subr.mxu0 0.0
      %1056 = vmatpush1.msra.mxu0 %v1038
      %1057 = vmatprep.subr.mxu0 0.0
      %1058 = vmatpush1.msra.mxu0 %v1039
      %1059 = vmatprep.subr.mxu0 0.0
      %1060 = vmatpush1.msra.mxu0 %v1040
      %1061 = vmatprep.subr.mxu0 0.0
      %1062 = vmatpush1.msra.mxu0 %v1041
      %1063 = vmatprep.subr.mxu0 0.0
      %1064 = vmatpush1.msra.mxu0 %v1042
      %1065 = vmatprep.subr.mxu0 0.0
      %1066 = vmatpush1.msra.mxu0 %v1043
      %1067 = vmatprep.subr.mxu0 0.0
      %1068 = vmatpush1.msra.mxu0 %v1044
      %1069 = vmatprep.subr.mxu0 0.0
      %1070 = vmatpush1.msra.mxu0 %v1045
      %1071 = vmatprep.subr.mxu0 0.0
      %1072 = vmatpush1.msra.mxu0 %v1046
      %1073 = vmatprep.subr.mxu0 0.0
      %1074 = vmatpush1.msra.mxu0 %v1047
      %1075 = vmatprep.subr.mxu0 0.0
      %1076 = vmatpush1.msra.mxu0 %v1048
      %1077 = vmatprep.subr.mxu0 0.0
      %1078 = vmatpush1.msra.mxu0 %v1049
      %1079 = vmatprep.subr.mxu0 0.0
      %1080 = vmatpush1.msra.mxu0 %v1050
      %1081 = vmatprep.subr.mxu0 0.0
      %1082 = vmatpush1.msra.mxu0 %v1051
      %1083 = vmatprep.subr.mxu0 0.0
      %1084 = vmatpush1.msra.mxu0 %v1052
      %1085 = vmatprep.subr.mxu0 0.0
      %1086 = vmatpush1.msra.mxu0 0.0
      %1087 = vmatprep.subr.mxu0 0.0
      %1088 = vmatpush1.msra.mxu0 0.0
      %1089 = vmatprep.subr.mxu0 0.0
      %1090 = vmatpush1.msra.mxu0 0.0
      %1091 = vmatprep.subr.mxu0 0.0
      %1092 = vmatpush1.msra.mxu0 0.0
      %1093 = vmatprep.subr.mxu0 0.0
      %1094 = vmatpush1.msra.mxu0 0.0
      %1095 = vmatprep.subr.mxu0 0.0
      %1096 = vmatpush1.msra.mxu0 0.0
      %1097 = vmatprep.subr.mxu0 0.0
      %1098 = vmatpush1.msra.mxu0 0.0
      %1099 = vmatprep.subr.mxu0 0.0
      %1100 = vmatpush1.msra.mxu0 0.0
      %1101 = vmatprep.subr.mxu0 0.0
      %1102 = vmatpush1.msra.mxu0 0.0
      %1103 = vmatprep.subr.mxu0 0.0
      %1104 = vmatpush1.msra.mxu0 0.0
      %1105 = vmatprep.subr.mxu0 0.0
      %1106 = vmatpush1.msra.mxu0 0.0
      %1107 = vmatprep.subr.mxu0 0.0
      %1108 = vmatpush1.msra.mxu0 0.0
      %1109 = vmatprep.subr.mxu0 0.0
      %1110 = vmatpush1.msra.mxu0 0.0
      %1111 = vmatprep.subr.mxu0 0.0
      %1112 = vmatpush1.msra.mxu0 0.0
      %1113 = vmatprep.subr.mxu0 0.0
      %1114 = vmatpush1.msra.mxu0 0.0
      %1115 = vmatprep.subr.mxu0 0.0
      %1116 = vmatpush1.msra.mxu0 0.0
      %1117 = vmatprep.mubr.f32.mxu0 0.0
      %1118 = vmatmul.mubr.f32.gmra.mrb[0].mxu0 %v1028
      %v1119 = vpop.f32.mrb[0].mxu0
      %v1120 = vadd.f32 0.0, %v1119
      %v1121 = vpop.f32.mrb[0].mxu0
      %1122 = vmatprep.mubr.f32.mxu0 0.0
      %1123 = vmatmul.mubr.f32.gmra.mrb[0].mxu0 %v1029
      %v1124 = vpop.f32.mrb[0].mxu0
      %v1125 = vadd.f32 0.0, %v1124
      %v1126 = vpop.f32.mrb[0].mxu0
      %1127 = vmatprep.mubr.f32.mxu0 0.0
      %1128 = vmatmul.mubr.f32.gmra.mrb[0].mxu0 %v1030
      %v1129 = vpop.f32.mrb[0].mxu0
      %v1130 = vadd.f32 0.0, %v1129
      %v1131 = vpop.f32.mrb[0].mxu0
      %1132 = vmatprep.mubr.f32.mxu0 0.0
      %1133 = vmatmul.mubr.f32.gmra.mrb[0].mxu0 %v1031
      %v1134 = vpop.f32.mrb[0].mxu0
      %v1135 = vadd.f32 0.0, %v1134
      %v1136 = vpop.f32.mrb[0].mxu0
      %1137 = vmatprep.mubr.f32.mxu0 0.0
      %1138 = vmatmul.mubr.f32.gmra.mrb[0].mxu0 %v1032
      %v1139 = vpop.f32.mrb[0].mxu0
      %v1140 = vadd.f32 0.0, %v1139
      %v1141 = vpop.f32.mrb[0].mxu0
      %1142 = vmatprep.mubr.f32.mxu0 0.0
      %1143 = vmatmul.mubr.f32.gmra.mrb[0].mxu0 %v1033
      %v1144 = vpop.f32.mrb[0].mxu0
      %v1145 = vadd.f32 0.0, %v1144
      %v1146 = vpop.f32.mrb[0].mxu0
      %1147 = vmatprep.mubr.f32.mxu0 0.0
      %1148 = vmatmul.mubr.f32.gmra.mrb[0].mxu0 %v1034
      %v1149 = vpop.f32.mrb[0].mxu0
      %v1150 = vadd.f32 0.0, %v1149
      %v1151 = vpop.f32.mrb[0].mxu0
      %1152 = vmatprep.mubr.f32.mxu0 0.0
      %1153 = vmatmul.mubr.f32.gmra.mrb[0].mxu0 %v1035
      %v1154 = vpop.f32.mrb[0].mxu0
      %v1155 = vadd.f32 0.0, %v1154
      %v1156 = vpop.f32.mrb[0].mxu0
      %1157 = vdwg.mxu0
      %v1158 = vadd.f32 %v1020, %v1120
      %v1159 = vadd.f32 %v1021, %v1125
      %v1160 = vadd.f32 %v1022, %v1130
      %v1161 = vadd.f32 %v1023, %v1135
      %v1162 = vadd.f32 %v1024, %v1140
      %v1163 = vadd.f32 %v1025, %v1145
      %v1164 = vadd.f32 %v1026, %v1150
      %v1165 = vadd.f32 %v1027, %v1155
      %s1166 = scalar_lea.vmem [#allocation2], 96
      %v1167 = vld [vmem:[%s1166 + $0x6] sm:$0xff]
      %v1168 = vld [vmem:[%s1166 + $0x1e] sm:$0xff]
      %v1169 = vld [vmem:[%s1166 + $0x36] sm:$0xff]
      %v1170 = vld [vmem:[%s1166 + $0x4e] sm:$0xff]
      %v1171 = vld [vmem:[%s1166 + $0x66] sm:$0xff]
      %v1172 = vld [vmem:[%s1166 + $0x7e] sm:$0xff]
      %v1173 = vld [vmem:[%s1166 + $0x96] sm:$0xff]
      %v1174 = vld [vmem:[%s1166 + $0xae] sm:$0xff]
      %s1175 = scalar_lea.vmem %s3, 768
      %v1176 = vld [vmem:[%s1175] sm:$0xff]
      %v1177 = vld [vmem:[%s1175 + $0x8] sm:$0xff]
      %v1178 = vld [vmem:[%s1175 + $0x10] sm:$0xff]
      %v1179 = vld [vmem:[%s1175 + $0x18] sm:$0xff]
      %v1180 = vld [vmem:[%s1175 + $0x20] sm:$0xff]
      %v1181 = vld [vmem:[%s1175 + $0x28] sm:$0xff]
      %v1182 = vld [vmem:[%s1175 + $0x30] sm:$0xff]
      %v1183 = vld [vmem:[%s1175 + $0x38] sm:$0xff]
      %v1184 = vld [vmem:[%s1175 + $0x40] sm:$0xff]
      %v1185 = vld [vmem:[%s1175 + $0x48] sm:$0xff]
      %v1186 = vld [vmem:[%s1175 + $0x50] sm:$0xff]
      %v1187 = vld [vmem:[%s1175 + $0x58] sm:$0xff]
      %v1188 = vld [vmem:[%s1175 + $0x60] sm:$0xff]
      %v1189 = vld [vmem:[%s1175 + $0x68] sm:$0xff]
      %v1190 = vld [vmem:[%s1175 + $0x70] sm:$0xff]
      %v1191 = vld [vmem:[%s1175 + $0x78] sm:$0xff]
      %1192 = vmatprep.subr.mxu0 0.0
      %1193 = vmatpush1.msra.mxu0 %v1176
      %1194 = vmatprep.subr.mxu0 0.0
      %1195 = vmatpush1.msra.mxu0 %v1177
      %1196 = vmatprep.subr.mxu0 0.0
      %1197 = vmatpush1.msra.mxu0 %v1178
      %1198 = vmatprep.subr.mxu0 0.0
      %1199 = vmatpush1.msra.mxu0 %v1179
      %1200 = vmatprep.subr.mxu0 0.0
      %1201 = vmatpush1.msra.mxu0 %v1180
      %1202 = vmatprep.subr.mxu0 0.0
      %1203 = vmatpush1.msra.mxu0 %v1181
      %1204 = vmatprep.subr.mxu0 0.0
      %1205 = vmatpush1.msra.mxu0 %v1182
      %1206 = vmatprep.subr.mxu0 0.0
      %1207 = vmatpush1.msra.mxu0 %v1183
      %1208 = vmatprep.subr.mxu0 0.0
      %1209 = vmatpush1.msra.mxu0 %v1184
      %1210 = vmatprep.subr.mxu0 0.0
      %1211 = vmatpush1.msra.mxu0 %v1185
      %1212 = vmatprep.subr.mxu0 0.0
      %1213 = vmatpush1.msra.mxu0 %v1186
      %1214 = vmatprep.subr.mxu0 0.0
      %1215 = vmatpush1.msra.mxu0 %v1187
      %1216 = vmatprep.subr.mxu0 0.0
      %1217 = vmatpush1.msra.mxu0 %v1188
      %1218 = vmatprep.subr.mxu0 0.0
      %1219 = vmatpush1.msra.mxu0 %v1189
      %1220 = vmatprep.subr.mxu0 0.0
      %1221 = vmatpush1.msra.mxu0 %v1190
      %1222 = vmatprep.subr.mxu0 0.0
      %1223 = vmatpush1.msra.mxu0 %v1191
      %1224 = vmatprep.subr.mxu0 0.0
      %1225 = vmatpush1.msra.mxu0 0.0
      %1226 = vmatprep.subr.mxu0 0.0
      %1227 = vmatpush1.msra.mxu0 0.0
      %1228 = vmatprep.subr.mxu0 0.0
      %1229 = vmatpush1.msra.mxu0 0.0
      %1230 = vmatprep.subr.mxu0 0.0
      %1231 = vmatpush1.msra.mxu0 0.0
      %1232 = vmatprep.subr.mxu0 0.0
      %1233 = vmatpush1.msra.mxu0 0.0
      %1234 = vmatprep.subr.mxu0 0.0
      %1235 = vmatpush1.msra.mxu0 0.0
      %1236 = vmatprep.subr.mxu0 0.0
      %1237 = vmatpush1.msra.mxu0 0.0
      %1238 = vmatprep.subr.mxu0 0.0
      %1239 = vmatpush1.msra.mxu0 0.0
      %1240 = vmatprep.subr.mxu0 0.0
      %1241 = vmatpush1.msra.mxu0 0.0
      %1242 = vmatprep.subr.mxu0 0.0
      %1243 = vmatpush1.msra.mxu0 0.0
      %1244 = vmatprep.subr.mxu0 0.0
      %1245 = vmatpush1.msra.mxu0 0.0
      %1246 = vmatprep.subr.mxu0 0.0
      %1247 = vmatpush1.msra.mxu0 0.0
      %1248 = vmatprep.subr.mxu0 0.0
      %1249 = vmatpush1.msra.mxu0 0.0
      %1250 = vmatprep.subr.mxu0 0.0
      %1251 = vmatpush1.msra.mxu0 0.0
      %1252 = vmatprep.subr.mxu0 0.0
      %1253 = vmatpush1.msra.mxu0 0.0
      %1254 = vmatprep.subr.mxu0 0.0
      %1255 = vmatpush1.msra.mxu0 0.0
      %1256 = vmatprep.mubr.f32.mxu0 0.0
      %1257 = vmatmul.mubr.f32.gmra.mrb[0].mxu0 %v1167
      %v1258 = vpop.f32.mrb[0].mxu0
      %v1259 = vadd.f32 0.0, %v1258
      %v1260 = vpop.f32.mrb[0].mxu0
      %1261 = vmatprep.mubr.f32.mxu0 0.0
      %1262 = vmatmul.mubr.f32.gmra.mrb[0].mxu0 %v1168
      %v1263 = vpop.f32.mrb[0].mxu0
      %v1264 = vadd.f32 0.0, %v1263
      %v1265 = vpop.f32.mrb[0].mxu0
      %1266 = vmatprep.mubr.f32.mxu0 0.0
      %1267 = vmatmul.mubr.f32.gmra.mrb[0].mxu0 %v1169
      %v1268 = vpop.f32.mrb[0].mxu0
      %v1269 = vadd.f32 0.0, %v1268
      %v1270 = vpop.f32.mrb[0].mxu0
      %1271 = vmatprep.mubr.f32.mxu0 0.0
      %1272 = vmatmul.mubr.f32.gmra.mrb[0].mxu0 %v1170
      %v1273 = vpop.f32.mrb[0].mxu0
      %v1274 = vadd.f32 0.0, %v1273
      %v1275 = vpop.f32.mrb[0].mxu0
      %1276 = vmatprep.mubr.f32.mxu0 0.0
      %1277 = vmatmul.mubr.f32.gmra.mrb[0].mxu0 %v1171
      %v1278 = vpop.f32.mrb[0].mxu0
      %v1279 = vadd.f32 0.0, %v1278
      %v1280 = vpop.f32.mrb[0].mxu0
      %1281 = vmatprep.mubr.f32.mxu0 0.0
      %1282 = vmatmul.mubr.f32.gmra.mrb[0].mxu0 %v1172
      %v1283 = vpop.f32.mrb[0].mxu0
      %v1284 = vadd.f32 0.0, %v1283
      %v1285 = vpop.f32.mrb[0].mxu0
      %1286 = vmatprep.mubr.f32.mxu0 0.0
      %1287 = vmatmul.mubr.f32.gmra.mrb[0].mxu0 %v1173
      %v1288 = vpop.f32.mrb[0].mxu0
      %v1289 = vadd.f32 0.0, %v1288
      %v1290 = vpop.f32.mrb[0].mxu0
      %1291 = vmatprep.mubr.f32.mxu0 0.0
      %1292 = vmatmul.mubr.f32.gmra.mrb[0].mxu0 %v1174
      %v1293 = vpop.f32.mrb[0].mxu0
      %v1294 = vadd.f32 0.0, %v1293
      %v1295 = vpop.f32.mrb[0].mxu0
      %1296 = vdwg.mxu0
      %v1297 = vadd.f32 %v1158, %v1259
      %v1298 = vadd.f32 %v1159, %v1264
      %v1299 = vadd.f32 %v1160, %v1269
      %v1300 = vadd.f32 %v1161, %v1274
      %v1301 = vadd.f32 %v1162, %v1279
      %v1302 = vadd.f32 %v1163, %v1284
      %v1303 = vadd.f32 %v1164, %v1289
      %v1304 = vadd.f32 %v1165, %v1294
      %v1305 = vld [vmem:[%s1166 + $0x8] sm:$0xff]
      %v1306 = vld [vmem:[%s1166 + $0x20] sm:$0xff]
      %v1307 = vld [vmem:[%s1166 + $0x38] sm:$0xff]
      %v1308 = vld [vmem:[%s1166 + $0x50] sm:$0xff]
      %v1309 = vld [vmem:[%s1166 + $0x68] sm:$0xff]
      %v1310 = vld [vmem:[%s1166 + $0x80] sm:$0xff]
      %v1311 = vld [vmem:[%s1166 + $0x98] sm:$0xff]
      %v1312 = vld [vmem:[%s1166 + $0xb0] sm:$0xff]
      %s1313 = scalar_lea.vmem %s3, 896
      %v1314 = vld [vmem:[%s1313] sm:$0xff]
      %v1315 = vld [vmem:[%s1313 + $0x8] sm:$0xff]
      %v1316 = vld [vmem:[%s1313 + $0x10] sm:$0xff]
      %v1317 = vld [vmem:[%s1313 + $0x18] sm:$0xff]
      %v1318 = vld [vmem:[%s1313 + $0x20] sm:$0xff]
      %v1319 = vld [vmem:[%s1313 + $0x28] sm:$0xff]
      %v1320 = vld [vmem:[%s1313 + $0x30] sm:$0xff]
      %v1321 = vld [vmem:[%s1313 + $0x38] sm:$0xff]
      %v1322 = vld [vmem:[%s1313 + $0x40] sm:$0xff]
      %v1323 = vld [vmem:[%s1313 + $0x48] sm:$0xff]
      %v1324 = vld [vmem:[%s1313 + $0x50] sm:$0xff]
      %v1325 = vld [vmem:[%s1313 + $0x58] sm:$0xff]
      %v1326 = vld [vmem:[%s1313 + $0x60] sm:$0xff]
      %v1327 = vld [vmem:[%s1313 + $0x68] sm:$0xff]
      %v1328 = vld [vmem:[%s1313 + $0x70] sm:$0xff]
      %v1329 = vld [vmem:[%s1313 + $0x78] sm:$0xff]
      %1330 = vmatprep.subr.mxu0 0.0
      %1331 = vmatpush1.msra.mxu0 %v1314
      %1332 = vmatprep.subr.mxu0 0.0
      %1333 = vmatpush1.msra.mxu0 %v1315
      %1334 = vmatprep.subr.mxu0 0.0
      %1335 = vmatpush1.msra.mxu0 %v1316
      %1336 = vmatprep.subr.mxu0 0.0
      %1337 = vmatpush1.msra.mxu0 %v1317
      %1338 = vmatprep.subr.mxu0 0.0
      %1339 = vmatpush1.msra.mxu0 %v1318
      %1340 = vmatprep.subr.mxu0 0.0
      %1341 = vmatpush1.msra.mxu0 %v1319
      %1342 = vmatprep.subr.mxu0 0.0
      %1343 = vmatpush1.msra.mxu0 %v1320
      %1344 = vmatprep.subr.mxu0 0.0
      %1345 = vmatpush1.msra.mxu0 %v1321
      %1346 = vmatprep.subr.mxu0 0.0
      %1347 = vmatpush1.msra.mxu0 %v1322
      %1348 = vmatprep.subr.mxu0 0.0
      %1349 = vmatpush1.msra.mxu0 %v1323
      %1350 = vmatprep.subr.mxu0 0.0
      %1351 = vmatpush1.msra.mxu0 %v1324
      %1352 = vmatprep.subr.mxu0 0.0
      %1353 = vmatpush1.msra.mxu0 %v1325
      %1354 = vmatprep.subr.mxu0 0.0
      %1355 = vmatpush1.msra.mxu0 %v1326
      %1356 = vmatprep.subr.mxu0 0.0
      %1357 = vmatpush1.msra.mxu0 %v1327
      %1358 = vmatprep.subr.mxu0 0.0
      %1359 = vmatpush1.msra.mxu0 %v1328
      %1360 = vmatprep.subr.mxu0 0.0
      %1361 = vmatpush1.msra.mxu0 %v1329
      %1362 = vmatprep.subr.mxu0 0.0
      %1363 = vmatpush1.msra.mxu0 0.0
      %1364 = vmatprep.subr.mxu0 0.0
      %1365 = vmatpush1.msra.mxu0 0.0
      %1366 = vmatprep.subr.mxu0 0.0
      %1367 = vmatpush1.msra.mxu0 0.0
      %1368 = vmatprep.subr.mxu0 0.0
      %1369 = vmatpush1.msra.mxu0 0.0
      %1370 = vmatprep.subr.mxu0 0.0
      %1371 = vmatpush1.msra.mxu0 0.0
      %1372 = vmatprep.subr.mxu0 0.0
      %1373 = vmatpush1.msra.mxu0 0.0
      %1374 = vmatprep.subr.mxu0 0.0
      %1375 = vmatpush1.msra.mxu0 0.0
      %1376 = vmatprep.subr.mxu0 0.0
      %1377 = vmatpush1.msra.mxu0 0.0
      %1378 = vmatprep.subr.mxu0 0.0
      %1379 = vmatpush1.msra.mxu0 0.0
      %1380 = vmatprep.subr.mxu0 0.0
      %1381 = vmatpush1.msra.mxu0 0.0
      %1382 = vmatprep.subr.mxu0 0.0
      %1383 = vmatpush1.msra.mxu0 0.0
      %1384 = vmatprep.subr.mxu0 0.0
      %1385 = vmatpush1.msra.mxu0 0.0
      %1386 = vmatprep.subr.mxu0 0.0
      %1387 = vmatpush1.msra.mxu0 0.0
      %1388 = vmatprep.subr.mxu0 0.0
      %1389 = vmatpush1.msra.mxu0 0.0
      %1390 = vmatprep.subr.mxu0 0.0
      %1391 = vmatpush1.msra.mxu0 0.0
      %1392 = vmatprep.subr.mxu0 0.0
      %1393 = vmatpush1.msra.mxu0 0.0
      %1394 = vmatprep.mubr.f32.mxu0 0.0
      %1395 = vmatmul.mubr.f32.gmra.mrb[0].mxu0 %v1305
      %v1396 = vpop.f32.mrb[0].mxu0
      %v1397 = vadd.f32 0.0, %v1396
      %v1398 = vpop.f32.mrb[0].mxu0
      %1399 = vmatprep.mubr.f32.mxu0 0.0
      %1400 = vmatmul.mubr.f32.gmra.mrb[0].mxu0 %v1306
      %v1401 = vpop.f32.mrb[0].mxu0
      %v1402 = vadd.f32 0.0, %v1401
      %v1403 = vpop.f32.mrb[0].mxu0
      %1404 = vmatprep.mubr.f32.mxu0 0.0
      %1405 = vmatmul.mubr.f32.gmra.mrb[0].mxu0 %v1307
      %v1406 = vpop.f32.mrb[0].mxu0
      %v1407 = vadd.f32 0.0, %v1406
      %v1408 = vpop.f32.mrb[0].mxu0
      %1409 = vmatprep.mubr.f32.mxu0 0.0
      %1410 = vmatmul.mubr.f32.gmra.mrb[0].mxu0 %v1308
      %v1411 = vpop.f32.mrb[0].mxu0
      %v1412 = vadd.f32 0.0, %v1411
      %v1413 = vpop.f32.mrb[0].mxu0
      %1414 = vmatprep.mubr.f32.mxu0 0.0
      %1415 = vmatmul.mubr.f32.gmra.mrb[0].mxu0 %v1309
      %v1416 = vpop.f32.mrb[0].mxu0
      %v1417 = vadd.f32 0.0, %v1416
      %v1418 = vpop.f32.mrb[0].mxu0
      %1419 = vmatprep.mubr.f32.mxu0 0.0
      %1420 = vmatmul.mubr.f32.gmra.mrb[0].mxu0 %v1310
      %v1421 = vpop.f32.mrb[0].mxu0
      %v1422 = vadd.f32 0.0, %v1421
      %v1423 = vpop.f32.mrb[0].mxu0
      %1424 = vmatprep.mubr.f32.mxu0 0.0
      %1425 = vmatmul.mubr.f32.gmra.mrb[0].mxu0 %v1311
      %v1426 = vpop.f32.mrb[0].mxu0
      %v1427 = vadd.f32 0.0, %v1426
      %v1428 = vpop.f32.mrb[0].mxu0
      %1429 = vmatprep.mubr.f32.mxu0 0.0
      %1430 = vmatmul.mubr.f32.gmra.mrb[0].mxu0 %v1312
      %v1431 = vpop.f32.mrb[0].mxu0
      %v1432 = vadd.f32 0.0, %v1431
      %v1433 = vpop.f32.mrb[0].mxu0
      %1434 = vdwg.mxu0
      %v1435 = vadd.f32 %v1297, %v1397
      %v1436 = vadd.f32 %v1298, %v1402
      %v1437 = vadd.f32 %v1299, %v1407
      %v1438 = vadd.f32 %v1300, %v1412
      %v1439 = vadd.f32 %v1301, %v1417
      %v1440 = vadd.f32 %v1302, %v1422
      %v1441 = vadd.f32 %v1303, %v1427
      %v1442 = vadd.f32 %v1304, %v1432
      %v1443 = vld [vmem:[%s1166 + $0xa] sm:$0xff]
      %v1444 = vld [vmem:[%s1166 + $0x22] sm:$0xff]
      %v1445 = vld [vmem:[%s1166 + $0x3a] sm:$0xff]
      %v1446 = vld [vmem:[%s1166 + $0x52] sm:$0xff]
      %v1447 = vld [vmem:[%s1166 + $0x6a] sm:$0xff]
      %v1448 = vld [vmem:[%s1166 + $0x82] sm:$0xff]
      %v1449 = vld [vmem:[%s1166 + $0x9a] sm:$0xff]
      %v1450 = vld [vmem:[%s1166 + $0xb2] sm:$0xff]
      %s1451 = scalar_lea.vmem %s3, 1024
      %v1452 = vld [vmem:[%s1451] sm:$0xff]
      %v1453 = vld [vmem:[%s1451 + $0x8] sm:$0xff]
      %v1454 = vld [vmem:[%s1451 + $0x10] sm:$0xff]
      %v1455 = vld [vmem:[%s1451 + $0x18] sm:$0xff]
      %v1456 = vld [vmem:[%s1451 + $0x20] sm:$0xff]
      %v1457 = vld [vmem:[%s1451 + $0x28] sm:$0xff]
      %v1458 = vld [vmem:[%s1451 + $0x30] sm:$0xff]
      %v1459 = vld [vmem:[%s1451 + $0x38] sm:$0xff]
      %v1460 = vld [vmem:[%s1451 + $0x40] sm:$0xff]
      %v1461 = vld [vmem:[%s1451 + $0x48] sm:$0xff]
      %v1462 = vld [vmem:[%s1451 + $0x50] sm:$0xff]
      %v1463 = vld [vmem:[%s1451 + $0x58] sm:$0xff]
      %v1464 = vld [vmem:[%s1451 + $0x60] sm:$0xff]
      %v1465 = vld [vmem:[%s1451 + $0x68] sm:$0xff]
      %v1466 = vld [vmem:[%s1451 + $0x70] sm:$0xff]
      %v1467 = vld [vmem:[%s1451 + $0x78] sm:$0xff]
      %1468 = vmatprep.subr.mxu0 0.0
      %1469 = vmatpush1.msra.mxu0 %v1452
      %1470 = vmatprep.subr.mxu0 0.0
      %1471 = vmatpush1.msra.mxu0 %v1453
      %1472 = vmatprep.subr.mxu0 0.0
      %1473 = vmatpush1.msra.mxu0 %v1454
      %1474 = vmatprep.subr.mxu0 0.0
      %1475 = vmatpush1.msra.mxu0 %v1455
      %1476 = vmatprep.subr.mxu0 0.0
      %1477 = vmatpush1.msra.mxu0 %v1456
      %1478 = vmatprep.subr.mxu0 0.0
      %1479 = vmatpush1.msra.mxu0 %v1457
      %1480 = vmatprep.subr.mxu0 0.0
      %1481 = vmatpush1.msra.mxu0 %v1458
      %1482 = vmatprep.subr.mxu0 0.0
      %1483 = vmatpush1.msra.mxu0 %v1459
      %1484 = vmatprep.subr.mxu0 0.0
      %1485 = vmatpush1.msra.mxu0 %v1460
      %1486 = vmatprep.subr.mxu0 0.0
      %1487 = vmatpush1.msra.mxu0 %v1461
      %1488 = vmatprep.subr.mxu0 0.0
      %1489 = vmatpush1.msra.mxu0 %v1462
      %1490 = vmatprep.subr.mxu0 0.0
      %1491 = vmatpush1.msra.mxu0 %v1463
      %1492 = vmatprep.subr.mxu0 0.0
      %1493 = vmatpush1.msra.mxu0 %v1464
      %1494 = vmatprep.subr.mxu0 0.0
      %1495 = vmatpush1.msra.mxu0 %v1465
      %1496 = vmatprep.subr.mxu0 0.0
      %1497 = vmatpush1.msra.mxu0 %v1466
      %1498 = vmatprep.subr.mxu0 0.0
      %1499 = vmatpush1.msra.mxu0 %v1467
      %1500 = vmatprep.subr.mxu0 0.0
      %1501 = vmatpush1.msra.mxu0 0.0
      %1502 = vmatprep.subr.mxu0 0.0
      %1503 = vmatpush1.msra.mxu0 0.0
      %1504 = vmatprep.subr.mxu0 0.0
      %1505 = vmatpush1.msra.mxu0 0.0
      %1506 = vmatprep.subr.mxu0 0.0
      %1507 = vmatpush1.msra.mxu0 0.0
      %1508 = vmatprep.subr.mxu0 0.0
      %1509 = vmatpush1.msra.mxu0 0.0
      %1510 = vmatprep.subr.mxu0 0.0
      %1511 = vmatpush1.msra.mxu0 0.0
      %1512 = vmatprep.subr.mxu0 0.0
      %1513 = vmatpush1.msra.mxu0 0.0
      %1514 = vmatprep.subr.mxu0 0.0
      %1515 = vmatpush1.msra.mxu0 0.0
      %1516 = vmatprep.subr.mxu0 0.0
      %1517 = vmatpush1.msra.mxu0 0.0
      %1518 = vmatprep.subr.mxu0 0.0
      %1519 = vmatpush1.msra.mxu0 0.0
      %1520 = vmatprep.subr.mxu0 0.0
      %1521 = vmatpush1.msra.mxu0 0.0
      %1522 = vmatprep.subr.mxu0 0.0
      %1523 = vmatpush1.msra.mxu0 0.0
      %1524 = vmatprep.subr.mxu0 0.0
      %1525 = vmatpush1.msra.mxu0 0.0
      %1526 = vmatprep.subr.mxu0 0.0
      %1527 = vmatpush1.msra.mxu0 0.0
      %1528 = vmatprep.subr.mxu0 0.0
      %1529 = vmatpush1.msra.mxu0 0.0
      %1530 = vmatprep.subr.mxu0 0.0
      %1531 = vmatpush1.msra.mxu0 0.0
      %1532 = vmatprep.mubr.f32.mxu0 0.0
      %1533 = vmatmul.mubr.f32.gmra.mrb[0].mxu0 %v1443
      %v1534 = vpop.f32.mrb[0].mxu0
      %v1535 = vadd.f32 0.0, %v1534
      %v1536 = vpop.f32.mrb[0].mxu0
      %1537 = vmatprep.mubr.f32.mxu0 0.0
      %1538 = vmatmul.mubr.f32.gmra.mrb[0].mxu0 %v1444
      %v1539 = vpop.f32.mrb[0].mxu0
      %v1540 = vadd.f32 0.0, %v1539
      %v1541 = vpop.f32.mrb[0].mxu0
      %1542 = vmatprep.mubr.f32.mxu0 0.0
      %1543 = vmatmul.mubr.f32.gmra.mrb[0].mxu0 %v1445
      %v1544 = vpop.f32.mrb[0].mxu0
      %v1545 = vadd.f32 0.0, %v1544
      %v1546 = vpop.f32.mrb[0].mxu0
      %1547 = vmatprep.mubr.f32.mxu0 0.0
      %1548 = vmatmul.mubr.f32.gmra.mrb[0].mxu0 %v1446
      %v1549 = vpop.f32.mrb[0].mxu0
      %v1550 = vadd.f32 0.0, %v1549
      %v1551 = vpop.f32.mrb[0].mxu0
      %1552 = vmatprep.mubr.f32.mxu0 0.0
      %1553 = vmatmul.mubr.f32.gmra.mrb[0].mxu0 %v1447
      %v1554 = vpop.f32.mrb[0].mxu0
      %v1555 = vadd.f32 0.0, %v1554
      %v1556 = vpop.f32.mrb[0].mxu0
      %1557 = vmatprep.mubr.f32.mxu0 0.0
      %1558 = vmatmul.mubr.f32.gmra.mrb[0].mxu0 %v1448
      %v1559 = vpop.f32.mrb[0].mxu0
      %v1560 = vadd.f32 0.0, %v1559
      %v1561 = vpop.f32.mrb[0].mxu0
      %1562 = vmatprep.mubr.f32.mxu0 0.0
      %1563 = vmatmul.mubr.f32.gmra.mrb[0].mxu0 %v1449
      %v1564 = vpop.f32.mrb[0].mxu0
      %v1565 = vadd.f32 0.0, %v1564
      %v1566 = vpop.f32.mrb[0].mxu0
      %1567 = vmatprep.mubr.f32.mxu0 0.0
      %1568 = vmatmul.mubr.f32.gmra.mrb[0].mxu0 %v1450
      %v1569 = vpop.f32.mrb[0].mxu0
      %v1570 = vadd.f32 0.0, %v1569
      %v1571 = vpop.f32.mrb[0].mxu0
      %1572 = vdwg.mxu0
      %v1573 = vadd.f32 %v1435, %v1535
      %v1574 = vadd.f32 %v1436, %v1540
      %v1575 = vadd.f32 %v1437, %v1545
      %v1576 = vadd.f32 %v1438, %v1550
      %v1577 = vadd.f32 %v1439, %v1555
      %v1578 = vadd.f32 %v1440, %v1560
      %v1579 = vadd.f32 %v1441, %v1565
      %v1580 = vadd.f32 %v1442, %v1570
      %v1581 = vld [vmem:[%s4] sm:$0x1]
      %v1583 = vlaneseq
      %v1584 = vshrl.u32 %v1583, 7
      %v1585 = vsub.s32 0, %v1584
      %v1586 = vrot.slane %v1581, %v1585
      %v1588 = vadd.f32 %v1573, %v1586
      %v1589 = vadd.f32 %v1574, %v1586
      %v1590 = vadd.f32 %v1575, %v1586
      %v1591 = vadd.f32 %v1576, %v1586
      %v1592 = vadd.f32 %v1577, %v1586
      %v1593 = vadd.f32 %v1578, %v1586
      %v1594 = vadd.f32 %v1579, %v1586
      %v1595 = vadd.f32 %v1580, %v1586
      %v1596 = vadd.f32 %v1588, %v1589
      %v1597 = vadd.f32 %v1596, %v1590
      %v1598 = vadd.f32 %v1597, %v1591
      %v1599 = vadd.f32 %v1598, %v1592
      %v1600 = vadd.f32 %v1599, %v1593
      %v1601 = vadd.f32 %v1600, %v1594
      %v1602 = vadd.f32 %v1601, %v1595
      %v1603 = vrot.slane %v1602, 4
      %v1604 = vadd.f32 %v1602, %v1603
      %v1605 = vrot.slane %v1604, 2
      %v1606 = vadd.f32 %v1604, %v1605
      %v1607 = vrot.slane %v1606, 1
      %v1608 = vadd.f32 %v1606, %v1607
      %v1609 = vmul.f32 %v1588, %v1588
      %v1610 = vmul.f32 %v1589, %v1589
      %v1611 = vmul.f32 %v1590, %v1590
      %v1612 = vmul.f32 %v1591, %v1591
      %v1613 = vmul.f32 %v1592, %v1592
      %v1614 = vmul.f32 %v1593, %v1593
      %v1615 = vmul.f32 %v1594, %v1594
      %v1616 = vmul.f32 %v1595, %v1595
      %v1617 = vadd.f32 %v1609, %v1610
      %v1618 = vadd.f32 %v1617, %v1611
      %v1619 = vadd.f32 %v1618, %v1612
      %v1620 = vadd.f32 %v1619, %v1613
      %v1621 = vadd.f32 %v1620, %v1614
      %v1622 = vadd.f32 %v1621, %v1615
      %v1623 = vadd.f32 %v1622, %v1616
      %v1624 = vrot.slane %v1623, 4
      %v1625 = vadd.f32 %v1623, %v1624
      %v1626 = vrot.slane %v1625, 2
      %v1627 = vadd.f32 %v1625, %v1626
      %v1628 = vrot.slane %v1627, 1
      %v1629 = vadd.f32 %v1627, %v1628
      %v1632 = vcombine.low %v1608, %v1629
      %v1634 = vunpack.c.l.s4 1966171168
      %v1635 = vunpack.c.0.s8 %v1634
      %v1636 = vlaneseq
      %v1637 = vshrl.u32 %v1636, 7
      %v1638 = vsub.s32 %v1635, %v1637
      %v1639 = vrot.slane %v1632, %v1638
      %v1641 = vunpack.c.l.s4 1966171168
      %v1642 = vunpack.c.0.s8 %v1641
      %v1643 = vlaneseq
      %v1644 = vshrl.u32 %v1643, 7
      %v1645 = vsub.s32 %v1642, %v1644
      %v1646 = vrot.slane %v1639, %v1645
      %v1648 = vlaneseq
      %vm1649 = vcmp.ge.s32.totalorder %v1648, 0
      %vm1650 = vcmp.lt.s32.totalorder %v1648, 256
      %vm1651 = vmand %vm1649, %vm1650
      %1652 = vst.msk [vmem:[%s262] sm:$0x3] %vm1651, %v1646
      %v1653 = vpack.c.bf16 %v1588, %v1588
      %v1654 = vpack.c.bf16 %v1589, %v1589
      %v1655 = vpack.c.bf16 %v1590, %v1590
      %v1656 = vpack.c.bf16 %v1591, %v1591
      %v1657 = vpack.c.bf16 %v1592, %v1592
      %v1658 = vpack.c.bf16 %v1593, %v1593
      %v1659 = vpack.c.bf16 %v1594, %v1594
      %v1660 = vpack.c.bf16 %v1595, %v1595
      %1661 = vst [vmem:[%s258] sm:$0xf] %v1653
      %1662 = vst [vmem:[%s258 + $0x4] sm:$0xf] %v1654
      %1663 = vst [vmem:[%s258 + $0x8] sm:$0xf] %v1655
      %1664 = vst [vmem:[%s258 + $0xc] sm:$0xf] %v1656
      %1665 = vst [vmem:[%s258 + $0x10] sm:$0xf] %v1657
      %1666 = vst [vmem:[%s258 + $0x14] sm:$0xf] %v1658
      %1667 = vst [vmem:[%s258 + $0x18] sm:$0xf] %v1659
      %1668 = vst [vmem:[%s258 + $0x1c] sm:$0xf] %v1660
      %p1669 = scmp.lt.s32.totalorder %s18, 1
      %s1670 = scalar_select %p1669, %s18, 1
      %s1671 = smul.addr %s1670, 8
      %s1672 = smul.addr %s1671, 4
      %s1673 = scalar_lea.vmem %s5, %s1672
      %p1674 = scmp.lt.s32.totalorder %s18, 1
      %s1675 = scalar_select %p1674, %s18, 1
      %s1676 = smul.addr %s1675, 2
      %s1677 = scalar_lea.vmem %s6, %s1676
      // Predicated region
      $region41: #{se_down_forward.5} parent=39 // pred_check
        %p1678 = pneg %p146
      $region42: #{se_down_forward.5} parent=39 // pred_check_branch
        %1680 = sbr.rel (%p1678) target = $region44
      $region43: #{se_down_forward.5} parent=39 // pred_region
        _
      $region44: #{se_down_forward.5} parent=39 // pred_fallthru
        _
      // Predicated region
      $region45: #{se_down_forward.5} parent=39 // pred_check
        %p1681 = pneg %p172
      $region46: #{se_down_forward.5} parent=39 // pred_check_branch
        %1683 = sbr.rel (%p1681) target = $region48
      $region47: #{se_down_forward.5} parent=39 // pred_region
        _
      $region48: #{se_down_forward.5} parent=39 // pred_fallthru
        _
    $region40: #{se_down_forward.5} parent=5 // pred_fallthru
      _
    %p1684 = scmp.le.s32.totalorder 2, %s13
    // Predicated region
    $region49: #{se_down_forward.5} parent=5 // pred_check
      %p1685 = pneg %p1684
    $region50: #{se_down_forward.5} parent=5 // pred_check_branch
      %1687 = sbr.rel (%p1685) target = $region52
    $region51: #{se_down_forward.5} parent=5 // pred_region
      %s1688 = ssub.s32 %s13, 2
      // Predicated region
      $region53: #{se_down_forward.5} parent=51 // pred_check
        %p1689 = pneg %p152
      $region54: #{se_down_forward.5} parent=51 // pred_check_branch
        %1691 = sbr.rel (%p1689) target = $region56
      $region55: #{se_down_forward.5} parent=51 // pred_region
        %p1692 = scmp.lt.s32.totalorder %s19, 1
        %s1693 = scalar_select %p1692, %s19, 1
        %s1694 = smul.addr %s1693, 8
        %s1695 = smul.addr %s1694, 4
        %s1696 = scalar_lea.vmem %s5, %s1695
      $region56: #{se_down_forward.5} parent=51 // pred_fallthru
        _
      // Predicated region
      $region57: #{se_down_forward.5} parent=51 // pred_check
        %p1697 = pneg %p178
      $region58: #{se_down_forward.5} parent=51 // pred_check_branch
        %1699 = sbr.rel (%p1697) target = $region60
      $region59: #{se_down_forward.5} parent=51 // pred_region
        %p1700 = scmp.lt.s32.totalorder %s19, 1
        %s1701 = scalar_select %p1700, %s19, 1
        %s1702 = smul.addr %s1701, 2
        %s1703 = scalar_lea.vmem %s6, %s1702
      $region60: #{se_down_forward.5} parent=51 // pred_fallthru
        _
    $region52: #{se_down_forward.5} parent=5 // pred_fallthru
      _
  $region6: #{se_down_forward.5} parent=0 // loop_footer
    %s17 = sadd.s32 1, %s13
  $region7: #{se_down_forward.5} parent=0 // loop_footer_branch
    %12 = sbr.rel target = $region3
  $region8: #{se_down_forward.5} parent=0 // loop_exit
    _

// kernel: se_down_forward.6
$region0: #{se_down_forward.6}
  #allocation0 [shape = 'u32[]', space=smem, size = 0x4, offset = 0x4, fixed_abs, tag = 'smem constant byte address 0x4 - core index']
  #allocation1 [shape = 'u32[144,128]{1,0:T(1,128)}', space=vmem, size = 0x12000, scoped, tag = 'internal scratch']
  #allocation2 [shape = 'f32[14,24,128]{2,1,0:T(8,128)}', space=vmem, size = 0x2a000, scoped, tag = 'scratch operand']
  %s0 = inlined_call_operand.vmem [shape: bf16[2,8,8,128], index: 0, kind: input, shape index: {}]
  %s1 = inlined_call_operand.vmem [shape: f32[1,128], index: 1, kind: input, shape index: {}]
  %s2 = inlined_call_operand.vmem [shape: f32[1,128], index: 2, kind: input, shape index: {}]
  %s3 = inlined_call_operand.vmem [shape: f32[9,128,128], index: 3, kind: input, shape index: {}]
  %s4 = inlined_call_operand.vmem [shape: f32[1,128], index: 4, kind: input, shape index: {}]
  %s5 = inlined_call_operand.vmem [shape: bf16[2,8,8,128], index: 5, kind: output, shape index: {0}]
  %s6 = inlined_call_operand.vmem [shape: f32[2,1,256], index: 6, kind: output, shape index: {1}]
  %7 = xla_tuple %s5, %s6
  %s8 = sld [smem:[#allocation0]]
  $region61: #{se_down_forward.6} parent=0
    _
  %s10 = ssub.s32 1, %s8
  %s11 = scalar_select 0, %s10, %s8
  loop: start=0, step=1, limit=4
  $region2: #{se_down_forward.6} parent=0 // loop_pre_header
    _
  $region3: #{se_down_forward.6} parent=0 // loop_header
    %s13 = sphi 0, %s17
    %p14 = scmp.ge.s32.totalorder %s13, 4
    %s23 = sphi 0, %s25
    %s26 = sphi 0, %s23
    %s27 = sphi 0, %s26
    %s43 = sphi 0, %s27
    %s47 = sphi 0, %s47
    %s49 = sphi 0, %s47
    %s50 = sphi 0, %s49
    %s64 = sphi 0, %s50
    %s68 = sphi 0, %s68
    %s70 = sphi 0, %s68
    %s71 = sphi 0, %s70
    %s85 = sphi 0, %s71
    %s89 = sphi 0, %s89
    %s91 = sphi 0, %s89
    %s92 = sphi 0, %s91
    %s106 = sphi 0, %s92
    %s110 = sphi 0, %s110
    %s112 = sphi 0, %s110
    %s113 = sphi 0, %s112
    %s127 = sphi 0, %s113
    %s133 = sphi 0, %s135
    %s136 = sphi 0, %s133
    %s137 = sphi 0, %s136
    %s153 = sphi 0, %s137
    %s159 = sphi 0, %s161
    %s162 = sphi 0, %s159
    %s163 = sphi 0, %s162
    %s179 = sphi 0, %s163
  $region4: #{se_down_forward.6} parent=0 // loop_header_branch
    %16 = sbr.rel (%p14) target = $region8
  $region5: #{se_down_forward.6} parent=0 // loop_body
    %s18 = ssub.s32 %s13, 1
    %s19 = ssub.s32 %s13, 2
    %s20 = sadd.s32 %s13, 1
    %s21 = ssub.s32 %s13, %s20
    %p22 = scmp.eq.s32.totalorder %s21, 0
    %s24 = sadd.s32 %s23, 1
    %s25 = scalar_select %p22, %s23, %s24
    %p28 = pneg %p22
    %p29 = scmp.eq.s32.totalorder %s13, 1
    %p30 = por %p28, %p29
    %p31 = scmp.ne.s32.totalorder %s23, %s26
    %p32 = scmp.eq.s32.totalorder %s13, 0
    %p33 = por %p31, %p32
    %p34 = scmp.ne.s32.totalorder %s23, %s26
    %p35 = scmp.eq.s32.totalorder %s18, 1
    %p36 = por %p34, %p35
    %p37 = scmp.ne.s32.totalorder %s26, %s27
    %p38 = scmp.eq.s32.totalorder %s18, 0
    %p39 = por %p37, %p38
    %p40 = scmp.ne.s32.totalorder %s26, %s27
    %p41 = scmp.eq.s32.totalorder %s19, 1
    %p42 = por %p40, %p41
    %p44 = scmp.ne.s32.totalorder %s27, %s43
    %p45 = scmp.eq.s32.totalorder %s19, 0
    %p46 = por %p44, %p45
    %s48 = sadd.s32 %s47, 1
    %p51 = scmp.eq.s32.totalorder %s13, 1
    %p52 = scmp.ne.s32.totalorder %s47, %s49
    %p53 = scmp.eq.s32.totalorder %s13, 0
    %p54 = por %p52, %p53
    %p55 = scmp.ne.s32.totalorder %s47, %s49
    %p56 = scmp.eq.s32.totalorder %s18, 1
    %p57 = por %p55, %p56
    %p58 = scmp.ne.s32.totalorder %s49, %s50
    %p59 = scmp.eq.s32.totalorder %s18, 0
    %p60 = por %p58, %p59
    %p61 = scmp.ne.s32.totalorder %s49, %s50
    %p62 = scmp.eq.s32.totalorder %s19, 1
    %p63 = por %p61, %p62
    %p65 = scmp.ne.s32.totalorder %s50, %s64
    %p66 = scmp.eq.s32.totalorder %s19, 0
    %p67 = por %p65, %p66
    %s69 = sadd.s32 %s68, 1
    %p72 = scmp.eq.s32.totalorder %s13, 1
    %p73 = scmp.ne.s32.totalorder %s68, %s70
    %p74 = scmp.eq.s32.totalorder %s13, 0
    %p75 = por %p73, %p74
    %p76 = scmp.ne.s32.totalorder %s68, %s70
    %p77 = scmp.eq.s32.totalorder %s18, 1
    %p78 = por %p76, %p77
    %p79 = scmp.ne.s32.totalorder %s70, %s71
    %p80 = scmp.eq.s32.totalorder %s18, 0
    %p81 = por %p79, %p80
    %p82 = scmp.ne.s32.totalorder %s70, %s71
    %p83 = scmp.eq.s32.totalorder %s19, 1
    %p84 = por %p82, %p83
    %p86 = scmp.ne.s32.totalorder %s71, %s85
    %p87 = scmp.eq.s32.totalorder %s19, 0
    %p88 = por %p86, %p87
    %s90 = sadd.s32 %s89, 1
    %p93 = scmp.eq.s32.totalorder %s13, 1
    %p94 = scmp.ne.s32.totalorder %s89, %s91
    %p95 = scmp.eq.s32.totalorder %s13, 0
    %p96 = por %p94, %p95
    %p97 = scmp.ne.s32.totalorder %s89, %s91
    %p98 = scmp.eq.s32.totalorder %s18, 1
    %p99 = por %p97, %p98
    %p100 = scmp.ne.s32.totalorder %s91, %s92
    %p101 = scmp.eq.s32.totalorder %s18, 0
    %p102 = por %p100, %p101
    %p103 = scmp.ne.s32.totalorder %s91, %s92
    %p104 = scmp.eq.s32.totalorder %s19, 1
    %p105 = por %p103, %p104
    %p107 = scmp.ne.s32.totalorder %s92, %s106
    %p108 = scmp.eq.s32.totalorder %s19, 0
    %p109 = por %p107, %p108
    %s111 = sadd.s32 %s110, 1
    %p114 = scmp.eq.s32.totalorder %s13, 1
    %p115 = scmp.ne.s32.totalorder %s110, %s112
    %p116 = scmp.eq.s32.totalorder %s13, 0
    %p117 = por %p115, %p116
    %p118 = scmp.ne.s32.totalorder %s110, %s112
    %p119 = scmp.eq.s32.totalorder %s18, 1
    %p120 = por %p118, %p119
    %p121 = scmp.ne.s32.totalorder %s112, %s113
    %p122 = scmp.eq.s32.totalorder %s18, 0
    %p123 = por %p121, %p122
    %p124 = scmp.ne.s32.totalorder %s112, %s113
    %p125 = scmp.eq.s32.totalorder %s19, 1
    %p126 = por %p124, %p125
    %p128 = scmp.ne.s32.totalorder %s113, %s127
    %p129 = scmp.eq.s32.totalorder %s19, 0
    %p130 = por %p128, %p129
    %s131 = ssub.s32 %s13, %s20
    %p132 = scmp.eq.s32.totalorder %s131, 0
    %s134 = sadd.s32 %s133, 1
    %s135 = scalar_select %p132, %s133, %s134
    %p138 = pneg %p132
    %p139 = scmp.eq.s32.totalorder %s13, 1
    %p140 = por %p138, %p139
    %p141 = scmp.ne.s32.totalorder %s133, %s136
    %p142 = scmp.eq.s32.totalorder %s13, 0
    %p143 = por %p141, %p142
    %p144 = scmp.ne.s32.totalorder %s133, %s136
    %p145 = scmp.eq.s32.totalorder %s18, 1
    %p146 = por %p144, %p145
    %p147 = scmp.ne.s32.totalorder %s136, %s137
    %p148 = scmp.eq.s32.totalorder %s18, 0
    %p149 = por %p147, %p148
    %p150 = scmp.ne.s32.totalorder %s136, %s137
    %p151 = scmp.eq.s32.totalorder %s19, 1
    %p152 = por %p150, %p151
    %p154 = scmp.ne.s32.totalorder %s137, %s153
    %p155 = scmp.eq.s32.totalorder %s19, 0
    %p156 = por %p154, %p155
    %s157 = ssub.s32 %s13, %s20
    %p158 = scmp.eq.s32.totalorder %s157, 0
    %s160 = sadd.s32 %s159, 1
    %s161 = scalar_select %p158, %s159, %s160
    %p164 = pneg %p158
    %p165 = scmp.eq.s32.totalorder %s13, 1
    %p166 = por %p164, %p165
    %p167 = scmp.ne.s32.totalorder %s159, %s162
    %p168 = scmp.eq.s32.totalorder %s13, 0
    %p169 = por %p167, %p168
    %p170 = scmp.ne.s32.totalorder %s159, %s162
    %p171 = scmp.eq.s32.totalorder %s18, 1
    %p172 = por %p170, %p171
    %p173 = scmp.ne.s32.totalorder %s162, %s163
    %p174 = scmp.eq.s32.totalorder %s18, 0
    %p175 = por %p173, %p174
    %p176 = scmp.ne.s32.totalorder %s162, %s163
    %p177 = scmp.eq.s32.totalorder %s19, 1
    %p178 = por %p176, %p177
    %p180 = scmp.ne.s32.totalorder %s163, %s179
    %p181 = scmp.eq.s32.totalorder %s19, 0
    %p182 = por %p180, %p181
    %p183 = scmp.le.s32.totalorder 1, %s13
    %p184 = scmp.lt.s32.totalorder %s13, 3
    %p185 = pnand %p183, %p184
    %p186 = pneg %p185
    // Predicated region
    $region9: #{se_down_forward.6} parent=5 // pred_check
      _
    $region10: #{se_down_forward.6} parent=5 // pred_check_branch
      %188 = sbr.rel (%p185) target = $region12
    $region11: #{se_down_forward.6} parent=5 // pred_region
      %s189 = ssub.s32 %s13, 1
      // Predicated region
      $region13: #{se_down_forward.6} parent=11 // pred_check
        %p190 = pneg %p60
      $region14: #{se_down_forward.6} parent=11 // pred_check_branch
        %192 = sbr.rel (%p190) target = $region16
      $region15: #{se_down_forward.6} parent=11 // pred_region
        _
      $region16: #{se_down_forward.6} parent=11 // pred_fallthru
        _
      // Predicated region
      $region17: #{se_down_forward.6} parent=11 // pred_check
        %p193 = pneg %p81
      $region18: #{se_down_forward.6} parent=11 // pred_check_branch
        %195 = sbr.rel (%p193) target = $region20
      $region19: #{se_down_forward.6} parent=11 // pred_region
        _
      $region20: #{se_down_forward.6} parent=11 // pred_fallthru
        _
      // Predicated region
      $region21: #{se_down_forward.6} parent=11 // pred_check
        %p196 = pneg %p102
      $region22: #{se_down_forward.6} parent=11 // pred_check_branch
        %198 = sbr.rel (%p196) target = $region24
      $region23: #{se_down_forward.6} parent=11 // pred_region
        _
      $region24: #{se_down_forward.6} parent=11 // pred_fallthru
        _
      // Predicated region
      $region25: #{se_down_forward.6} parent=11 // pred_check
        %p199 = pneg %p123
      $region26: #{se_down_forward.6} parent=11 // pred_check_branch
        %201 = sbr.rel (%p199) target = $region28
      $region27: #{se_down_forward.6} parent=11 // pred_region
        _
      $region28: #{se_down_forward.6} parent=11 // pred_fallthru
        _
    $region12: #{se_down_forward.6} parent=5 // pred_fallthru
      _
    %p202 = scmp.lt.s32.totalorder %s13, 2
    // Predicated region
    $region29: #{se_down_forward.6} parent=5 // pred_check
      %p203 = pneg %p202
    $region30: #{se_down_forward.6} parent=5 // pred_check_branch
      %205 = sbr.rel (%p203) target = $region32
    $region31: #{se_down_forward.6} parent=5 // pred_region
      // Predicated region
      $region33: #{se_down_forward.6} parent=31 // pred_check
        %p206 = pneg %p33
      $region34: #{se_down_forward.6} parent=31 // pred_check_branch
        %208 = sbr.rel (%p206) target = $region36
      $region35: #{se_down_forward.6} parent=31 // pred_region
        %p209 = scmp.lt.s32.totalorder %s13, 1
        %s210 = scalar_select %p209, %s13, 1
        %s211 = smul.addr %s210, 8
        %s212 = smul.addr %s211, 4
        %s213 = scalar_lea.vmem %s0, %s212
      $region36: #{se_down_forward.6} parent=31 // pred_fallthru
        _
    $region32: #{se_down_forward.6} parent=5 // pred_fallthru
      _
    %p214 = scmp.le.s32.totalorder 1, %s13
    %p215 = scmp.lt.s32.totalorder %s13, 3
    %p216 = pnand %p214, %p215
    %p217 = pneg %p216
    // Predicated region
    $region37: #{se_down_forward.6} parent=5 // pred_check
      _
    $region38: #{se_down_forward.6} parent=5 // pred_check_branch
      %219 = sbr.rel (%p216) target = $region40
    $region39: #{se_down_forward.6} parent=5 // pred_region
      %s220 = ssub.s32 %s13, 1
      %p221 = scmp.lt.s32.totalorder %s18, 1
      %s222 = scalar_select %p221, %s18, 1
      %s223 = smul.addr %s222, 8
      %s224 = smul.addr %s223, 4
      %s225 = scalar_lea.vmem %s0, %s224
      %p226 = pneg %p39
      %p227 = pneg %p36
      %p228 = pneg %p60
      %p229 = pneg %p57
      %p230 = pneg %p81
      %p231 = pneg %p78
      %p232 = pneg %p102
      %p233 = pneg %p99
      %p234 = pneg %p123
      %p235 = pneg %p120
      %p236 = pneg %p149
      %p237 = pneg %p146
      %p238 = scmp.lt.s32.totalorder %s18, 1
      %s239 = scalar_select %p238, %s18, 1
      %s240 = smul.addr %s239, 8
      %s241 = smul.addr %s240, 4
      %s242 = scalar_lea.vmem %s5, %s241
      %p243 = pneg %p175
      %p244 = pneg %p172
      %p245 = scmp.lt.s32.totalorder %s18, 1
      %s246 = scalar_select %p245, %s18, 1
      %s247 = smul.addr %s246, 2
      %s248 = scalar_lea.vmem %s6, %s247
      %p249 = scmp.lt.s32.totalorder %s18, 1
      %s250 = scalar_select %p249, %s18, 1
      %s251 = smul.addr %s250, 8
      %s252 = smul.addr %s251, 4
      %s253 = scalar_lea.vmem %s0, %s252
      %p254 = scmp.lt.s32.totalorder %s18, 1
      %s255 = scalar_select %p254, %s18, 1
      %s256 = smul.addr %s255, 8
      %s257 = smul.addr %s256, 4
      %s258 = scalar_lea.vmem %s5, %s257
      %p259 = scmp.lt.s32.totalorder %s18, 1
      %s260 = scalar_select %p259, %s18, 1
      %s261 = smul.addr %s260, 2
      %s262 = scalar_lea.vmem %s6, %s261
      %v263 = vld [vmem:[%s253] sm:$0xf]
      %v264 = vld [vmem:[%s253 + $0x4] sm:$0xf]
      %v265 = vld [vmem:[%s253 + $0x8] sm:$0xf]
      %v266 = vld [vmem:[%s253 + $0xc] sm:$0xf]
      %v267 = vld [vmem:[%s253 + $0x10] sm:$0xf]
      %v268 = vld [vmem:[%s253 + $0x14] sm:$0xf]
      %v269 = vld [vmem:[%s253 + $0x18] sm:$0xf]
      %v270 = vld [vmem:[%s253 + $0x1c] sm:$0xf]
      %v271 = vunpack.c.l.bf16 %v263
      %v272 = vunpack.c.l.bf16 %v264
      %v273 = vunpack.c.l.bf16 %v265
      %v274 = vunpack.c.l.bf16 %v266
      %v275 = vunpack.c.l.bf16 %v267
      %v276 = vunpack.c.l.bf16 %v268
      %v277 = vunpack.c.l.bf16 %v269
      %v278 = vunpack.c.l.bf16 %v270
      %v279 = vld [vmem:[%s1] sm:$0x1]
      %v280 = vld [vmem:[%s2] sm:$0x1]
      %v282 = vlaneseq
      %v283 = vshrl.u32 %v282, 7
      %v284 = vsub.s32 0, %v283
      %v285 = vrot.slane %v279, %v284
      %v287 = vmul.f32 %v271, %v285
      %v288 = vmul.f32 %v272, %v285
      %v289 = vmul.f32 %v273, %v285
      %v290 = vmul.f32 %v274, %v285
      %v291 = vmul.f32 %v275, %v285
      %v292 = vmul.f32 %v276, %v285
      %v293 = vmul.f32 %v277, %v285
      %v294 = vmul.f32 %v278, %v285
      %v296 = vlaneseq
      %v297 = vshrl.u32 %v296, 7
      %v298 = vsub.s32 0, %v297
      %v299 = vrot.slane %v280, %v298
      %v301 = vadd.f32 %v287, %v299
      %v302 = vadd.f32 %v288, %v299
      %v303 = vadd.f32 %v289, %v299
      %v304 = vadd.f32 %v290, %v299
      %v305 = vadd.f32 %v291, %v299
      %v306 = vadd.f32 %v292, %v299
      %v307 = vadd.f32 %v293, %v299
      %v308 = vadd.f32 %v294, %v299
      %v309 = vmax.f32 %v301, 0.0
      %v310 = vmax.f32 %v302, 0.0
      %v311 = vmax.f32 %v303, 0.0
      %v312 = vmax.f32 %v304, 0.0
      %v313 = vmax.f32 %v305, 0.0
      %v314 = vmax.f32 %v306, 0.0
      %v315 = vmax.f32 %v307, 0.0
      %v316 = vmax.f32 %v308, 0.0
      %317 = vst [vmem:[#allocation2] sm:$0xff] 0.0
      %318 = vst [vmem:[#allocation2 + $0x8] sm:$0xff] 0.0
      %319 = vst [vmem:[#allocation2 + $0x10] sm:$0xff] 0.0
      %320 = vst [vmem:[#allocation2 + $0x18] sm:$0xff] 0.0
      %321 = vst [vmem:[#allocation2 + $0x20] sm:$0xff] 0.0
      %322 = vst [vmem:[#allocation2 + $0x28] sm:$0xff] 0.0
      %323 = vst [vmem:[#allocation2 + $0x30] sm:$0xff] 0.0
      %324 = vst [vmem:[#allocation2 + $0x38] sm:$0xff] 0.0
      %325 = vst [vmem:[#allocation2 + $0x40] sm:$0xff] 0.0
      %s326 = scalar_lea.vmem [#allocation2], 264
      %327 = vst [vmem:[%s326] sm:$0xff] 0.0
      %328 = vst [vmem:[%s326 + $0x8] sm:$0xff] 0.0
      %329 = vst [vmem:[%s326 + $0x10] sm:$0xff] 0.0
      %330 = vst [vmem:[%s326 + $0x18] sm:$0xff] 0.0
      %331 = vst [vmem:[%s326 + $0x20] sm:$0xff] 0.0
      %332 = vst [vmem:[%s326 + $0x28] sm:$0xff] 0.0
      %333 = vst [vmem:[%s326 + $0x30] sm:$0xff] 0.0
      %334 = vst [vmem:[%s326 + $0x38] sm:$0xff] 0.0
      %335 = vst [vmem:[%s326 + $0x40] sm:$0xff] 0.0
      %s336 = scalar_lea.vmem [#allocation2], 72
      %337 = vst [vmem:[%s336] sm:$0xff] 0.0
      %338 = vst [vmem:[%s336 + $0x18] sm:$0xff] 0.0
      %339 = vst [vmem:[%s336 + $0x30] sm:$0xff] 0.0
      %340 = vst [vmem:[%s336 + $0x48] sm:$0xff] 0.0
      %341 = vst [vmem:[%s336 + $0x60] sm:$0xff] 0.0
      %342 = vst [vmem:[%s336 + $0x78] sm:$0xff] 0.0
      %343 = vst [vmem:[%s336 + $0x90] sm:$0xff] 0.0
      %344 = vst [vmem:[%s336 + $0xa8] sm:$0xff] 0.0
      %345 = vst [vmem:[%s336 + $0x10] sm:$0xff] 0.0
      %346 = vst [vmem:[%s336 + $0x28] sm:$0xff] 0.0
      %347 = vst [vmem:[%s336 + $0x40] sm:$0xff] 0.0
      %348 = vst [vmem:[%s336 + $0x58] sm:$0xff] 0.0
      %349 = vst [vmem:[%s336 + $0x70] sm:$0xff] 0.0
      %350 = vst [vmem:[%s336 + $0x88] sm:$0xff] 0.0
      %351 = vst [vmem:[%s336 + $0xa0] sm:$0xff] 0.0
      %352 = vst [vmem:[%s336 + $0xb8] sm:$0xff] 0.0
      %353 = vst [vmem:[%s336 + $0x8] sm:$0xff] %v309
      %354 = vst [vmem:[%s336 + $0x20] sm:$0xff] %v310
      %355 = vst [vmem:[%s336 + $0x38] sm:$0xff] %v311
      %356 = vst [vmem:[%s336 + $0x50] sm:$0xff] %v312
      %357 = vst [vmem:[%s336 + $0x68] sm:$0xff] %v313
      %358 = vst [vmem:[%s336 + $0x80] sm:$0xff] %v314
      %359 = vst [vmem:[%s336 + $0x98] sm:$0xff] %v315
      %360 = vst [vmem:[%s336 + $0xb0] sm:$0xff] %v316
      %v361 = vld [vmem:[#allocation2 + $0x5] sm:$0xff]
      %v362 = vld [vmem:[#allocation2 + $0x1d] sm:$0xff]
      %v363 = vld [vmem:[#allocation2 + $0x35] sm:$0xff]
      %v364 = vld [vmem:[#allocation2 + $0x4d] sm:$0xff]
      %v365 = vld [vmem:[#allocation2 + $0x65] sm:$0xff]
      %v366 = vld [vmem:[#allocation2 + $0x7d] sm:$0xff]
      %v367 = vld [vmem:[#allocation2 + $0x95] sm:$0xff]
      %v368 = vld [vmem:[#allocation2 + $0xad] sm:$0xff]
      %v369 = vld [vmem:[%s3] sm:$0xff]
      %v370 = vld [vmem:[%s3 + $0x8] sm:$0xff]
      %v371 = vld [vmem:[%s3 + $0x10] sm:$0xff]
      %v372 = vld [vmem:[%s3 + $0x18] sm:$0xff]
      %v373 = vld [vmem:[%s3 + $0x20] sm:$0xff]
      %v374 = vld [vmem:[%s3 + $0x28] sm:$0xff]
      %v375 = vld [vmem:[%s3 + $0x30] sm:$0xff]
      %v376 = vld [vmem:[%s3 + $0x38] sm:$0xff]
      %v377 = vld [vmem:[%s3 + $0x40] sm:$0xff]
      %v378 = vld [vmem:[%s3 + $0x48] sm:$0xff]
      %v379 = vld [vmem:[%s3 + $0x50] sm:$0xff]
      %v380 = vld [vmem:[%s3 + $0x58] sm:$0xff]
      %v381 = vld [vmem:[%s3 + $0x60] sm:$0xff]
      %v382 = vld [vmem:[%s3 + $0x68] sm:$0xff]
      %v383 = vld [vmem:[%s3 + $0x70] sm:$0xff]
      %v384 = vld [vmem:[%s3 + $0x78] sm:$0xff]
      %v385 = vld [vmem:[#allocation2 + $0x8] sm:$0xff]
      %v386 = vld [vmem:[#allocation2 + $0x20] sm:$0xff]
      %v387 = vld [vmem:[#allocation2 + $0x38] sm:$0xff]
      %v388 = vld [vmem:[#allocation2 + $0x50] sm:$0xff]
      %v389 = vld [vmem:[#allocation2 + $0x68] sm:$0xff]
      %v390 = vld [vmem:[#allocation2 + $0x80] sm:$0xff]
      %v391 = vld [vmem:[#allocation2 + $0x98] sm:$0xff]
      %v392 = vld [vmem:[#allocation2 + $0xb0] sm:$0xff]
      %s393 = scalar_lea.vmem %s3, 128
      %v394 = vld [vmem:[%s393] sm:$0xff]
      %v395 = vld [vmem:[%s393 + $0x8] sm:$0xff]
      %v396 = vld [vmem:[%s393 + $0x10] sm:$0xff]
      %v397 = vld [vmem:[%s393 + $0x18] sm:$0xff]
      %v398 = vld [vmem:[%s393 + $0x20] sm:$0xff]
      %v399 = vld [vmem:[%s393 + $0x28] sm:$0xff]
      %v400 = vld [vmem:[%s393 + $0x30] sm:$0xff]
      %v401 = vld [vmem:[%s393 + $0x38] sm:$0xff]
      %v402 = vld [vmem:[%s393 + $0x40] sm:$0xff]
      %v403 = vld [vmem:[%s393 + $0x48] sm:$0xff]
      %v404 = vld [vmem:[%s393 + $0x50] sm:$0xff]
      %v405 = vld [vmem:[%s393 + $0x58] sm:$0xff]
      %v406 = vld [vmem:[%s393 + $0x60] sm:$0xff]
      %v407 = vld [vmem:[%s393 + $0x68] sm:$0xff]
      %v408 = vld [vmem:[%s393 + $0x70] sm:$0xff]
      %v409 = vld [vmem:[%s393 + $0x78] sm:$0xff]
      %410 = vmatprep.subr.mxu0 0.0
      %411 = vmatpush1.msra.mxu0 %v394
      %412 = vmatprep.subr.mxu0 0.0
      %413 = vmatpush1.msra.mxu0 %v395
      %414 = vmatprep.subr.mxu0 0.0
      %415 = vmatpush1.msra.mxu0 %v396
      %416 = vmatprep.subr.mxu0 0.0
      %417 = vmatpush1.msra.mxu0 %v397
      %418 = vmatprep.subr.mxu0 0.0
      %419 = vmatpush1.msra.mxu0 %v398
      %420 = vmatprep.subr.mxu0 0.0
      %421 = vmatpush1.msra.mxu0 %v399
      %422 = vmatprep.subr.mxu0 0.0
      %423 = vmatpush1.msra.mxu0 %v400
      %424 = vmatprep.subr.mxu0 0.0
      %425 = vmatpush1.msra.mxu0 %v401
      %426 = vmatprep.subr.mxu0 0.0
      %427 = vmatpush1.msra.mxu0 %v402
      %428 = vmatprep.subr.mxu0 0.0
      %429 = vmatpush1.msra.mxu0 %v403
      %430 = vmatprep.subr.mxu0 0.0
      %431 = vmatpush1.msra.mxu0 %v404
      %432 = vmatprep.subr.mxu0 0.0
      %433 = vmatpush1.msra.mxu0 %v405
      %434 = vmatprep.subr.mxu0 0.0
      %435 = vmatpush1.msra.mxu0 %v406
      %436 = vmatprep.subr.mxu0 0.0
      %437 = vmatpush1.msra.mxu0 %v407
      %438 = vmatprep.subr.mxu0 0.0
      %439 = vmatpush1.msra.mxu0 %v408
      %440 = vmatprep.subr.mxu0 0.0
      %441 = vmatpush1.msra.mxu0 %v409
      %442 = vmatprep.subr.mxu0 0.0
      %443 = vmatpush1.msra.mxu0 0.0
      %444 = vmatprep.subr.mxu0 0.0
      %445 = vmatpush1.msra.mxu0 0.0
      %446 = vmatprep.subr.mxu0 0.0
      %447 = vmatpush1.msra.mxu0 0.0
      %448 = vmatprep.subr.mxu0 0.0
      %449 = vmatpush1.msra.mxu0 0.0
      %450 = vmatprep.subr.mxu0 0.0
      %451 = vmatpush1.msra.mxu0 0.0
      %452 = vmatprep.subr.mxu0 0.0
      %453 = vmatpush1.msra.mxu0 0.0
      %454 = vmatprep.subr.mxu0 0.0
      %455 = vmatpush1.msra.mxu0 0.0
      %456 = vmatprep.subr.mxu0 0.0
      %457 = vmatpush1.msra.mxu0 0.0
      %458 = vmatprep.subr.mxu0 0.0
      %459 = vmatpush1.msra.mxu0 0.0
      %460 = vmatprep.subr.mxu0 0.0
      %461 = vmatpush1.msra.mxu0 0.0
      %462 = vmatprep.subr.mxu0 0.0
      %463 = vmatpush1.msra.mxu0 0.0
      %464 = vmatprep.subr.mxu0 0.0
      %465 = vmatpush1.msra.mxu0 0.0
      %466 = vmatprep.subr.mxu0 0.0
      %467 = vmatpush1.msra.mxu0 0.0
      %468 = vmatprep.subr.mxu0 0.0
      %469 = vmatpush1.msra.mxu0 0.0
      %470 = vmatprep.subr.mxu0 0.0
      %471 = vmatpush1.msra.mxu0 0.0
      %472 = vmatprep.subr.mxu0 0.0
      %473 = vmatpush1.msra.mxu0 0.0
      %474 = vmatprep.mubr.f32.mxu0 0.0
      %475 = vmatmul.mubr.f32.gmra.mrb[0].mxu0 %v385
      %v476 = vpop.f32.mrb[0].mxu0
      %v477 = vadd.f32 0.0, %v476
      %v478 = vpop.f32.mrb[0].mxu0
      %479 = vmatprep.mubr.f32.mxu0 0.0
      %480 = vmatmul.mubr.f32.gmra.mrb[0].mxu0 %v386
      %v481 = vpop.f32.mrb[0].mxu0
      %v482 = vadd.f32 0.0, %v481
      %v483 = vpop.f32.mrb[0].mxu0
      %484 = vmatprep.mubr.f32.mxu0 0.0
      %485 = vmatmul.mubr.f32.gmra.mrb[0].mxu0 %v387
      %v486 = vpop.f32.mrb[0].mxu0
      %v487 = vadd.f32 0.0, %v486
      %v488 = vpop.f32.mrb[0].mxu0
      %489 = vmatprep.mubr.f32.mxu0 0.0
      %490 = vmatmul.mubr.f32.gmra.mrb[0].mxu0 %v388
      %v491 = vpop.f32.mrb[0].mxu0
      %v492 = vadd.f32 0.0, %v491
      %v493 = vpop.f32.mrb[0].mxu0
      %494 = vmatprep.mubr.f32.mxu0 0.0
      %495 = vmatmul.mubr.f32.gmra.mrb[0].mxu0 %v389
      %v496 = vpop.f32.mrb[0].mxu0
      %v497 = vadd.f32 0.0, %v496
      %v498 = vpop.f32.mrb[0].mxu0
      %499 = vmatprep.mubr.f32.mxu0 0.0
      %500 = vmatmul.mubr.f32.gmra.mrb[0].mxu0 %v390
      %v501 = vpop.f32.mrb[0].mxu0
      %v502 = vadd.f32 0.0, %v501
      %v503 = vpop.f32.mrb[0].mxu0
      %504 = vmatprep.mubr.f32.mxu0 0.0
      %505 = vmatmul.mubr.f32.gmra.mrb[0].mxu0 %v391
      %v506 = vpop.f32.mrb[0].mxu0
      %v507 = vadd.f32 0.0, %v506
      %v508 = vpop.f32.mrb[0].mxu0
      %509 = vmatprep.mubr.f32.mxu0 0.0
      %510 = vmatmul.mubr.f32.gmra.mrb[0].mxu0 %v392
      %v511 = vpop.f32.mrb[0].mxu0
      %v512 = vadd.f32 0.0, %v511
      %v513 = vpop.f32.mrb[0].mxu0
      %514 = vdwg.mxu0
      %515 = vmatprep.subr.mxu0 0.0
      %516 = vmatpush1.msra.mxu0 %v369
      %517 = vmatprep.subr.mxu0 0.0
      %518 = vmatpush1.msra.mxu0 %v370
      %519 = vmatprep.subr.mxu0 0.0
      %520 = vmatpush1.msra.mxu0 %v371
      %521 = vmatprep.subr.mxu0 0.0
      %522 = vmatpush1.msra.mxu0 %v372
      %523 = vmatprep.subr.mxu0 0.0
      %524 = vmatpush1.msra.mxu0 %v373
      %525 = vmatprep.subr.mxu0 0.0
      %526 = vmatpush1.msra.mxu0 %v374
      %527 = vmatprep.subr.mxu0 0.0
      %528 = vmatpush1.msra.mxu0 %v375
      %529 = vmatprep.subr.mxu0 0.0
      %530 = vmatpush1.msra.mxu0 %v376
      %531 = vmatprep.subr.mxu0 0.0
      %532 = vmatpush1.msra.mxu0 %v377
      %533 = vmatprep.subr.mxu0 0.0
      %534 = vmatpush1.msra.mxu0 %v378
      %535 = vmatprep.subr.mxu0 0.0
      %536 = vmatpush1.msra.mxu0 %v379
      %537 = vmatprep.subr.mxu0 0.0
      %538 = vmatpush1.msra.mxu0 %v380
      %539 = vmatprep.subr.mxu0 0.0
      %540 = vmatpush1.msra.mxu0 %v381
      %541 = vmatprep.subr.mxu0 0.0
      %542 = vmatpush1.msra.mxu0 %v382
      %543 = vmatprep.subr.mxu0 0.0
      %544 = vmatpush1.msra.mxu0 %v383
      %545 = vmatprep.subr.mxu0 0.0
      %546 = vmatpush1.msra.mxu0 %v384
      %547 = vmatprep.subr.mxu0 0.0
      %548 = vmatpush1.msra.mxu0 0.0
      %549 = vmatprep.subr.mxu0 0.0
      %550 = vmatpush1.msra.mxu0 0.0
      %551 = vmatprep.subr.mxu0 0.0
      %552 = vmatpush1.msra.mxu0 0.0
      %553 = vmatprep.subr.mxu0 0.0
      %554 = vmatpush1.msra.mxu0 0.0
      %555 = vmatprep.subr.mxu0 0.0
      %556 = vmatpush1.msra.mxu0 0.0
      %557 = vmatprep.subr.mxu0 0.0
      %558 = vmatpush1.msra.mxu0 0.0
      %559 = vmatprep.subr.mxu0 0.0
      %560 = vmatpush1.msra.mxu0 0.0
      %561 = vmatprep.subr.mxu0 0.0
      %562 = vmatpush1.msra.mxu0 0.0
      %563 = vmatprep.subr.mxu0 0.0
      %564 = vmatpush1.msra.mxu0 0.0
      %565 = vmatprep.subr.mxu0 0.0
      %566 = vmatpush1.msra.mxu0 0.0
      %567 = vmatprep.subr.mxu0 0.0
      %568 = vmatpush1.msra.mxu0 0.0
      %569 = vmatprep.subr.mxu0 0.0
      %570 = vmatpush1.msra.mxu0 0.0
      %571 = vmatprep.subr.mxu0 0.0
      %572 = vmatpush1.msra.mxu0 0.0
      %573 = vmatprep.subr.mxu0 0.0
      %574 = vmatpush1.msra.mxu0 0.0
      %575 = vmatprep.subr.mxu0 0.0
      %576 = vmatpush1.msra.mxu0 0.0
      %577 = vmatprep.subr.mxu0 0.0
      %578 = vmatpush1.msra.mxu0 0.0
      %579 = vmatprep.mubr.f32.mxu0 0.0
      %580 = vmatmul.mubr.f32.gmra.mrb[0].mxu0 %v361
      %v581 = vpop.f32.mrb[0].mxu0
      %v582 = vadd.f32 %v477, %v581
      %v583 = vpop.f32.mrb[0].mxu0
      %584 = vmatprep.mubr.f32.mxu0 0.0
      %585 = vmatmul.mubr.f32.gmra.mrb[0].mxu0 %v362
      %v586 = vpop.f32.mrb[0].mxu0
      %v587 = vadd.f32 %v482, %v586
      %v588 = vpop.f32.mrb[0].mxu0
      %589 = vmatprep.mubr.f32.mxu0 0.0
      %590 = vmatmul.mubr.f32.gmra.mrb[0].mxu0 %v363
      %v591 = vpop.f32.mrb[0].mxu0
      %v592 = vadd.f32 %v487, %v591
      %v593 = vpop.f32.mrb[0].mxu0
      %594 = vmatprep.mubr.f32.mxu0 0.0
      %595 = vmatmul.mubr.f32.gmra.mrb[0].mxu0 %v364
      %v596 = vpop.f32.mrb[0].mxu0
      %v597 = vadd.f32 %v492, %v596
      %v598 = vpop.f32.mrb[0].mxu0
      %599 = vmatprep.mubr.f32.mxu0 0.0
      %600 = vmatmul.mubr.f32.gmra.mrb[0].mxu0 %v365
      %v601 = vpop.f32.mrb[0].mxu0
      %v602 = vadd.f32 %v497, %v601
      %v603 = vpop.f32.mrb[0].mxu0
      %604 = vmatprep.mubr.f32.mxu0 0.0
      %605 = vmatmul.mubr.f32.gmra.mrb[0].mxu0 %v366
      %v606 = vpop.f32.mrb[0].mxu0
      %v607 = vadd.f32 %v502, %v606
      %v608 = vpop.f32.mrb[0].mxu0
      %609 = vmatprep.mubr.f32.mxu0 0.0
      %610 = vmatmul.mubr.f32.gmra.mrb[0].mxu0 %v367
      %v611 = vpop.f32.mrb[0].mxu0
      %v612 = vadd.f32 %v507, %v611
      %v613 = vpop.f32.mrb[0].mxu0
      %614 = vmatprep.mubr.f32.mxu0 0.0
      %615 = vmatmul.mubr.f32.gmra.mrb[0].mxu0 %v368
      %v616 = vpop.f32.mrb[0].mxu0
      %v617 = vadd.f32 %v512, %v616
      %v618 = vpop.f32.mrb[0].mxu0
      %619 = vdwg.mxu0
      %v620 = vld [vmem:[#allocation2 + $0xb] sm:$0xff]
      %v621 = vld [vmem:[#allocation2 + $0x23] sm:$0xff]
      %v622 = vld [vmem:[#allocation2 + $0x3b] sm:$0xff]
      %v623 = vld [vmem:[#allocation2 + $0x53] sm:$0xff]
      %v624 = vld [vmem:[#allocation2 + $0x6b] sm:$0xff]
      %v625 = vld [vmem:[#allocation2 + $0x83] sm:$0xff]
      %v626 = vld [vmem:[#allocation2 + $0x9b] sm:$0xff]
      %v627 = vld [vmem:[#allocation2 + $0xb3] sm:$0xff]
      %s628 = scalar_lea.vmem %s3, 256
      %v629 = vld [vmem:[%s628] sm:$0xff]
      %v630 = vld [vmem:[%s628 + $0x8] sm:$0xff]
      %v631 = vld [vmem:[%s628 + $0x10] sm:$0xff]
      %v632 = vld [vmem:[%s628 + $0x18] sm:$0xff]
      %v633 = vld [vmem:[%s628 + $0x20] sm:$0xff]
      %v634 = vld [vmem:[%s628 + $0x28] sm:$0xff]
      %v635 = vld [vmem:[%s628 + $0x30] sm:$0xff]
      %v636 = vld [vmem:[%s628 + $0x38] sm:$0xff]
      %v637 = vld [vmem:[%s628 + $0x40] sm:$0xff]
      %v638 = vld [vmem:[%s628 + $0x48] sm:$0xff]
      %v639 = vld [vmem:[%s628 + $0x50] sm:$0xff]
      %v640 = vld [vmem:[%s628 + $0x58] sm:$0xff]
      %v641 = vld [vmem:[%s628 + $0x60] sm:$0xff]
      %v642 = vld [vmem:[%s628 + $0x68] sm:$0xff]
      %v643 = vld [vmem:[%s628 + $0x70] sm:$0xff]
      %v644 = vld [vmem:[%s628 + $0x78] sm:$0xff]
      %645 = vmatprep.subr.mxu0 0.0
      %646 = vmatpush1.msra.mxu0 %v629
      %647 = vmatprep.subr.mxu0 0.0
      %648 = vmatpush1.msra.mxu0 %v630
      %649 = vmatprep.subr.mxu0 0.0
      %650 = vmatpush1.msra.mxu0 %v631
      %651 = vmatprep.subr.mxu0 0.0
      %652 = vmatpush1.msra.mxu0 %v632
      %653 = vmatprep.subr.mxu0 0.0
      %654 = vmatpush1.msra.mxu0 %v633
      %655 = vmatprep.subr.mxu0 0.0
      %656 = vmatpush1.msra.mxu0 %v634
      %657 = vmatprep.subr.mxu0 0.0
      %658 = vmatpush1.msra.mxu0 %v635
      %659 = vmatprep.subr.mxu0 0.0
      %660 = vmatpush1.msra.mxu0 %v636
      %661 = vmatprep.subr.mxu0 0.0
      %662 = vmatpush1.msra.mxu0 %v637
      %663 = vmatprep.subr.mxu0 0.0
      %664 = vmatpush1.msra.mxu0 %v638
      %665 = vmatprep.subr.mxu0 0.0
      %666 = vmatpush1.msra.mxu0 %v639
      %667 = vmatprep.subr.mxu0 0.0
      %668 = vmatpush1.msra.mxu0 %v640
      %669 = vmatprep.subr.mxu0 0.0
      %670 = vmatpush1.msra.mxu0 %v641
      %671 = vmatprep.subr.mxu0 0.0
      %672 = vmatpush1.msra.mxu0 %v642
      %673 = vmatprep.subr.mxu0 0.0
      %674 = vmatpush1.msra.mxu0 %v643
      %675 = vmatprep.subr.mxu0 0.0
      %676 = vmatpush1.msra.mxu0 %v644
      %677 = vmatprep.subr.mxu0 0.0
      %678 = vmatpush1.msra.mxu0 0.0
      %679 = vmatprep.subr.mxu0 0.0
      %680 = vmatpush1.msra.mxu0 0.0
      %681 = vmatprep.subr.mxu0 0.0
      %682 = vmatpush1.msra.mxu0 0.0
      %683 = vmatprep.subr.mxu0 0.0
      %684 = vmatpush1.msra.mxu0 0.0
      %685 = vmatprep.subr.mxu0 0.0
      %686 = vmatpush1.msra.mxu0 0.0
      %687 = vmatprep.subr.mxu0 0.0
      %688 = vmatpush1.msra.mxu0 0.0
      %689 = vmatprep.subr.mxu0 0.0
      %690 = vmatpush1.msra.mxu0 0.0
      %691 = vmatprep.subr.mxu0 0.0
      %692 = vmatpush1.msra.mxu0 0.0
      %693 = vmatprep.subr.mxu0 0.0
      %694 = vmatpush1.msra.mxu0 0.0
      %695 = vmatprep.subr.mxu0 0.0
      %696 = vmatpush1.msra.mxu0 0.0
      %697 = vmatprep.subr.mxu0 0.0
      %698 = vmatpush1.msra.mxu0 0.0
      %699 = vmatprep.subr.mxu0 0.0
      %700 = vmatpush1.msra.mxu0 0.0
      %701 = vmatprep.subr.mxu0 0.0
      %702 = vmatpush1.msra.mxu0 0.0
      %703 = vmatprep.subr.mxu0 0.0
      %704 = vmatpush1.msra.mxu0 0.0
      %705 = vmatprep.subr.mxu0 0.0
      %706 = vmatpush1.msra.mxu0 0.0
      %707 = vmatprep.subr.mxu0 0.0
      %708 = vmatpush1.msra.mxu0 0.0
      %709 = vmatprep.mubr.f32.mxu0 0.0
      %710 = vmatmul.mubr.f32.gmra.mrb[0].mxu0 %v620
      %v711 = vpop.f32.mrb[0].mxu0
      %v712 = vadd.f32 0.0, %v711
      %v713 = vpop.f32.mrb[0].mxu0
      %714 = vmatprep.mubr.f32.mxu0 0.0
      %715 = vmatmul.mubr.f32.gmra.mrb[0].mxu0 %v621
      %v716 = vpop.f32.mrb[0].mxu0
      %v717 = vadd.f32 0.0, %v716
      %v718 = vpop.f32.mrb[0].mxu0
      %719 = vmatprep.mubr.f32.mxu0 0.0
      %720 = vmatmul.mubr.f32.gmra.mrb[0].mxu0 %v622
      %v721 = vpop.f32.mrb[0].mxu0
      %v722 = vadd.f32 0.0, %v721
      %v723 = vpop.f32.mrb[0].mxu0
      %724 = vmatprep.mubr.f32.mxu0 0.0
      %725 = vmatmul.mubr.f32.gmra.mrb[0].mxu0 %v623
      %v726 = vpop.f32.mrb[0].mxu0
      %v727 = vadd.f32 0.0, %v726
      %v728 = vpop.f32.mrb[0].mxu0
      %729 = vmatprep.mubr.f32.mxu0 0.0
      %730 = vmatmul.mubr.f32.gmra.mrb[0].mxu0 %v624
      %v731 = vpop.f32.mrb[0].mxu0
      %v732 = vadd.f32 0.0, %v731
      %v733 = vpop.f32.mrb[0].mxu0
      %734 = vmatprep.mubr.f32.mxu0 0.0
      %735 = vmatmul.mubr.f32.gmra.mrb[0].mxu0 %v625
      %v736 = vpop.f32.mrb[0].mxu0
      %v737 = vadd.f32 0.0, %v736
      %v738 = vpop.f32.mrb[0].mxu0
      %739 = vmatprep.mubr.f32.mxu0 0.0
      %740 = vmatmul.mubr.f32.gmra.mrb[0].mxu0 %v626
      %v741 = vpop.f32.mrb[0].mxu0
      %v742 = vadd.f32 0.0, %v741
      %v743 = vpop.f32.mrb[0].mxu0
      %744 = vmatprep.mubr.f32.mxu0 0.0
      %745 = vmatmul.mubr.f32.gmra.mrb[0].mxu0 %v627
      %v746 = vpop.f32.mrb[0].mxu0
      %v747 = vadd.f32 0.0, %v746
      %v748 = vpop.f32.mrb[0].mxu0
      %749 = vdwg.mxu0
      %v750 = vadd.f32 %v582, %v712
      %v751 = vadd.f32 %v587, %v717
      %v752 = vadd.f32 %v592, %v722
      %v753 = vadd.f32 %v597, %v727
      %v754 = vadd.f32 %v602, %v732
      %v755 = vadd.f32 %v607, %v737
      %v756 = vadd.f32 %v612, %v742
      %v757 = vadd.f32 %v617, %v747
      %v758 = vld [vmem:[%s336 + $0x5] sm:$0xff]
      %v759 = vld [vmem:[%s336 + $0x1d] sm:$0xff]
      %v760 = vld [vmem:[%s336 + $0x35] sm:$0xff]
      %v761 = vld [vmem:[%s336 + $0x4d] sm:$0xff]
      %v762 = vld [vmem:[%s336 + $0x65] sm:$0xff]
      %v763 = vld [vmem:[%s336 + $0x7d] sm:$0xff]
      %v764 = vld [vmem:[%s336 + $0x95] sm:$0xff]
      %v765 = vld [vmem:[%s336 + $0xad] sm:$0xff]
      %s766 = scalar_lea.vmem %s3, 384
      %v767 = vld [vmem:[%s766] sm:$0xff]
      %v768 = vld [vmem:[%s766 + $0x8] sm:$0xff]
      %v769 = vld [vmem:[%s766 + $0x10] sm:$0xff]
      %v770 = vld [vmem:[%s766 + $0x18] sm:$0xff]
      %v771 = vld [vmem:[%s766 + $0x20] sm:$0xff]
      %v772 = vld [vmem:[%s766 + $0x28] sm:$0xff]
      %v773 = vld [vmem:[%s766 + $0x30] sm:$0xff]
      %v774 = vld [vmem:[%s766 + $0x38] sm:$0xff]
      %v775 = vld [vmem:[%s766 + $0x40] sm:$0xff]
      %v776 = vld [vmem:[%s766 + $0x48] sm:$0xff]
      %v777 = vld [vmem:[%s766 + $0x50] sm:$0xff]
      %v778 = vld [vmem:[%s766 + $0x58] sm:$0xff]
      %v779 = vld [vmem:[%s766 + $0x60] sm:$0xff]
      %v780 = vld [vmem:[%s766 + $0x68] sm:$0xff]
      %v781 = vld [vmem:[%s766 + $0x70] sm:$0xff]
      %v782 = vld [vmem:[%s766 + $0x78] sm:$0xff]
      %783 = vmatprep.subr.mxu0 0.0
      %784 = vmatpush1.msra.mxu0 %v767
      %785 = vmatprep.subr.mxu0 0.0
      %786 = vmatpush1.msra.mxu0 %v768
      %787 = vmatprep.subr.mxu0 0.0
      %788 = vmatpush1.msra.mxu0 %v769
      %789 = vmatprep.subr.mxu0 0.0
      %790 = vmatpush1.msra.mxu0 %v770
      %791 = vmatprep.subr.mxu0 0.0
      %792 = vmatpush1.msra.mxu0 %v771
      %793 = vmatprep.subr.mxu0 0.0
      %794 = vmatpush1.msra.mxu0 %v772
      %795 = vmatprep.subr.mxu0 0.0
      %796 = vmatpush1.msra.mxu0 %v773
      %797 = vmatprep.subr.mxu0 0.0
      %798 = vmatpush1.msra.mxu0 %v774
      %799 = vmatprep.subr.mxu0 0.0
      %800 = vmatpush1.msra.mxu0 %v775
      %801 = vmatprep.subr.mxu0 0.0
      %802 = vmatpush1.msra.mxu0 %v776
      %803 = vmatprep.subr.mxu0 0.0
      %804 = vmatpush1.msra.mxu0 %v777
      %805 = vmatprep.subr.mxu0 0.0
      %806 = vmatpush1.msra.mxu0 %v778
      %807 = vmatprep.subr.mxu0 0.0
      %808 = vmatpush1.msra.mxu0 %v779
      %809 = vmatprep.subr.mxu0 0.0
      %810 = vmatpush1.msra.mxu0 %v780
      %811 = vmatprep.subr.mxu0 0.0
      %812 = vmatpush1.msra.mxu0 %v781
      %813 = vmatprep.subr.mxu0 0.0
      %814 = vmatpush1.msra.mxu0 %v782
      %815 = vmatprep.subr.mxu0 0.0
      %816 = vmatpush1.msra.mxu0 0.0
      %817 = vmatprep.subr.mxu0 0.0
      %818 = vmatpush1.msra.mxu0 0.0
      %819 = vmatprep.subr.mxu0 0.0
      %820 = vmatpush1.msra.mxu0 0.0
      %821 = vmatprep.subr.mxu0 0.0
      %822 = vmatpush1.msra.mxu0 0.0
      %823 = vmatprep.subr.mxu0 0.0
      %824 = vmatpush1.msra.mxu0 0.0
      %825 = vmatprep.subr.mxu0 0.0
      %826 = vmatpush1.msra.mxu0 0.0
      %827 = vmatprep.subr.mxu0 0.0
      %828 = vmatpush1.msra.mxu0 0.0
      %829 = vmatprep.subr.mxu0 0.0
      %830 = vmatpush1.msra.mxu0 0.0
      %831 = vmatprep.subr.mxu0 0.0
      %832 = vmatpush1.msra.mxu0 0.0
      %833 = vmatprep.subr.mxu0 0.0
      %834 = vmatpush1.msra.mxu0 0.0
      %835 = vmatprep.subr.mxu0 0.0
      %836 = vmatpush1.msra.mxu0 0.0
      %837 = vmatprep.subr.mxu0 0.0
      %838 = vmatpush1.msra.mxu0 0.0
      %839 = vmatprep.subr.mxu0 0.0
      %840 = vmatpush1.msra.mxu0 0.0
      %841 = vmatprep.subr.mxu0 0.0
      %842 = vmatpush1.msra.mxu0 0.0
      %843 = vmatprep.subr.mxu0 0.0
      %844 = vmatpush1.msra.mxu0 0.0
      %845 = vmatprep.subr.mxu0 0.0
      %846 = vmatpush1.msra.mxu0 0.0
      %847 = vmatprep.mubr.f32.mxu0 0.0
      %848 = vmatmul.mubr.f32.gmra.mrb[0].mxu0 %v758
      %v849 = vpop.f32.mrb[0].mxu0
      %v850 = vadd.f32 0.0, %v849
      %v851 = vpop.f32.mrb[0].mxu0
      %852 = vmatprep.mubr.f32.mxu0 0.0
      %853 = vmatmul.mubr.f32.gmra.mrb[0].mxu0 %v759
      %v854 = vpop.f32.mrb[0].mxu0
      %v855 = vadd.f32 0.0, %v854
      %v856 = vpop.f32.mrb[0].mxu0
      %857 = vmatprep.mubr.f32.mxu0 0.0
      %858 = vmatmul.mubr.f32.gmra.mrb[0].mxu0 %v760
      %v859 = vpop.f32.mrb[0].mxu0
      %v860 = vadd.f32 0.0, %v859
      %v861 = vpop.f32.mrb[0].mxu0
      %862 = vmatprep.mubr.f32.mxu0 0.0
      %863 = vmatmul.mubr.f32.gmra.mrb[0].mxu0 %v761
      %v864 = vpop.f32.mrb[0].mxu0
      %v865 = vadd.f32 0.0, %v864
      %v866 = vpop.f32.mrb[0].mxu0
      %867 = vmatprep.mubr.f32.mxu0 0.0
      %868 = vmatmul.mubr.f32.gmra.mrb[0].mxu0 %v762
      %v869 = vpop.f32.mrb[0].mxu0
      %v870 = vadd.f32 0.0, %v869
      %v871 = vpop.f32.mrb[0].mxu0
      %872 = vmatprep.mubr.f32.mxu0 0.0
      %873 = vmatmul.mubr.f32.gmra.mrb[0].mxu0 %v763
      %v874 = vpop.f32.mrb[0].mxu0
      %v875 = vadd.f32 0.0, %v874
      %v876 = vpop.f32.mrb[0].mxu0
      %877 = vmatprep.mubr.f32.mxu0 0.0
      %878 = vmatmul.mubr.f32.gmra.mrb[0].mxu0 %v764
      %v879 = vpop.f32.mrb[0].mxu0
      %v880 = vadd.f32 0.0, %v879
      %v881 = vpop.f32.mrb[0].mxu0
      %882 = vmatprep.mubr.f32.mxu0 0.0
      %883 = vmatmul.mubr.f32.gmra.mrb[0].mxu0 %v765
      %v884 = vpop.f32.mrb[0].mxu0
      %v885 = vadd.f32 0.0, %v884
      %v886 = vpop.f32.mrb[0].mxu0
      %887 = vdwg.mxu0
      %v888 = vadd.f32 %v750, %v850
      %v889 = vadd.f32 %v751, %v855
      %v890 = vadd.f32 %v752, %v860
      %v891 = vadd.f32 %v753, %v865
      %v892 = vadd.f32 %v754, %v870
      %v893 = vadd.f32 %v755, %v875
      %v894 = vadd.f32 %v756, %v880
      %v895 = vadd.f32 %v757, %v885
      %v896 = vld [vmem:[%s336 + $0x8] sm:$0xff]
      %v897 = vld [vmem:[%s336 + $0x20] sm:$0xff]
      %v898 = vld [vmem:[%s336 + $0x38] sm:$0xff]
      %v899 = vld [vmem:[%s336 + $0x50] sm:$0xff]
      %v900 = vld [vmem:[%s336 + $0x68] sm:$0xff]
      %v901 = vld [vmem:[%s336 + $0x80] sm:$0xff]
      %v902 = vld [vmem:[%s336 + $0x98] sm:$0xff]
      %v903 = vld [vmem:[%s336 + $0xb0] sm:$0xff]
      %s904 = scalar_lea.vmem %s3, 512
      %v905 = vld [vmem:[%s904] sm:$0xff]
      %v906 = vld [vmem:[%s904 + $0x8] sm:$0xff]
      %v907 = vld [vmem:[%s904 + $0x10] sm:$0xff]
      %v908 = vld [vmem:[%s904 + $0x18] sm:$0xff]
      %v909 = vld [vmem:[%s904 + $0x20] sm:$0xff]
      %v910 = vld [vmem:[%s904 + $0x28] sm:$0xff]
      %v911 = vld [vmem:[%s904 + $0x30] sm:$0xff]
      %v912 = vld [vmem:[%s904 + $0x38] sm:$0xff]
      %v913 = vld [vmem:[%s904 + $0x40] sm:$0xff]
      %v914 = vld [vmem:[%s904 + $0x48] sm:$0xff]
      %v915 = vld [vmem:[%s904 + $0x50] sm:$0xff]
      %v916 = vld [vmem:[%s904 + $0x58] sm:$0xff]
      %v917 = vld [vmem:[%s904 + $0x60] sm:$0xff]
      %v918 = vld [vmem:[%s904 + $0x68] sm:$0xff]
      %v919 = vld [vmem:[%s904 + $0x70] sm:$0xff]
      %v920 = vld [vmem:[%s904 + $0x78] sm:$0xff]
      %921 = vmatprep.subr.mxu0 0.0
      %922 = vmatpush1.msra.mxu0 %v905
      %923 = vmatprep.subr.mxu0 0.0
      %924 = vmatpush1.msra.mxu0 %v906
      %925 = vmatprep.subr.mxu0 0.0
      %926 = vmatpush1.msra.mxu0 %v907
      %927 = vmatprep.subr.mxu0 0.0
      %928 = vmatpush1.msra.mxu0 %v908
      %929 = vmatprep.subr.mxu0 0.0
      %930 = vmatpush1.msra.mxu0 %v909
      %931 = vmatprep.subr.mxu0 0.0
      %932 = vmatpush1.msra.mxu0 %v910
      %933 = vmatprep.subr.mxu0 0.0
      %934 = vmatpush1.msra.mxu0 %v911
      %935 = vmatprep.subr.mxu0 0.0
      %936 = vmatpush1.msra.mxu0 %v912
      %937 = vmatprep.subr.mxu0 0.0
      %938 = vmatpush1.msra.mxu0 %v913
      %939 = vmatprep.subr.mxu0 0.0
      %940 = vmatpush1.msra.mxu0 %v914
      %941 = vmatprep.subr.mxu0 0.0
      %942 = vmatpush1.msra.mxu0 %v915
      %943 = vmatprep.subr.mxu0 0.0
      %944 = vmatpush1.msra.mxu0 %v916
      %945 = vmatprep.subr.mxu0 0.0
      %946 = vmatpush1.msra.mxu0 %v917
      %947 = vmatprep.subr.mxu0 0.0
      %948 = vmatpush1.msra.mxu0 %v918
      %949 = vmatprep.subr.mxu0 0.0
      %950 = vmatpush1.msra.mxu0 %v919
      %951 = vmatprep.subr.mxu0 0.0
      %952 = vmatpush1.msra.mxu0 %v920
      %953 = vmatprep.subr.mxu0 0.0
      %954 = vmatpush1.msra.mxu0 0.0
      %955 = vmatprep.subr.mxu0 0.0
      %956 = vmatpush1.msra.mxu0 0.0
      %957 = vmatprep.subr.mxu0 0.0
      %958 = vmatpush1.msra.mxu0 0.0
      %959 = vmatprep.subr.mxu0 0.0
      %960 = vmatpush1.msra.mxu0 0.0
      %961 = vmatprep.subr.mxu0 0.0
      %962 = vmatpush1.msra.mxu0 0.0
      %963 = vmatprep.subr.mxu0 0.0
      %964 = vmatpush1.msra.mxu0 0.0
      %965 = vmatprep.subr.mxu0 0.0
      %966 = vmatpush1.msra.mxu0 0.0
      %967 = vmatprep.subr.mxu0 0.0
      %968 = vmatpush1.msra.mxu0 0.0
      %969 = vmatprep.subr.mxu0 0.0
      %970 = vmatpush1.msra.mxu0 0.0
      %971 = vmatprep.subr.mxu0 0.0
      %972 = vmatpush1.msra.mxu0 0.0
      %973 = vmatprep.subr.mxu0 0.0
      %974 = vmatpush1.msra.mxu0 0.0
      %975 = vmatprep.subr.mxu0 0.0
      %976 = vmatpush1.msra.mxu0 0.0
      %977 = vmatprep.subr.mxu0 0.0
      %978 = vmatpush1.msra.mxu0 0.0
      %979 = vmatprep.subr.mxu0 0.0
      %980 = vmatpush1.msra.mxu0 0.0
      %981 = vmatprep.subr.mxu0 0.0
      %982 = vmatpush1.msra.mxu0 0.0
      %983 = vmatprep.subr.mxu0 0.0
      %984 = vmatpush1.msra.mxu0 0.0
      %985 = vmatprep.mubr.f32.mxu0 0.0
      %986 = vmatmul.mubr.f32.gmra.mrb[0].mxu0 %v896
      %v987 = vpop.f32.mrb[0].mxu0
      %v988 = vadd.f32 0.0, %v987
      %v989 = vpop.f32.mrb[0].mxu0
      %990 = vmatprep.mubr.f32.mxu0 0.0
      %991 = vmatmul.mubr.f32.gmra.mrb[0].mxu0 %v897
      %v992 = vpop.f32.mrb[0].mxu0
      %v993 = vadd.f32 0.0, %v992
      %v994 = vpop.f32.mrb[0].mxu0
      %995 = vmatprep.mubr.f32.mxu0 0.0
      %996 = vmatmul.mubr.f32.gmra.mrb[0].mxu0 %v898
      %v997 = vpop.f32.mrb[0].mxu0
      %v998 = vadd.f32 0.0, %v997
      %v999 = vpop.f32.mrb[0].mxu0
      %1000 = vmatprep.mubr.f32.mxu0 0.0
      %1001 = vmatmul.mubr.f32.gmra.mrb[0].mxu0 %v899
      %v1002 = vpop.f32.mrb[0].mxu0
      %v1003 = vadd.f32 0.0, %v1002
      %v1004 = vpop.f32.mrb[0].mxu0
      %1005 = vmatprep.mubr.f32.mxu0 0.0
      %1006 = vmatmul.mubr.f32.gmra.mrb[0].mxu0 %v900
      %v1007 = vpop.f32.mrb[0].mxu0
      %v1008 = vadd.f32 0.0, %v1007
      %v1009 = vpop.f32.mrb[0].mxu0
      %1010 = vmatprep.mubr.f32.mxu0 0.0
      %1011 = vmatmul.mubr.f32.gmra.mrb[0].mxu0 %v901
      %v1012 = vpop.f32.mrb[0].mxu0
      %v1013 = vadd.f32 0.0, %v1012
      %v1014 = vpop.f32.mrb[0].mxu0
      %1015 = vmatprep.mubr.f32.mxu0 0.0
      %1016 = vmatmul.mubr.f32.gmra.mrb[0].mxu0 %v902
      %v1017 = vpop.f32.mrb[0].mxu0
      %v1018 = vadd.f32 0.0, %v1017
      %v1019 = vpop.f32.mrb[0].mxu0
      %1020 = vmatprep.mubr.f32.mxu0 0.0
      %1021 = vmatmul.mubr.f32.gmra.mrb[0].mxu0 %v903
      %v1022 = vpop.f32.mrb[0].mxu0
      %v1023 = vadd.f32 0.0, %v1022
      %v1024 = vpop.f32.mrb[0].mxu0
      %1025 = vdwg.mxu0
      %v1026 = vadd.f32 %v888, %v988
      %v1027 = vadd.f32 %v889, %v993
      %v1028 = vadd.f32 %v890, %v998
      %v1029 = vadd.f32 %v891, %v1003
      %v1030 = vadd.f32 %v892, %v1008
      %v1031 = vadd.f32 %v893, %v1013
      %v1032 = vadd.f32 %v894, %v1018
      %v1033 = vadd.f32 %v895, %v1023
      %v1034 = vld [vmem:[%s336 + $0xb] sm:$0xff]
      %v1035 = vld [vmem:[%s336 + $0x23] sm:$0xff]
      %v1036 = vld [vmem:[%s336 + $0x3b] sm:$0xff]
      %v1037 = vld [vmem:[%s336 + $0x53] sm:$0xff]
      %v1038 = vld [vmem:[%s336 + $0x6b] sm:$0xff]
      %v1039 = vld [vmem:[%s336 + $0x83] sm:$0xff]
      %v1040 = vld [vmem:[%s336 + $0x9b] sm:$0xff]
      %v1041 = vld [vmem:[%s336 + $0xb3] sm:$0xff]
      %s1042 = scalar_lea.vmem %s3, 640
      %v1043 = vld [vmem:[%s1042] sm:$0xff]
      %v1044 = vld [vmem:[%s1042 + $0x8] sm:$0xff]
      %v1045 = vld [vmem:[%s1042 + $0x10] sm:$0xff]
      %v1046 = vld [vmem:[%s1042 + $0x18] sm:$0xff]
      %v1047 = vld [vmem:[%s1042 + $0x20] sm:$0xff]
      %v1048 = vld [vmem:[%s1042 + $0x28] sm:$0xff]
      %v1049 = vld [vmem:[%s1042 + $0x30] sm:$0xff]
      %v1050 = vld [vmem:[%s1042 + $0x38] sm:$0xff]
      %v1051 = vld [vmem:[%s1042 + $0x40] sm:$0xff]
      %v1052 = vld [vmem:[%s1042 + $0x48] sm:$0xff]
      %v1053 = vld [vmem:[%s1042 + $0x50] sm:$0xff]
      %v1054 = vld [vmem:[%s1042 + $0x58] sm:$0xff]
      %v1055 = vld [vmem:[%s1042 + $0x60] sm:$0xff]
      %v1056 = vld [vmem:[%s1042 + $0x68] sm:$0xff]
      %v1057 = vld [vmem:[%s1042 + $0x70] sm:$0xff]
      %v1058 = vld [vmem:[%s1042 + $0x78] sm:$0xff]
      %1059 = vmatprep.subr.mxu0 0.0
      %1060 = vmatpush1.msra.mxu0 %v1043
      %1061 = vmatprep.subr.mxu0 0.0
      %1062 = vmatpush1.msra.mxu0 %v1044
      %1063 = vmatprep.subr.mxu0 0.0
      %1064 = vmatpush1.msra.mxu0 %v1045
      %1065 = vmatprep.subr.mxu0 0.0
      %1066 = vmatpush1.msra.mxu0 %v1046
      %1067 = vmatprep.subr.mxu0 0.0
      %1068 = vmatpush1.msra.mxu0 %v1047
      %1069 = vmatprep.subr.mxu0 0.0
      %1070 = vmatpush1.msra.mxu0 %v1048
      %1071 = vmatprep.subr.mxu0 0.0
      %1072 = vmatpush1.msra.mxu0 %v1049
      %1073 = vmatprep.subr.mxu0 0.0
      %1074 = vmatpush1.msra.mxu0 %v1050
      %1075 = vmatprep.subr.mxu0 0.0
      %1076 = vmatpush1.msra.mxu0 %v1051
      %1077 = vmatprep.subr.mxu0 0.0
      %1078 = vmatpush1.msra.mxu0 %v1052
      %1079 = vmatprep.subr.mxu0 0.0
      %1080 = vmatpush1.msra.mxu0 %v1053
      %1081 = vmatprep.subr.mxu0 0.0
      %1082 = vmatpush1.msra.mxu0 %v1054
      %1083 = vmatprep.subr.mxu0 0.0
      %1084 = vmatpush1.msra.mxu0 %v1055
      %1085 = vmatprep.subr.mxu0 0.0
      %1086 = vmatpush1.msra.mxu0 %v1056
      %1087 = vmatprep.subr.mxu0 0.0
      %1088 = vmatpush1.msra.mxu0 %v1057
      %1089 = vmatprep.subr.mxu0 0.0
      %1090 = vmatpush1.msra.mxu0 %v1058
      %1091 = vmatprep.subr.mxu0 0.0
      %1092 = vmatpush1.msra.mxu0 0.0
      %1093 = vmatprep.subr.mxu0 0.0
      %1094 = vmatpush1.msra.mxu0 0.0
      %1095 = vmatprep.subr.mxu0 0.0
      %1096 = vmatpush1.msra.mxu0 0.0
      %1097 = vmatprep.subr.mxu0 0.0
      %1098 = vmatpush1.msra.mxu0 0.0
      %1099 = vmatprep.subr.mxu0 0.0
      %1100 = vmatpush1.msra.mxu0 0.0
      %1101 = vmatprep.subr.mxu0 0.0
      %1102 = vmatpush1.msra.mxu0 0.0
      %1103 = vmatprep.subr.mxu0 0.0
      %1104 = vmatpush1.msra.mxu0 0.0
      %1105 = vmatprep.subr.mxu0 0.0
      %1106 = vmatpush1.msra.mxu0 0.0
      %1107 = vmatprep.subr.mxu0 0.0
      %1108 = vmatpush1.msra.mxu0 0.0
      %1109 = vmatprep.subr.mxu0 0.0
      %1110 = vmatpush1.msra.mxu0 0.0
      %1111 = vmatprep.subr.mxu0 0.0
      %1112 = vmatpush1.msra.mxu0 0.0
      %1113 = vmatprep.subr.mxu0 0.0
      %1114 = vmatpush1.msra.mxu0 0.0
      %1115 = vmatprep.subr.mxu0 0.0
      %1116 = vmatpush1.msra.mxu0 0.0
      %1117 = vmatprep.subr.mxu0 0.0
      %1118 = vmatpush1.msra.mxu0 0.0
      %1119 = vmatprep.subr.mxu0 0.0
      %1120 = vmatpush1.msra.mxu0 0.0
      %1121 = vmatprep.subr.mxu0 0.0
      %1122 = vmatpush1.msra.mxu0 0.0
      %1123 = vmatprep.mubr.f32.mxu0 0.0
      %1124 = vmatmul.mubr.f32.gmra.mrb[0].mxu0 %v1034
      %v1125 = vpop.f32.mrb[0].mxu0
      %v1126 = vadd.f32 0.0, %v1125
      %v1127 = vpop.f32.mrb[0].mxu0
      %1128 = vmatprep.mubr.f32.mxu0 0.0
      %1129 = vmatmul.mubr.f32.gmra.mrb[0].mxu0 %v1035
      %v1130 = vpop.f32.mrb[0].mxu0
      %v1131 = vadd.f32 0.0, %v1130
      %v1132 = vpop.f32.mrb[0].mxu0
      %1133 = vmatprep.mubr.f32.mxu0 0.0
      %1134 = vmatmul.mubr.f32.gmra.mrb[0].mxu0 %v1036
      %v1135 = vpop.f32.mrb[0].mxu0
      %v1136 = vadd.f32 0.0, %v1135
      %v1137 = vpop.f32.mrb[0].mxu0
      %1138 = vmatprep.mubr.f32.mxu0 0.0
      %1139 = vmatmul.mubr.f32.gmra.mrb[0].mxu0 %v1037
      %v1140 = vpop.f32.mrb[0].mxu0
      %v1141 = vadd.f32 0.0, %v1140
      %v1142 = vpop.f32.mrb[0].mxu0
      %1143 = vmatprep.mubr.f32.mxu0 0.0
      %1144 = vmatmul.mubr.f32.gmra.mrb[0].mxu0 %v1038
      %v1145 = vpop.f32.mrb[0].mxu0
      %v1146 = vadd.f32 0.0, %v1145
      %v1147 = vpop.f32.mrb[0].mxu0
      %1148 = vmatprep.mubr.f32.mxu0 0.0
      %1149 = vmatmul.mubr.f32.gmra.mrb[0].mxu0 %v1039
      %v1150 = vpop.f32.mrb[0].mxu0
      %v1151 = vadd.f32 0.0, %v1150
      %v1152 = vpop.f32.mrb[0].mxu0
      %1153 = vmatprep.mubr.f32.mxu0 0.0
      %1154 = vmatmul.mubr.f32.gmra.mrb[0].mxu0 %v1040
      %v1155 = vpop.f32.mrb[0].mxu0
      %v1156 = vadd.f32 0.0, %v1155
      %v1157 = vpop.f32.mrb[0].mxu0
      %1158 = vmatprep.mubr.f32.mxu0 0.0
      %1159 = vmatmul.mubr.f32.gmra.mrb[0].mxu0 %v1041
      %v1160 = vpop.f32.mrb[0].mxu0
      %v1161 = vadd.f32 0.0, %v1160
      %v1162 = vpop.f32.mrb[0].mxu0
      %1163 = vdwg.mxu0
      %v1164 = vadd.f32 %v1026, %v1126
      %v1165 = vadd.f32 %v1027, %v1131
      %v1166 = vadd.f32 %v1028, %v1136
      %v1167 = vadd.f32 %v1029, %v1141
      %v1168 = vadd.f32 %v1030, %v1146
      %v1169 = vadd.f32 %v1031, %v1151
      %v1170 = vadd.f32 %v1032, %v1156
      %v1171 = vadd.f32 %v1033, %v1161
      %s1172 = scalar_lea.vmem [#allocation2], 144
      %v1173 = vld [vmem:[%s1172 + $0x5] sm:$0xff]
      %v1174 = vld [vmem:[%s1172 + $0x1d] sm:$0xff]
      %v1175 = vld [vmem:[%s1172 + $0x35] sm:$0xff]
      %v1176 = vld [vmem:[%s1172 + $0x4d] sm:$0xff]
      %v1177 = vld [vmem:[%s1172 + $0x65] sm:$0xff]
      %v1178 = vld [vmem:[%s1172 + $0x7d] sm:$0xff]
      %v1179 = vld [vmem:[%s1172 + $0x95] sm:$0xff]
      %v1180 = vld [vmem:[%s1172 + $0xad] sm:$0xff]
      %s1181 = scalar_lea.vmem %s3, 768
      %v1182 = vld [vmem:[%s1181] sm:$0xff]
      %v1183 = vld [vmem:[%s1181 + $0x8] sm:$0xff]
      %v1184 = vld [vmem:[%s1181 + $0x10] sm:$0xff]
      %v1185 = vld [vmem:[%s1181 + $0x18] sm:$0xff]
      %v1186 = vld [vmem:[%s1181 + $0x20] sm:$0xff]
      %v1187 = vld [vmem:[%s1181 + $0x28] sm:$0xff]
      %v1188 = vld [vmem:[%s1181 + $0x30] sm:$0xff]
      %v1189 = vld [vmem:[%s1181 + $0x38] sm:$0xff]
      %v1190 = vld [vmem:[%s1181 + $0x40] sm:$0xff]
      %v1191 = vld [vmem:[%s1181 + $0x48] sm:$0xff]
      %v1192 = vld [vmem:[%s1181 + $0x50] sm:$0xff]
      %v1193 = vld [vmem:[%s1181 + $0x58] sm:$0xff]
      %v1194 = vld [vmem:[%s1181 + $0x60] sm:$0xff]
      %v1195 = vld [vmem:[%s1181 + $0x68] sm:$0xff]
      %v1196 = vld [vmem:[%s1181 + $0x70] sm:$0xff]
      %v1197 = vld [vmem:[%s1181 + $0x78] sm:$0xff]
      %1198 = vmatprep.subr.mxu0 0.0
      %1199 = vmatpush1.msra.mxu0 %v1182
      %1200 = vmatprep.subr.mxu0 0.0
      %1201 = vmatpush1.msra.mxu0 %v1183
      %1202 = vmatprep.subr.mxu0 0.0
      %1203 = vmatpush1.msra.mxu0 %v1184
      %1204 = vmatprep.subr.mxu0 0.0
      %1205 = vmatpush1.msra.mxu0 %v1185
      %1206 = vmatprep.subr.mxu0 0.0
      %1207 = vmatpush1.msra.mxu0 %v1186
      %1208 = vmatprep.subr.mxu0 0.0
      %1209 = vmatpush1.msra.mxu0 %v1187
      %1210 = vmatprep.subr.mxu0 0.0
      %1211 = vmatpush1.msra.mxu0 %v1188
      %1212 = vmatprep.subr.mxu0 0.0
      %1213 = vmatpush1.msra.mxu0 %v1189
      %1214 = vmatprep.subr.mxu0 0.0
      %1215 = vmatpush1.msra.mxu0 %v1190
      %1216 = vmatprep.subr.mxu0 0.0
      %1217 = vmatpush1.msra.mxu0 %v1191
      %1218 = vmatprep.subr.mxu0 0.0
      %1219 = vmatpush1.msra.mxu0 %v1192
      %1220 = vmatprep.subr.mxu0 0.0
      %1221 = vmatpush1.msra.mxu0 %v1193
      %1222 = vmatprep.subr.mxu0 0.0
      %1223 = vmatpush1.msra.mxu0 %v1194
      %1224 = vmatprep.subr.mxu0 0.0
      %1225 = vmatpush1.msra.mxu0 %v1195
      %1226 = vmatprep.subr.mxu0 0.0
      %1227 = vmatpush1.msra.mxu0 %v1196
      %1228 = vmatprep.subr.mxu0 0.0
      %1229 = vmatpush1.msra.mxu0 %v1197
      %1230 = vmatprep.subr.mxu0 0.0
      %1231 = vmatpush1.msra.mxu0 0.0
      %1232 = vmatprep.subr.mxu0 0.0
      %1233 = vmatpush1.msra.mxu0 0.0
      %1234 = vmatprep.subr.mxu0 0.0
      %1235 = vmatpush1.msra.mxu0 0.0
      %1236 = vmatprep.subr.mxu0 0.0
      %1237 = vmatpush1.msra.mxu0 0.0
      %1238 = vmatprep.subr.mxu0 0.0
      %1239 = vmatpush1.msra.mxu0 0.0
      %1240 = vmatprep.subr.mxu0 0.0
      %1241 = vmatpush1.msra.mxu0 0.0
      %1242 = vmatprep.subr.mxu0 0.0
      %1243 = vmatpush1.msra.mxu0 0.0
      %1244 = vmatprep.subr.mxu0 0.0
      %1245 = vmatpush1.msra.mxu0 0.0
      %1246 = vmatprep.subr.mxu0 0.0
      %1247 = vmatpush1.msra.mxu0 0.0
      %1248 = vmatprep.subr.mxu0 0.0
      %1249 = vmatpush1.msra.mxu0 0.0
      %1250 = vmatprep.subr.mxu0 0.0
      %1251 = vmatpush1.msra.mxu0 0.0
      %1252 = vmatprep.subr.mxu0 0.0
      %1253 = vmatpush1.msra.mxu0 0.0
      %1254 = vmatprep.subr.mxu0 0.0
      %1255 = vmatpush1.msra.mxu0 0.0
      %1256 = vmatprep.subr.mxu0 0.0
      %1257 = vmatpush1.msra.mxu0 0.0
      %1258 = vmatprep.subr.mxu0 0.0
      %1259 = vmatpush1.msra.mxu0 0.0
      %1260 = vmatprep.subr.mxu0 0.0
      %1261 = vmatpush1.msra.mxu0 0.0
      %1262 = vmatprep.mubr.f32.mxu0 0.0
      %1263 = vmatmul.mubr.f32.gmra.mrb[0].mxu0 %v1173
      %v1264 = vpop.f32.mrb[0].mxu0
      %v1265 = vadd.f32 0.0, %v1264
      %v1266 = vpop.f32.mrb[0].mxu0
      %1267 = vmatprep.mubr.f32.mxu0 0.0
      %1268 = vmatmul.mubr.f32.gmra.mrb[0].mxu0 %v1174
      %v1269 = vpop.f32.mrb[0].mxu0
      %v1270 = vadd.f32 0.0, %v1269
      %v1271 = vpop.f32.mrb[0].mxu0
      %1272 = vmatprep.mubr.f32.mxu0 0.0
      %1273 = vmatmul.mubr.f32.gmra.mrb[0].mxu0 %v1175
      %v1274 = vpop.f32.mrb[0].mxu0
      %v1275 = vadd.f32 0.0, %v1274
      %v1276 = vpop.f32.mrb[0].mxu0
      %1277 = vmatprep.mubr.f32.mxu0 0.0
      %1278 = vmatmul.mubr.f32.gmra.mrb[0].mxu0 %v1176
      %v1279 = vpop.f32.mrb[0].mxu0
      %v1280 = vadd.f32 0.0, %v1279
      %v1281 = vpop.f32.mrb[0].mxu0
      %1282 = vmatprep.mubr.f32.mxu0 0.0
      %1283 = vmatmul.mubr.f32.gmra.mrb[0].mxu0 %v1177
      %v1284 = vpop.f32.mrb[0].mxu0
      %v1285 = vadd.f32 0.0, %v1284
      %v1286 = vpop.f32.mrb[0].mxu0
      %1287 = vmatprep.mubr.f32.mxu0 0.0
      %1288 = vmatmul.mubr.f32.gmra.mrb[0].mxu0 %v1178
      %v1289 = vpop.f32.mrb[0].mxu0
      %v1290 = vadd.f32 0.0, %v1289
      %v1291 = vpop.f32.mrb[0].mxu0
      %1292 = vmatprep.mubr.f32.mxu0 0.0
      %1293 = vmatmul.mubr.f32.gmra.mrb[0].mxu0 %v1179
      %v1294 = vpop.f32.mrb[0].mxu0
      %v1295 = vadd.f32 0.0, %v1294
      %v1296 = vpop.f32.mrb[0].mxu0
      %1297 = vmatprep.mubr.f32.mxu0 0.0
      %1298 = vmatmul.mubr.f32.gmra.mrb[0].mxu0 %v1180
      %v1299 = vpop.f32.mrb[0].mxu0
      %v1300 = vadd.f32 0.0, %v1299
      %v1301 = vpop.f32.mrb[0].mxu0
      %1302 = vdwg.mxu0
      %v1303 = vadd.f32 %v1164, %v1265
      %v1304 = vadd.f32 %v1165, %v1270
      %v1305 = vadd.f32 %v1166, %v1275
      %v1306 = vadd.f32 %v1167, %v1280
      %v1307 = vadd.f32 %v1168, %v1285
      %v1308 = vadd.f32 %v1169, %v1290
      %v1309 = vadd.f32 %v1170, %v1295
      %v1310 = vadd.f32 %v1171, %v1300
      %v1311 = vld [vmem:[%s1172 + $0x8] sm:$0xff]
      %v1312 = vld [vmem:[%s1172 + $0x20] sm:$0xff]
      %v1313 = vld [vmem:[%s1172 + $0x38] sm:$0xff]
      %v1314 = vld [vmem:[%s1172 + $0x50] sm:$0xff]
      %v1315 = vld [vmem:[%s1172 + $0x68] sm:$0xff]
      %v1316 = vld [vmem:[%s1172 + $0x80] sm:$0xff]
      %v1317 = vld [vmem:[%s1172 + $0x98] sm:$0xff]
      %v1318 = vld [vmem:[%s1172 + $0xb0] sm:$0xff]
      %s1319 = scalar_lea.vmem %s3, 896
      %v1320 = vld [vmem:[%s1319] sm:$0xff]
      %v1321 = vld [vmem:[%s1319 + $0x8] sm:$0xff]
      %v1322 = vld [vmem:[%s1319 + $0x10] sm:$0xff]
      %v1323 = vld [vmem:[%s1319 + $0x18] sm:$0xff]
      %v1324 = vld [vmem:[%s1319 + $0x20] sm:$0xff]
      %v1325 = vld [vmem:[%s1319 + $0x28] sm:$0xff]
      %v1326 = vld [vmem:[%s1319 + $0x30] sm:$0xff]
      %v1327 = vld [vmem:[%s1319 + $0x38] sm:$0xff]
      %v1328 = vld [vmem:[%s1319 + $0x40] sm:$0xff]
      %v1329 = vld [vmem:[%s1319 + $0x48] sm:$0xff]
      %v1330 = vld [vmem:[%s1319 + $0x50] sm:$0xff]
      %v1331 = vld [vmem:[%s1319 + $0x58] sm:$0xff]
      %v1332 = vld [vmem:[%s1319 + $0x60] sm:$0xff]
      %v1333 = vld [vmem:[%s1319 + $0x68] sm:$0xff]
      %v1334 = vld [vmem:[%s1319 + $0x70] sm:$0xff]
      %v1335 = vld [vmem:[%s1319 + $0x78] sm:$0xff]
      %1336 = vmatprep.subr.mxu0 0.0
      %1337 = vmatpush1.msra.mxu0 %v1320
      %1338 = vmatprep.subr.mxu0 0.0
      %1339 = vmatpush1.msra.mxu0 %v1321
      %1340 = vmatprep.subr.mxu0 0.0
      %1341 = vmatpush1.msra.mxu0 %v1322
      %1342 = vmatprep.subr.mxu0 0.0
      %1343 = vmatpush1.msra.mxu0 %v1323
      %1344 = vmatprep.subr.mxu0 0.0
      %1345 = vmatpush1.msra.mxu0 %v1324
      %1346 = vmatprep.subr.mxu0 0.0
      %1347 = vmatpush1.msra.mxu0 %v1325
      %1348 = vmatprep.subr.mxu0 0.0
      %1349 = vmatpush1.msra.mxu0 %v1326
      %1350 = vmatprep.subr.mxu0 0.0
      %1351 = vmatpush1.msra.mxu0 %v1327
      %1352 = vmatprep.subr.mxu0 0.0
      %1353 = vmatpush1.msra.mxu0 %v1328
      %1354 = vmatprep.subr.mxu0 0.0
      %1355 = vmatpush1.msra.mxu0 %v1329
      %1356 = vmatprep.subr.mxu0 0.0
      %1357 = vmatpush1.msra.mxu0 %v1330
      %1358 = vmatprep.subr.mxu0 0.0
      %1359 = vmatpush1.msra.mxu0 %v1331
      %1360 = vmatprep.subr.mxu0 0.0
      %1361 = vmatpush1.msra.mxu0 %v1332
      %1362 = vmatprep.subr.mxu0 0.0
      %1363 = vmatpush1.msra.mxu0 %v1333
      %1364 = vmatprep.subr.mxu0 0.0
      %1365 = vmatpush1.msra.mxu0 %v1334
      %1366 = vmatprep.subr.mxu0 0.0
      %1367 = vmatpush1.msra.mxu0 %v1335
      %1368 = vmatprep.subr.mxu0 0.0
      %1369 = vmatpush1.msra.mxu0 0.0
      %1370 = vmatprep.subr.mxu0 0.0
      %1371 = vmatpush1.msra.mxu0 0.0
      %1372 = vmatprep.subr.mxu0 0.0
      %1373 = vmatpush1.msra.mxu0 0.0
      %1374 = vmatprep.subr.mxu0 0.0
      %1375 = vmatpush1.msra.mxu0 0.0
      %1376 = vmatprep.subr.mxu0 0.0
      %1377 = vmatpush1.msra.mxu0 0.0
      %1378 = vmatprep.subr.mxu0 0.0
      %1379 = vmatpush1.msra.mxu0 0.0
      %1380 = vmatprep.subr.mxu0 0.0
      %1381 = vmatpush1.msra.mxu0 0.0
      %1382 = vmatprep.subr.mxu0 0.0
      %1383 = vmatpush1.msra.mxu0 0.0
      %1384 = vmatprep.subr.mxu0 0.0
      %1385 = vmatpush1.msra.mxu0 0.0
      %1386 = vmatprep.subr.mxu0 0.0
      %1387 = vmatpush1.msra.mxu0 0.0
      %1388 = vmatprep.subr.mxu0 0.0
      %1389 = vmatpush1.msra.mxu0 0.0
      %1390 = vmatprep.subr.mxu0 0.0
      %1391 = vmatpush1.msra.mxu0 0.0
      %1392 = vmatprep.subr.mxu0 0.0
      %1393 = vmatpush1.msra.mxu0 0.0
      %1394 = vmatprep.subr.mxu0 0.0
      %1395 = vmatpush1.msra.mxu0 0.0
      %1396 = vmatprep.subr.mxu0 0.0
      %1397 = vmatpush1.msra.mxu0 0.0
      %1398 = vmatprep.subr.mxu0 0.0
      %1399 = vmatpush1.msra.mxu0 0.0
      %1400 = vmatprep.mubr.f32.mxu0 0.0
      %1401 = vmatmul.mubr.f32.gmra.mrb[0].mxu0 %v1311
      %v1402 = vpop.f32.mrb[0].mxu0
      %v1403 = vadd.f32 0.0, %v1402
      %v1404 = vpop.f32.mrb[0].mxu0
      %1405 = vmatprep.mubr.f32.mxu0 0.0
      %1406 = vmatmul.mubr.f32.gmra.mrb[0].mxu0 %v1312
      %v1407 = vpop.f32.mrb[0].mxu0
      %v1408 = vadd.f32 0.0, %v1407
      %v1409 = vpop.f32.mrb[0].mxu0
      %1410 = vmatprep.mubr.f32.mxu0 0.0
      %1411 = vmatmul.mubr.f32.gmra.mrb[0].mxu0 %v1313
      %v1412 = vpop.f32.mrb[0].mxu0
      %v1413 = vadd.f32 0.0, %v1412
      %v1414 = vpop.f32.mrb[0].mxu0
      %1415 = vmatprep.mubr.f32.mxu0 0.0
      %1416 = vmatmul.mubr.f32.gmra.mrb[0].mxu0 %v1314
      %v1417 = vpop.f32.mrb[0].mxu0
      %v1418 = vadd.f32 0.0, %v1417
      %v1419 = vpop.f32.mrb[0].mxu0
      %1420 = vmatprep.mubr.f32.mxu0 0.0
      %1421 = vmatmul.mubr.f32.gmra.mrb[0].mxu0 %v1315
      %v1422 = vpop.f32.mrb[0].mxu0
      %v1423 = vadd.f32 0.0, %v1422
      %v1424 = vpop.f32.mrb[0].mxu0
      %1425 = vmatprep.mubr.f32.mxu0 0.0
      %1426 = vmatmul.mubr.f32.gmra.mrb[0].mxu0 %v1316
      %v1427 = vpop.f32.mrb[0].mxu0
      %v1428 = vadd.f32 0.0, %v1427
      %v1429 = vpop.f32.mrb[0].mxu0
      %1430 = vmatprep.mubr.f32.mxu0 0.0
      %1431 = vmatmul.mubr.f32.gmra.mrb[0].mxu0 %v1317
      %v1432 = vpop.f32.mrb[0].mxu0
      %v1433 = vadd.f32 0.0, %v1432
      %v1434 = vpop.f32.mrb[0].mxu0
      %1435 = vmatprep.mubr.f32.mxu0 0.0
      %1436 = vmatmul.mubr.f32.gmra.mrb[0].mxu0 %v1318
      %v1437 = vpop.f32.mrb[0].mxu0
      %v1438 = vadd.f32 0.0, %v1437
      %v1439 = vpop.f32.mrb[0].mxu0
      %1440 = vdwg.mxu0
      %v1441 = vadd.f32 %v1303, %v1403
      %v1442 = vadd.f32 %v1304, %v1408
      %v1443 = vadd.f32 %v1305, %v1413
      %v1444 = vadd.f32 %v1306, %v1418
      %v1445 = vadd.f32 %v1307, %v1423
      %v1446 = vadd.f32 %v1308, %v1428
      %v1447 = vadd.f32 %v1309, %v1433
      %v1448 = vadd.f32 %v1310, %v1438
      %v1449 = vld [vmem:[%s1172 + $0xb] sm:$0xff]
      %v1450 = vld [vmem:[%s1172 + $0x23] sm:$0xff]
      %v1451 = vld [vmem:[%s1172 + $0x3b] sm:$0xff]
      %v1452 = vld [vmem:[%s1172 + $0x53] sm:$0xff]
      %v1453 = vld [vmem:[%s1172 + $0x6b] sm:$0xff]
      %v1454 = vld [vmem:[%s1172 + $0x83] sm:$0xff]
      %v1455 = vld [vmem:[%s1172 + $0x9b] sm:$0xff]
      %v1456 = vld [vmem:[%s1172 + $0xb3] sm:$0xff]
      %s1457 = scalar_lea.vmem %s3, 1024
      %v1458 = vld [vmem:[%s1457] sm:$0xff]
      %v1459 = vld [vmem:[%s1457 + $0x8] sm:$0xff]
      %v1460 = vld [vmem:[%s1457 + $0x10] sm:$0xff]
      %v1461 = vld [vmem:[%s1457 + $0x18] sm:$0xff]
      %v1462 = vld [vmem:[%s1457 + $0x20] sm:$0xff]
      %v1463 = vld [vmem:[%s1457 + $0x28] sm:$0xff]
      %v1464 = vld [vmem:[%s1457 + $0x30] sm:$0xff]
      %v1465 = vld [vmem:[%s1457 + $0x38] sm:$0xff]
      %v1466 = vld [vmem:[%s1457 + $0x40] sm:$0xff]
      %v1467 = vld [vmem:[%s1457 + $0x48] sm:$0xff]
      %v1468 = vld [vmem:[%s1457 + $0x50] sm:$0xff]
      %v1469 = vld [vmem:[%s1457 + $0x58] sm:$0xff]
      %v1470 = vld [vmem:[%s1457 + $0x60] sm:$0xff]
      %v1471 = vld [vmem:[%s1457 + $0x68] sm:$0xff]
      %v1472 = vld [vmem:[%s1457 + $0x70] sm:$0xff]
      %v1473 = vld [vmem:[%s1457 + $0x78] sm:$0xff]
      %1474 = vmatprep.subr.mxu0 0.0
      %1475 = vmatpush1.msra.mxu0 %v1458
      %1476 = vmatprep.subr.mxu0 0.0
      %1477 = vmatpush1.msra.mxu0 %v1459
      %1478 = vmatprep.subr.mxu0 0.0
      %1479 = vmatpush1.msra.mxu0 %v1460
      %1480 = vmatprep.subr.mxu0 0.0
      %1481 = vmatpush1.msra.mxu0 %v1461
      %1482 = vmatprep.subr.mxu0 0.0
      %1483 = vmatpush1.msra.mxu0 %v1462
      %1484 = vmatprep.subr.mxu0 0.0
      %1485 = vmatpush1.msra.mxu0 %v1463
      %1486 = vmatprep.subr.mxu0 0.0
      %1487 = vmatpush1.msra.mxu0 %v1464
      %1488 = vmatprep.subr.mxu0 0.0
      %1489 = vmatpush1.msra.mxu0 %v1465
      %1490 = vmatprep.subr.mxu0 0.0
      %1491 = vmatpush1.msra.mxu0 %v1466
      %1492 = vmatprep.subr.mxu0 0.0
      %1493 = vmatpush1.msra.mxu0 %v1467
      %1494 = vmatprep.subr.mxu0 0.0
      %1495 = vmatpush1.msra.mxu0 %v1468
      %1496 = vmatprep.subr.mxu0 0.0
      %1497 = vmatpush1.msra.mxu0 %v1469
      %1498 = vmatprep.subr.mxu0 0.0
      %1499 = vmatpush1.msra.mxu0 %v1470
      %1500 = vmatprep.subr.mxu0 0.0
      %1501 = vmatpush1.msra.mxu0 %v1471
      %1502 = vmatprep.subr.mxu0 0.0
      %1503 = vmatpush1.msra.mxu0 %v1472
      %1504 = vmatprep.subr.mxu0 0.0
      %1505 = vmatpush1.msra.mxu0 %v1473
      %1506 = vmatprep.subr.mxu0 0.0
      %1507 = vmatpush1.msra.mxu0 0.0
      %1508 = vmatprep.subr.mxu0 0.0
      %1509 = vmatpush1.msra.mxu0 0.0
      %1510 = vmatprep.subr.mxu0 0.0
      %1511 = vmatpush1.msra.mxu0 0.0
      %1512 = vmatprep.subr.mxu0 0.0
      %1513 = vmatpush1.msra.mxu0 0.0
      %1514 = vmatprep.subr.mxu0 0.0
      %1515 = vmatpush1.msra.mxu0 0.0
      %1516 = vmatprep.subr.mxu0 0.0
      %1517 = vmatpush1.msra.mxu0 0.0
      %1518 = vmatprep.subr.mxu0 0.0
      %1519 = vmatpush1.msra.mxu0 0.0
      %1520 = vmatprep.subr.mxu0 0.0
      %1521 = vmatpush1.msra.mxu0 0.0
      %1522 = vmatprep.subr.mxu0 0.0
      %1523 = vmatpush1.msra.mxu0 0.0
      %1524 = vmatprep.subr.mxu0 0.0
      %1525 = vmatpush1.msra.mxu0 0.0
      %1526 = vmatprep.subr.mxu0 0.0
      %1527 = vmatpush1.msra.mxu0 0.0
      %1528 = vmatprep.subr.mxu0 0.0
      %1529 = vmatpush1.msra.mxu0 0.0
      %1530 = vmatprep.subr.mxu0 0.0
      %1531 = vmatpush1.msra.mxu0 0.0
      %1532 = vmatprep.subr.mxu0 0.0
      %1533 = vmatpush1.msra.mxu0 0.0
      %1534 = vmatprep.subr.mxu0 0.0
      %1535 = vmatpush1.msra.mxu0 0.0
      %1536 = vmatprep.subr.mxu0 0.0
      %1537 = vmatpush1.msra.mxu0 0.0
      %1538 = vmatprep.mubr.f32.mxu0 0.0
      %1539 = vmatmul.mubr.f32.gmra.mrb[0].mxu0 %v1449
      %v1540 = vpop.f32.mrb[0].mxu0
      %v1541 = vadd.f32 0.0, %v1540
      %v1542 = vpop.f32.mrb[0].mxu0
      %1543 = vmatprep.mubr.f32.mxu0 0.0
      %1544 = vmatmul.mubr.f32.gmra.mrb[0].mxu0 %v1450
      %v1545 = vpop.f32.mrb[0].mxu0
      %v1546 = vadd.f32 0.0, %v1545
      %v1547 = vpop.f32.mrb[0].mxu0
      %1548 = vmatprep.mubr.f32.mxu0 0.0
      %1549 = vmatmul.mubr.f32.gmra.mrb[0].mxu0 %v1451
      %v1550 = vpop.f32.mrb[0].mxu0
      %v1551 = vadd.f32 0.0, %v1550
      %v1552 = vpop.f32.mrb[0].mxu0
      %1553 = vmatprep.mubr.f32.mxu0 0.0
      %1554 = vmatmul.mubr.f32.gmra.mrb[0].mxu0 %v1452
      %v1555 = vpop.f32.mrb[0].mxu0
      %v1556 = vadd.f32 0.0, %v1555
      %v1557 = vpop.f32.mrb[0].mxu0
      %1558 = vmatprep.mubr.f32.mxu0 0.0
      %1559 = vmatmul.mubr.f32.gmra.mrb[0].mxu0 %v1453
      %v1560 = vpop.f32.mrb[0].mxu0
      %v1561 = vadd.f32 0.0, %v1560
      %v1562 = vpop.f32.mrb[0].mxu0
      %1563 = vmatprep.mubr.f32.mxu0 0.0
      %1564 = vmatmul.mubr.f32.gmra.mrb[0].mxu0 %v1454
      %v1565 = vpop.f32.mrb[0].mxu0
      %v1566 = vadd.f32 0.0, %v1565
      %v1567 = vpop.f32.mrb[0].mxu0
      %1568 = vmatprep.mubr.f32.mxu0 0.0
      %1569 = vmatmul.mubr.f32.gmra.mrb[0].mxu0 %v1455
      %v1570 = vpop.f32.mrb[0].mxu0
      %v1571 = vadd.f32 0.0, %v1570
      %v1572 = vpop.f32.mrb[0].mxu0
      %1573 = vmatprep.mubr.f32.mxu0 0.0
      %1574 = vmatmul.mubr.f32.gmra.mrb[0].mxu0 %v1456
      %v1575 = vpop.f32.mrb[0].mxu0
      %v1576 = vadd.f32 0.0, %v1575
      %v1577 = vpop.f32.mrb[0].mxu0
      %1578 = vdwg.mxu0
      %v1579 = vadd.f32 %v1441, %v1541
      %v1580 = vadd.f32 %v1442, %v1546
      %v1581 = vadd.f32 %v1443, %v1551
      %v1582 = vadd.f32 %v1444, %v1556
      %v1583 = vadd.f32 %v1445, %v1561
      %v1584 = vadd.f32 %v1446, %v1566
      %v1585 = vadd.f32 %v1447, %v1571
      %v1586 = vadd.f32 %v1448, %v1576
      %v1587 = vld [vmem:[%s4] sm:$0x1]
      %v1589 = vlaneseq
      %v1590 = vshrl.u32 %v1589, 7
      %v1591 = vsub.s32 0, %v1590
      %v1592 = vrot.slane %v1587, %v1591
      %v1594 = vadd.f32 %v1579, %v1592
      %v1595 = vadd.f32 %v1580, %v1592
      %v1596 = vadd.f32 %v1581, %v1592
      %v1597 = vadd.f32 %v1582, %v1592
      %v1598 = vadd.f32 %v1583, %v1592
      %v1599 = vadd.f32 %v1584, %v1592
      %v1600 = vadd.f32 %v1585, %v1592
      %v1601 = vadd.f32 %v1586, %v1592
      %v1602 = vadd.f32 %v1594, %v1595
      %v1603 = vadd.f32 %v1602, %v1596
      %v1604 = vadd.f32 %v1603, %v1597
      %v1605 = vadd.f32 %v1604, %v1598
      %v1606 = vadd.f32 %v1605, %v1599
      %v1607 = vadd.f32 %v1606, %v1600
      %v1608 = vadd.f32 %v1607, %v1601
      %v1609 = vrot.slane %v1608, 4
      %v1610 = vadd.f32 %v1608, %v1609
      %v1611 = vrot.slane %v1610, 2
      %v1612 = vadd.f32 %v1610, %v1611
      %v1613 = vrot.slane %v1612, 1
      %v1614 = vadd.f32 %v1612, %v1613
      %v1615 = vmul.f32 %v1594, %v1594
      %v1616 = vmul.f32 %v1595, %v1595
      %v1617 = vmul.f32 %v1596, %v1596
      %v1618 = vmul.f32 %v1597, %v1597
      %v1619 = vmul.f32 %v1598, %v1598
      %v1620 = vmul.f32 %v1599, %v1599
      %v1621 = vmul.f32 %v1600, %v1600
      %v1622 = vmul.f32 %v1601, %v1601
      %v1623 = vadd.f32 %v1615, %v1616
      %v1624 = vadd.f32 %v1623, %v1617
      %v1625 = vadd.f32 %v1624, %v1618
      %v1626 = vadd.f32 %v1625, %v1619
      %v1627 = vadd.f32 %v1626, %v1620
      %v1628 = vadd.f32 %v1627, %v1621
      %v1629 = vadd.f32 %v1628, %v1622
      %v1630 = vrot.slane %v1629, 4
      %v1631 = vadd.f32 %v1629, %v1630
      %v1632 = vrot.slane %v1631, 2
      %v1633 = vadd.f32 %v1631, %v1632
      %v1634 = vrot.slane %v1633, 1
      %v1635 = vadd.f32 %v1633, %v1634
      %v1638 = vcombine.low %v1614, %v1635
      %v1640 = vunpack.c.l.s4 1966171168
      %v1641 = vunpack.c.0.s8 %v1640
      %v1642 = vlaneseq
      %v1643 = vshrl.u32 %v1642, 7
      %v1644 = vsub.s32 %v1641, %v1643
      %v1645 = vrot.slane %v1638, %v1644
      %v1647 = vunpack.c.l.s4 1966171168
      %v1648 = vunpack.c.0.s8 %v1647
      %v1649 = vlaneseq
      %v1650 = vshrl.u32 %v1649, 7
      %v1651 = vsub.s32 %v1648, %v1650
      %v1652 = vrot.slane %v1645, %v1651
      %v1654 = vlaneseq
      %vm1655 = vcmp.ge.s32.totalorder %v1654, 0
      %vm1656 = vcmp.lt.s32.totalorder %v1654, 256
      %vm1657 = vmand %vm1655, %vm1656
      %1658 = vst.msk [vmem:[%s262] sm:$0x3] %vm1657, %v1652
      %v1659 = vpack.c.bf16 %v1594, %v1594
      %v1660 = vpack.c.bf16 %v1595, %v1595
      %v1661 = vpack.c.bf16 %v1596, %v1596
      %v1662 = vpack.c.bf16 %v1597, %v1597
      %v1663 = vpack.c.bf16 %v1598, %v1598
      %v1664 = vpack.c.bf16 %v1599, %v1599
      %v1665 = vpack.c.bf16 %v1600, %v1600
      %v1666 = vpack.c.bf16 %v1601, %v1601
      %1667 = vst [vmem:[%s258] sm:$0xf] %v1659
      %1668 = vst [vmem:[%s258 + $0x4] sm:$0xf] %v1660
      %1669 = vst [vmem:[%s258 + $0x8] sm:$0xf] %v1661
      %1670 = vst [vmem:[%s258 + $0xc] sm:$0xf] %v1662
      %1671 = vst [vmem:[%s258 + $0x10] sm:$0xf] %v1663
      %1672 = vst [vmem:[%s258 + $0x14] sm:$0xf] %v1664
      %1673 = vst [vmem:[%s258 + $0x18] sm:$0xf] %v1665
      %1674 = vst [vmem:[%s258 + $0x1c] sm:$0xf] %v1666
      %p1675 = scmp.lt.s32.totalorder %s18, 1
      %s1676 = scalar_select %p1675, %s18, 1
      %s1677 = smul.addr %s1676, 8
      %s1678 = smul.addr %s1677, 4
      %s1679 = scalar_lea.vmem %s5, %s1678
      %p1680 = scmp.lt.s32.totalorder %s18, 1
      %s1681 = scalar_select %p1680, %s18, 1
      %s1682 = smul.addr %s1681, 2
      %s1683 = scalar_lea.vmem %s6, %s1682
      // Predicated region
      $region41: #{se_down_forward.6} parent=39 // pred_check
        %p1684 = pneg %p146
      $region42: #{se_down_forward.6} parent=39 // pred_check_branch
        %1686 = sbr.rel (%p1684) target = $region44
      $region43: #{se_down_forward.6} parent=39 // pred_region
        _
      $region44: #{se_down_forward.6} parent=39 // pred_fallthru
        _
      // Predicated region
      $region45: #{se_down_forward.6} parent=39 // pred_check
        %p1687 = pneg %p172
      $region46: #{se_down_forward.6} parent=39 // pred_check_branch
        %1689 = sbr.rel (%p1687) target = $region48
      $region47: #{se_down_forward.6} parent=39 // pred_region
        _
      $region48: #{se_down_forward.6} parent=39 // pred_fallthru
        _
    $region40: #{se_down_forward.6} parent=5 // pred_fallthru
      _
    %p1690 = scmp.le.s32.totalorder 2, %s13
    // Predicated region
    $region49: #{se_down_forward.6} parent=5 // pred_check
      %p1691 = pneg %p1690
    $region50: #{se_down_forward.6} parent=5 // pred_check_branch
      %1693 = sbr.rel (%p1691) target = $region52
    $region51: #{se_down_forward.6} parent=5 // pred_region
      %s1694 = ssub.s32 %s13, 2
      // Predicated region
      $region53: #{se_down_forward.6} parent=51 // pred_check
        %p1695 = pneg %p152
      $region54: #{se_down_forward.6} parent=51 // pred_check_branch
        %1697 = sbr.rel (%p1695) target = $region56
      $region55: #{se_down_forward.6} parent=51 // pred_region
        %p1698 = scmp.lt.s32.totalorder %s19, 1
        %s1699 = scalar_select %p1698, %s19, 1
        %s1700 = smul.addr %s1699, 8
        %s1701 = smul.addr %s1700, 4
        %s1702 = scalar_lea.vmem %s5, %s1701
      $region56: #{se_down_forward.6} parent=51 // pred_fallthru
        _
      // Predicated region
      $region57: #{se_down_forward.6} parent=51 // pred_check
        %p1703 = pneg %p178
      $region58: #{se_down_forward.6} parent=51 // pred_check_branch
        %1705 = sbr.rel (%p1703) target = $region60
      $region59: #{se_down_forward.6} parent=51 // pred_region
        %p1706 = scmp.lt.s32.totalorder %s19, 1
        %s1707 = scalar_select %p1706, %s19, 1
        %s1708 = smul.addr %s1707, 2
        %s1709 = scalar_lea.vmem %s6, %s1708
      $region60: #{se_down_forward.6} parent=51 // pred_fallthru
        _
    $region52: #{se_down_forward.6} parent=5 // pred_fallthru
      _
  $region6: #{se_down_forward.6} parent=0 // loop_footer
    %s17 = sadd.s32 1, %s13
  $region7: #{se_down_forward.6} parent=0 // loop_footer_branch
    %12 = sbr.rel target = $region3
  $region8: #{se_down_forward.6} parent=0 // loop_exit
    _

</llo_original>
